<compile_context>
chip_gen: v7x
topology: tpu7x:2x2x1
jax: 0.10.0
libtpu: 0.0.40
codegen_flags: <defaults>
</compile_context>

<pallas_src>
import functools

import numpy as np
import jax
import jax.numpy as jnp
from jax import lax
from jax.experimental import pallas as pl
from jax.experimental.pallas import tpu as pltpu


# ----------------------------------------------------------------------------
# helpers
# ----------------------------------------------------------------------------

def _full_map(ndim):
    return lambda i, _n=ndim: (0,) * _n


def _bn_eval_scale_shift(c, eps=1e-5):
    gamma = jnp.ones((c,), jnp.float32)
    beta = jnp.zeros((c,), jnp.float32)
    rmean = jnp.zeros((c,), jnp.float32)
    rvar = jnp.ones((c,), jnp.float32)
    scale = gamma / jnp.sqrt(rvar + eps)
    shift = beta - rmean * scale
    return scale, shift


# ----------------------------------------------------------------------------
# the fused Pallas kernel (entire forward pass, grid=(1,))
# ----------------------------------------------------------------------------

def _trans_graph_kernel(
        xcat_ref, edge_oh_ref, src_ref, dst_ref, g3_ref, neg_ref, pool_ref, invc_ref,
        w_in_ref, b_in_ref, emb_ref,
        wkx_ref, wqvx_ref, wskip_ref, cb_ref,
        wek_ref, bek_ref, weqv_ref, beqv_ref, bn1s_ref, bn1b_ref,
        wqkv_ref, bqkv_ref, wo_ref, bo_ref, bn2s_ref, bn2b_ref,
        wm1_ref, bm1_ref, wm2_ref, bm2_ref, bn3s_ref, bn3b_ref,
        out_ref, *, num_layers, heads, channels):
    f32, bf16 = jnp.float32, jnp.bfloat16
    C = channels
    H = heads
    Dh = C // H
    B, S, N = g3_ref.shape

    # ---- input embeddings: fused [x | pe_norm(pe)] @ W_in  (BN folded into W_in) ----
    h = jnp.dot(xcat_ref[...].astype(bf16), w_in_ref[...],
                preferred_element_type=f32) + b_in_ref[...]                   # [N, C]
    # edge Embedding(64, C) as exact one-hot (bf16) matmul
    e = jnp.dot(edge_oh_ref[...], emb_ref[...], preferred_element_type=f32)   # [E, C]
    e_bf = e.astype(bf16)

    for l in range(num_layers):
        x = h                                                                 # layer input, f32
        x_bf = x.astype(bf16)

        # ---------- ResGatedGraphConv (act=ReLU, edge_dim=C) + residual + norm1 ----------
        px_k = jnp.dot(x_bf, wkx_ref[l], preferred_element_type=f32)          # [N, C]   (K slab)
        px_qv = jnp.dot(x_bf, wqvx_ref[l], preferred_element_type=f32)        # [N, 2C]  (Q|V slab)
        skip = jnp.dot(x_bf, wskip_ref[l], preferred_element_type=f32)        # [N, C]
        pe_k = jnp.dot(e_bf, wek_ref[l], preferred_element_type=f32) + bek_ref[l]     # [E, C]
        pe_qv = jnp.dot(e_bf, weqv_ref[l], preferred_element_type=f32) + beqv_ref[l]  # [E, 2C]
        # narrowed gathers: dst only needs K, src only needs Q|V
        gdst = jnp.dot(dst_ref[...], px_k.astype(bf16), preferred_element_type=f32)   # [E, C]
        gsrc = jnp.dot(src_ref[...], px_qv.astype(bf16), preferred_element_type=f32)  # [E, 2C]
        k = gdst + pe_k
        qv = gsrc + pe_qv
        msg = jnp.maximum(k + qv[:, 0:C], 0.0) * qv[:, C:2 * C]               # relu gate * V
        # scatter-add to destination nodes: dst_oh^T @ msg (transposed-lhs, bf16 operands)
        agg = lax.dot_general(dst_ref[...], msg.astype(bf16),
                              (((0,), (0,)), ((), ())),
                              preferred_element_type=f32)                     # [N, C]
        conv = agg + skip + cb_ref[l]
        h1 = (conv + x) * bn1s_ref[l] + bn1b_ref[l]                           # norm1(conv + x)

        # ---------- dense-batch multi-head self-attention (heads batched) ----------
        wqkv = wqkv_ref[l]                                                    # [H, C, 3Dh] bf16
        bqkv = bqkv_ref[l]                                                    # [H, 1, 3Dh] f32
        wo = wo_ref[l]                                                        # [H, Dh, C] bf16
        attn_nodes = jnp.zeros((N, C), f32)
        for b in range(B):
            g_b = g3_ref[b]                                                   # [S, N] bf16 (exact)
            dense = jnp.dot(g_b, x_bf, preferred_element_type=f32)            # to_dense_batch [S, C]
            d3 = jnp.broadcast_to(dense.astype(bf16)[None], (H, S, C))
            qkv = lax.dot_general(d3, wqkv, (((2,), (1,)), ((0,), (0,))),
                                  preferred_element_type=f32) + bqkv          # [H, S, 3Dh]
            q = qkv[:, :, 0:Dh].astype(bf16)                                  # 1/sqrt(Dh) folded in
            kk = qkv[:, :, Dh:2 * Dh].astype(bf16)
            v = qkv[:, :, 2 * Dh:3 * Dh].astype(bf16)
            s = lax.dot_general(q, kk, (((2,), (2,)), ((0,), (0,))),
                                preferred_element_type=f32)                   # [H, S, S]
            s = s + neg_ref[b][None]                                          # key_padding_mask
            mx = jnp.max(s, axis=-1, keepdims=True)
            p = jnp.exp(s - mx)
            denom = jnp.sum(p, axis=-1, keepdims=True)
            attnw = (p * pl.reciprocal(denom, approx=True)).astype(bf16)      # EUP reciprocal
            ctx = lax.dot_general(attnw, v, (((2,), (1,)), ((0,), (0,))),
                                  preferred_element_type=f32)                 # [H, S, Dh]
            oh = lax.dot_general(ctx.astype(bf16), wo, (((2,), (1,)), ((0,), (0,))),
                                 preferred_element_type=f32)                  # [H, S, C]
            att_b = jnp.sum(oh, axis=0) + bo_ref[l]                           # merge heads + out-proj
            # gather dense rows back to nodes (h[mask]) and accumulate over graphs
            attn_nodes = attn_nodes + lax.dot_general(
                g_b, att_b.astype(bf16), (((0,), (0,)), ((), ())),
                preferred_element_type=f32)                                   # [N, C]

        h2 = (attn_nodes + x) * bn2s_ref[l] + bn2b_ref[l]                     # norm2(attn + x)

        # ---------- sum(hs) + MLP + norm3 ----------
        out = h1 + h2
        m = jnp.dot(out.astype(bf16), wm1_ref[l], preferred_element_type=f32) + bm1_ref[l]
        m = jnp.maximum(m, 0.0)
        m2 = jnp.dot(m.astype(bf16), wm2_ref[l], preferred_element_type=f32) + bm2_ref[l]
        h = (out + m2) * bn3s_ref[l] + bn3b_ref[l]                            # norm3(out + mlp(out))

    # ---- global mean pool: exact 0/1 indicator matmul, scaled by 1/count in f32 ----
    pooled = jnp.dot(pool_ref[...], h.astype(bf16), preferred_element_type=f32)
    out_ref[...] = pooled * invc_ref[...]


# ----------------------------------------------------------------------------
# parameter init / one-time packing (weight fusion hoisted out of the forward)
# ----------------------------------------------------------------------------

def init_params(key, channels=32, pe_dim=8, num_layer=2, heads=8):
    keys = iter(jax.random.split(key, 256))

    def w(shape, s=0.1):
        return (s * jax.random.normal(next(keys), shape)).astype(jnp.float32)

    params = {
        "channels": channels, "pe_dim": pe_dim, "heads": heads,
        "w_node": w((3, channels - pe_dim)), "b_node": w((channels - pe_dim,), 0.01),
        "w_pe": w((20, pe_dim)), "b_pe": w((pe_dim,), 0.01),
        "emb_table": w((64, channels)),
    }
    params["pe_bn_scale"], params["pe_bn_shift"] = _bn_eval_scale_shift(20)

    layers = []
    for _ in range(num_layer):
        p = {
            # ResGatedGraphConv: Linear(C + edge_dim, C) split into node / edge parts
            "wk_x": w((channels, channels)), "wk_e": w((channels, channels)), "bk": w((channels,), 0.01),
            "wq_x": w((channels, channels)), "wq_e": w((channels, channels)), "bq": w((channels,), 0.01),
            "wv_x": w((channels, channels)), "wv_e": w((channels, channels)), "bv": w((channels,), 0.01),
            "w_skip": w((channels, channels)), "conv_bias": w((channels,), 0.01),
            # MultiheadAttention
            "wq_a": w((channels, channels)), "bq_a": w((channels,), 0.01),
            "wk_a": w((channels, channels)), "bk_a": w((channels,), 0.01),
            "wv_a": w((channels, channels)), "bv_a": w((channels,), 0.01),
            "wo_a": w((channels, channels)), "bo_a": w((channels,), 0.01),
            # MLP
            "w_mlp1": w((channels, 2 * channels)), "b_mlp1": w((2 * channels,), 0.01),
            "w_mlp2": w((2 * channels, channels)), "b_mlp2": w((channels,), 0.01),
        }
        p["bn1_scale"], p["bn1_shift"] = _bn_eval_scale_shift(channels)
        p["bn2_scale"], p["bn2_shift"] = _bn_eval_scale_shift(channels)
        p["bn3_scale"], p["bn3_shift"] = _bn_eval_scale_shift(channels)
        layers.append(p)
    params["layers"] = layers
    return params


def pack_params(params):
    """One-time fusion/stacking of all weights used by the fused kernel."""
    C = params["channels"]
    pd = params["pe_dim"]
    H = params["heads"]
    Dh = C // H
    nd = C - pd
    L = len(params["layers"])
    scale = 1.0 / float(np.sqrt(Dh))
    bf16 = jnp.bfloat16

    # fold eval BatchNorm1d(20) into pe_lin, then fuse node_emb + pe_lin into one [23, C] matmul
    pe_s, pe_b = params["pe_bn_scale"], params["pe_bn_shift"]
    w_pe_eff = pe_s[:, None] * params["w_pe"]
    b_pe_eff = params["b_pe"] + pe_b @ params["w_pe"]
    w_in = jnp.zeros((23, C), jnp.float32)
    w_in = w_in.at[0:3, 0:nd].set(params["w_node"])
    w_in = w_in.at[3:23, nd:C].set(w_pe_eff)
    b_in = jnp.concatenate([params["b_node"], b_pe_eff]).reshape(1, C)

    def stack(fn, dtype=None):
        a = jnp.stack([fn(p) for p in params["layers"]], axis=0)
        return a.astype(dtype) if dtype is not None else a

    def qkv_w(p):  # per-head [Wq*scale | Wk | Wv] -> (H, C, 3Dh)
        wq, wk, wv = p["wq_a"] * scale, p["wk_a"], p["wv_a"]
        return jnp.stack(
            [jnp.concatenate([wq[:, h * Dh:(h + 1) * Dh], wk[:, h * Dh:(h + 1) * Dh],
                              wv[:, h * Dh:(h + 1) * Dh]], axis=1) for h in range(H)], axis=0)

    def qkv_b(p):  # per-head [bq*scale | bk | bv] -> (H, 1, 3Dh)
        bq, bk, bv = p["bq_a"] * scale, p["bk_a"], p["bv_a"]
        return jnp.stack(
            [jnp.concatenate([bq[h * Dh:(h + 1) * Dh], bk[h * Dh:(h + 1) * Dh],
                              bv[h * Dh:(h + 1) * Dh]]).reshape(1, 3 * Dh) for h in range(H)], axis=0)

    return {
        "channels": C, "heads": H, "num_layers": L,
        "w_in": w_in.astype(bf16), "b_in": b_in,
        "emb_tab": params["emb_table"].astype(bf16),
        "wkx": stack(lambda p: p["wk_x"], bf16),
        "wqvx": stack(lambda p: jnp.concatenate([p["wq_x"], p["wv_x"]], axis=1), bf16),
        "wskip": stack(lambda p: p["w_skip"], bf16),
        "conv_b": stack(lambda p: p["conv_bias"].reshape(1, C)),
        "w_ek": stack(lambda p: p["wk_e"], bf16),
        "b_ek": stack(lambda p: p["bk"].reshape(1, C)),
        "w_eqv": stack(lambda p: jnp.concatenate([p["wq_e"], p["wv_e"]], axis=1), bf16),
        "b_eqv": stack(lambda p: jnp.concatenate([p["bq"], p["bv"]]).reshape(1, 2 * C)),
        "bn1s": stack(lambda p: p["bn1_scale"].reshape(1, C)),
        "bn1b": stack(lambda p: p["bn1_shift"].reshape(1, C)),
        "w_qkv_h": stack(qkv_w, bf16),
        "b_qkv_h": stack(qkv_b),
        "wo_h": stack(lambda p: p["wo_a"].reshape(H, Dh, C), bf16),
        "b_o": stack(lambda p: p["bo_a"].reshape(1, C)),
        "bn2s": stack(lambda p: p["bn2_scale"].reshape(1, C)),
        "bn2b": stack(lambda p: p["bn2_shift"].reshape(1, C)),
        "w_m1": stack(lambda p: p["w_mlp1"], bf16),
        "b_m1": stack(lambda p: p["b_mlp1"].reshape(1, 2 * C)),
        "w_m2": stack(lambda p: p["w_mlp2"], bf16),
        "b_m2": stack(lambda p: p["b_mlp2"].reshape(1, C)),
        "bn3s": stack(lambda p: p["bn3_scale"].reshape(1, C)),
        "bn3b": stack(lambda p: p["bn3_shift"].reshape(1, C)),
    }


def prepare_graph(edge_index, edge_attr, batch, num_graphs, num_nodes):
    """Host-side (NumPy) graph-structure matrices: one-hots, dense-batch scatter, pool."""
    N = num_nodes
    batch_np = np.asarray(batch)
    ei = np.asarray(edge_index)
    ea = np.asarray(edge_attr)
    E = ei.shape[1]

    counts = np.bincount(batch_np, minlength=num_graphs)
    S = int(counts.max())
    starts = np.concatenate([[0], np.cumsum(counts)[:-1]])
    pos = np.arange(N) - starts[batch_np]

    G = np.zeros((num_graphs, S, N), np.float32)
    G[batch_np, pos, np.arange(N)] = 1.0                                  # to_dense_batch scatter
    negmask = np.where(np.arange(S)[None, :] < counts[:, None], 0.0, -1e30).astype(np.float32)
    pool_ind = np.zeros((num_graphs, N), np.float32)
    pool_ind[batch_np, np.arange(N)] = 1.0
    inv_counts = (1.0 / np.maximum(counts, 1)).astype(np.float32).reshape(num_graphs, 1)

    src_oh = np.zeros((E, N), np.float32)
    src_oh[np.arange(E), ei[0]] = 1.0
    dst_oh = np.zeros((E, N), np.float32)
    dst_oh[np.arange(E), ei[1]] = 1.0
    edge_oh = np.zeros((ea.shape[0], 64), np.float32)
    edge_oh[np.arange(ea.shape[0]), ea] = 1.0

    return {
        "src_oh": jnp.asarray(src_oh, jnp.bfloat16),       # 0/1 exact in bf16
        "dst_oh": jnp.asarray(dst_oh, jnp.bfloat16),
        "edge_oh": jnp.asarray(edge_oh, jnp.bfloat16),
        "g3": jnp.asarray(G, jnp.bfloat16),
        "negmask": jnp.asarray(negmask.reshape(num_graphs, 1, S), jnp.float32),
        "pool_ind": jnp.asarray(pool_ind, jnp.bfloat16),
        "inv_counts": jnp.asarray(inv_counts, jnp.float32),
    }


# ----------------------------------------------------------------------------
# forward: one pallas_call for the whole model
# ----------------------------------------------------------------------------

def trans_graph_forward(packed, graph, x, pe):
    C = packed["channels"]
    H = packed["heads"]
    L = packed["num_layers"]
    N = pe.shape[0]
    B = graph["pool_ind"].shape[0]

    x_cat = jnp.concatenate(
        [jnp.reshape(x, (N, -1)).astype(jnp.float32), pe.astype(jnp.float32)], axis=1)  # [N, 23]

    args = [
        x_cat, graph["edge_oh"], graph["src_oh"], graph["dst_oh"], graph["g3"],
        graph["negmask"], graph["pool_ind"], graph["inv_counts"],
        packed["w_in"], packed["b_in"], packed["emb_tab"],
        packed["wkx"], packed["wqvx"], packed["wskip"], packed["conv_b"],
        packed["w_ek"], packed["b_ek"], packed["w_eqv"], packed["b_eqv"],
        packed["bn1s"], packed["bn1b"],
        packed["w_qkv_h"], packed["b_qkv_h"], packed["wo_h"], packed["b_o"],
        packed["bn2s"], packed["bn2b"],
        packed["w_m1"], packed["b_m1"], packed["w_m2"], packed["b_m2"],
        packed["bn3s"], packed["bn3b"],
    ]
    in_specs = [pl.BlockSpec(a.shape, _full_map(a.ndim)) for a in args]

    kernel = functools.partial(_trans_graph_kernel, num_layers=L, heads=H, channels=C)
    return pl.pallas_call(
        kernel,
        out_shape=jax.ShapeDtypeStruct((B, C), jnp.float32),
        grid=(1,),
        in_specs=in_specs,
        out_specs=pl.BlockSpec((B, C), lambda i: (0, 0)),
        compiler_params=pltpu.CompilerParams(dimension_semantics=("arbitrary",)),
    )(*args)


# ----------------------------------------------------------------------------
# Demo
# ----------------------------------------------------------------------------

if __name__ == "__main__":
    channels, pe_dim, num_layer, heads = 32, 8, 2, 8
    N, E, B = 12, 24, 2

    key = jax.random.PRNGKey(0)
    kx, kpe, kei, kea, kp = jax.random.split(key, 5)

    x = jax.random.normal(kx, (N, 3, 1), dtype=jnp.float32)          # node features
    pe = jax.random.normal(kpe, (N, 20), dtype=jnp.float32)          # positional encodings
    edge_index = jax.random.randint(kei, (2, E), 0, N)               # [2, E] (src, dst)
    edge_attr = jax.random.randint(kea, (E,), 0, 64)                 # integer edge types
    batch = jnp.array([0] * 6 + [1] * 6, dtype=jnp.int32)            # sorted graph assignment

    params = init_params(kp, channels, pe_dim, num_layer, heads)
    packed = pack_params(params)                                     # one-time weight fusion
    graph = prepare_graph(edge_index, edge_attr, batch, num_graphs=B, num_nodes=N)

    out = trans_graph_forward(packed, graph, x, pe)
    out = jax.block_until_ready(out)
    assert out.shape == (B, channels), out.shape
    assert bool(jnp.all(jnp.isfinite(out)))
    print("KERNEL_OK")
</pallas_src>

<mosaic_0001>
module attributes {stable_mosaic.version = 11 : i64} {
  func.func @_trans_graph_kernel(%arg0: i32, %arg1: memref<12x23xf32, #tpu.memory_space<vmem>>, %arg2: memref<24x64xbf16, #tpu.memory_space<vmem>>, %arg3: memref<24x12xbf16, #tpu.memory_space<vmem>>, %arg4: memref<24x12xbf16, #tpu.memory_space<vmem>>, %arg5: memref<2x6x12xbf16, #tpu.memory_space<vmem>>, %arg6: memref<2x1x6xf32, #tpu.memory_space<vmem>>, %arg7: memref<2x12xbf16, #tpu.memory_space<vmem>>, %arg8: memref<2x1xf32, #tpu.memory_space<vmem>>, %arg9: memref<23x32xbf16, #tpu.memory_space<vmem>>, %arg10: memref<1x32xf32, #tpu.memory_space<vmem>>, %arg11: memref<64x32xbf16, #tpu.memory_space<vmem>>, %arg12: memref<2x32x32xbf16, #tpu.memory_space<vmem>>, %arg13: memref<2x32x64xbf16, #tpu.memory_space<vmem>>, %arg14: memref<2x32x32xbf16, #tpu.memory_space<vmem>>, %arg15: memref<2x1x32xf32, #tpu.memory_space<vmem>>, %arg16: memref<2x32x32xbf16, #tpu.memory_space<vmem>>, %arg17: memref<2x1x32xf32, #tpu.memory_space<vmem>>, %arg18: memref<2x32x64xbf16, #tpu.memory_space<vmem>>, %arg19: memref<2x1x64xf32, #tpu.memory_space<vmem>>, %arg20: memref<2x1x32xf32, #tpu.memory_space<vmem>>, %arg21: memref<2x1x32xf32, #tpu.memory_space<vmem>>, %arg22: memref<2x8x32x12xbf16, #tpu.memory_space<vmem>>, %arg23: memref<2x8x1x12xf32, #tpu.memory_space<vmem>>, %arg24: memref<2x8x4x32xbf16, #tpu.memory_space<vmem>>, %arg25: memref<2x1x32xf32, #tpu.memory_space<vmem>>, %arg26: memref<2x1x32xf32, #tpu.memory_space<vmem>>, %arg27: memref<2x1x32xf32, #tpu.memory_space<vmem>>, %arg28: memref<2x32x64xbf16, #tpu.memory_space<vmem>>, %arg29: memref<2x1x64xf32, #tpu.memory_space<vmem>>, %arg30: memref<2x64x32xbf16, #tpu.memory_space<vmem>>, %arg31: memref<2x1x32xf32, #tpu.memory_space<vmem>>, %arg32: memref<2x1x32xf32, #tpu.memory_space<vmem>>, %arg33: memref<2x1x32xf32, #tpu.memory_space<vmem>>, %arg34: memref<2x32xf32, #tpu.memory_space<vmem>>) attributes {dimension_semantics = [#tpu.dimension_semantics<arbitrary>], iteration_bounds = array<i64: 1>, scalar_prefetch = 0 : i64, scratch_operands = 0 : i64, tpu.core_type = #tpu.core_type<tc>, window_params = [{pipeline_mode = #tpu.pipeline_mode<synchronous>, transform_indices = @transform_0, window_bounds = array<i64: 12, 23>}, {pipeline_mode = #tpu.pipeline_mode<synchronous>, transform_indices = @transform_1, window_bounds = array<i64: 24, 64>}, {pipeline_mode = #tpu.pipeline_mode<synchronous>, transform_indices = @transform_2, window_bounds = array<i64: 24, 12>}, {pipeline_mode = #tpu.pipeline_mode<synchronous>, transform_indices = @transform_3, window_bounds = array<i64: 24, 12>}, {pipeline_mode = #tpu.pipeline_mode<synchronous>, transform_indices = @transform_4, window_bounds = array<i64: 2, 6, 12>}, {pipeline_mode = #tpu.pipeline_mode<synchronous>, transform_indices = @transform_5, window_bounds = array<i64: 2, 1, 6>}, {pipeline_mode = #tpu.pipeline_mode<synchronous>, transform_indices = @transform_6, window_bounds = array<i64: 2, 12>}, {pipeline_mode = #tpu.pipeline_mode<synchronous>, transform_indices = @transform_7, window_bounds = array<i64: 2, 1>}, {pipeline_mode = #tpu.pipeline_mode<synchronous>, transform_indices = @transform_8, window_bounds = array<i64: 23, 32>}, {pipeline_mode = #tpu.pipeline_mode<synchronous>, transform_indices = @transform_9, window_bounds = array<i64: 1, 32>}, {pipeline_mode = #tpu.pipeline_mode<synchronous>, transform_indices = @transform_10, window_bounds = array<i64: 64, 32>}, {pipeline_mode = #tpu.pipeline_mode<synchronous>, transform_indices = @transform_11, window_bounds = array<i64: 2, 32, 32>}, {pipeline_mode = #tpu.pipeline_mode<synchronous>, transform_indices = @transform_12, window_bounds = array<i64: 2, 32, 64>}, {pipeline_mode = #tpu.pipeline_mode<synchronous>, transform_indices = @transform_13, window_bounds = array<i64: 2, 32, 32>}, {pipeline_mode = #tpu.pipeline_mode<synchronous>, transform_indices = @transform_14, window_bounds = array<i64: 2, 1, 32>}, {pipeline_mode = #tpu.pipeline_mode<synchronous>, transform_indices = @transform_15, window_bounds = array<i64: 2, 32, 32>}, {pipeline_mode = #tpu.pipeline_mode<synchronous>, transform_indices = @transform_16, window_bounds = array<i64: 2, 1, 32>}, {pipeline_mode = #tpu.pipeline_mode<synchronous>, transform_indices = @transform_17, window_bounds = array<i64: 2, 32, 64>}, {pipeline_mode = #tpu.pipeline_mode<synchronous>, transform_indices = @transform_18, window_bounds = array<i64: 2, 1, 64>}, {pipeline_mode = #tpu.pipeline_mode<synchronous>, transform_indices = @transform_19, window_bounds = array<i64: 2, 1, 32>}, {pipeline_mode = #tpu.pipeline_mode<synchronous>, transform_indices = @transform_20, window_bounds = array<i64: 2, 1, 32>}, {pipeline_mode = #tpu.pipeline_mode<synchronous>, transform_indices = @transform_21, window_bounds = array<i64: 2, 8, 32, 12>}, {pipeline_mode = #tpu.pipeline_mode<synchronous>, transform_indices = @transform_22, window_bounds = array<i64: 2, 8, 1, 12>}, {pipeline_mode = #tpu.pipeline_mode<synchronous>, transform_indices = @transform_23, window_bounds = array<i64: 2, 8, 4, 32>}, {pipeline_mode = #tpu.pipeline_mode<synchronous>, transform_indices = @transform_24, window_bounds = array<i64: 2, 1, 32>}, {pipeline_mode = #tpu.pipeline_mode<synchronous>, transform_indices = @transform_25, window_bounds = array<i64: 2, 1, 32>}, {pipeline_mode = #tpu.pipeline_mode<synchronous>, transform_indices = @transform_26, window_bounds = array<i64: 2, 1, 32>}, {pipeline_mode = #tpu.pipeline_mode<synchronous>, transform_indices = @transform_27, window_bounds = array<i64: 2, 32, 64>}, {pipeline_mode = #tpu.pipeline_mode<synchronous>, transform_indices = @transform_28, window_bounds = array<i64: 2, 1, 64>}, {pipeline_mode = #tpu.pipeline_mode<synchronous>, transform_indices = @transform_29, window_bounds = array<i64: 2, 64, 32>}, {pipeline_mode = #tpu.pipeline_mode<synchronous>, transform_indices = @transform_30, window_bounds = array<i64: 2, 1, 32>}, {pipeline_mode = #tpu.pipeline_mode<synchronous>, transform_indices = @transform_31, window_bounds = array<i64: 2, 1, 32>}, {pipeline_mode = #tpu.pipeline_mode<synchronous>, transform_indices = @transform_32, window_bounds = array<i64: 2, 1, 32>}, {pipeline_mode = #tpu.pipeline_mode<synchronous>, transform_indices = @transform_33, window_bounds = array<i64: 2, 32>}]} {
    %c0 = arith.constant 0 : index
    %c0_0 = arith.constant 0 : index
    %0 = vector.load %arg1[%c0, %c0_0] : memref<12x23xf32, #tpu.memory_space<vmem>>, vector<12x23xf32>
    %1 = arith.truncf %0 : vector<12x23xf32> to vector<12x23xbf16>
    %c0_1 = arith.constant 0 : index
    %c0_2 = arith.constant 0 : index
    %2 = vector.load %arg9[%c0_1, %c0_2] : memref<23x32xbf16, #tpu.memory_space<vmem>>, vector<23x32xbf16>
    %cst = arith.constant dense<0.000000e+00> : vector<12x32xf32>
    %3 = tpu.matmul %1, %2, %cst {dimension_numbers = #tpu.dot_dimension_numbers<[1], [0], [0], [1], [0, 0, 1, 1], [], []>} : vector<12x23xbf16>, vector<23x32xbf16>, vector<12x32xf32> -> vector<12x32xf32>
    %c0_3 = arith.constant 0 : index
    %c0_4 = arith.constant 0 : index
    %4 = vector.load %arg10[%c0_3, %c0_4] : memref<1x32xf32, #tpu.memory_space<vmem>>, vector<1x32xf32>
    %5 = vector.broadcast %4 : vector<1x32xf32> to vector<12x32xf32>
    %6 = arith.addf %3, %5 : vector<12x32xf32>
    %c0_5 = arith.constant 0 : index
    %c0_6 = arith.constant 0 : index
    %7 = vector.load %arg2[%c0_5, %c0_6] : memref<24x64xbf16, #tpu.memory_space<vmem>>, vector<24x64xbf16>
    %c0_7 = arith.constant 0 : index
    %c0_8 = arith.constant 0 : index
    %8 = vector.load %arg11[%c0_7, %c0_8] : memref<64x32xbf16, #tpu.memory_space<vmem>>, vector<64x32xbf16>
    %cst_9 = arith.constant dense<0.000000e+00> : vector<24x32xf32>
    %9 = tpu.matmul %7, %8, %cst_9 {dimension_numbers = #tpu.dot_dimension_numbers<[1], [0], [0], [1], [0, 0, 1, 1], [], []>} : vector<24x64xbf16>, vector<64x32xbf16>, vector<24x32xf32> -> vector<24x32xf32>
    %10 = arith.truncf %9 : vector<24x32xf32> to vector<24x32xbf16>
    %11 = arith.truncf %6 : vector<12x32xf32> to vector<12x32xbf16>
    %c0_10 = arith.constant 0 : index
    %c0_11 = arith.constant 0 : index
    %c0_12 = arith.constant 0 : index
    %12 = vector.load %arg12[%c0_10, %c0_11, %c0_12] : memref<2x32x32xbf16, #tpu.memory_space<vmem>>, vector<1x32x32xbf16>
    %13 = vector.shape_cast %12 : vector<1x32x32xbf16> to vector<32x32xbf16>
    %cst_13 = arith.constant dense<0.000000e+00> : vector<12x32xf32>
    %14 = tpu.matmul %11, %13, %cst_13 {dimension_numbers = #tpu.dot_dimension_numbers<[1], [0], [0], [1], [0, 0, 1, 1], [], []>} : vector<12x32xbf16>, vector<32x32xbf16>, vector<12x32xf32> -> vector<12x32xf32>
    %c0_14 = arith.constant 0 : index
    %c0_15 = arith.constant 0 : index
    %c0_16 = arith.constant 0 : index
    %15 = vector.load %arg13[%c0_14, %c0_15, %c0_16] : memref<2x32x64xbf16, #tpu.memory_space<vmem>>, vector<1x32x64xbf16>
    %16 = vector.shape_cast %15 : vector<1x32x64xbf16> to vector<32x64xbf16>
    %cst_17 = arith.constant dense<0.000000e+00> : vector<12x64xf32>
    %17 = tpu.matmul %11, %16, %cst_17 {dimension_numbers = #tpu.dot_dimension_numbers<[1], [0], [0], [1], [0, 0, 1, 1], [], []>} : vector<12x32xbf16>, vector<32x64xbf16>, vector<12x64xf32> -> vector<12x64xf32>
    %c0_18 = arith.constant 0 : index
    %c0_19 = arith.constant 0 : index
    %c0_20 = arith.constant 0 : index
    %18 = vector.load %arg14[%c0_18, %c0_19, %c0_20] : memref<2x32x32xbf16, #tpu.memory_space<vmem>>, vector<1x32x32xbf16>
    %19 = vector.shape_cast %18 : vector<1x32x32xbf16> to vector<32x32xbf16>
    %cst_21 = arith.constant dense<0.000000e+00> : vector<12x32xf32>
    %20 = tpu.matmul %11, %19, %cst_21 {dimension_numbers = #tpu.dot_dimension_numbers<[1], [0], [0], [1], [0, 0, 1, 1], [], []>} : vector<12x32xbf16>, vector<32x32xbf16>, vector<12x32xf32> -> vector<12x32xf32>
    %c0_22 = arith.constant 0 : index
    %c0_23 = arith.constant 0 : index
    %c0_24 = arith.constant 0 : index
    %21 = vector.load %arg16[%c0_22, %c0_23, %c0_24] : memref<2x32x32xbf16, #tpu.memory_space<vmem>>, vector<1x32x32xbf16>
    %22 = vector.shape_cast %21 : vector<1x32x32xbf16> to vector<32x32xbf16>
    %cst_25 = arith.constant dense<0.000000e+00> : vector<24x32xf32>
    %23 = tpu.matmul %10, %22, %cst_25 {dimension_numbers = #tpu.dot_dimension_numbers<[1], [0], [0], [1], [0, 0, 1, 1], [], []>} : vector<24x32xbf16>, vector<32x32xbf16>, vector<24x32xf32> -> vector<24x32xf32>
    %c0_26 = arith.constant 0 : index
    %c0_27 = arith.constant 0 : index
    %c0_28 = arith.constant 0 : index
    %24 = vector.load %arg17[%c0_26, %c0_27, %c0_28] : memref<2x1x32xf32, #tpu.memory_space<vmem>>, vector<1x1x32xf32>
    %25 = vector.shape_cast %24 : vector<1x1x32xf32> to vector<1x32xf32>
    %26 = vector.broadcast %25 : vector<1x32xf32> to vector<24x32xf32>
    %27 = arith.addf %23, %26 : vector<24x32xf32>
    %c0_29 = arith.constant 0 : index
    %c0_30 = arith.constant 0 : index
    %c0_31 = arith.constant 0 : index
    %28 = vector.load %arg18[%c0_29, %c0_30, %c0_31] : memref<2x32x64xbf16, #tpu.memory_space<vmem>>, vector<1x32x64xbf16>
    %29 = vector.shape_cast %28 : vector<1x32x64xbf16> to vector<32x64xbf16>
    %cst_32 = arith.constant dense<0.000000e+00> : vector<24x64xf32>
    %30 = tpu.matmul %10, %29, %cst_32 {dimension_numbers = #tpu.dot_dimension_numbers<[1], [0], [0], [1], [0, 0, 1, 1], [], []>} : vector<24x32xbf16>, vector<32x64xbf16>, vector<24x64xf32> -> vector<24x64xf32>
    %c0_33 = arith.constant 0 : index
    %c0_34 = arith.constant 0 : index
    %c0_35 = arith.constant 0 : index
    %31 = vector.load %arg19[%c0_33, %c0_34, %c0_35] : memref<2x1x64xf32, #tpu.memory_space<vmem>>, vector<1x1x64xf32>
    %32 = vector.shape_cast %31 : vector<1x1x64xf32> to vector<1x64xf32>
    %33 = vector.broadcast %32 : vector<1x64xf32> to vector<24x64xf32>
    %34 = arith.addf %30, %33 : vector<24x64xf32>
    %c0_36 = arith.constant 0 : index
    %c0_37 = arith.constant 0 : index
    %35 = vector.load %arg4[%c0_36, %c0_37] : memref<24x12xbf16, #tpu.memory_space<vmem>>, vector<24x12xbf16>
    %36 = arith.truncf %14 : vector<12x32xf32> to vector<12x32xbf16>
    %cst_38 = arith.constant dense<0.000000e+00> : vector<24x32xf32>
    %37 = tpu.matmul %35, %36, %cst_38 {dimension_numbers = #tpu.dot_dimension_numbers<[1], [0], [0], [1], [0, 0, 1, 1], [], []>} : vector<24x12xbf16>, vector<12x32xbf16>, vector<24x32xf32> -> vector<24x32xf32>
    %c0_39 = arith.constant 0 : index
    %c0_40 = arith.constant 0 : index
    %38 = vector.load %arg3[%c0_39, %c0_40] : memref<24x12xbf16, #tpu.memory_space<vmem>>, vector<24x12xbf16>
    %39 = arith.truncf %17 : vector<12x64xf32> to vector<12x64xbf16>
    %cst_41 = arith.constant dense<0.000000e+00> : vector<24x64xf32>
    %40 = tpu.matmul %38, %39, %cst_41 {dimension_numbers = #tpu.dot_dimension_numbers<[1], [0], [0], [1], [0, 0, 1, 1], [], []>} : vector<24x12xbf16>, vector<12x64xbf16>, vector<24x64xf32> -> vector<24x64xf32>
    %41 = arith.addf %37, %27 : vector<24x32xf32>
    %42 = arith.addf %40, %34 : vector<24x64xf32>
    %43 = vector.extract_strided_slice %42 {offsets = [0, 0], sizes = [24, 32], strides = [1, 1]} : vector<24x64xf32> to vector<24x32xf32>
    %44 = arith.addf %41, %43 : vector<24x32xf32>
    %cst_42 = arith.constant 0.000000e+00 : f32
    %45 = vector.broadcast %cst_42 : f32 to vector<24x32xf32>
    %46 = arith.maximumf %44, %45 : vector<24x32xf32>
    %47 = vector.extract_strided_slice %42 {offsets = [0, 32], sizes = [24, 32], strides = [1, 1]} : vector<24x64xf32> to vector<24x32xf32>
    %48 = arith.mulf %46, %47 : vector<24x32xf32>
    %c0_43 = arith.constant 0 : index
    %c0_44 = arith.constant 0 : index
    %49 = vector.load %arg4[%c0_43, %c0_44] : memref<24x12xbf16, #tpu.memory_space<vmem>>, vector<24x12xbf16>
    %50 = arith.truncf %48 : vector<24x32xf32> to vector<24x32xbf16>
    %cst_45 = arith.constant dense<0.000000e+00> : vector<12x32xf32>
    %51 = tpu.matmul %49, %50, %cst_45 {dimension_numbers = #tpu.dot_dimension_numbers<[0], [0], [1], [1], [0, 1, 1, 1], [], []>} : vector<24x12xbf16>, vector<24x32xbf16>, vector<12x32xf32> -> vector<12x32xf32>
    %52 = arith.addf %51, %20 : vector<12x32xf32>
    %c0_46 = arith.constant 0 : index
    %c0_47 = arith.constant 0 : index
    %c0_48 = arith.constant 0 : index
    %53 = vector.load %arg15[%c0_46, %c0_47, %c0_48] : memref<2x1x32xf32, #tpu.memory_space<vmem>>, vector<1x1x32xf32>
    %54 = vector.shape_cast %53 : vector<1x1x32xf32> to vector<1x32xf32>
    %55 = vector.broadcast %54 : vector<1x32xf32> to vector<12x32xf32>
    %56 = arith.addf %52, %55 : vector<12x32xf32>
    %57 = arith.addf %56, %6 : vector<12x32xf32>
    %c0_49 = arith.constant 0 : index
    %c0_50 = arith.constant 0 : index
    %c0_51 = arith.constant 0 : index
    %58 = vector.load %arg20[%c0_49, %c0_50, %c0_51] : memref<2x1x32xf32, #tpu.memory_space<vmem>>, vector<1x1x32xf32>
    %59 = vector.shape_cast %58 : vector<1x1x32xf32> to vector<1x32xf32>
    %60 = vector.broadcast %59 : vector<1x32xf32> to vector<12x32xf32>
    %61 = arith.mulf %57, %60 : vector<12x32xf32>
    %c0_52 = arith.constant 0 : index
    %c0_53 = arith.constant 0 : index
    %c0_54 = arith.constant 0 : index
    %62 = vector.load %arg21[%c0_52, %c0_53, %c0_54] : memref<2x1x32xf32, #tpu.memory_space<vmem>>, vector<1x1x32xf32>
    %63 = vector.shape_cast %62 : vector<1x1x32xf32> to vector<1x32xf32>
    %64 = vector.broadcast %63 : vector<1x32xf32> to vector<12x32xf32>
    %65 = arith.addf %61, %64 : vector<12x32xf32>
    %c0_55 = arith.constant 0 : index
    %c0_56 = arith.constant 0 : index
    %c0_57 = arith.constant 0 : index
    %c0_58 = arith.constant 0 : index
    %66 = vector.load %arg22[%c0_55, %c0_56, %c0_57, %c0_58] : memref<2x8x32x12xbf16, #tpu.memory_space<vmem>>, vector<1x8x32x12xbf16>
    %67 = vector.shape_cast %66 : vector<1x8x32x12xbf16> to vector<8x32x12xbf16>
    %c0_59 = arith.constant 0 : index
    %c0_60 = arith.constant 0 : index
    %c0_61 = arith.constant 0 : index
    %c0_62 = arith.constant 0 : index
    %68 = vector.load %arg23[%c0_59, %c0_60, %c0_61, %c0_62] : memref<2x8x1x12xf32, #tpu.memory_space<vmem>>, vector<1x8x1x12xf32>
    %69 = vector.shape_cast %68 : vector<1x8x1x12xf32> to vector<8x1x12xf32>
    %c0_63 = arith.constant 0 : index
    %c0_64 = arith.constant 0 : index
    %c0_65 = arith.constant 0 : index
    %c0_66 = arith.constant 0 : index
    %70 = vector.load %arg24[%c0_63, %c0_64, %c0_65, %c0_66] : memref<2x8x4x32xbf16, #tpu.memory_space<vmem>>, vector<1x8x4x32xbf16>
    %71 = vector.shape_cast %70 : vector<1x8x4x32xbf16> to vector<8x4x32xbf16>
    %cst_67 = arith.constant 0.000000e+00 : f32
    %72 = vector.broadcast %cst_67 : f32 to vector<12x32xf32>
    %c0_68 = arith.constant 0 : index
    %c0_69 = arith.constant 0 : index
    %c0_70 = arith.constant 0 : index
    %73 = vector.load %arg5[%c0_68, %c0_69, %c0_70] : memref<2x6x12xbf16, #tpu.memory_space<vmem>>, vector<1x6x12xbf16>
    %74 = vector.shape_cast %73 : vector<1x6x12xbf16> to vector<6x12xbf16>
    %cst_71 = arith.constant dense<0.000000e+00> : vector<6x32xf32>
    %75 = tpu.matmul %74, %11, %cst_71 {dimension_numbers = #tpu.dot_dimension_numbers<[1], [0], [0], [1], [0, 0, 1, 1], [], []>} : vector<6x12xbf16>, vector<12x32xbf16>, vector<6x32xf32> -> vector<6x32xf32>
    %76 = arith.truncf %75 : vector<6x32xf32> to vector<6x32xbf16>
    %77 = vector.shape_cast %76 : vector<6x32xbf16> to vector<1x6x32xbf16>
    %78 = vector.shape_cast %77 : vector<1x6x32xbf16> to vector<1x6x32xbf16>
    %79 = vector.broadcast %78 : vector<1x6x32xbf16> to vector<8x6x32xbf16>
    %cst_72 = arith.constant dense<0.000000e+00> : vector<8x6x12xf32>
    %80 = tpu.matmul %79, %67, %cst_72 {dimension_numbers = #tpu.dot_dimension_numbers<[2], [1], [1], [2], [0, 0, 0, 1, 1, 2], [0], [0]>} : vector<8x6x32xbf16>, vector<8x32x12xbf16>, vector<8x6x12xf32> -> vector<8x6x12xf32>
    %81 = vector.broadcast %69 : vector<8x1x12xf32> to vector<8x6x12xf32>
    %82 = arith.addf %80, %81 : vector<8x6x12xf32>
    %83 = vector.extract_strided_slice %82 {offsets = [0, 0, 0], sizes = [8, 6, 4], strides = [1, 1, 1]} : vector<8x6x12xf32> to vector<8x6x4xf32>
    %84 = arith.truncf %83 : vector<8x6x4xf32> to vector<8x6x4xbf16>
    %85 = vector.extract_strided_slice %82 {offsets = [0, 0, 4], sizes = [8, 6, 4], strides = [1, 1, 1]} : vector<8x6x12xf32> to vector<8x6x4xf32>
    %86 = arith.truncf %85 : vector<8x6x4xf32> to vector<8x6x4xbf16>
    %87 = vector.extract_strided_slice %82 {offsets = [0, 0, 8], sizes = [8, 6, 4], strides = [1, 1, 1]} : vector<8x6x12xf32> to vector<8x6x4xf32>
    %88 = arith.truncf %87 : vector<8x6x4xf32> to vector<8x6x4xbf16>
    %cst_73 = arith.constant dense<0.000000e+00> : vector<8x6x6xf32>
    %89 = tpu.matmul %84, %86, %cst_73 {dimension_numbers = #tpu.dot_dimension_numbers<[2], [2], [1], [1], [0, 0, 0, 1, 1, 1], [0], [0]>} : vector<8x6x4xbf16>, vector<8x6x4xbf16>, vector<8x6x6xf32> -> vector<8x6x6xf32>
    %c0_74 = arith.constant 0 : index
    %c0_75 = arith.constant 0 : index
    %c0_76 = arith.constant 0 : index
    %90 = vector.load %arg6[%c0_74, %c0_75, %c0_76] : memref<2x1x6xf32, #tpu.memory_space<vmem>>, vector<1x1x6xf32>
    %91 = vector.shape_cast %90 : vector<1x1x6xf32> to vector<1x6xf32>
    %92 = vector.shape_cast %91 : vector<1x6xf32> to vector<1x1x6xf32>
    %93 = vector.broadcast %92 : vector<1x1x6xf32> to vector<8x6x6xf32>
    %94 = arith.addf %89, %93 : vector<8x6x6xf32>
    %cst_77 = arith.constant dense<0xFF800000> : vector<8x6xf32>
    %95 = vector.multi_reduction <maximumf>, %94, %cst_77 [2] : vector<8x6x6xf32> to vector<8x6xf32>
    %96 = vector.shape_cast %95 : vector<8x6xf32> to vector<8x6x1xf32>
    %97 = vector.broadcast %96 : vector<8x6x1xf32> to vector<8x6x6xf32>
    %98 = arith.subf %94, %97 : vector<8x6x6xf32>
    %99 = math.exp %98 : vector<8x6x6xf32>
    %cst_78 = arith.constant dense<0.000000e+00> : vector<8x6xf32>
    %100 = vector.multi_reduction <add>, %99, %cst_78 [2] : vector<8x6x6xf32> to vector<8x6xf32>
    %101 = vector.shape_cast %100 : vector<8x6xf32> to vector<8x6x1xf32>
    %102 = tpu.reciprocal %101 {approx = true} : vector<8x6x1xf32> -> vector<8x6x1xf32>
    %103 = vector.broadcast %102 : vector<8x6x1xf32> to vector<8x6x6xf32>
    %104 = arith.mulf %99, %103 : vector<8x6x6xf32>
    %105 = arith.truncf %104 : vector<8x6x6xf32> to vector<8x6x6xbf16>
    %cst_79 = arith.constant dense<0.000000e+00> : vector<8x6x4xf32>
    %106 = tpu.matmul %105, %88, %cst_79 {dimension_numbers = #tpu.dot_dimension_numbers<[2], [1], [1], [2], [0, 0, 0, 1, 1, 2], [0], [0]>} : vector<8x6x6xbf16>, vector<8x6x4xbf16>, vector<8x6x4xf32> -> vector<8x6x4xf32>
    %107 = arith.truncf %106 : vector<8x6x4xf32> to vector<8x6x4xbf16>
    %cst_80 = arith.constant dense<0.000000e+00> : vector<8x6x32xf32>
    %108 = tpu.matmul %107, %71, %cst_80 {dimension_numbers = #tpu.dot_dimension_numbers<[2], [1], [1], [2], [0, 0, 0, 1, 1, 2], [0], [0]>} : vector<8x6x4xbf16>, vector<8x4x32xbf16>, vector<8x6x32xf32> -> vector<8x6x32xf32>
    %cst_81 = arith.constant dense<0.000000e+00> : vector<6x32xf32>
    %109 = vector.multi_reduction <add>, %108, %cst_81 [0] : vector<8x6x32xf32> to vector<6x32xf32>
    %c0_82 = arith.constant 0 : index
    %c0_83 = arith.constant 0 : index
    %c0_84 = arith.constant 0 : index
    %110 = vector.load %arg25[%c0_82, %c0_83, %c0_84] : memref<2x1x32xf32, #tpu.memory_space<vmem>>, vector<1x1x32xf32>
    %111 = vector.shape_cast %110 : vector<1x1x32xf32> to vector<1x32xf32>
    %112 = vector.broadcast %111 : vector<1x32xf32> to vector<6x32xf32>
    %113 = arith.addf %109, %112 : vector<6x32xf32>
    %114 = arith.truncf %113 : vector<6x32xf32> to vector<6x32xbf16>
    %cst_85 = arith.constant dense<0.000000e+00> : vector<12x32xf32>
    %115 = tpu.matmul %74, %114, %cst_85 {dimension_numbers = #tpu.dot_dimension_numbers<[0], [0], [1], [1], [0, 1, 1, 1], [], []>} : vector<6x12xbf16>, vector<6x32xbf16>, vector<12x32xf32> -> vector<12x32xf32>
    %116 = arith.addf %72, %115 : vector<12x32xf32>
    %c1 = arith.constant 1 : index
    %c0_86 = arith.constant 0 : index
    %c0_87 = arith.constant 0 : index
    %117 = vector.load %arg5[%c1, %c0_86, %c0_87] : memref<2x6x12xbf16, #tpu.memory_space<vmem>>, vector<1x6x12xbf16>
    %118 = vector.shape_cast %117 : vector<1x6x12xbf16> to vector<6x12xbf16>
    %cst_88 = arith.constant dense<0.000000e+00> : vector<6x32xf32>
    %119 = tpu.matmul %118, %11, %cst_88 {dimension_numbers = #tpu.dot_dimension_numbers<[1], [0], [0], [1], [0, 0, 1, 1], [], []>} : vector<6x12xbf16>, vector<12x32xbf16>, vector<6x32xf32> -> vector<6x32xf32>
    %120 = arith.truncf %119 : vector<6x32xf32> to vector<6x32xbf16>
    %121 = vector.shape_cast %120 : vector<6x32xbf16> to vector<1x6x32xbf16>
    %122 = vector.shape_cast %121 : vector<1x6x32xbf16> to vector<1x6x32xbf16>
    %123 = vector.broadcast %122 : vector<1x6x32xbf16> to vector<8x6x32xbf16>
    %cst_89 = arith.constant dense<0.000000e+00> : vector<8x6x12xf32>
    %124 = tpu.matmul %123, %67, %cst_89 {dimension_numbers = #tpu.dot_dimension_numbers<[2], [1], [1], [2], [0, 0, 0, 1, 1, 2], [0], [0]>} : vector<8x6x32xbf16>, vector<8x32x12xbf16>, vector<8x6x12xf32> -> vector<8x6x12xf32>
    %125 = vector.broadcast %69 : vector<8x1x12xf32> to vector<8x6x12xf32>
    %126 = arith.addf %124, %125 : vector<8x6x12xf32>
    %127 = vector.extract_strided_slice %126 {offsets = [0, 0, 0], sizes = [8, 6, 4], strides = [1, 1, 1]} : vector<8x6x12xf32> to vector<8x6x4xf32>
    %128 = arith.truncf %127 : vector<8x6x4xf32> to vector<8x6x4xbf16>
    %129 = vector.extract_strided_slice %126 {offsets = [0, 0, 4], sizes = [8, 6, 4], strides = [1, 1, 1]} : vector<8x6x12xf32> to vector<8x6x4xf32>
    %130 = arith.truncf %129 : vector<8x6x4xf32> to vector<8x6x4xbf16>
    %131 = vector.extract_strided_slice %126 {offsets = [0, 0, 8], sizes = [8, 6, 4], strides = [1, 1, 1]} : vector<8x6x12xf32> to vector<8x6x4xf32>
    %132 = arith.truncf %131 : vector<8x6x4xf32> to vector<8x6x4xbf16>
    %cst_90 = arith.constant dense<0.000000e+00> : vector<8x6x6xf32>
    %133 = tpu.matmul %128, %130, %cst_90 {dimension_numbers = #tpu.dot_dimension_numbers<[2], [2], [1], [1], [0, 0, 0, 1, 1, 1], [0], [0]>} : vector<8x6x4xbf16>, vector<8x6x4xbf16>, vector<8x6x6xf32> -> vector<8x6x6xf32>
    %c1_91 = arith.constant 1 : index
    %c0_92 = arith.constant 0 : index
    %c0_93 = arith.constant 0 : index
    %134 = vector.load %arg6[%c1_91, %c0_92, %c0_93] : memref<2x1x6xf32, #tpu.memory_space<vmem>>, vector<1x1x6xf32>
    %135 = vector.shape_cast %134 : vector<1x1x6xf32> to vector<1x6xf32>
    %136 = vector.shape_cast %135 : vector<1x6xf32> to vector<1x1x6xf32>
    %137 = vector.broadcast %136 : vector<1x1x6xf32> to vector<8x6x6xf32>
    %138 = arith.addf %133, %137 : vector<8x6x6xf32>
    %cst_94 = arith.constant dense<0xFF800000> : vector<8x6xf32>
    %139 = vector.multi_reduction <maximumf>, %138, %cst_94 [2] : vector<8x6x6xf32> to vector<8x6xf32>
    %140 = vector.shape_cast %139 : vector<8x6xf32> to vector<8x6x1xf32>
    %141 = vector.broadcast %140 : vector<8x6x1xf32> to vector<8x6x6xf32>
    %142 = arith.subf %138, %141 : vector<8x6x6xf32>
    %143 = math.exp %142 : vector<8x6x6xf32>
    %cst_95 = arith.constant dense<0.000000e+00> : vector<8x6xf32>
    %144 = vector.multi_reduction <add>, %143, %cst_95 [2] : vector<8x6x6xf32> to vector<8x6xf32>
    %145 = vector.shape_cast %144 : vector<8x6xf32> to vector<8x6x1xf32>
    %146 = tpu.reciprocal %145 {approx = true} : vector<8x6x1xf32> -> vector<8x6x1xf32>
    %147 = vector.broadcast %146 : vector<8x6x1xf32> to vector<8x6x6xf32>
    %148 = arith.mulf %143, %147 : vector<8x6x6xf32>
    %149 = arith.truncf %148 : vector<8x6x6xf32> to vector<8x6x6xbf16>
    %cst_96 = arith.constant dense<0.000000e+00> : vector<8x6x4xf32>
    %150 = tpu.matmul %149, %132, %cst_96 {dimension_numbers = #tpu.dot_dimension_numbers<[2], [1], [1], [2], [0, 0, 0, 1, 1, 2], [0], [0]>} : vector<8x6x6xbf16>, vector<8x6x4xbf16>, vector<8x6x4xf32> -> vector<8x6x4xf32>
    %151 = arith.truncf %150 : vector<8x6x4xf32> to vector<8x6x4xbf16>
    %cst_97 = arith.constant dense<0.000000e+00> : vector<8x6x32xf32>
    %152 = tpu.matmul %151, %71, %cst_97 {dimension_numbers = #tpu.dot_dimension_numbers<[2], [1], [1], [2], [0, 0, 0, 1, 1, 2], [0], [0]>} : vector<8x6x4xbf16>, vector<8x4x32xbf16>, vector<8x6x32xf32> -> vector<8x6x32xf32>
    %cst_98 = arith.constant dense<0.000000e+00> : vector<6x32xf32>
    %153 = vector.multi_reduction <add>, %152, %cst_98 [0] : vector<8x6x32xf32> to vector<6x32xf32>
    %c0_99 = arith.constant 0 : index
    %c0_100 = arith.constant 0 : index
    %c0_101 = arith.constant 0 : index
    %154 = vector.load %arg25[%c0_99, %c0_100, %c0_101] : memref<2x1x32xf32, #tpu.memory_space<vmem>>, vector<1x1x32xf32>
    %155 = vector.shape_cast %154 : vector<1x1x32xf32> to vector<1x32xf32>
    %156 = vector.broadcast %155 : vector<1x32xf32> to vector<6x32xf32>
    %157 = arith.addf %153, %156 : vector<6x32xf32>
    %158 = arith.truncf %157 : vector<6x32xf32> to vector<6x32xbf16>
    %cst_102 = arith.constant dense<0.000000e+00> : vector<12x32xf32>
    %159 = tpu.matmul %118, %158, %cst_102 {dimension_numbers = #tpu.dot_dimension_numbers<[0], [0], [1], [1], [0, 1, 1, 1], [], []>} : vector<6x12xbf16>, vector<6x32xbf16>, vector<12x32xf32> -> vector<12x32xf32>
    %160 = arith.addf %116, %159 : vector<12x32xf32>
    %161 = arith.addf %160, %6 : vector<12x32xf32>
    %c0_103 = arith.constant 0 : index
    %c0_104 = arith.constant 0 : index
    %c0_105 = arith.constant 0 : index
    %162 = vector.load %arg26[%c0_103, %c0_104, %c0_105] : memref<2x1x32xf32, #tpu.memory_space<vmem>>, vector<1x1x32xf32>
    %163 = vector.shape_cast %162 : vector<1x1x32xf32> to vector<1x32xf32>
    %164 = vector.broadcast %163 : vector<1x32xf32> to vector<12x32xf32>
    %165 = arith.mulf %161, %164 : vector<12x32xf32>
    %c0_106 = arith.constant 0 : index
    %c0_107 = arith.constant 0 : index
    %c0_108 = arith.constant 0 : index
    %166 = vector.load %arg27[%c0_106, %c0_107, %c0_108] : memref<2x1x32xf32, #tpu.memory_space<vmem>>, vector<1x1x32xf32>
    %167 = vector.shape_cast %166 : vector<1x1x32xf32> to vector<1x32xf32>
    %168 = vector.broadcast %167 : vector<1x32xf32> to vector<12x32xf32>
    %169 = arith.addf %165, %168 : vector<12x32xf32>
    %170 = arith.addf %65, %169 : vector<12x32xf32>
    %171 = arith.truncf %170 : vector<12x32xf32> to vector<12x32xbf16>
    %c0_109 = arith.constant 0 : index
    %c0_110 = arith.constant 0 : index
    %c0_111 = arith.constant 0 : index
    %172 = vector.load %arg28[%c0_109, %c0_110, %c0_111] : memref<2x32x64xbf16, #tpu.memory_space<vmem>>, vector<1x32x64xbf16>
    %173 = vector.shape_cast %172 : vector<1x32x64xbf16> to vector<32x64xbf16>
    %cst_112 = arith.constant dense<0.000000e+00> : vector<12x64xf32>
    %174 = tpu.matmul %171, %173, %cst_112 {dimension_numbers = #tpu.dot_dimension_numbers<[1], [0], [0], [1], [0, 0, 1, 1], [], []>} : vector<12x32xbf16>, vector<32x64xbf16>, vector<12x64xf32> -> vector<12x64xf32>
    %c0_113 = arith.constant 0 : index
    %c0_114 = arith.constant 0 : index
    %c0_115 = arith.constant 0 : index
    %175 = vector.load %arg29[%c0_113, %c0_114, %c0_115] : memref<2x1x64xf32, #tpu.memory_space<vmem>>, vector<1x1x64xf32>
    %176 = vector.shape_cast %175 : vector<1x1x64xf32> to vector<1x64xf32>
    %177 = vector.broadcast %176 : vector<1x64xf32> to vector<12x64xf32>
    %178 = arith.addf %174, %177 : vector<12x64xf32>
    %cst_116 = arith.constant 0.000000e+00 : f32
    %179 = vector.broadcast %cst_116 : f32 to vector<12x64xf32>
    %180 = arith.maximumf %178, %179 : vector<12x64xf32>
    %181 = arith.truncf %180 : vector<12x64xf32> to vector<12x64xbf16>
    %c0_117 = arith.constant 0 : index
    %c0_118 = arith.constant 0 : index
    %c0_119 = arith.constant 0 : index
    %182 = vector.load %arg30[%c0_117, %c0_118, %c0_119] : memref<2x64x32xbf16, #tpu.memory_space<vmem>>, vector<1x64x32xbf16>
    %183 = vector.shape_cast %182 : vector<1x64x32xbf16> to vector<64x32xbf16>
    %cst_120 = arith.constant dense<0.000000e+00> : vector<12x32xf32>
    %184 = tpu.matmul %181, %183, %cst_120 {dimension_numbers = #tpu.dot_dimension_numbers<[1], [0], [0], [1], [0, 0, 1, 1], [], []>} : vector<12x64xbf16>, vector<64x32xbf16>, vector<12x32xf32> -> vector<12x32xf32>
    %c0_121 = arith.constant 0 : index
    %c0_122 = arith.constant 0 : index
    %c0_123 = arith.constant 0 : index
    %185 = vector.load %arg31[%c0_121, %c0_122, %c0_123] : memref<2x1x32xf32, #tpu.memory_space<vmem>>, vector<1x1x32xf32>
    %186 = vector.shape_cast %185 : vector<1x1x32xf32> to vector<1x32xf32>
    %187 = vector.broadcast %186 : vector<1x32xf32> to vector<12x32xf32>
    %188 = arith.addf %184, %187 : vector<12x32xf32>
    %189 = arith.addf %170, %188 : vector<12x32xf32>
    %c0_124 = arith.constant 0 : index
    %c0_125 = arith.constant 0 : index
    %c0_126 = arith.constant 0 : index
    %190 = vector.load %arg32[%c0_124, %c0_125, %c0_126] : memref<2x1x32xf32, #tpu.memory_space<vmem>>, vector<1x1x32xf32>
    %191 = vector.shape_cast %190 : vector<1x1x32xf32> to vector<1x32xf32>
    %192 = vector.broadcast %191 : vector<1x32xf32> to vector<12x32xf32>
    %193 = arith.mulf %189, %192 : vector<12x32xf32>
    %c0_127 = arith.constant 0 : index
    %c0_128 = arith.constant 0 : index
    %c0_129 = arith.constant 0 : index
    %194 = vector.load %arg33[%c0_127, %c0_128, %c0_129] : memref<2x1x32xf32, #tpu.memory_space<vmem>>, vector<1x1x32xf32>
    %195 = vector.shape_cast %194 : vector<1x1x32xf32> to vector<1x32xf32>
    %196 = vector.broadcast %195 : vector<1x32xf32> to vector<12x32xf32>
    %197 = arith.addf %193, %196 : vector<12x32xf32>
    %198 = arith.truncf %197 : vector<12x32xf32> to vector<12x32xbf16>
    %c1_130 = arith.constant 1 : index
    %c0_131 = arith.constant 0 : index
    %c0_132 = arith.constant 0 : index
    %199 = vector.load %arg12[%c1_130, %c0_131, %c0_132] : memref<2x32x32xbf16, #tpu.memory_space<vmem>>, vector<1x32x32xbf16>
    %200 = vector.shape_cast %199 : vector<1x32x32xbf16> to vector<32x32xbf16>
    %cst_133 = arith.constant dense<0.000000e+00> : vector<12x32xf32>
    %201 = tpu.matmul %198, %200, %cst_133 {dimension_numbers = #tpu.dot_dimension_numbers<[1], [0], [0], [1], [0, 0, 1, 1], [], []>} : vector<12x32xbf16>, vector<32x32xbf16>, vector<12x32xf32> -> vector<12x32xf32>
    %c1_134 = arith.constant 1 : index
    %c0_135 = arith.constant 0 : index
    %c0_136 = arith.constant 0 : index
    %202 = vector.load %arg13[%c1_134, %c0_135, %c0_136] : memref<2x32x64xbf16, #tpu.memory_space<vmem>>, vector<1x32x64xbf16>
    %203 = vector.shape_cast %202 : vector<1x32x64xbf16> to vector<32x64xbf16>
    %cst_137 = arith.constant dense<0.000000e+00> : vector<12x64xf32>
    %204 = tpu.matmul %198, %203, %cst_137 {dimension_numbers = #tpu.dot_dimension_numbers<[1], [0], [0], [1], [0, 0, 1, 1], [], []>} : vector<12x32xbf16>, vector<32x64xbf16>, vector<12x64xf32> -> vector<12x64xf32>
    %c1_138 = arith.constant 1 : index
    %c0_139 = arith.constant 0 : index
    %c0_140 = arith.constant 0 : index
    %205 = vector.load %arg14[%c1_138, %c0_139, %c0_140] : memref<2x32x32xbf16, #tpu.memory_space<vmem>>, vector<1x32x32xbf16>
    %206 = vector.shape_cast %205 : vector<1x32x32xbf16> to vector<32x32xbf16>
    %cst_141 = arith.constant dense<0.000000e+00> : vector<12x32xf32>
    %207 = tpu.matmul %198, %206, %cst_141 {dimension_numbers = #tpu.dot_dimension_numbers<[1], [0], [0], [1], [0, 0, 1, 1], [], []>} : vector<12x32xbf16>, vector<32x32xbf16>, vector<12x32xf32> -> vector<12x32xf32>
    %c1_142 = arith.constant 1 : index
    %c0_143 = arith.constant 0 : index
    %c0_144 = arith.constant 0 : index
    %208 = vector.load %arg16[%c1_142, %c0_143, %c0_144] : memref<2x32x32xbf16, #tpu.memory_space<vmem>>, vector<1x32x32xbf16>
    %209 = vector.shape_cast %208 : vector<1x32x32xbf16> to vector<32x32xbf16>
    %cst_145 = arith.constant dense<0.000000e+00> : vector<24x32xf32>
    %210 = tpu.matmul %10, %209, %cst_145 {dimension_numbers = #tpu.dot_dimension_numbers<[1], [0], [0], [1], [0, 0, 1, 1], [], []>} : vector<24x32xbf16>, vector<32x32xbf16>, vector<24x32xf32> -> vector<24x32xf32>
    %c1_146 = arith.constant 1 : index
    %c0_147 = arith.constant 0 : index
    %c0_148 = arith.constant 0 : index
    %211 = vector.load %arg17[%c1_146, %c0_147, %c0_148] : memref<2x1x32xf32, #tpu.memory_space<vmem>>, vector<1x1x32xf32>
    %212 = vector.shape_cast %211 : vector<1x1x32xf32> to vector<1x32xf32>
    %213 = vector.broadcast %212 : vector<1x32xf32> to vector<24x32xf32>
    %214 = arith.addf %210, %213 : vector<24x32xf32>
    %c1_149 = arith.constant 1 : index
    %c0_150 = arith.constant 0 : index
    %c0_151 = arith.constant 0 : index
    %215 = vector.load %arg18[%c1_149, %c0_150, %c0_151] : memref<2x32x64xbf16, #tpu.memory_space<vmem>>, vector<1x32x64xbf16>
    %216 = vector.shape_cast %215 : vector<1x32x64xbf16> to vector<32x64xbf16>
    %cst_152 = arith.constant dense<0.000000e+00> : vector<24x64xf32>
    %217 = tpu.matmul %10, %216, %cst_152 {dimension_numbers = #tpu.dot_dimension_numbers<[1], [0], [0], [1], [0, 0, 1, 1], [], []>} : vector<24x32xbf16>, vector<32x64xbf16>, vector<24x64xf32> -> vector<24x64xf32>
    %c1_153 = arith.constant 1 : index
    %c0_154 = arith.constant 0 : index
    %c0_155 = arith.constant 0 : index
    %218 = vector.load %arg19[%c1_153, %c0_154, %c0_155] : memref<2x1x64xf32, #tpu.memory_space<vmem>>, vector<1x1x64xf32>
    %219 = vector.shape_cast %218 : vector<1x1x64xf32> to vector<1x64xf32>
    %220 = vector.broadcast %219 : vector<1x64xf32> to vector<24x64xf32>
    %221 = arith.addf %217, %220 : vector<24x64xf32>
    %c0_156 = arith.constant 0 : index
    %c0_157 = arith.constant 0 : index
    %222 = vector.load %arg4[%c0_156, %c0_157] : memref<24x12xbf16, #tpu.memory_space<vmem>>, vector<24x12xbf16>
    %223 = arith.truncf %201 : vector<12x32xf32> to vector<12x32xbf16>
    %cst_158 = arith.constant dense<0.000000e+00> : vector<24x32xf32>
    %224 = tpu.matmul %222, %223, %cst_158 {dimension_numbers = #tpu.dot_dimension_numbers<[1], [0], [0], [1], [0, 0, 1, 1], [], []>} : vector<24x12xbf16>, vector<12x32xbf16>, vector<24x32xf32> -> vector<24x32xf32>
    %c0_159 = arith.constant 0 : index
    %c0_160 = arith.constant 0 : index
    %225 = vector.load %arg3[%c0_159, %c0_160] : memref<24x12xbf16, #tpu.memory_space<vmem>>, vector<24x12xbf16>
    %226 = arith.truncf %204 : vector<12x64xf32> to vector<12x64xbf16>
    %cst_161 = arith.constant dense<0.000000e+00> : vector<24x64xf32>
    %227 = tpu.matmul %225, %226, %cst_161 {dimension_numbers = #tpu.dot_dimension_numbers<[1], [0], [0], [1], [0, 0, 1, 1], [], []>} : vector<24x12xbf16>, vector<12x64xbf16>, vector<24x64xf32> -> vector<24x64xf32>
    %228 = arith.addf %224, %214 : vector<24x32xf32>
    %229 = arith.addf %227, %221 : vector<24x64xf32>
    %230 = vector.extract_strided_slice %229 {offsets = [0, 0], sizes = [24, 32], strides = [1, 1]} : vector<24x64xf32> to vector<24x32xf32>
    %231 = arith.addf %228, %230 : vector<24x32xf32>
    %cst_162 = arith.constant 0.000000e+00 : f32
    %232 = vector.broadcast %cst_162 : f32 to vector<24x32xf32>
    %233 = arith.maximumf %231, %232 : vector<24x32xf32>
    %234 = vector.extract_strided_slice %229 {offsets = [0, 32], sizes = [24, 32], strides = [1, 1]} : vector<24x64xf32> to vector<24x32xf32>
    %235 = arith.mulf %233, %234 : vector<24x32xf32>
    %c0_163 = arith.constant 0 : index
    %c0_164 = arith.constant 0 : index
    %236 = vector.load %arg4[%c0_163, %c0_164] : memref<24x12xbf16, #tpu.memory_space<vmem>>, vector<24x12xbf16>
    %237 = arith.truncf %235 : vector<24x32xf32> to vector<24x32xbf16>
    %cst_165 = arith.constant dense<0.000000e+00> : vector<12x32xf32>
    %238 = tpu.matmul %236, %237, %cst_165 {dimension_numbers = #tpu.dot_dimension_numbers<[0], [0], [1], [1], [0, 1, 1, 1], [], []>} : vector<24x12xbf16>, vector<24x32xbf16>, vector<12x32xf32> -> vector<12x32xf32>
    %239 = arith.addf %238, %207 : vector<12x32xf32>
    %c1_166 = arith.constant 1 : index
    %c0_167 = arith.constant 0 : index
    %c0_168 = arith.constant 0 : index
    %240 = vector.load %arg15[%c1_166, %c0_167, %c0_168] : memref<2x1x32xf32, #tpu.memory_space<vmem>>, vector<1x1x32xf32>
    %241 = vector.shape_cast %240 : vector<1x1x32xf32> to vector<1x32xf32>
    %242 = vector.broadcast %241 : vector<1x32xf32> to vector<12x32xf32>
    %243 = arith.addf %239, %242 : vector<12x32xf32>
    %244 = arith.addf %243, %197 : vector<12x32xf32>
    %c1_169 = arith.constant 1 : index
    %c0_170 = arith.constant 0 : index
    %c0_171 = arith.constant 0 : index
    %245 = vector.load %arg20[%c1_169, %c0_170, %c0_171] : memref<2x1x32xf32, #tpu.memory_space<vmem>>, vector<1x1x32xf32>
    %246 = vector.shape_cast %245 : vector<1x1x32xf32> to vector<1x32xf32>
    %247 = vector.broadcast %246 : vector<1x32xf32> to vector<12x32xf32>
    %248 = arith.mulf %244, %247 : vector<12x32xf32>
    %c1_172 = arith.constant 1 : index
    %c0_173 = arith.constant 0 : index
    %c0_174 = arith.constant 0 : index
    %249 = vector.load %arg21[%c1_172, %c0_173, %c0_174] : memref<2x1x32xf32, #tpu.memory_space<vmem>>, vector<1x1x32xf32>
    %250 = vector.shape_cast %249 : vector<1x1x32xf32> to vector<1x32xf32>
    %251 = vector.broadcast %250 : vector<1x32xf32> to vector<12x32xf32>
    %252 = arith.addf %248, %251 : vector<12x32xf32>
    %c1_175 = arith.constant 1 : index
    %c0_176 = arith.constant 0 : index
    %c0_177 = arith.constant 0 : index
    %c0_178 = arith.constant 0 : index
    %253 = vector.load %arg22[%c1_175, %c0_176, %c0_177, %c0_178] : memref<2x8x32x12xbf16, #tpu.memory_space<vmem>>, vector<1x8x32x12xbf16>
    %254 = vector.shape_cast %253 : vector<1x8x32x12xbf16> to vector<8x32x12xbf16>
    %c1_179 = arith.constant 1 : index
    %c0_180 = arith.constant 0 : index
    %c0_181 = arith.constant 0 : index
    %c0_182 = arith.constant 0 : index
    %255 = vector.load %arg23[%c1_179, %c0_180, %c0_181, %c0_182] : memref<2x8x1x12xf32, #tpu.memory_space<vmem>>, vector<1x8x1x12xf32>
    %256 = vector.shape_cast %255 : vector<1x8x1x12xf32> to vector<8x1x12xf32>
    %c1_183 = arith.constant 1 : index
    %c0_184 = arith.constant 0 : index
    %c0_185 = arith.constant 0 : index
    %c0_186 = arith.constant 0 : index
    %257 = vector.load %arg24[%c1_183, %c0_184, %c0_185, %c0_186] : memref<2x8x4x32xbf16, #tpu.memory_space<vmem>>, vector<1x8x4x32xbf16>
    %258 = vector.shape_cast %257 : vector<1x8x4x32xbf16> to vector<8x4x32xbf16>
    %cst_187 = arith.constant 0.000000e+00 : f32
    %259 = vector.broadcast %cst_187 : f32 to vector<12x32xf32>
    %c0_188 = arith.constant 0 : index
    %c0_189 = arith.constant 0 : index
    %c0_190 = arith.constant 0 : index
    %260 = vector.load %arg5[%c0_188, %c0_189, %c0_190] : memref<2x6x12xbf16, #tpu.memory_space<vmem>>, vector<1x6x12xbf16>
    %261 = vector.shape_cast %260 : vector<1x6x12xbf16> to vector<6x12xbf16>
    %cst_191 = arith.constant dense<0.000000e+00> : vector<6x32xf32>
    %262 = tpu.matmul %261, %198, %cst_191 {dimension_numbers = #tpu.dot_dimension_numbers<[1], [0], [0], [1], [0, 0, 1, 1], [], []>} : vector<6x12xbf16>, vector<12x32xbf16>, vector<6x32xf32> -> vector<6x32xf32>
    %263 = arith.truncf %262 : vector<6x32xf32> to vector<6x32xbf16>
    %264 = vector.shape_cast %263 : vector<6x32xbf16> to vector<1x6x32xbf16>
    %265 = vector.shape_cast %264 : vector<1x6x32xbf16> to vector<1x6x32xbf16>
    %266 = vector.broadcast %265 : vector<1x6x32xbf16> to vector<8x6x32xbf16>
    %cst_192 = arith.constant dense<0.000000e+00> : vector<8x6x12xf32>
    %267 = tpu.matmul %266, %254, %cst_192 {dimension_numbers = #tpu.dot_dimension_numbers<[2], [1], [1], [2], [0, 0, 0, 1, 1, 2], [0], [0]>} : vector<8x6x32xbf16>, vector<8x32x12xbf16>, vector<8x6x12xf32> -> vector<8x6x12xf32>
    %268 = vector.broadcast %256 : vector<8x1x12xf32> to vector<8x6x12xf32>
    %269 = arith.addf %267, %268 : vector<8x6x12xf32>
    %270 = vector.extract_strided_slice %269 {offsets = [0, 0, 0], sizes = [8, 6, 4], strides = [1, 1, 1]} : vector<8x6x12xf32> to vector<8x6x4xf32>
    %271 = arith.truncf %270 : vector<8x6x4xf32> to vector<8x6x4xbf16>
    %272 = vector.extract_strided_slice %269 {offsets = [0, 0, 4], sizes = [8, 6, 4], strides = [1, 1, 1]} : vector<8x6x12xf32> to vector<8x6x4xf32>
    %273 = arith.truncf %272 : vector<8x6x4xf32> to vector<8x6x4xbf16>
    %274 = vector.extract_strided_slice %269 {offsets = [0, 0, 8], sizes = [8, 6, 4], strides = [1, 1, 1]} : vector<8x6x12xf32> to vector<8x6x4xf32>
    %275 = arith.truncf %274 : vector<8x6x4xf32> to vector<8x6x4xbf16>
    %cst_193 = arith.constant dense<0.000000e+00> : vector<8x6x6xf32>
    %276 = tpu.matmul %271, %273, %cst_193 {dimension_numbers = #tpu.dot_dimension_numbers<[2], [2], [1], [1], [0, 0, 0, 1, 1, 1], [0], [0]>} : vector<8x6x4xbf16>, vector<8x6x4xbf16>, vector<8x6x6xf32> -> vector<8x6x6xf32>
    %c0_194 = arith.constant 0 : index
    %c0_195 = arith.constant 0 : index
    %c0_196 = arith.constant 0 : index
    %277 = vector.load %arg6[%c0_194, %c0_195, %c0_196] : memref<2x1x6xf32, #tpu.memory_space<vmem>>, vector<1x1x6xf32>
    %278 = vector.shape_cast %277 : vector<1x1x6xf32> to vector<1x6xf32>
    %279 = vector.shape_cast %278 : vector<1x6xf32> to vector<1x1x6xf32>
    %280 = vector.broadcast %279 : vector<1x1x6xf32> to vector<8x6x6xf32>
    %281 = arith.addf %276, %280 : vector<8x6x6xf32>
    %cst_197 = arith.constant dense<0xFF800000> : vector<8x6xf32>
    %282 = vector.multi_reduction <maximumf>, %281, %cst_197 [2] : vector<8x6x6xf32> to vector<8x6xf32>
    %283 = vector.shape_cast %282 : vector<8x6xf32> to vector<8x6x1xf32>
    %284 = vector.broadcast %283 : vector<8x6x1xf32> to vector<8x6x6xf32>
    %285 = arith.subf %281, %284 : vector<8x6x6xf32>
    %286 = math.exp %285 : vector<8x6x6xf32>
    %cst_198 = arith.constant dense<0.000000e+00> : vector<8x6xf32>
    %287 = vector.multi_reduction <add>, %286, %cst_198 [2] : vector<8x6x6xf32> to vector<8x6xf32>
    %288 = vector.shape_cast %287 : vector<8x6xf32> to vector<8x6x1xf32>
    %289 = tpu.reciprocal %288 {approx = true} : vector<8x6x1xf32> -> vector<8x6x1xf32>
    %290 = vector.broadcast %289 : vector<8x6x1xf32> to vector<8x6x6xf32>
    %291 = arith.mulf %286, %290 : vector<8x6x6xf32>
    %292 = arith.truncf %291 : vector<8x6x6xf32> to vector<8x6x6xbf16>
    %cst_199 = arith.constant dense<0.000000e+00> : vector<8x6x4xf32>
    %293 = tpu.matmul %292, %275, %cst_199 {dimension_numbers = #tpu.dot_dimension_numbers<[2], [1], [1], [2], [0, 0, 0, 1, 1, 2], [0], [0]>} : vector<8x6x6xbf16>, vector<8x6x4xbf16>, vector<8x6x4xf32> -> vector<8x6x4xf32>
    %294 = arith.truncf %293 : vector<8x6x4xf32> to vector<8x6x4xbf16>
    %cst_200 = arith.constant dense<0.000000e+00> : vector<8x6x32xf32>
    %295 = tpu.matmul %294, %258, %cst_200 {dimension_numbers = #tpu.dot_dimension_numbers<[2], [1], [1], [2], [0, 0, 0, 1, 1, 2], [0], [0]>} : vector<8x6x4xbf16>, vector<8x4x32xbf16>, vector<8x6x32xf32> -> vector<8x6x32xf32>
    %cst_201 = arith.constant dense<0.000000e+00> : vector<6x32xf32>
    %296 = vector.multi_reduction <add>, %295, %cst_201 [0] : vector<8x6x32xf32> to vector<6x32xf32>
    %c1_202 = arith.constant 1 : index
    %c0_203 = arith.constant 0 : index
    %c0_204 = arith.constant 0 : index
    %297 = vector.load %arg25[%c1_202, %c0_203, %c0_204] : memref<2x1x32xf32, #tpu.memory_space<vmem>>, vector<1x1x32xf32>
    %298 = vector.shape_cast %297 : vector<1x1x32xf32> to vector<1x32xf32>
    %299 = vector.broadcast %298 : vector<1x32xf32> to vector<6x32xf32>
    %300 = arith.addf %296, %299 : vector<6x32xf32>
    %301 = arith.truncf %300 : vector<6x32xf32> to vector<6x32xbf16>
    %cst_205 = arith.constant dense<0.000000e+00> : vector<12x32xf32>
    %302 = tpu.matmul %261, %301, %cst_205 {dimension_numbers = #tpu.dot_dimension_numbers<[0], [0], [1], [1], [0, 1, 1, 1], [], []>} : vector<6x12xbf16>, vector<6x32xbf16>, vector<12x32xf32> -> vector<12x32xf32>
    %303 = arith.addf %259, %302 : vector<12x32xf32>
    %c1_206 = arith.constant 1 : index
    %c0_207 = arith.constant 0 : index
    %c0_208 = arith.constant 0 : index
    %304 = vector.load %arg5[%c1_206, %c0_207, %c0_208] : memref<2x6x12xbf16, #tpu.memory_space<vmem>>, vector<1x6x12xbf16>
    %305 = vector.shape_cast %304 : vector<1x6x12xbf16> to vector<6x12xbf16>
    %cst_209 = arith.constant dense<0.000000e+00> : vector<6x32xf32>
    %306 = tpu.matmul %305, %198, %cst_209 {dimension_numbers = #tpu.dot_dimension_numbers<[1], [0], [0], [1], [0, 0, 1, 1], [], []>} : vector<6x12xbf16>, vector<12x32xbf16>, vector<6x32xf32> -> vector<6x32xf32>
    %307 = arith.truncf %306 : vector<6x32xf32> to vector<6x32xbf16>
    %308 = vector.shape_cast %307 : vector<6x32xbf16> to vector<1x6x32xbf16>
    %309 = vector.shape_cast %308 : vector<1x6x32xbf16> to vector<1x6x32xbf16>
    %310 = vector.broadcast %309 : vector<1x6x32xbf16> to vector<8x6x32xbf16>
    %cst_210 = arith.constant dense<0.000000e+00> : vector<8x6x12xf32>
    %311 = tpu.matmul %310, %254, %cst_210 {dimension_numbers = #tpu.dot_dimension_numbers<[2], [1], [1], [2], [0, 0, 0, 1, 1, 2], [0], [0]>} : vector<8x6x32xbf16>, vector<8x32x12xbf16>, vector<8x6x12xf32> -> vector<8x6x12xf32>
    %312 = vector.broadcast %256 : vector<8x1x12xf32> to vector<8x6x12xf32>
    %313 = arith.addf %311, %312 : vector<8x6x12xf32>
    %314 = vector.extract_strided_slice %313 {offsets = [0, 0, 0], sizes = [8, 6, 4], strides = [1, 1, 1]} : vector<8x6x12xf32> to vector<8x6x4xf32>
    %315 = arith.truncf %314 : vector<8x6x4xf32> to vector<8x6x4xbf16>
    %316 = vector.extract_strided_slice %313 {offsets = [0, 0, 4], sizes = [8, 6, 4], strides = [1, 1, 1]} : vector<8x6x12xf32> to vector<8x6x4xf32>
    %317 = arith.truncf %316 : vector<8x6x4xf32> to vector<8x6x4xbf16>
    %318 = vector.extract_strided_slice %313 {offsets = [0, 0, 8], sizes = [8, 6, 4], strides = [1, 1, 1]} : vector<8x6x12xf32> to vector<8x6x4xf32>
    %319 = arith.truncf %318 : vector<8x6x4xf32> to vector<8x6x4xbf16>
    %cst_211 = arith.constant dense<0.000000e+00> : vector<8x6x6xf32>
    %320 = tpu.matmul %315, %317, %cst_211 {dimension_numbers = #tpu.dot_dimension_numbers<[2], [2], [1], [1], [0, 0, 0, 1, 1, 1], [0], [0]>} : vector<8x6x4xbf16>, vector<8x6x4xbf16>, vector<8x6x6xf32> -> vector<8x6x6xf32>
    %c1_212 = arith.constant 1 : index
    %c0_213 = arith.constant 0 : index
    %c0_214 = arith.constant 0 : index
    %321 = vector.load %arg6[%c1_212, %c0_213, %c0_214] : memref<2x1x6xf32, #tpu.memory_space<vmem>>, vector<1x1x6xf32>
    %322 = vector.shape_cast %321 : vector<1x1x6xf32> to vector<1x6xf32>
    %323 = vector.shape_cast %322 : vector<1x6xf32> to vector<1x1x6xf32>
    %324 = vector.broadcast %323 : vector<1x1x6xf32> to vector<8x6x6xf32>
    %325 = arith.addf %320, %324 : vector<8x6x6xf32>
    %cst_215 = arith.constant dense<0xFF800000> : vector<8x6xf32>
    %326 = vector.multi_reduction <maximumf>, %325, %cst_215 [2] : vector<8x6x6xf32> to vector<8x6xf32>
    %327 = vector.shape_cast %326 : vector<8x6xf32> to vector<8x6x1xf32>
    %328 = vector.broadcast %327 : vector<8x6x1xf32> to vector<8x6x6xf32>
    %329 = arith.subf %325, %328 : vector<8x6x6xf32>
    %330 = math.exp %329 : vector<8x6x6xf32>
    %cst_216 = arith.constant dense<0.000000e+00> : vector<8x6xf32>
    %331 = vector.multi_reduction <add>, %330, %cst_216 [2] : vector<8x6x6xf32> to vector<8x6xf32>
    %332 = vector.shape_cast %331 : vector<8x6xf32> to vector<8x6x1xf32>
    %333 = tpu.reciprocal %332 {approx = true} : vector<8x6x1xf32> -> vector<8x6x1xf32>
    %334 = vector.broadcast %333 : vector<8x6x1xf32> to vector<8x6x6xf32>
    %335 = arith.mulf %330, %334 : vector<8x6x6xf32>
    %336 = arith.truncf %335 : vector<8x6x6xf32> to vector<8x6x6xbf16>
    %cst_217 = arith.constant dense<0.000000e+00> : vector<8x6x4xf32>
    %337 = tpu.matmul %336, %319, %cst_217 {dimension_numbers = #tpu.dot_dimension_numbers<[2], [1], [1], [2], [0, 0, 0, 1, 1, 2], [0], [0]>} : vector<8x6x6xbf16>, vector<8x6x4xbf16>, vector<8x6x4xf32> -> vector<8x6x4xf32>
    %338 = arith.truncf %337 : vector<8x6x4xf32> to vector<8x6x4xbf16>
    %cst_218 = arith.constant dense<0.000000e+00> : vector<8x6x32xf32>
    %339 = tpu.matmul %338, %258, %cst_218 {dimension_numbers = #tpu.dot_dimension_numbers<[2], [1], [1], [2], [0, 0, 0, 1, 1, 2], [0], [0]>} : vector<8x6x4xbf16>, vector<8x4x32xbf16>, vector<8x6x32xf32> -> vector<8x6x32xf32>
    %cst_219 = arith.constant dense<0.000000e+00> : vector<6x32xf32>
    %340 = vector.multi_reduction <add>, %339, %cst_219 [0] : vector<8x6x32xf32> to vector<6x32xf32>
    %c1_220 = arith.constant 1 : index
    %c0_221 = arith.constant 0 : index
    %c0_222 = arith.constant 0 : index
    %341 = vector.load %arg25[%c1_220, %c0_221, %c0_222] : memref<2x1x32xf32, #tpu.memory_space<vmem>>, vector<1x1x32xf32>
    %342 = vector.shape_cast %341 : vector<1x1x32xf32> to vector<1x32xf32>
    %343 = vector.broadcast %342 : vector<1x32xf32> to vector<6x32xf32>
    %344 = arith.addf %340, %343 : vector<6x32xf32>
    %345 = arith.truncf %344 : vector<6x32xf32> to vector<6x32xbf16>
    %cst_223 = arith.constant dense<0.000000e+00> : vector<12x32xf32>
    %346 = tpu.matmul %305, %345, %cst_223 {dimension_numbers = #tpu.dot_dimension_numbers<[0], [0], [1], [1], [0, 1, 1, 1], [], []>} : vector<6x12xbf16>, vector<6x32xbf16>, vector<12x32xf32> -> vector<12x32xf32>
    %347 = arith.addf %303, %346 : vector<12x32xf32>
    %348 = arith.addf %347, %197 : vector<12x32xf32>
    %c1_224 = arith.constant 1 : index
    %c0_225 = arith.constant 0 : index
    %c0_226 = arith.constant 0 : index
    %349 = vector.load %arg26[%c1_224, %c0_225, %c0_226] : memref<2x1x32xf32, #tpu.memory_space<vmem>>, vector<1x1x32xf32>
    %350 = vector.shape_cast %349 : vector<1x1x32xf32> to vector<1x32xf32>
    %351 = vector.broadcast %350 : vector<1x32xf32> to vector<12x32xf32>
    %352 = arith.mulf %348, %351 : vector<12x32xf32>
    %c1_227 = arith.constant 1 : index
    %c0_228 = arith.constant 0 : index
    %c0_229 = arith.constant 0 : index
    %353 = vector.load %arg27[%c1_227, %c0_228, %c0_229] : memref<2x1x32xf32, #tpu.memory_space<vmem>>, vector<1x1x32xf32>
    %354 = vector.shape_cast %353 : vector<1x1x32xf32> to vector<1x32xf32>
    %355 = vector.broadcast %354 : vector<1x32xf32> to vector<12x32xf32>
    %356 = arith.addf %352, %355 : vector<12x32xf32>
    %357 = arith.addf %252, %356 : vector<12x32xf32>
    %358 = arith.truncf %357 : vector<12x32xf32> to vector<12x32xbf16>
    %c1_230 = arith.constant 1 : index
    %c0_231 = arith.constant 0 : index
    %c0_232 = arith.constant 0 : index
    %359 = vector.load %arg28[%c1_230, %c0_231, %c0_232] : memref<2x32x64xbf16, #tpu.memory_space<vmem>>, vector<1x32x64xbf16>
    %360 = vector.shape_cast %359 : vector<1x32x64xbf16> to vector<32x64xbf16>
    %cst_233 = arith.constant dense<0.000000e+00> : vector<12x64xf32>
    %361 = tpu.matmul %358, %360, %cst_233 {dimension_numbers = #tpu.dot_dimension_numbers<[1], [0], [0], [1], [0, 0, 1, 1], [], []>} : vector<12x32xbf16>, vector<32x64xbf16>, vector<12x64xf32> -> vector<12x64xf32>
    %c1_234 = arith.constant 1 : index
    %c0_235 = arith.constant 0 : index
    %c0_236 = arith.constant 0 : index
    %362 = vector.load %arg29[%c1_234, %c0_235, %c0_236] : memref<2x1x64xf32, #tpu.memory_space<vmem>>, vector<1x1x64xf32>
    %363 = vector.shape_cast %362 : vector<1x1x64xf32> to vector<1x64xf32>
    %364 = vector.broadcast %363 : vector<1x64xf32> to vector<12x64xf32>
    %365 = arith.addf %361, %364 : vector<12x64xf32>
    %cst_237 = arith.constant 0.000000e+00 : f32
    %366 = vector.broadcast %cst_237 : f32 to vector<12x64xf32>
    %367 = arith.maximumf %365, %366 : vector<12x64xf32>
    %368 = arith.truncf %367 : vector<12x64xf32> to vector<12x64xbf16>
    %c1_238 = arith.constant 1 : index
    %c0_239 = arith.constant 0 : index
    %c0_240 = arith.constant 0 : index
    %369 = vector.load %arg30[%c1_238, %c0_239, %c0_240] : memref<2x64x32xbf16, #tpu.memory_space<vmem>>, vector<1x64x32xbf16>
    %370 = vector.shape_cast %369 : vector<1x64x32xbf16> to vector<64x32xbf16>
    %cst_241 = arith.constant dense<0.000000e+00> : vector<12x32xf32>
    %371 = tpu.matmul %368, %370, %cst_241 {dimension_numbers = #tpu.dot_dimension_numbers<[1], [0], [0], [1], [0, 0, 1, 1], [], []>} : vector<12x64xbf16>, vector<64x32xbf16>, vector<12x32xf32> -> vector<12x32xf32>
    %c1_242 = arith.constant 1 : index
    %c0_243 = arith.constant 0 : index
    %c0_244 = arith.constant 0 : index
    %372 = vector.load %arg31[%c1_242, %c0_243, %c0_244] : memref<2x1x32xf32, #tpu.memory_space<vmem>>, vector<1x1x32xf32>
    %373 = vector.shape_cast %372 : vector<1x1x32xf32> to vector<1x32xf32>
    %374 = vector.broadcast %373 : vector<1x32xf32> to vector<12x32xf32>
    %375 = arith.addf %371, %374 : vector<12x32xf32>
    %376 = arith.addf %357, %375 : vector<12x32xf32>
    %c1_245 = arith.constant 1 : index
    %c0_246 = arith.constant 0 : index
    %c0_247 = arith.constant 0 : index
    %377 = vector.load %arg32[%c1_245, %c0_246, %c0_247] : memref<2x1x32xf32, #tpu.memory_space<vmem>>, vector<1x1x32xf32>
    %378 = vector.shape_cast %377 : vector<1x1x32xf32> to vector<1x32xf32>
    %379 = vector.broadcast %378 : vector<1x32xf32> to vector<12x32xf32>
    %380 = arith.mulf %376, %379 : vector<12x32xf32>
    %c1_248 = arith.constant 1 : index
    %c0_249 = arith.constant 0 : index
    %c0_250 = arith.constant 0 : index
    %381 = vector.load %arg33[%c1_248, %c0_249, %c0_250] : memref<2x1x32xf32, #tpu.memory_space<vmem>>, vector<1x1x32xf32>
    %382 = vector.shape_cast %381 : vector<1x1x32xf32> to vector<1x32xf32>
    %383 = vector.broadcast %382 : vector<1x32xf32> to vector<12x32xf32>
    %384 = arith.addf %380, %383 : vector<12x32xf32>
    %c0_251 = arith.constant 0 : index
    %c0_252 = arith.constant 0 : index
    %385 = vector.load %arg7[%c0_251, %c0_252] : memref<2x12xbf16, #tpu.memory_space<vmem>>, vector<2x12xbf16>
    %386 = arith.truncf %384 : vector<12x32xf32> to vector<12x32xbf16>
    %cst_253 = arith.constant dense<0.000000e+00> : vector<2x32xf32>
    %387 = tpu.matmul %385, %386, %cst_253 {dimension_numbers = #tpu.dot_dimension_numbers<[1], [0], [0], [1], [0, 0, 1, 1], [], []>} : vector<2x12xbf16>, vector<12x32xbf16>, vector<2x32xf32> -> vector<2x32xf32>
    %c0_254 = arith.constant 0 : index
    %c0_255 = arith.constant 0 : index
    %388 = vector.load %arg8[%c0_254, %c0_255] : memref<2x1xf32, #tpu.memory_space<vmem>>, vector<2x1xf32>
    %389 = vector.broadcast %388 : vector<2x1xf32> to vector<2x32xf32>
    %390 = arith.mulf %387, %389 : vector<2x32xf32>
    %c0_256 = arith.constant 0 : index
    %c0_257 = arith.constant 0 : index
    %391 = vector.load %arg34[%c0_256, %c0_257] : memref<2x32xf32, #tpu.memory_space<vmem>>, vector<2x32xf32>
    tpu.vector_store %arg34[%c0_256, %c0_257], %390 {strides = array<i32>} : memref<2x32xf32, #tpu.memory_space<vmem>>, vector<2x32xf32>,
    return
  }
  func.func @transform_0(%arg0: i32) -> (i32, i32) {
    %c0_i32 = arith.constant 0 : i32
    %c0_i32_0 = arith.constant 0 : i32
    %c0_i32_1 = arith.constant 0 : i32
    return %c0_i32, %c0_i32_0 : i32, i32
  }
  func.func @transform_1(%arg0: i32) -> (i32, i32) {
    %c0_i32 = arith.constant 0 : i32
    %c0_i32_0 = arith.constant 0 : i32
    %c0_i32_1 = arith.constant 0 : i32
    return %c0_i32, %c0_i32_0 : i32, i32
  }
  func.func @transform_2(%arg0: i32) -> (i32, i32) {
    %c0_i32 = arith.constant 0 : i32
    %c0_i32_0 = arith.constant 0 : i32
    %c0_i32_1 = arith.constant 0 : i32
    return %c0_i32, %c0_i32_0 : i32, i32
  }
  func.func @transform_3(%arg0: i32) -> (i32, i32) {
    %c0_i32 = arith.constant 0 : i32
    %c0_i32_0 = arith.constant 0 : i32
    %c0_i32_1 = arith.constant 0 : i32
    return %c0_i32, %c0_i32_0 : i32, i32
  }
  func.func @transform_4(%arg0: i32) -> (i32, i32, i32) {
    %c0_i32 = arith.constant 0 : i32
    %c0_i32_0 = arith.constant 0 : i32
    %c0_i32_1 = arith.constant 0 : i32
    %c0_i32_2 = arith.constant 0 : i32
    return %c0_i32, %c0_i32_0, %c0_i32_1 : i32, i32, i32
  }
  func.func @transform_5(%arg0: i32) -> (i32, i32, i32) {
    %c0_i32 = arith.constant 0 : i32
    %c0_i32_0 = arith.constant 0 : i32
    %c0_i32_1 = arith.constant 0 : i32
    %c0_i32_2 = arith.constant 0 : i32
    return %c0_i32, %c0_i32_0, %c0_i32_1 : i32, i32, i32
  }
  func.func @transform_6(%arg0: i32) -> (i32, i32) {
    %c0_i32 = arith.constant 0 : i32
    %c0_i32_0 = arith.constant 0 : i32
    %c0_i32_1 = arith.constant 0 : i32
    return %c0_i32, %c0_i32_0 : i32, i32
  }
  func.func @transform_7(%arg0: i32) -> (i32, i32) {
    %c0_i32 = arith.constant 0 : i32
    %c0_i32_0 = arith.constant 0 : i32
    %c0_i32_1 = arith.constant 0 : i32
    return %c0_i32, %c0_i32_0 : i32, i32
  }
  func.func @transform_8(%arg0: i32) -> (i32, i32) {
    %c0_i32 = arith.constant 0 : i32
    %c0_i32_0 = arith.constant 0 : i32
    %c0_i32_1 = arith.constant 0 : i32
    return %c0_i32, %c0_i32_0 : i32, i32
  }
  func.func @transform_9(%arg0: i32) -> (i32, i32) {
    %c0_i32 = arith.constant 0 : i32
    %c0_i32_0 = arith.constant 0 : i32
    %c0_i32_1 = arith.constant 0 : i32
    return %c0_i32, %c0_i32_0 : i32, i32
  }
  func.func @transform_10(%arg0: i32) -> (i32, i32) {
    %c0_i32 = arith.constant 0 : i32
    %c0_i32_0 = arith.constant 0 : i32
    %c0_i32_1 = arith.constant 0 : i32
    return %c0_i32, %c0_i32_0 : i32, i32
  }
  func.func @transform_11(%arg0: i32) -> (i32, i32, i32) {
    %c0_i32 = arith.constant 0 : i32
    %c0_i32_0 = arith.constant 0 : i32
    %c0_i32_1 = arith.constant 0 : i32
    %c0_i32_2 = arith.constant 0 : i32
    return %c0_i32, %c0_i32_0, %c0_i32_1 : i32, i32, i32
  }
  func.func @transform_12(%arg0: i32) -> (i32, i32, i32) {
    %c0_i32 = arith.constant 0 : i32
    %c0_i32_0 = arith.constant 0 : i32
    %c0_i32_1 = arith.constant 0 : i32
    %c0_i32_2 = arith.constant 0 : i32
    return %c0_i32, %c0_i32_0, %c0_i32_1 : i32, i32, i32
  }
  func.func @transform_13(%arg0: i32) -> (i32, i32, i32) {
    %c0_i32 = arith.constant 0 : i32
    %c0_i32_0 = arith.constant 0 : i32
    %c0_i32_1 = arith.constant 0 : i32
    %c0_i32_2 = arith.constant 0 : i32
    return %c0_i32, %c0_i32_0, %c0_i32_1 : i32, i32, i32
  }
  func.func @transform_14(%arg0: i32) -> (i32, i32, i32) {
    %c0_i32 = arith.constant 0 : i32
    %c0_i32_0 = arith.constant 0 : i32
    %c0_i32_1 = arith.constant 0 : i32
    %c0_i32_2 = arith.constant 0 : i32
    return %c0_i32, %c0_i32_0, %c0_i32_1 : i32, i32, i32
  }
  func.func @transform_15(%arg0: i32) -> (i32, i32, i32) {
    %c0_i32 = arith.constant 0 : i32
    %c0_i32_0 = arith.constant 0 : i32
    %c0_i32_1 = arith.constant 0 : i32
    %c0_i32_2 = arith.constant 0 : i32
    return %c0_i32, %c0_i32_0, %c0_i32_1 : i32, i32, i32
  }
  func.func @transform_16(%arg0: i32) -> (i32, i32, i32) {
    %c0_i32 = arith.constant 0 : i32
    %c0_i32_0 = arith.constant 0 : i32
    %c0_i32_1 = arith.constant 0 : i32
    %c0_i32_2 = arith.constant 0 : i32
    return %c0_i32, %c0_i32_0, %c0_i32_1 : i32, i32, i32
  }
  func.func @transform_17(%arg0: i32) -> (i32, i32, i32) {
    %c0_i32 = arith.constant 0 : i32
    %c0_i32_0 = arith.constant 0 : i32
    %c0_i32_1 = arith.constant 0 : i32
    %c0_i32_2 = arith.constant 0 : i32
    return %c0_i32, %c0_i32_0, %c0_i32_1 : i32, i32, i32
  }
  func.func @transform_18(%arg0: i32) -> (i32, i32, i32) {
    %c0_i32 = arith.constant 0 : i32
    %c0_i32_0 = arith.constant 0 : i32
    %c0_i32_1 = arith.constant 0 : i32
    %c0_i32_2 = arith.constant 0 : i32
    return %c0_i32, %c0_i32_0, %c0_i32_1 : i32, i32, i32
  }
  func.func @transform_19(%arg0: i32) -> (i32, i32, i32) {
    %c0_i32 = arith.constant 0 : i32
    %c0_i32_0 = arith.constant 0 : i32
    %c0_i32_1 = arith.constant 0 : i32
    %c0_i32_2 = arith.constant 0 : i32
    return %c0_i32, %c0_i32_0, %c0_i32_1 : i32, i32, i32
  }
  func.func @transform_20(%arg0: i32) -> (i32, i32, i32) {
    %c0_i32 = arith.constant 0 : i32
    %c0_i32_0 = arith.constant 0 : i32
    %c0_i32_1 = arith.constant 0 : i32
    %c0_i32_2 = arith.constant 0 : i32
    return %c0_i32, %c0_i32_0, %c0_i32_1 : i32, i32, i32
  }
  func.func @transform_21(%arg0: i32) -> (i32, i32, i32, i32) {
    %c0_i32 = arith.constant 0 : i32
    %c0_i32_0 = arith.constant 0 : i32
    %c0_i32_1 = arith.constant 0 : i32
    %c0_i32_2 = arith.constant 0 : i32
    %c0_i32_3 = arith.constant 0 : i32
    return %c0_i32, %c0_i32_0, %c0_i32_1, %c0_i32_2 : i32, i32, i32, i32
  }
  func.func @transform_22(%arg0: i32) -> (i32, i32, i32, i32) {
    %c0_i32 = arith.constant 0 : i32
    %c0_i32_0 = arith.constant 0 : i32
    %c0_i32_1 = arith.constant 0 : i32
    %c0_i32_2 = arith.constant 0 : i32
    %c0_i32_3 = arith.constant 0 : i32
    return %c0_i32, %c0_i32_0, %c0_i32_1, %c0_i32_2 : i32, i32, i32, i32
  }
  func.func @transform_23(%arg0: i32) -> (i32, i32, i32, i32) {
    %c0_i32 = arith.constant 0 : i32
    %c0_i32_0 = arith.constant 0 : i32
    %c0_i32_1 = arith.constant 0 : i32
    %c0_i32_2 = arith.constant 0 : i32
    %c0_i32_3 = arith.constant 0 : i32
    return %c0_i32, %c0_i32_0, %c0_i32_1, %c0_i32_2 : i32, i32, i32, i32
  }
  func.func @transform_24(%arg0: i32) -> (i32, i32, i32) {
    %c0_i32 = arith.constant 0 : i32
    %c0_i32_0 = arith.constant 0 : i32
    %c0_i32_1 = arith.constant 0 : i32
    %c0_i32_2 = arith.constant 0 : i32
    return %c0_i32, %c0_i32_0, %c0_i32_1 : i32, i32, i32
  }
  func.func @transform_25(%arg0: i32) -> (i32, i32, i32) {
    %c0_i32 = arith.constant 0 : i32
    %c0_i32_0 = arith.constant 0 : i32
    %c0_i32_1 = arith.constant 0 : i32
    %c0_i32_2 = arith.constant 0 : i32
    return %c0_i32, %c0_i32_0, %c0_i32_1 : i32, i32, i32
  }
  func.func @transform_26(%arg0: i32) -> (i32, i32, i32) {
    %c0_i32 = arith.constant 0 : i32
    %c0_i32_0 = arith.constant 0 : i32
    %c0_i32_1 = arith.constant 0 : i32
    %c0_i32_2 = arith.constant 0 : i32
    return %c0_i32, %c0_i32_0, %c0_i32_1 : i32, i32, i32
  }
  func.func @transform_27(%arg0: i32) -> (i32, i32, i32) {
    %c0_i32 = arith.constant 0 : i32
    %c0_i32_0 = arith.constant 0 : i32
    %c0_i32_1 = arith.constant 0 : i32
    %c0_i32_2 = arith.constant 0 : i32
    return %c0_i32, %c0_i32_0, %c0_i32_1 : i32, i32, i32
  }
  func.func @transform_28(%arg0: i32) -> (i32, i32, i32) {
    %c0_i32 = arith.constant 0 : i32
    %c0_i32_0 = arith.constant 0 : i32
    %c0_i32_1 = arith.constant 0 : i32
    %c0_i32_2 = arith.constant 0 : i32
    return %c0_i32, %c0_i32_0, %c0_i32_1 : i32, i32, i32
  }
  func.func @transform_29(%arg0: i32) -> (i32, i32, i32) {
    %c0_i32 = arith.constant 0 : i32
    %c0_i32_0 = arith.constant 0 : i32
    %c0_i32_1 = arith.constant 0 : i32
    %c0_i32_2 = arith.constant 0 : i32
    return %c0_i32, %c0_i32_0, %c0_i32_1 : i32, i32, i32
  }
  func.func @transform_30(%arg0: i32) -> (i32, i32, i32) {
    %c0_i32 = arith.constant 0 : i32
    %c0_i32_0 = arith.constant 0 : i32
    %c0_i32_1 = arith.constant 0 : i32
    %c0_i32_2 = arith.constant 0 : i32
    return %c0_i32, %c0_i32_0, %c0_i32_1 : i32, i32, i32
  }
  func.func @transform_31(%arg0: i32) -> (i32, i32, i32) {
    %c0_i32 = arith.constant 0 : i32
    %c0_i32_0 = arith.constant 0 : i32
    %c0_i32_1 = arith.constant 0 : i32
    %c0_i32_2 = arith.constant 0 : i32
    return %c0_i32, %c0_i32_0, %c0_i32_1 : i32, i32, i32
  }
  func.func @transform_32(%arg0: i32) -> (i32, i32, i32) {
    %c0_i32 = arith.constant 0 : i32
    %c0_i32_0 = arith.constant 0 : i32
    %c0_i32_1 = arith.constant 0 : i32
    %c0_i32_2 = arith.constant 0 : i32
    return %c0_i32, %c0_i32_0, %c0_i32_1 : i32, i32, i32
  }
  func.func @transform_33(%arg0: i32) -> (i32, i32) {
    %c0_i32 = arith.constant 0 : i32
    %c0_i32_0 = arith.constant 0 : i32
    %c0_i32_1 = arith.constant 0 : i32
    return %c0_i32, %c0_i32_0 : i32, i32
  }
}

</mosaic_0001>

<llo_original>
// kernel: tpu_custom_call.1
$region0: #{tpu_custom_call.1}
  #allocation0 [shape = 'u32[]', space=smem, size = 0x4, offset = 0x4, fixed_abs, tag = 'smem constant byte address 0x4 - core index']
  #allocation1 [shape = 'u32[144,128]{1,0:T(1,128)}', space=vmem, size = 0x12000, scoped, tag = 'internal scratch']
  %s0 = inlined_call_operand.smem [shape: u32[34], index: -1, kind: input, shape index: {}]
  %s1 = sld [smem:[%s0]]
  %s2 = scalar_lea.smem %s0, 1
  %s3 = sld [smem:[%s2]]
  %s4 = scalar_lea.smem %s0, 2
  %s5 = sld [smem:[%s4]]
  %s6 = scalar_lea.smem %s0, 3
  %s7 = sld [smem:[%s6]]
  %s8 = scalar_lea.smem %s0, 4
  %s9 = sld [smem:[%s8]]
  %s10 = scalar_lea.smem %s0, 5
  %s11 = sld [smem:[%s10]]
  %s12 = scalar_lea.smem %s0, 6
  %s13 = sld [smem:[%s12]]
  %s14 = scalar_lea.smem %s0, 7
  %s15 = sld [smem:[%s14]]
  %s16 = scalar_lea.smem %s0, 8
  %s17 = sld [smem:[%s16]]
  %s18 = scalar_lea.smem %s0, 9
  %s19 = sld [smem:[%s18]]
  %s20 = scalar_lea.smem %s0, 10
  %s21 = sld [smem:[%s20]]
  %s22 = scalar_lea.smem %s0, 11
  %s23 = sld [smem:[%s22]]
  %s24 = scalar_lea.smem %s0, 12
  %s25 = sld [smem:[%s24]]
  %s26 = scalar_lea.smem %s0, 13
  %s27 = sld [smem:[%s26]]
  %s28 = scalar_lea.smem %s0, 14
  %s29 = sld [smem:[%s28]]
  %s30 = scalar_lea.smem %s0, 15
  %s31 = sld [smem:[%s30]]
  %s32 = scalar_lea.smem %s0, 16
  %s33 = sld [smem:[%s32]]
  %s34 = scalar_lea.smem %s0, 17
  %s35 = sld [smem:[%s34]]
  %s36 = scalar_lea.smem %s0, 18
  %s37 = sld [smem:[%s36]]
  %s38 = scalar_lea.smem %s0, 19
  %s39 = sld [smem:[%s38]]
  %s40 = scalar_lea.smem %s0, 20
  %s41 = sld [smem:[%s40]]
  %s42 = scalar_lea.smem %s0, 21
  %s43 = sld [smem:[%s42]]
  %s44 = scalar_lea.smem %s0, 22
  %s45 = sld [smem:[%s44]]
  %s46 = scalar_lea.smem %s0, 23
  %s47 = sld [smem:[%s46]]
  %s48 = scalar_lea.smem %s0, 24
  %s49 = sld [smem:[%s48]]
  %s50 = scalar_lea.smem %s0, 25
  %s51 = sld [smem:[%s50]]
  %s52 = scalar_lea.smem %s0, 26
  %s53 = sld [smem:[%s52]]
  %s54 = scalar_lea.smem %s0, 27
  %s55 = sld [smem:[%s54]]
  %s56 = scalar_lea.smem %s0, 28
  %s57 = sld [smem:[%s56]]
  %s58 = scalar_lea.smem %s0, 29
  %s59 = sld [smem:[%s58]]
  %s60 = scalar_lea.smem %s0, 30
  %s61 = sld [smem:[%s60]]
  %s62 = scalar_lea.smem %s0, 31
  %s63 = sld [smem:[%s62]]
  %s64 = scalar_lea.smem %s0, 32
  %s65 = sld [smem:[%s64]]
  %s66 = scalar_lea.smem %s0, 33
  %s67 = sld [smem:[%s66]]
  %s68 = sld [smem:[#allocation0]]
  $region142: #{tpu_custom_call.1} parent=0
    _
  %s70 = ssub.s32 1, %s68
  %s71 = scalar_select 0, %s70, %s68
  $region1: #{tpu_custom_call.1} parent=0
    #allocation2 [shape = 'u8[1024]{0}', space=vmem, size = 0x400, scoped, tag = 'output window, operand 0, single buffered']
    #allocation3 [shape = 's32[1]{0}', space=sflag, size = 0x4, scoped, tag = 'scoped memory for tpu_custom_call.1']
    %72 = vsyncpa [#allocation3], 0
    // Predicated region
    $region2: #{tpu_custom_call.1} parent=1 // pred_check
      _
    $region3: #{tpu_custom_call.1} parent=1 // pred_check_branch
      %74 = sbr.rel (0) target = $region5
    $region4: #{tpu_custom_call.1} parent=1 // pred_region
      _
    $region5: #{tpu_custom_call.1} parent=1 // pred_fallthru
      _
    // Predicated region
    $region6: #{tpu_custom_call.1} parent=1 // pred_check
      _
    $region7: #{tpu_custom_call.1} parent=1 // pred_check_branch
      %76 = sbr.rel (0) target = $region9
    $region8: #{tpu_custom_call.1} parent=1 // pred_region
      _
    $region9: #{tpu_custom_call.1} parent=1 // pred_fallthru
      _
    // Predicated region
    $region10: #{tpu_custom_call.1} parent=1 // pred_check
      _
    $region11: #{tpu_custom_call.1} parent=1 // pred_check_branch
      %78 = sbr.rel (0) target = $region13
    $region12: #{tpu_custom_call.1} parent=1 // pred_region
      _
    $region13: #{tpu_custom_call.1} parent=1 // pred_fallthru
      _
    // Predicated region
    $region14: #{tpu_custom_call.1} parent=1 // pred_check
      _
    $region15: #{tpu_custom_call.1} parent=1 // pred_check_branch
      %80 = sbr.rel (0) target = $region17
    $region16: #{tpu_custom_call.1} parent=1 // pred_region
      _
    $region17: #{tpu_custom_call.1} parent=1 // pred_fallthru
      _
    // Predicated region
    $region18: #{tpu_custom_call.1} parent=1 // pred_check
      _
    $region19: #{tpu_custom_call.1} parent=1 // pred_check_branch
      %82 = sbr.rel (0) target = $region21
    $region20: #{tpu_custom_call.1} parent=1 // pred_region
      _
    $region21: #{tpu_custom_call.1} parent=1 // pred_fallthru
      _
    // Predicated region
    $region22: #{tpu_custom_call.1} parent=1 // pred_check
      _
    $region23: #{tpu_custom_call.1} parent=1 // pred_check_branch
      %84 = sbr.rel (0) target = $region25
    $region24: #{tpu_custom_call.1} parent=1 // pred_region
      _
    $region25: #{tpu_custom_call.1} parent=1 // pred_fallthru
      _
    // Predicated region
    $region26: #{tpu_custom_call.1} parent=1 // pred_check
      _
    $region27: #{tpu_custom_call.1} parent=1 // pred_check_branch
      %86 = sbr.rel (0) target = $region29
    $region28: #{tpu_custom_call.1} parent=1 // pred_region
      _
    $region29: #{tpu_custom_call.1} parent=1 // pred_fallthru
      _
    // Predicated region
    $region30: #{tpu_custom_call.1} parent=1 // pred_check
      _
    $region31: #{tpu_custom_call.1} parent=1 // pred_check_branch
      %88 = sbr.rel (0) target = $region33
    $region32: #{tpu_custom_call.1} parent=1 // pred_region
      _
    $region33: #{tpu_custom_call.1} parent=1 // pred_fallthru
      _
    // Predicated region
    $region34: #{tpu_custom_call.1} parent=1 // pred_check
      _
    $region35: #{tpu_custom_call.1} parent=1 // pred_check_branch
      %90 = sbr.rel (0) target = $region37
    $region36: #{tpu_custom_call.1} parent=1 // pred_region
      _
    $region37: #{tpu_custom_call.1} parent=1 // pred_fallthru
      _
    // Predicated region
    $region38: #{tpu_custom_call.1} parent=1 // pred_check
      _
    $region39: #{tpu_custom_call.1} parent=1 // pred_check_branch
      %92 = sbr.rel (0) target = $region41
    $region40: #{tpu_custom_call.1} parent=1 // pred_region
      _
    $region41: #{tpu_custom_call.1} parent=1 // pred_fallthru
      _
    // Predicated region
    $region42: #{tpu_custom_call.1} parent=1 // pred_check
      _
    $region43: #{tpu_custom_call.1} parent=1 // pred_check_branch
      %94 = sbr.rel (0) target = $region45
    $region44: #{tpu_custom_call.1} parent=1 // pred_region
      _
    $region45: #{tpu_custom_call.1} parent=1 // pred_fallthru
      _
    // Predicated region
    $region46: #{tpu_custom_call.1} parent=1 // pred_check
      _
    $region47: #{tpu_custom_call.1} parent=1 // pred_check_branch
      %96 = sbr.rel (0) target = $region49
    $region48: #{tpu_custom_call.1} parent=1 // pred_region
      _
    $region49: #{tpu_custom_call.1} parent=1 // pred_fallthru
      _
    // Predicated region
    $region50: #{tpu_custom_call.1} parent=1 // pred_check
      _
    $region51: #{tpu_custom_call.1} parent=1 // pred_check_branch
      %98 = sbr.rel (0) target = $region53
    $region52: #{tpu_custom_call.1} parent=1 // pred_region
      _
    $region53: #{tpu_custom_call.1} parent=1 // pred_fallthru
      _
    // Predicated region
    $region54: #{tpu_custom_call.1} parent=1 // pred_check
      _
    $region55: #{tpu_custom_call.1} parent=1 // pred_check_branch
      %100 = sbr.rel (0) target = $region57
    $region56: #{tpu_custom_call.1} parent=1 // pred_region
      _
    $region57: #{tpu_custom_call.1} parent=1 // pred_fallthru
      _
    // Predicated region
    $region58: #{tpu_custom_call.1} parent=1 // pred_check
      _
    $region59: #{tpu_custom_call.1} parent=1 // pred_check_branch
      %102 = sbr.rel (0) target = $region61
    $region60: #{tpu_custom_call.1} parent=1 // pred_region
      _
    $region61: #{tpu_custom_call.1} parent=1 // pred_fallthru
      _
    // Predicated region
    $region62: #{tpu_custom_call.1} parent=1 // pred_check
      _
    $region63: #{tpu_custom_call.1} parent=1 // pred_check_branch
      %104 = sbr.rel (0) target = $region65
    $region64: #{tpu_custom_call.1} parent=1 // pred_region
      _
    $region65: #{tpu_custom_call.1} parent=1 // pred_fallthru
      _
    // Predicated region
    $region66: #{tpu_custom_call.1} parent=1 // pred_check
      _
    $region67: #{tpu_custom_call.1} parent=1 // pred_check_branch
      %106 = sbr.rel (0) target = $region69
    $region68: #{tpu_custom_call.1} parent=1 // pred_region
      _
    $region69: #{tpu_custom_call.1} parent=1 // pred_fallthru
      _
    // Predicated region
    $region70: #{tpu_custom_call.1} parent=1 // pred_check
      _
    $region71: #{tpu_custom_call.1} parent=1 // pred_check_branch
      %108 = sbr.rel (0) target = $region73
    $region72: #{tpu_custom_call.1} parent=1 // pred_region
      _
    $region73: #{tpu_custom_call.1} parent=1 // pred_fallthru
      _
    // Predicated region
    $region74: #{tpu_custom_call.1} parent=1 // pred_check
      _
    $region75: #{tpu_custom_call.1} parent=1 // pred_check_branch
      %110 = sbr.rel (0) target = $region77
    $region76: #{tpu_custom_call.1} parent=1 // pred_region
      _
    $region77: #{tpu_custom_call.1} parent=1 // pred_fallthru
      _
    // Predicated region
    $region78: #{tpu_custom_call.1} parent=1 // pred_check
      _
    $region79: #{tpu_custom_call.1} parent=1 // pred_check_branch
      %112 = sbr.rel (0) target = $region81
    $region80: #{tpu_custom_call.1} parent=1 // pred_region
      _
    $region81: #{tpu_custom_call.1} parent=1 // pred_fallthru
      _
    // Predicated region
    $region82: #{tpu_custom_call.1} parent=1 // pred_check
      _
    $region83: #{tpu_custom_call.1} parent=1 // pred_check_branch
      %114 = sbr.rel (0) target = $region85
    $region84: #{tpu_custom_call.1} parent=1 // pred_region
      _
    $region85: #{tpu_custom_call.1} parent=1 // pred_fallthru
      _
    // Predicated region
    $region86: #{tpu_custom_call.1} parent=1 // pred_check
      _
    $region87: #{tpu_custom_call.1} parent=1 // pred_check_branch
      %116 = sbr.rel (0) target = $region89
    $region88: #{tpu_custom_call.1} parent=1 // pred_region
      _
    $region89: #{tpu_custom_call.1} parent=1 // pred_fallthru
      _
    // Predicated region
    $region90: #{tpu_custom_call.1} parent=1 // pred_check
      _
    $region91: #{tpu_custom_call.1} parent=1 // pred_check_branch
      %118 = sbr.rel (0) target = $region93
    $region92: #{tpu_custom_call.1} parent=1 // pred_region
      _
    $region93: #{tpu_custom_call.1} parent=1 // pred_fallthru
      _
    // Predicated region
    $region94: #{tpu_custom_call.1} parent=1 // pred_check
      _
    $region95: #{tpu_custom_call.1} parent=1 // pred_check_branch
      %120 = sbr.rel (0) target = $region97
    $region96: #{tpu_custom_call.1} parent=1 // pred_region
      _
    $region97: #{tpu_custom_call.1} parent=1 // pred_fallthru
      _
    // Predicated region
    $region98: #{tpu_custom_call.1} parent=1 // pred_check
      _
    $region99: #{tpu_custom_call.1} parent=1 // pred_check_branch
      %122 = sbr.rel (0) target = $region101
    $region100: #{tpu_custom_call.1} parent=1 // pred_region
      _
    $region101: #{tpu_custom_call.1} parent=1 // pred_fallthru
      _
    // Predicated region
    $region102: #{tpu_custom_call.1} parent=1 // pred_check
      _
    $region103: #{tpu_custom_call.1} parent=1 // pred_check_branch
      %124 = sbr.rel (0) target = $region105
    $region104: #{tpu_custom_call.1} parent=1 // pred_region
      _
    $region105: #{tpu_custom_call.1} parent=1 // pred_fallthru
      _
    // Predicated region
    $region106: #{tpu_custom_call.1} parent=1 // pred_check
      _
    $region107: #{tpu_custom_call.1} parent=1 // pred_check_branch
      %126 = sbr.rel (0) target = $region109
    $region108: #{tpu_custom_call.1} parent=1 // pred_region
      _
    $region109: #{tpu_custom_call.1} parent=1 // pred_fallthru
      _
    // Predicated region
    $region110: #{tpu_custom_call.1} parent=1 // pred_check
      _
    $region111: #{tpu_custom_call.1} parent=1 // pred_check_branch
      %128 = sbr.rel (0) target = $region113
    $region112: #{tpu_custom_call.1} parent=1 // pred_region
      _
    $region113: #{tpu_custom_call.1} parent=1 // pred_fallthru
      _
    // Predicated region
    $region114: #{tpu_custom_call.1} parent=1 // pred_check
      _
    $region115: #{tpu_custom_call.1} parent=1 // pred_check_branch
      %130 = sbr.rel (0) target = $region117
    $region116: #{tpu_custom_call.1} parent=1 // pred_region
      _
    $region117: #{tpu_custom_call.1} parent=1 // pred_fallthru
      _
    // Predicated region
    $region118: #{tpu_custom_call.1} parent=1 // pred_check
      _
    $region119: #{tpu_custom_call.1} parent=1 // pred_check_branch
      %132 = sbr.rel (0) target = $region121
    $region120: #{tpu_custom_call.1} parent=1 // pred_region
      _
    $region121: #{tpu_custom_call.1} parent=1 // pred_fallthru
      _
    // Predicated region
    $region122: #{tpu_custom_call.1} parent=1 // pred_check
      _
    $region123: #{tpu_custom_call.1} parent=1 // pred_check_branch
      %134 = sbr.rel (0) target = $region125
    $region124: #{tpu_custom_call.1} parent=1 // pred_region
      _
    $region125: #{tpu_custom_call.1} parent=1 // pred_fallthru
      _
    // Predicated region
    $region126: #{tpu_custom_call.1} parent=1 // pred_check
      _
    $region127: #{tpu_custom_call.1} parent=1 // pred_check_branch
      %136 = sbr.rel (0) target = $region129
    $region128: #{tpu_custom_call.1} parent=1 // pred_region
      _
    $region129: #{tpu_custom_call.1} parent=1 // pred_fallthru
      _
    // Predicated region
    $region130: #{tpu_custom_call.1} parent=1 // pred_check
      _
    $region131: #{tpu_custom_call.1} parent=1 // pred_check_branch
      %138 = sbr.rel (0) target = $region133
    $region132: #{tpu_custom_call.1} parent=1 // pred_region
      _
    $region133: #{tpu_custom_call.1} parent=1 // pred_fallthru
      _
    %v140 = vld [vmem:[%s1] sm:$0xff]
    %v141 = vld [vmem:[%s1 + $0x8] sm:$0xf]
    %v142 = vpack.c.bf16 %v141, %v140
    %v143 = vld [vmem:[%s17] sm:$0xf]
    %v144 = vld [vmem:[%s17 + $0x4] sm:$0xf]
    %v145 = vld [vmem:[%s17 + $0x8] sm:$0xf]
    %v146 = vld [vmem:[%s19] sm:$0x1]
    %v148 = vlaneseq
    %v149 = vshrl.u32 %v148, 7
    %v150 = vsub.s32 0, %v149
    %v151 = vrot.slane %v146, %v150
    %v156 = vunpack.c.l.b16 %v143
    %v157 = vunpack.c.l.b16 %v144
    %v158 = vunpack.c.l.b16 %v145
    %v159 = vpack.c.b16 %v157, %v156
    %v160 = vpack.c.b16 %v158, %v158
    %vm162 = vcmask 187392
    %v164 = vsel %vm162, %v142, 0
    %vm166 = vcmask 1042432
    %vm167 = vcmask 1043456
    %v168 = vsel %vm166, 4294967295, 65535
    %v169 = vsel %vm167, %v168, 0
    %v171 = vand.u32 %v160, %v169
    %173 = vmatprep.subr.bf16.mxu0 0
    %174 = vmatpush1.bf16.msra.mxu0 %v159
    %175 = vmatprep.subr.bf16.mxu0 0
    %176 = vmatpush1.bf16.msra.mxu0 %v171
    %177 = vmatprep.subr.bf16.mxu0 0
    %178 = vmatpush1.bf16.msra.mxu0 0
    %179 = vmatprep.subr.bf16.mxu0 0
    %180 = vmatpush1.bf16.msra.mxu0 0
    %181 = vmatprep.subr.bf16.mxu0 0
    %182 = vmatpush1.bf16.msra.mxu0 0
    %183 = vmatprep.subr.bf16.mxu0 0
    %184 = vmatpush1.bf16.msra.mxu0 0
    %185 = vmatprep.subr.bf16.mxu0 0
    %186 = vmatpush1.bf16.msra.mxu0 0
    %187 = vmatprep.subr.bf16.mxu0 0
    %188 = vmatpush1.bf16.msra.mxu0 0
    %189 = vmatprep.subr.bf16.mxu0 0
    %190 = vmatpush1.bf16.msra.mxu0 0
    %191 = vmatprep.subr.bf16.mxu0 0
    %192 = vmatpush1.bf16.msra.mxu0 0
    %193 = vmatprep.subr.bf16.mxu0 0
    %194 = vmatpush1.bf16.msra.mxu0 0
    %195 = vmatprep.subr.bf16.mxu0 0
    %196 = vmatpush1.bf16.msra.mxu0 0
    %197 = vmatprep.subr.bf16.mxu0 0
    %198 = vmatpush1.bf16.msra.mxu0 0
    %199 = vmatprep.subr.bf16.mxu0 0
    %200 = vmatpush1.bf16.msra.mxu0 0
    %201 = vmatprep.subr.bf16.mxu0 0
    %202 = vmatpush1.bf16.msra.mxu0 0
    %203 = vmatprep.subr.bf16.mxu0 0
    %204 = vmatpush1.bf16.msra.mxu0 0
    %205 = vmatprep.mubr.bf16.mxu0 0
    %206 = vmatmul.mubr.bf16.gmra.mrb[0].mxu0 %v164
    %v207 = vpop.f32.mrb[0].mxu0
    %v208 = vadd.f32 %v151, %v207
    %v209 = vpop.f32.mrb[0].mxu0
    %v210 = vpop.f32.mrb[0].mxu0
    %v211 = vadd.f32 %v151, %v210
    %v212 = vpop.f32.mrb[0].mxu0
    %213 = vdwg.mxu0
    %v214 = vld [vmem:[%s3] sm:$0xf]
    %v215 = vld [vmem:[%s3 + $0x4] sm:$0xf]
    %v216 = vld [vmem:[%s3 + $0x8] sm:$0xf]
    %v217 = vld [vmem:[%s21] sm:$0xf]
    %v218 = vld [vmem:[%s21 + $0x4] sm:$0xf]
    %v219 = vld [vmem:[%s21 + $0x8] sm:$0xf]
    %v220 = vld [vmem:[%s21 + $0xc] sm:$0xf]
    %v221 = vld [vmem:[%s21 + $0x10] sm:$0xf]
    %v222 = vld [vmem:[%s21 + $0x14] sm:$0xf]
    %v223 = vld [vmem:[%s21 + $0x18] sm:$0xf]
    %v224 = vld [vmem:[%s21 + $0x1c] sm:$0xf]
    %v228 = vunpack.c.l.b16 %v214
    %v229 = vunpack.c.l.b16 %v215
    %v230 = vunpack.c.l.b16 %v216
    %v231 = vpack.c.b16 %v229, %v228
    %v232 = vpack.c.b16 %v230, %v230
    %v241 = vunpack.c.l.b16 %v217
    %v242 = vunpack.c.l.b16 %v218
    %v243 = vunpack.c.l.b16 %v219
    %v244 = vunpack.c.l.b16 %v220
    %v245 = vunpack.c.l.b16 %v221
    %v246 = vunpack.c.l.b16 %v222
    %v247 = vunpack.c.l.b16 %v223
    %v248 = vunpack.c.l.b16 %v224
    %v249 = vpack.c.b16 %v242, %v241
    %v250 = vpack.c.b16 %v244, %v243
    %v251 = vpack.c.b16 %v246, %v245
    %v252 = vpack.c.b16 %v248, %v247
    %vm257 = vcmask 523264
    %v259 = vsel %vm257, %v231, 0
    %v262 = vsel %vm257, %v232, 0
    %264 = vmatprep.subr.bf16.mxu0 0
    %265 = vmatpush1.bf16.msra.mxu0 %v249
    %266 = vmatprep.subr.bf16.mxu0 0
    %267 = vmatpush1.bf16.msra.mxu0 %v250
    %268 = vmatprep.subr.bf16.mxu0 0
    %269 = vmatpush1.bf16.msra.mxu0 %v251
    %270 = vmatprep.subr.bf16.mxu0 0
    %271 = vmatpush1.bf16.msra.mxu0 %v252
    %272 = vmatprep.subr.bf16.mxu0 0
    %273 = vmatpush1.bf16.msra.mxu0 0
    %274 = vmatprep.subr.bf16.mxu0 0
    %275 = vmatpush1.bf16.msra.mxu0 0
    %276 = vmatprep.subr.bf16.mxu0 0
    %277 = vmatpush1.bf16.msra.mxu0 0
    %278 = vmatprep.subr.bf16.mxu0 0
    %279 = vmatpush1.bf16.msra.mxu0 0
    %280 = vmatprep.subr.bf16.mxu0 0
    %281 = vmatpush1.bf16.msra.mxu0 0
    %282 = vmatprep.subr.bf16.mxu0 0
    %283 = vmatpush1.bf16.msra.mxu0 0
    %284 = vmatprep.subr.bf16.mxu0 0
    %285 = vmatpush1.bf16.msra.mxu0 0
    %286 = vmatprep.subr.bf16.mxu0 0
    %287 = vmatpush1.bf16.msra.mxu0 0
    %288 = vmatprep.subr.bf16.mxu0 0
    %289 = vmatpush1.bf16.msra.mxu0 0
    %290 = vmatprep.subr.bf16.mxu0 0
    %291 = vmatpush1.bf16.msra.mxu0 0
    %292 = vmatprep.subr.bf16.mxu0 0
    %293 = vmatpush1.bf16.msra.mxu0 0
    %294 = vmatprep.subr.bf16.mxu0 0
    %295 = vmatpush1.bf16.msra.mxu0 0
    %296 = vmatprep.mubr.bf16.mxu0 0
    %297 = vmatmul.mubr.bf16.gmra.mrb[0].mxu0 %v259
    %v298 = vpop.f32.mrb[0].mxu0
    %v299 = vadd.f32 0.0, %v298
    %v300 = vpop.f32.mrb[0].mxu0
    %v301 = vpop.f32.mrb[0].mxu0
    %v302 = vadd.f32 0.0, %v301
    %v303 = vpop.f32.mrb[0].mxu0
    %304 = vmatprep.mubr.bf16.mxu0 0
    %305 = vmatmul.mubr.bf16.gmra.mrb[0].mxu0 %v262
    %v306 = vpop.f32.mrb[0].mxu0
    %v307 = vadd.f32 0.0, %v306
    %v308 = vpop.f32.mrb[0].mxu0
    %v309 = vpop.f32.mrb[0].mxu0
    %v310 = vpop.f32.mrb[0].mxu0
    %311 = vdwg.mxu0
    %v312 = vpack.c.bf16 %v302, %v299
    %v313 = vpack.c.bf16 %v307, %v307
    %v314 = vpack.c.bf16 %v211, %v208
    %v315 = vld [vmem:[%s23] sm:$0xf]
    %v316 = vld [vmem:[%s23 + $0x4] sm:$0xf]
    %v317 = vld [vmem:[%s23 + $0x8] sm:$0xf]
    %v318 = vld [vmem:[%s23 + $0xc] sm:$0xf]
    %v323 = vunpack.c.l.b16 %v315
    %v324 = vunpack.c.l.b16 %v316
    %v325 = vunpack.c.l.b16 %v317
    %v326 = vunpack.c.l.b16 %v318
    %v327 = vpack.c.b16 %v324, %v323
    %v328 = vpack.c.b16 %v326, %v325
    %vm331 = vcmask 261120
    %v333 = vsel %vm331, %v314, 0
    %335 = vmatprep.subr.bf16.mxu0 0
    %336 = vmatpush1.bf16.msra.mxu0 %v327
    %337 = vmatprep.subr.bf16.mxu0 0
    %338 = vmatpush1.bf16.msra.mxu0 %v328
    %339 = vmatprep.subr.bf16.mxu0 0
    %340 = vmatpush1.bf16.msra.mxu0 0
    %341 = vmatprep.subr.bf16.mxu0 0
    %342 = vmatpush1.bf16.msra.mxu0 0
    %343 = vmatprep.subr.bf16.mxu0 0
    %344 = vmatpush1.bf16.msra.mxu0 0
    %345 = vmatprep.subr.bf16.mxu0 0
    %346 = vmatpush1.bf16.msra.mxu0 0
    %347 = vmatprep.subr.bf16.mxu0 0
    %348 = vmatpush1.bf16.msra.mxu0 0
    %349 = vmatprep.subr.bf16.mxu0 0
    %350 = vmatpush1.bf16.msra.mxu0 0
    %351 = vmatprep.subr.bf16.mxu0 0
    %352 = vmatpush1.bf16.msra.mxu0 0
    %353 = vmatprep.subr.bf16.mxu0 0
    %354 = vmatpush1.bf16.msra.mxu0 0
    %355 = vmatprep.subr.bf16.mxu0 0
    %356 = vmatpush1.bf16.msra.mxu0 0
    %357 = vmatprep.subr.bf16.mxu0 0
    %358 = vmatpush1.bf16.msra.mxu0 0
    %359 = vmatprep.subr.bf16.mxu0 0
    %360 = vmatpush1.bf16.msra.mxu0 0
    %361 = vmatprep.subr.bf16.mxu0 0
    %362 = vmatpush1.bf16.msra.mxu0 0
    %363 = vmatprep.subr.bf16.mxu0 0
    %364 = vmatpush1.bf16.msra.mxu0 0
    %365 = vmatprep.subr.bf16.mxu0 0
    %366 = vmatpush1.bf16.msra.mxu0 0
    %367 = vmatprep.mubr.bf16.mxu0 0
    %368 = vmatmul.mubr.bf16.gmra.mrb[0].mxu0 %v333
    %v369 = vpop.f32.mrb[0].mxu0
    %v370 = vadd.f32 0.0, %v369
    %v371 = vpop.f32.mrb[0].mxu0
    %v372 = vpop.f32.mrb[0].mxu0
    %v373 = vadd.f32 0.0, %v372
    %v374 = vpop.f32.mrb[0].mxu0
    %375 = vdwg.mxu0
    %v376 = vld [vmem:[%s25] sm:$0xf]
    %v377 = vld [vmem:[%s25 + $0x4] sm:$0xf]
    %v378 = vld [vmem:[%s25 + $0x8] sm:$0xf]
    %v379 = vld [vmem:[%s25 + $0xc] sm:$0xf]
    %v384 = vunpack.c.l.b16 %v376
    %v385 = vunpack.c.l.b16 %v377
    %v386 = vunpack.c.l.b16 %v378
    %v387 = vunpack.c.l.b16 %v379
    %v388 = vpack.c.b16 %v385, %v384
    %v389 = vpack.c.b16 %v387, %v386
    %392 = vmatprep.subr.bf16.mxu0 0
    %393 = vmatpush1.bf16.msra.mxu0 %v388
    %394 = vmatprep.subr.bf16.mxu0 0
    %395 = vmatpush1.bf16.msra.mxu0 %v389
    %396 = vmatprep.subr.bf16.mxu0 0
    %397 = vmatpush1.bf16.msra.mxu0 0
    %398 = vmatprep.subr.bf16.mxu0 0
    %399 = vmatpush1.bf16.msra.mxu0 0
    %400 = vmatprep.subr.bf16.mxu0 0
    %401 = vmatpush1.bf16.msra.mxu0 0
    %402 = vmatprep.subr.bf16.mxu0 0
    %403 = vmatpush1.bf16.msra.mxu0 0
    %404 = vmatprep.subr.bf16.mxu0 0
    %405 = vmatpush1.bf16.msra.mxu0 0
    %406 = vmatprep.subr.bf16.mxu0 0
    %407 = vmatpush1.bf16.msra.mxu0 0
    %408 = vmatprep.subr.bf16.mxu0 0
    %409 = vmatpush1.bf16.msra.mxu0 0
    %410 = vmatprep.subr.bf16.mxu0 0
    %411 = vmatpush1.bf16.msra.mxu0 0
    %412 = vmatprep.subr.bf16.mxu0 0
    %413 = vmatpush1.bf16.msra.mxu0 0
    %414 = vmatprep.subr.bf16.mxu0 0
    %415 = vmatpush1.bf16.msra.mxu0 0
    %416 = vmatprep.subr.bf16.mxu0 0
    %417 = vmatpush1.bf16.msra.mxu0 0
    %418 = vmatprep.subr.bf16.mxu0 0
    %419 = vmatpush1.bf16.msra.mxu0 0
    %420 = vmatprep.subr.bf16.mxu0 0
    %421 = vmatpush1.bf16.msra.mxu0 0
    %422 = vmatprep.subr.bf16.mxu0 0
    %423 = vmatpush1.bf16.msra.mxu0 0
    %424 = vmatprep.mubr.bf16.mxu0 0
    %425 = vmatmul.mubr.bf16.gmra.mrb[0].mxu0 %v333
    %v426 = vpop.f32.mrb[0].mxu0
    %v427 = vadd.f32 0.0, %v426
    %v428 = vpop.f32.mrb[0].mxu0
    %v429 = vpop.f32.mrb[0].mxu0
    %v430 = vadd.f32 0.0, %v429
    %v431 = vpop.f32.mrb[0].mxu0
    %432 = vdwg.mxu0
    %v433 = vld [vmem:[%s27] sm:$0xf]
    %v434 = vld [vmem:[%s27 + $0x4] sm:$0xf]
    %v435 = vld [vmem:[%s27 + $0x8] sm:$0xf]
    %v436 = vld [vmem:[%s27 + $0xc] sm:$0xf]
    %v441 = vunpack.c.l.b16 %v433
    %v442 = vunpack.c.l.b16 %v434
    %v443 = vunpack.c.l.b16 %v435
    %v444 = vunpack.c.l.b16 %v436
    %v445 = vpack.c.b16 %v442, %v441
    %v446 = vpack.c.b16 %v444, %v443
    %449 = vmatprep.subr.bf16.mxu0 0
    %450 = vmatpush1.bf16.msra.mxu0 %v445
    %451 = vmatprep.subr.bf16.mxu0 0
    %452 = vmatpush1.bf16.msra.mxu0 %v446
    %453 = vmatprep.subr.bf16.mxu0 0
    %454 = vmatpush1.bf16.msra.mxu0 0
    %455 = vmatprep.subr.bf16.mxu0 0
    %456 = vmatpush1.bf16.msra.mxu0 0
    %457 = vmatprep.subr.bf16.mxu0 0
    %458 = vmatpush1.bf16.msra.mxu0 0
    %459 = vmatprep.subr.bf16.mxu0 0
    %460 = vmatpush1.bf16.msra.mxu0 0
    %461 = vmatprep.subr.bf16.mxu0 0
    %462 = vmatpush1.bf16.msra.mxu0 0
    %463 = vmatprep.subr.bf16.mxu0 0
    %464 = vmatpush1.bf16.msra.mxu0 0
    %465 = vmatprep.subr.bf16.mxu0 0
    %466 = vmatpush1.bf16.msra.mxu0 0
    %467 = vmatprep.subr.bf16.mxu0 0
    %468 = vmatpush1.bf16.msra.mxu0 0
    %469 = vmatprep.subr.bf16.mxu0 0
    %470 = vmatpush1.bf16.msra.mxu0 0
    %471 = vmatprep.subr.bf16.mxu0 0
    %472 = vmatpush1.bf16.msra.mxu0 0
    %473 = vmatprep.subr.bf16.mxu0 0
    %474 = vmatpush1.bf16.msra.mxu0 0
    %475 = vmatprep.subr.bf16.mxu0 0
    %476 = vmatpush1.bf16.msra.mxu0 0
    %477 = vmatprep.subr.bf16.mxu0 0
    %478 = vmatpush1.bf16.msra.mxu0 0
    %479 = vmatprep.subr.bf16.mxu0 0
    %480 = vmatpush1.bf16.msra.mxu0 0
    %481 = vmatprep.mubr.bf16.mxu0 0
    %482 = vmatmul.mubr.bf16.gmra.mrb[0].mxu0 %v333
    %v483 = vpop.f32.mrb[0].mxu0
    %v484 = vadd.f32 0.0, %v483
    %v485 = vpop.f32.mrb[0].mxu0
    %v486 = vpop.f32.mrb[0].mxu0
    %v487 = vadd.f32 0.0, %v486
    %v488 = vpop.f32.mrb[0].mxu0
    %489 = vdwg.mxu0
    %v490 = vld [vmem:[%s31] sm:$0xf]
    %v491 = vld [vmem:[%s31 + $0x4] sm:$0xf]
    %v492 = vld [vmem:[%s31 + $0x8] sm:$0xf]
    %v493 = vld [vmem:[%s31 + $0xc] sm:$0xf]
    %v494 = vld [vmem:[%s33] sm:$0x1]
    %v496 = vlaneseq
    %v497 = vshrl.u32 %v496, 7
    %v498 = vsub.s32 0, %v497
    %v499 = vrot.slane %v494, %v498
    %v505 = vunpack.c.l.b16 %v490
    %v506 = vunpack.c.l.b16 %v491
    %v507 = vunpack.c.l.b16 %v492
    %v508 = vunpack.c.l.b16 %v493
    %v509 = vpack.c.b16 %v506, %v505
    %v510 = vpack.c.b16 %v508, %v507
    %v514 = vsel %vm331, %v312, 0
    %v517 = vsel %vm331, %v313, 0
    %519 = vmatprep.subr.bf16.mxu0 0
    %520 = vmatpush1.bf16.msra.mxu0 %v509
    %521 = vmatprep.subr.bf16.mxu0 0
    %522 = vmatpush1.bf16.msra.mxu0 %v510
    %523 = vmatprep.subr.bf16.mxu0 0
    %524 = vmatpush1.bf16.msra.mxu0 0
    %525 = vmatprep.subr.bf16.mxu0 0
    %526 = vmatpush1.bf16.msra.mxu0 0
    %527 = vmatprep.subr.bf16.mxu0 0
    %528 = vmatpush1.bf16.msra.mxu0 0
    %529 = vmatprep.subr.bf16.mxu0 0
    %530 = vmatpush1.bf16.msra.mxu0 0
    %531 = vmatprep.subr.bf16.mxu0 0
    %532 = vmatpush1.bf16.msra.mxu0 0
    %533 = vmatprep.subr.bf16.mxu0 0
    %534 = vmatpush1.bf16.msra.mxu0 0
    %535 = vmatprep.subr.bf16.mxu0 0
    %536 = vmatpush1.bf16.msra.mxu0 0
    %537 = vmatprep.subr.bf16.mxu0 0
    %538 = vmatpush1.bf16.msra.mxu0 0
    %539 = vmatprep.subr.bf16.mxu0 0
    %540 = vmatpush1.bf16.msra.mxu0 0
    %541 = vmatprep.subr.bf16.mxu0 0
    %542 = vmatpush1.bf16.msra.mxu0 0
    %543 = vmatprep.subr.bf16.mxu0 0
    %544 = vmatpush1.bf16.msra.mxu0 0
    %545 = vmatprep.subr.bf16.mxu0 0
    %546 = vmatpush1.bf16.msra.mxu0 0
    %547 = vmatprep.subr.bf16.mxu0 0
    %548 = vmatpush1.bf16.msra.mxu0 0
    %549 = vmatprep.subr.bf16.mxu0 0
    %550 = vmatpush1.bf16.msra.mxu0 0
    %551 = vmatprep.mubr.bf16.mxu0 0
    %552 = vmatmul.mubr.bf16.gmra.mrb[0].mxu0 %v514
    %v553 = vpop.f32.mrb[0].mxu0
    %v554 = vadd.f32 %v499, %v553
    %v555 = vpop.f32.mrb[0].mxu0
    %v556 = vpop.f32.mrb[0].mxu0
    %v557 = vadd.f32 %v499, %v556
    %v558 = vpop.f32.mrb[0].mxu0
    %559 = vmatprep.mubr.bf16.mxu0 0
    %560 = vmatmul.mubr.bf16.gmra.mrb[0].mxu0 %v517
    %v561 = vpop.f32.mrb[0].mxu0
    %v562 = vadd.f32 %v499, %v561
    %v563 = vpop.f32.mrb[0].mxu0
    %v564 = vpop.f32.mrb[0].mxu0
    %v565 = vpop.f32.mrb[0].mxu0
    %566 = vdwg.mxu0
    %v567 = vld [vmem:[%s35] sm:$0xf]
    %v568 = vld [vmem:[%s35 + $0x4] sm:$0xf]
    %v569 = vld [vmem:[%s35 + $0x8] sm:$0xf]
    %v570 = vld [vmem:[%s35 + $0xc] sm:$0xf]
    %v571 = vld [vmem:[%s37] sm:$0x1]
    %v573 = vlaneseq
    %v574 = vshrl.u32 %v573, 7
    %v575 = vsub.s32 0, %v574
    %v576 = vrot.slane %v571, %v575
    %v582 = vunpack.c.l.b16 %v567
    %v583 = vunpack.c.l.b16 %v568
    %v584 = vunpack.c.l.b16 %v569
    %v585 = vunpack.c.l.b16 %v570
    %v586 = vpack.c.b16 %v583, %v582
    %v587 = vpack.c.b16 %v585, %v584
    %590 = vmatprep.subr.bf16.mxu0 0
    %591 = vmatpush1.bf16.msra.mxu0 %v586
    %592 = vmatprep.subr.bf16.mxu0 0
    %593 = vmatpush1.bf16.msra.mxu0 %v587
    %594 = vmatprep.subr.bf16.mxu0 0
    %595 = vmatpush1.bf16.msra.mxu0 0
    %596 = vmatprep.subr.bf16.mxu0 0
    %597 = vmatpush1.bf16.msra.mxu0 0
    %598 = vmatprep.subr.bf16.mxu0 0
    %599 = vmatpush1.bf16.msra.mxu0 0
    %600 = vmatprep.subr.bf16.mxu0 0
    %601 = vmatpush1.bf16.msra.mxu0 0
    %602 = vmatprep.subr.bf16.mxu0 0
    %603 = vmatpush1.bf16.msra.mxu0 0
    %604 = vmatprep.subr.bf16.mxu0 0
    %605 = vmatpush1.bf16.msra.mxu0 0
    %606 = vmatprep.subr.bf16.mxu0 0
    %607 = vmatpush1.bf16.msra.mxu0 0
    %608 = vmatprep.subr.bf16.mxu0 0
    %609 = vmatpush1.bf16.msra.mxu0 0
    %610 = vmatprep.subr.bf16.mxu0 0
    %611 = vmatpush1.bf16.msra.mxu0 0
    %612 = vmatprep.subr.bf16.mxu0 0
    %613 = vmatpush1.bf16.msra.mxu0 0
    %614 = vmatprep.subr.bf16.mxu0 0
    %615 = vmatpush1.bf16.msra.mxu0 0
    %616 = vmatprep.subr.bf16.mxu0 0
    %617 = vmatpush1.bf16.msra.mxu0 0
    %618 = vmatprep.subr.bf16.mxu0 0
    %619 = vmatpush1.bf16.msra.mxu0 0
    %620 = vmatprep.subr.bf16.mxu0 0
    %621 = vmatpush1.bf16.msra.mxu0 0
    %622 = vmatprep.mubr.bf16.mxu0 0
    %623 = vmatmul.mubr.bf16.gmra.mrb[0].mxu0 %v514
    %v624 = vpop.f32.mrb[0].mxu0
    %v625 = vadd.f32 %v576, %v624
    %v626 = vpop.f32.mrb[0].mxu0
    %v627 = vpop.f32.mrb[0].mxu0
    %v628 = vadd.f32 %v576, %v627
    %v629 = vpop.f32.mrb[0].mxu0
    %630 = vmatprep.mubr.bf16.mxu0 0
    %631 = vmatmul.mubr.bf16.gmra.mrb[0].mxu0 %v517
    %v632 = vpop.f32.mrb[0].mxu0
    %v633 = vadd.f32 %v576, %v632
    %v634 = vpop.f32.mrb[0].mxu0
    %v635 = vpop.f32.mrb[0].mxu0
    %v636 = vpop.f32.mrb[0].mxu0
    %637 = vdwg.mxu0
    %v638 = vld [vmem:[%s7] sm:$0xf]
    %v639 = vld [vmem:[%s7 + $0x4] sm:$0xf]
    %v640 = vld [vmem:[%s7 + $0x8] sm:$0xf]
    %v641 = vpack.c.bf16 %v373, %v370
    %v642 = vld [vmem:[%s5] sm:$0xf]
    %v643 = vld [vmem:[%s5 + $0x4] sm:$0xf]
    %v644 = vld [vmem:[%s5 + $0x8] sm:$0xf]
    %v645 = vpack.c.bf16 %v430, %v427
    %v649 = vunpack.c.l.b16 %v638
    %v650 = vunpack.c.l.b16 %v639
    %v651 = vunpack.c.l.b16 %v640
    %v652 = vpack.c.b16 %v650, %v649
    %v653 = vpack.c.b16 %v651, %v651
    %vm654 = vcmask 97280
    %v656 = vsel %vm654, %v652, 0
    %v659 = vsel %vm654, %v653, 0
    %vm661 = vcmask 1045504
    %v663 = vsel %vm661, %v641, 0
    %665 = vmatprep.subr.bf16.mxu0 0
    %666 = vmatpush1.bf16.msra.mxu0 %v663
    %667 = vmatprep.subr.bf16.mxu0 0
    %668 = vmatpush1.bf16.msra.mxu0 0
    %669 = vmatprep.subr.bf16.mxu0 0
    %670 = vmatpush1.bf16.msra.mxu0 0
    %671 = vmatprep.subr.bf16.mxu0 0
    %672 = vmatpush1.bf16.msra.mxu0 0
    %673 = vmatprep.subr.bf16.mxu0 0
    %674 = vmatpush1.bf16.msra.mxu0 0
    %675 = vmatprep.subr.bf16.mxu0 0
    %676 = vmatpush1.bf16.msra.mxu0 0
    %677 = vmatprep.subr.bf16.mxu0 0
    %678 = vmatpush1.bf16.msra.mxu0 0
    %679 = vmatprep.subr.bf16.mxu0 0
    %680 = vmatpush1.bf16.msra.mxu0 0
    %681 = vmatprep.subr.bf16.mxu0 0
    %682 = vmatpush1.bf16.msra.mxu0 0
    %683 = vmatprep.subr.bf16.mxu0 0
    %684 = vmatpush1.bf16.msra.mxu0 0
    %685 = vmatprep.subr.bf16.mxu0 0
    %686 = vmatpush1.bf16.msra.mxu0 0
    %687 = vmatprep.subr.bf16.mxu0 0
    %688 = vmatpush1.bf16.msra.mxu0 0
    %689 = vmatprep.subr.bf16.mxu0 0
    %690 = vmatpush1.bf16.msra.mxu0 0
    %691 = vmatprep.subr.bf16.mxu0 0
    %692 = vmatpush1.bf16.msra.mxu0 0
    %693 = vmatprep.subr.bf16.mxu0 0
    %694 = vmatpush1.bf16.msra.mxu0 0
    %695 = vmatprep.subr.bf16.mxu0 0
    %696 = vmatpush1.bf16.msra.mxu0 0
    %697 = vmatprep.mubr.bf16.mxu0 0
    %698 = vmatmul.mubr.bf16.gmra.mrb[0].mxu0 %v656
    %v699 = vpop.f32.mrb[0].mxu0
    %v700 = vadd.f32 %v554, %v699
    %v701 = vpop.f32.mrb[0].mxu0
    %v702 = vpop.f32.mrb[0].mxu0
    %v703 = vadd.f32 %v557, %v702
    %v704 = vpop.f32.mrb[0].mxu0
    %705 = vmatprep.mubr.bf16.mxu0 0
    %706 = vmatmul.mubr.bf16.gmra.mrb[0].mxu0 %v659
    %v707 = vpop.f32.mrb[0].mxu0
    %v708 = vadd.f32 %v562, %v707
    %v709 = vpop.f32.mrb[0].mxu0
    %v710 = vpop.f32.mrb[0].mxu0
    %v711 = vpop.f32.mrb[0].mxu0
    %712 = vdwg.mxu0
    %v716 = vunpack.c.l.b16 %v642
    %v717 = vunpack.c.l.b16 %v643
    %v718 = vunpack.c.l.b16 %v644
    %v719 = vpack.c.b16 %v717, %v716
    %v720 = vpack.c.b16 %v718, %v718
    %v722 = vsel %vm654, %v719, 0
    %v725 = vsel %vm654, %v720, 0
    %v728 = vsel %vm661, %v645, 0
    %730 = vmatprep.subr.bf16.mxu0 0
    %731 = vmatpush1.bf16.msra.mxu0 %v728
    %732 = vmatprep.subr.bf16.mxu0 0
    %733 = vmatpush1.bf16.msra.mxu0 0
    %734 = vmatprep.subr.bf16.mxu0 0
    %735 = vmatpush1.bf16.msra.mxu0 0
    %736 = vmatprep.subr.bf16.mxu0 0
    %737 = vmatpush1.bf16.msra.mxu0 0
    %738 = vmatprep.subr.bf16.mxu0 0
    %739 = vmatpush1.bf16.msra.mxu0 0
    %740 = vmatprep.subr.bf16.mxu0 0
    %741 = vmatpush1.bf16.msra.mxu0 0
    %742 = vmatprep.subr.bf16.mxu0 0
    %743 = vmatpush1.bf16.msra.mxu0 0
    %744 = vmatprep.subr.bf16.mxu0 0
    %745 = vmatpush1.bf16.msra.mxu0 0
    %746 = vmatprep.subr.bf16.mxu0 0
    %747 = vmatpush1.bf16.msra.mxu0 0
    %748 = vmatprep.subr.bf16.mxu0 0
    %749 = vmatpush1.bf16.msra.mxu0 0
    %750 = vmatprep.subr.bf16.mxu0 0
    %751 = vmatpush1.bf16.msra.mxu0 0
    %752 = vmatprep.subr.bf16.mxu0 0
    %753 = vmatpush1.bf16.msra.mxu0 0
    %754 = vmatprep.subr.bf16.mxu0 0
    %755 = vmatpush1.bf16.msra.mxu0 0
    %756 = vmatprep.subr.bf16.mxu0 0
    %757 = vmatpush1.bf16.msra.mxu0 0
    %758 = vmatprep.subr.bf16.mxu0 0
    %759 = vmatpush1.bf16.msra.mxu0 0
    %760 = vmatprep.subr.bf16.mxu0 0
    %761 = vmatpush1.bf16.msra.mxu0 0
    %762 = vmatprep.mubr.bf16.mxu0 0
    %763 = vmatmul.mubr.bf16.gmra.mrb[0].mxu0 %v722
    %v764 = vpop.f32.mrb[0].mxu0
    %v765 = vadd.f32 %v625, %v764
    %v766 = vpop.f32.mrb[0].mxu0
    %v767 = vpop.f32.mrb[0].mxu0
    %v768 = vadd.f32 %v628, %v767
    %v769 = vpop.f32.mrb[0].mxu0
    %770 = vmatprep.mubr.bf16.mxu0 0
    %771 = vmatmul.mubr.bf16.gmra.mrb[0].mxu0 %v725
    %v772 = vpop.f32.mrb[0].mxu0
    %v773 = vadd.f32 %v633, %v772
    %v774 = vpop.f32.mrb[0].mxu0
    %v775 = vpop.f32.mrb[0].mxu0
    %v776 = vpop.f32.mrb[0].mxu0
    %777 = vdwg.mxu0
    %v778 = vadd.f32 %v700, %v765
    %v779 = vadd.f32 %v703, %v768
    %v780 = vadd.f32 %v708, %v773
    %v781 = vmax.f32 %v778, 0.0
    %v782 = vmax.f32 %v779, 0.0
    %v783 = vmax.f32 %v780, 0.0
    %787 = vrot.lane.b32.xlu0 %v765, 96
    %v788 = vpop.permute.xlu0 %787
    %789 = vrot.lane.b32.xlu0 %v768, 96
    %v790 = vpop.permute.xlu0 %789
    %791 = vrot.lane.b32.xlu0 %v773, 96
    %v792 = vpop.permute.xlu0 %791
    %v796 = vmul.f32 %v781, %v788
    %v797 = vmul.f32 %v782, %v790
    %v798 = vmul.f32 %v783, %v792
    %v799 = vpack.c.bf16 %v797, %v796
    %v800 = vpack.c.bf16 %v798, %v798
    %803 = vxpose.xlu0.c.b16.start [1/8] %v652, 128
    %804 = vxpose.xlu0.c.b16.cont [2/8] %v653, 128
    %805 = vxpose.xlu0.c.b16.cont [3/8] 0, 128
    %806 = vxpose.xlu0.c.b16.cont [4/8] 0, 128
    %807 = vxpose.xlu0.c.b16.cont [5/8] 0, 128
    %808 = vxpose.xlu0.c.b16.cont [6/8] 0, 128
    %809 = vxpose.xlu0.c.b16.cont [7/8] 0, 128
    %810 = vxpose.xlu0.c.b16.end [8/8] 0, 128
    %v811 = vpop.trf.xlu0
    %v812 = vpop.trf.xlu0
    %v813 = vpop.trf.xlu0
    %v814 = vpop.trf.xlu0
    %v815 = vpop.trf.xlu0
    %v816 = vpop.trf.xlu0
    %v817 = vpop.trf.xlu0
    %v818 = vpop.trf.xlu0
    %vm819 = vcmask 195584
    %v821 = vsel %vm819, %v811, 0
    %v824 = vsel %vm167, %v800, 0
    %826 = vmatprep.subr.bf16.mxu0 0
    %827 = vmatpush1.bf16.msra.mxu0 %v799
    %828 = vmatprep.subr.bf16.mxu0 0
    %829 = vmatpush1.bf16.msra.mxu0 %v824
    %830 = vmatprep.subr.bf16.mxu0 0
    %831 = vmatpush1.bf16.msra.mxu0 0
    %832 = vmatprep.subr.bf16.mxu0 0
    %833 = vmatpush1.bf16.msra.mxu0 0
    %834 = vmatprep.subr.bf16.mxu0 0
    %835 = vmatpush1.bf16.msra.mxu0 0
    %836 = vmatprep.subr.bf16.mxu0 0
    %837 = vmatpush1.bf16.msra.mxu0 0
    %838 = vmatprep.subr.bf16.mxu0 0
    %839 = vmatpush1.bf16.msra.mxu0 0
    %840 = vmatprep.subr.bf16.mxu0 0
    %841 = vmatpush1.bf16.msra.mxu0 0
    %842 = vmatprep.subr.bf16.mxu0 0
    %843 = vmatpush1.bf16.msra.mxu0 0
    %844 = vmatprep.subr.bf16.mxu0 0
    %845 = vmatpush1.bf16.msra.mxu0 0
    %846 = vmatprep.subr.bf16.mxu0 0
    %847 = vmatpush1.bf16.msra.mxu0 0
    %848 = vmatprep.subr.bf16.mxu0 0
    %849 = vmatpush1.bf16.msra.mxu0 0
    %850 = vmatprep.subr.bf16.mxu0 0
    %851 = vmatpush1.bf16.msra.mxu0 0
    %852 = vmatprep.subr.bf16.mxu0 0
    %853 = vmatpush1.bf16.msra.mxu0 0
    %854 = vmatprep.subr.bf16.mxu0 0
    %855 = vmatpush1.bf16.msra.mxu0 0
    %856 = vmatprep.subr.bf16.mxu0 0
    %857 = vmatpush1.bf16.msra.mxu0 0
    %858 = vmatprep.mubr.bf16.mxu0 0
    %859 = vmatmul.mubr.bf16.gmra.mrb[0].mxu0 %v821
    %v860 = vpop.f32.mrb[0].mxu0
    %v861 = vadd.f32 %v484, %v860
    %v862 = vpop.f32.mrb[0].mxu0
    %v863 = vpop.f32.mrb[0].mxu0
    %v864 = vadd.f32 %v487, %v863
    %v865 = vpop.f32.mrb[0].mxu0
    %866 = vdwg.mxu0
    %v867 = vld [vmem:[%s29] sm:$0x1]
    %v869 = vlaneseq
    %v870 = vshrl.u32 %v869, 7
    %v871 = vsub.s32 0, %v870
    %v872 = vrot.slane %v867, %v871
    %v874 = vadd.f32 %v861, %v872
    %v875 = vadd.f32 %v864, %v872
    %v876 = vadd.f32 %v874, %v208
    %v877 = vadd.f32 %v875, %v211
    %v878 = vld [vmem:[%s39] sm:$0x1]
    %v880 = vlaneseq
    %v881 = vshrl.u32 %v880, 7
    %v882 = vsub.s32 0, %v881
    %v883 = vrot.slane %v878, %v882
    %v885 = vmul.f32 %v876, %v883
    %v886 = vmul.f32 %v877, %v883
    %v887 = vld [vmem:[%s41] sm:$0x1]
    %v889 = vlaneseq
    %v890 = vshrl.u32 %v889, 7
    %v891 = vsub.s32 0, %v890
    %v892 = vrot.slane %v887, %v891
    %v894 = vadd.f32 %v885, %v892
    %v895 = vadd.f32 %v886, %v892
    %v896 = vld [vmem:[%s43] sm:$0xf]
    %v897 = vld [vmem:[%s43 + $0x4] sm:$0xf]
    %v898 = vld [vmem:[%s43 + $0x8] sm:$0xf]
    %v899 = vld [vmem:[%s43 + $0xc] sm:$0xf]
    %v900 = vld [vmem:[%s43 + $0x10] sm:$0xf]
    %v901 = vld [vmem:[%s43 + $0x14] sm:$0xf]
    %v902 = vld [vmem:[%s43 + $0x18] sm:$0xf]
    %v903 = vld [vmem:[%s43 + $0x1c] sm:$0xf]
    %v904 = vld [vmem:[%s43 + $0x20] sm:$0xf]
    %v905 = vld [vmem:[%s43 + $0x24] sm:$0xf]
    %v906 = vld [vmem:[%s43 + $0x28] sm:$0xf]
    %v907 = vld [vmem:[%s43 + $0x2c] sm:$0xf]
    %v908 = vld [vmem:[%s43 + $0x30] sm:$0xf]
    %v909 = vld [vmem:[%s43 + $0x34] sm:$0xf]
    %v910 = vld [vmem:[%s43 + $0x38] sm:$0xf]
    %v911 = vld [vmem:[%s43 + $0x3c] sm:$0xf]
    %v912 = vld [vmem:[%s43 + $0x40] sm:$0xf]
    %v913 = vld [vmem:[%s43 + $0x44] sm:$0xf]
    %v914 = vld [vmem:[%s43 + $0x48] sm:$0xf]
    %v915 = vld [vmem:[%s43 + $0x4c] sm:$0xf]
    %v916 = vld [vmem:[%s43 + $0x50] sm:$0xf]
    %v917 = vld [vmem:[%s43 + $0x54] sm:$0xf]
    %v918 = vld [vmem:[%s43 + $0x58] sm:$0xf]
    %v919 = vld [vmem:[%s43 + $0x5c] sm:$0xf]
    %v920 = vld [vmem:[%s43 + $0x60] sm:$0xf]
    %v921 = vld [vmem:[%s43 + $0x64] sm:$0xf]
    %v922 = vld [vmem:[%s43 + $0x68] sm:$0xf]
    %v923 = vld [vmem:[%s43 + $0x6c] sm:$0xf]
    %v924 = vld [vmem:[%s43 + $0x70] sm:$0xf]
    %v925 = vld [vmem:[%s43 + $0x74] sm:$0xf]
    %v926 = vld [vmem:[%s43 + $0x78] sm:$0xf]
    %v927 = vld [vmem:[%s43 + $0x7c] sm:$0xf]
    %v928 = vld [vmem:[%s45] sm:$0x1]
    %v929 = vld [vmem:[%s45 + $0x1] sm:$0x1]
    %v930 = vld [vmem:[%s45 + $0x2] sm:$0x1]
    %v931 = vld [vmem:[%s45 + $0x3] sm:$0x1]
    %v932 = vld [vmem:[%s45 + $0x4] sm:$0x1]
    %v933 = vld [vmem:[%s45 + $0x5] sm:$0x1]
    %v934 = vld [vmem:[%s45 + $0x6] sm:$0x1]
    %v935 = vld [vmem:[%s45 + $0x7] sm:$0x1]
    %v936 = vld [vmem:[%s47] sm:$0x3]
    %v937 = vld [vmem:[%s47 + $0x2] sm:$0x3]
    %v938 = vld [vmem:[%s47 + $0x4] sm:$0x3]
    %v939 = vld [vmem:[%s47 + $0x6] sm:$0x3]
    %v940 = vld [vmem:[%s47 + $0x8] sm:$0x3]
    %v941 = vld [vmem:[%s47 + $0xa] sm:$0x3]
    %v942 = vld [vmem:[%s47 + $0xc] sm:$0x3]
    %v943 = vld [vmem:[%s47 + $0xe] sm:$0x3]
    %v944 = vld [vmem:[%s9] sm:$0x7]
    %v946 = vsel %vm654, %v944, 0
    %v948 = vsel %vm661, %v314, 0
    %950 = vmatprep.subr.bf16.mxu0 0
    %951 = vmatpush1.bf16.msra.mxu0 %v948
    %952 = vmatprep.subr.bf16.mxu0 0
    %953 = vmatpush1.bf16.msra.mxu0 0
    %954 = vmatprep.subr.bf16.mxu0 0
    %955 = vmatpush1.bf16.msra.mxu0 0
    %956 = vmatprep.subr.bf16.mxu0 0
    %957 = vmatpush1.bf16.msra.mxu0 0
    %958 = vmatprep.subr.bf16.mxu0 0
    %959 = vmatpush1.bf16.msra.mxu0 0
    %960 = vmatprep.subr.bf16.mxu0 0
    %961 = vmatpush1.bf16.msra.mxu0 0
    %962 = vmatprep.subr.bf16.mxu0 0
    %963 = vmatpush1.bf16.msra.mxu0 0
    %964 = vmatprep.subr.bf16.mxu0 0
    %965 = vmatpush1.bf16.msra.mxu0 0
    %966 = vmatprep.subr.bf16.mxu0 0
    %967 = vmatpush1.bf16.msra.mxu0 0
    %968 = vmatprep.subr.bf16.mxu0 0
    %969 = vmatpush1.bf16.msra.mxu0 0
    %970 = vmatprep.subr.bf16.mxu0 0
    %971 = vmatpush1.bf16.msra.mxu0 0
    %972 = vmatprep.subr.bf16.mxu0 0
    %973 = vmatpush1.bf16.msra.mxu0 0
    %974 = vmatprep.subr.bf16.mxu0 0
    %975 = vmatpush1.bf16.msra.mxu0 0
    %976 = vmatprep.subr.bf16.mxu0 0
    %977 = vmatpush1.bf16.msra.mxu0 0
    %978 = vmatprep.subr.bf16.mxu0 0
    %979 = vmatpush1.bf16.msra.mxu0 0
    %980 = vmatprep.subr.bf16.mxu0 0
    %981 = vmatpush1.bf16.msra.mxu0 0
    %982 = vmatprep.mubr.bf16.mxu0 0
    %983 = vmatmul.mubr.bf16.gmra.mrb[0].mxu0 %v946
    %v984 = vpop.f32.mrb[0].mxu0
    %v985 = vadd.f32 0.0, %v984
    %v986 = vpop.f32.mrb[0].mxu0
    %v987 = vpop.f32.mrb[0].mxu0
    %v988 = vpop.f32.mrb[0].mxu0
    %989 = vdwg.mxu0
    %v990 = vpack.c.bf16 %v985, %v985
    %v999 = vlaneseq
    %v1000 = vshrl.u32 %v999, 7
    %v1001 = vsub.s32 0, %v1000
    %v1002 = vrot.slane %v928, %v1001
    %v1003 = vlaneseq
    %v1004 = vshrl.u32 %v1003, 7
    %v1005 = vsub.s32 0, %v1004
    %v1006 = vrot.slane %v929, %v1005
    %v1007 = vlaneseq
    %v1008 = vshrl.u32 %v1007, 7
    %v1009 = vsub.s32 0, %v1008
    %v1010 = vrot.slane %v930, %v1009
    %v1011 = vlaneseq
    %v1012 = vshrl.u32 %v1011, 7
    %v1013 = vsub.s32 0, %v1012
    %v1014 = vrot.slane %v931, %v1013
    %v1015 = vlaneseq
    %v1016 = vshrl.u32 %v1015, 7
    %v1017 = vsub.s32 0, %v1016
    %v1018 = vrot.slane %v932, %v1017
    %v1019 = vlaneseq
    %v1020 = vshrl.u32 %v1019, 7
    %v1021 = vsub.s32 0, %v1020
    %v1022 = vrot.slane %v933, %v1021
    %v1023 = vlaneseq
    %v1024 = vshrl.u32 %v1023, 7
    %v1025 = vsub.s32 0, %v1024
    %v1026 = vrot.slane %v934, %v1025
    %v1027 = vlaneseq
    %v1028 = vshrl.u32 %v1027, 7
    %v1029 = vsub.s32 0, %v1028
    %v1030 = vrot.slane %v935, %v1029
    %v1043 = vunpack.c.l.b16 %v896
    %v1044 = vunpack.c.l.b16 %v897
    %v1045 = vunpack.c.l.b16 %v898
    %v1046 = vunpack.c.l.b16 %v899
    %v1047 = vpack.c.b16 %v1044, %v1043
    %v1048 = vpack.c.b16 %v1046, %v1045
    %v1052 = vsel %vm331, %v990, 0
    %1054 = vmatprep.subr.bf16.mxu0 0
    %1055 = vmatpush1.bf16.msra.mxu0 %v1047
    %1056 = vmatprep.subr.bf16.mxu0 0
    %1057 = vmatpush1.bf16.msra.mxu0 %v1048
    %1058 = vmatprep.subr.bf16.mxu0 0
    %1059 = vmatpush1.bf16.msra.mxu0 0
    %1060 = vmatprep.subr.bf16.mxu0 0
    %1061 = vmatpush1.bf16.msra.mxu0 0
    %1062 = vmatprep.subr.bf16.mxu0 0
    %1063 = vmatpush1.bf16.msra.mxu0 0
    %1064 = vmatprep.subr.bf16.mxu0 0
    %1065 = vmatpush1.bf16.msra.mxu0 0
    %1066 = vmatprep.subr.bf16.mxu0 0
    %1067 = vmatpush1.bf16.msra.mxu0 0
    %1068 = vmatprep.subr.bf16.mxu0 0
    %1069 = vmatpush1.bf16.msra.mxu0 0
    %1070 = vmatprep.subr.bf16.mxu0 0
    %1071 = vmatpush1.bf16.msra.mxu0 0
    %1072 = vmatprep.subr.bf16.mxu0 0
    %1073 = vmatpush1.bf16.msra.mxu0 0
    %1074 = vmatprep.subr.bf16.mxu0 0
    %1075 = vmatpush1.bf16.msra.mxu0 0
    %1076 = vmatprep.subr.bf16.mxu0 0
    %1077 = vmatpush1.bf16.msra.mxu0 0
    %1078 = vmatprep.subr.bf16.mxu0 0
    %1079 = vmatpush1.bf16.msra.mxu0 0
    %1080 = vmatprep.subr.bf16.mxu0 0
    %1081 = vmatpush1.bf16.msra.mxu0 0
    %1082 = vmatprep.subr.bf16.mxu0 0
    %1083 = vmatpush1.bf16.msra.mxu0 0
    %1084 = vmatprep.subr.bf16.mxu0 0
    %1085 = vmatpush1.bf16.msra.mxu0 0
    %1086 = vmatprep.mubr.bf16.mxu0 0
    %1087 = vmatmul.mubr.bf16.gmra.mrb[0].mxu0 %v1052
    %v1088 = vpop.f32.mrb[0].mxu0
    %v1089 = vadd.f32 %v1002, %v1088
    %v1090 = vpop.f32.mrb[0].mxu0
    %v1091 = vpop.f32.mrb[0].mxu0
    %v1092 = vpop.f32.mrb[0].mxu0
    %1093 = vdwg.mxu0
    %v1098 = vunpack.c.l.b16 %v900
    %v1099 = vunpack.c.l.b16 %v901
    %v1100 = vunpack.c.l.b16 %v902
    %v1101 = vunpack.c.l.b16 %v903
    %v1102 = vpack.c.b16 %v1099, %v1098
    %v1103 = vpack.c.b16 %v1101, %v1100
    %1106 = vmatprep.subr.bf16.mxu0 0
    %1107 = vmatpush1.bf16.msra.mxu0 %v1102
    %1108 = vmatprep.subr.bf16.mxu0 0
    %1109 = vmatpush1.bf16.msra.mxu0 %v1103
    %1110 = vmatprep.subr.bf16.mxu0 0
    %1111 = vmatpush1.bf16.msra.mxu0 0
    %1112 = vmatprep.subr.bf16.mxu0 0
    %1113 = vmatpush1.bf16.msra.mxu0 0
    %1114 = vmatprep.subr.bf16.mxu0 0
    %1115 = vmatpush1.bf16.msra.mxu0 0
    %1116 = vmatprep.subr.bf16.mxu0 0
    %1117 = vmatpush1.bf16.msra.mxu0 0
    %1118 = vmatprep.subr.bf16.mxu0 0
    %1119 = vmatpush1.bf16.msra.mxu0 0
    %1120 = vmatprep.subr.bf16.mxu0 0
    %1121 = vmatpush1.bf16.msra.mxu0 0
    %1122 = vmatprep.subr.bf16.mxu0 0
    %1123 = vmatpush1.bf16.msra.mxu0 0
    %1124 = vmatprep.subr.bf16.mxu0 0
    %1125 = vmatpush1.bf16.msra.mxu0 0
    %1126 = vmatprep.subr.bf16.mxu0 0
    %1127 = vmatpush1.bf16.msra.mxu0 0
    %1128 = vmatprep.subr.bf16.mxu0 0
    %1129 = vmatpush1.bf16.msra.mxu0 0
    %1130 = vmatprep.subr.bf16.mxu0 0
    %1131 = vmatpush1.bf16.msra.mxu0 0
    %1132 = vmatprep.subr.bf16.mxu0 0
    %1133 = vmatpush1.bf16.msra.mxu0 0
    %1134 = vmatprep.subr.bf16.mxu0 0
    %1135 = vmatpush1.bf16.msra.mxu0 0
    %1136 = vmatprep.subr.bf16.mxu0 0
    %1137 = vmatpush1.bf16.msra.mxu0 0
    %1138 = vmatprep.mubr.bf16.mxu0 0
    %1139 = vmatmul.mubr.bf16.gmra.mrb[0].mxu0 %v1052
    %v1140 = vpop.f32.mrb[0].mxu0
    %v1141 = vadd.f32 %v1006, %v1140
    %v1142 = vpop.f32.mrb[0].mxu0
    %v1143 = vpop.f32.mrb[0].mxu0
    %v1144 = vpop.f32.mrb[0].mxu0
    %1145 = vdwg.mxu0
    %v1150 = vunpack.c.l.b16 %v904
    %v1151 = vunpack.c.l.b16 %v905
    %v1152 = vunpack.c.l.b16 %v906
    %v1153 = vunpack.c.l.b16 %v907
    %v1154 = vpack.c.b16 %v1151, %v1150
    %v1155 = vpack.c.b16 %v1153, %v1152
    %1158 = vmatprep.subr.bf16.mxu0 0
    %1159 = vmatpush1.bf16.msra.mxu0 %v1154
    %1160 = vmatprep.subr.bf16.mxu0 0
    %1161 = vmatpush1.bf16.msra.mxu0 %v1155
    %1162 = vmatprep.subr.bf16.mxu0 0
    %1163 = vmatpush1.bf16.msra.mxu0 0
    %1164 = vmatprep.subr.bf16.mxu0 0
    %1165 = vmatpush1.bf16.msra.mxu0 0
    %1166 = vmatprep.subr.bf16.mxu0 0
    %1167 = vmatpush1.bf16.msra.mxu0 0
    %1168 = vmatprep.subr.bf16.mxu0 0
    %1169 = vmatpush1.bf16.msra.mxu0 0
    %1170 = vmatprep.subr.bf16.mxu0 0
    %1171 = vmatpush1.bf16.msra.mxu0 0
    %1172 = vmatprep.subr.bf16.mxu0 0
    %1173 = vmatpush1.bf16.msra.mxu0 0
    %1174 = vmatprep.subr.bf16.mxu0 0
    %1175 = vmatpush1.bf16.msra.mxu0 0
    %1176 = vmatprep.subr.bf16.mxu0 0
    %1177 = vmatpush1.bf16.msra.mxu0 0
    %1178 = vmatprep.subr.bf16.mxu0 0
    %1179 = vmatpush1.bf16.msra.mxu0 0
    %1180 = vmatprep.subr.bf16.mxu0 0
    %1181 = vmatpush1.bf16.msra.mxu0 0
    %1182 = vmatprep.subr.bf16.mxu0 0
    %1183 = vmatpush1.bf16.msra.mxu0 0
    %1184 = vmatprep.subr.bf16.mxu0 0
    %1185 = vmatpush1.bf16.msra.mxu0 0
    %1186 = vmatprep.subr.bf16.mxu0 0
    %1187 = vmatpush1.bf16.msra.mxu0 0
    %1188 = vmatprep.subr.bf16.mxu0 0
    %1189 = vmatpush1.bf16.msra.mxu0 0
    %1190 = vmatprep.mubr.bf16.mxu0 0
    %1191 = vmatmul.mubr.bf16.gmra.mrb[0].mxu0 %v1052
    %v1192 = vpop.f32.mrb[0].mxu0
    %v1193 = vadd.f32 %v1010, %v1192
    %v1194 = vpop.f32.mrb[0].mxu0
    %v1195 = vpop.f32.mrb[0].mxu0
    %v1196 = vpop.f32.mrb[0].mxu0
    %1197 = vdwg.mxu0
    %v1202 = vunpack.c.l.b16 %v908
    %v1203 = vunpack.c.l.b16 %v909
    %v1204 = vunpack.c.l.b16 %v910
    %v1205 = vunpack.c.l.b16 %v911
    %v1206 = vpack.c.b16 %v1203, %v1202
    %v1207 = vpack.c.b16 %v1205, %v1204
    %1210 = vmatprep.subr.bf16.mxu0 0
    %1211 = vmatpush1.bf16.msra.mxu0 %v1206
    %1212 = vmatprep.subr.bf16.mxu0 0
    %1213 = vmatpush1.bf16.msra.mxu0 %v1207
    %1214 = vmatprep.subr.bf16.mxu0 0
    %1215 = vmatpush1.bf16.msra.mxu0 0
    %1216 = vmatprep.subr.bf16.mxu0 0
    %1217 = vmatpush1.bf16.msra.mxu0 0
    %1218 = vmatprep.subr.bf16.mxu0 0
    %1219 = vmatpush1.bf16.msra.mxu0 0
    %1220 = vmatprep.subr.bf16.mxu0 0
    %1221 = vmatpush1.bf16.msra.mxu0 0
    %1222 = vmatprep.subr.bf16.mxu0 0
    %1223 = vmatpush1.bf16.msra.mxu0 0
    %1224 = vmatprep.subr.bf16.mxu0 0
    %1225 = vmatpush1.bf16.msra.mxu0 0
    %1226 = vmatprep.subr.bf16.mxu0 0
    %1227 = vmatpush1.bf16.msra.mxu0 0
    %1228 = vmatprep.subr.bf16.mxu0 0
    %1229 = vmatpush1.bf16.msra.mxu0 0
    %1230 = vmatprep.subr.bf16.mxu0 0
    %1231 = vmatpush1.bf16.msra.mxu0 0
    %1232 = vmatprep.subr.bf16.mxu0 0
    %1233 = vmatpush1.bf16.msra.mxu0 0
    %1234 = vmatprep.subr.bf16.mxu0 0
    %1235 = vmatpush1.bf16.msra.mxu0 0
    %1236 = vmatprep.subr.bf16.mxu0 0
    %1237 = vmatpush1.bf16.msra.mxu0 0
    %1238 = vmatprep.subr.bf16.mxu0 0
    %1239 = vmatpush1.bf16.msra.mxu0 0
    %1240 = vmatprep.subr.bf16.mxu0 0
    %1241 = vmatpush1.bf16.msra.mxu0 0
    %1242 = vmatprep.mubr.bf16.mxu0 0
    %1243 = vmatmul.mubr.bf16.gmra.mrb[0].mxu0 %v1052
    %v1244 = vpop.f32.mrb[0].mxu0
    %v1245 = vadd.f32 %v1014, %v1244
    %v1246 = vpop.f32.mrb[0].mxu0
    %v1247 = vpop.f32.mrb[0].mxu0
    %v1248 = vpop.f32.mrb[0].mxu0
    %1249 = vdwg.mxu0
    %v1254 = vunpack.c.l.b16 %v912
    %v1255 = vunpack.c.l.b16 %v913
    %v1256 = vunpack.c.l.b16 %v914
    %v1257 = vunpack.c.l.b16 %v915
    %v1258 = vpack.c.b16 %v1255, %v1254
    %v1259 = vpack.c.b16 %v1257, %v1256
    %1262 = vmatprep.subr.bf16.mxu0 0
    %1263 = vmatpush1.bf16.msra.mxu0 %v1258
    %1264 = vmatprep.subr.bf16.mxu0 0
    %1265 = vmatpush1.bf16.msra.mxu0 %v1259
    %1266 = vmatprep.subr.bf16.mxu0 0
    %1267 = vmatpush1.bf16.msra.mxu0 0
    %1268 = vmatprep.subr.bf16.mxu0 0
    %1269 = vmatpush1.bf16.msra.mxu0 0
    %1270 = vmatprep.subr.bf16.mxu0 0
    %1271 = vmatpush1.bf16.msra.mxu0 0
    %1272 = vmatprep.subr.bf16.mxu0 0
    %1273 = vmatpush1.bf16.msra.mxu0 0
    %1274 = vmatprep.subr.bf16.mxu0 0
    %1275 = vmatpush1.bf16.msra.mxu0 0
    %1276 = vmatprep.subr.bf16.mxu0 0
    %1277 = vmatpush1.bf16.msra.mxu0 0
    %1278 = vmatprep.subr.bf16.mxu0 0
    %1279 = vmatpush1.bf16.msra.mxu0 0
    %1280 = vmatprep.subr.bf16.mxu0 0
    %1281 = vmatpush1.bf16.msra.mxu0 0
    %1282 = vmatprep.subr.bf16.mxu0 0
    %1283 = vmatpush1.bf16.msra.mxu0 0
    %1284 = vmatprep.subr.bf16.mxu0 0
    %1285 = vmatpush1.bf16.msra.mxu0 0
    %1286 = vmatprep.subr.bf16.mxu0 0
    %1287 = vmatpush1.bf16.msra.mxu0 0
    %1288 = vmatprep.subr.bf16.mxu0 0
    %1289 = vmatpush1.bf16.msra.mxu0 0
    %1290 = vmatprep.subr.bf16.mxu0 0
    %1291 = vmatpush1.bf16.msra.mxu0 0
    %1292 = vmatprep.subr.bf16.mxu0 0
    %1293 = vmatpush1.bf16.msra.mxu0 0
    %1294 = vmatprep.mubr.bf16.mxu0 0
    %1295 = vmatmul.mubr.bf16.gmra.mrb[0].mxu0 %v1052
    %v1296 = vpop.f32.mrb[0].mxu0
    %v1297 = vadd.f32 %v1018, %v1296
    %v1298 = vpop.f32.mrb[0].mxu0
    %v1299 = vpop.f32.mrb[0].mxu0
    %v1300 = vpop.f32.mrb[0].mxu0
    %1301 = vdwg.mxu0
    %v1306 = vunpack.c.l.b16 %v916
    %v1307 = vunpack.c.l.b16 %v917
    %v1308 = vunpack.c.l.b16 %v918
    %v1309 = vunpack.c.l.b16 %v919
    %v1310 = vpack.c.b16 %v1307, %v1306
    %v1311 = vpack.c.b16 %v1309, %v1308
    %1314 = vmatprep.subr.bf16.mxu0 0
    %1315 = vmatpush1.bf16.msra.mxu0 %v1310
    %1316 = vmatprep.subr.bf16.mxu0 0
    %1317 = vmatpush1.bf16.msra.mxu0 %v1311
    %1318 = vmatprep.subr.bf16.mxu0 0
    %1319 = vmatpush1.bf16.msra.mxu0 0
    %1320 = vmatprep.subr.bf16.mxu0 0
    %1321 = vmatpush1.bf16.msra.mxu0 0
    %1322 = vmatprep.subr.bf16.mxu0 0
    %1323 = vmatpush1.bf16.msra.mxu0 0
    %1324 = vmatprep.subr.bf16.mxu0 0
    %1325 = vmatpush1.bf16.msra.mxu0 0
    %1326 = vmatprep.subr.bf16.mxu0 0
    %1327 = vmatpush1.bf16.msra.mxu0 0
    %1328 = vmatprep.subr.bf16.mxu0 0
    %1329 = vmatpush1.bf16.msra.mxu0 0
    %1330 = vmatprep.subr.bf16.mxu0 0
    %1331 = vmatpush1.bf16.msra.mxu0 0
    %1332 = vmatprep.subr.bf16.mxu0 0
    %1333 = vmatpush1.bf16.msra.mxu0 0
    %1334 = vmatprep.subr.bf16.mxu0 0
    %1335 = vmatpush1.bf16.msra.mxu0 0
    %1336 = vmatprep.subr.bf16.mxu0 0
    %1337 = vmatpush1.bf16.msra.mxu0 0
    %1338 = vmatprep.subr.bf16.mxu0 0
    %1339 = vmatpush1.bf16.msra.mxu0 0
    %1340 = vmatprep.subr.bf16.mxu0 0
    %1341 = vmatpush1.bf16.msra.mxu0 0
    %1342 = vmatprep.subr.bf16.mxu0 0
    %1343 = vmatpush1.bf16.msra.mxu0 0
    %1344 = vmatprep.subr.bf16.mxu0 0
    %1345 = vmatpush1.bf16.msra.mxu0 0
    %1346 = vmatprep.mubr.bf16.mxu0 0
    %1347 = vmatmul.mubr.bf16.gmra.mrb[0].mxu0 %v1052
    %v1348 = vpop.f32.mrb[0].mxu0
    %v1349 = vadd.f32 %v1022, %v1348
    %v1350 = vpop.f32.mrb[0].mxu0
    %v1351 = vpop.f32.mrb[0].mxu0
    %v1352 = vpop.f32.mrb[0].mxu0
    %1353 = vdwg.mxu0
    %v1358 = vunpack.c.l.b16 %v920
    %v1359 = vunpack.c.l.b16 %v921
    %v1360 = vunpack.c.l.b16 %v922
    %v1361 = vunpack.c.l.b16 %v923
    %v1362 = vpack.c.b16 %v1359, %v1358
    %v1363 = vpack.c.b16 %v1361, %v1360
    %1366 = vmatprep.subr.bf16.mxu0 0
    %1367 = vmatpush1.bf16.msra.mxu0 %v1362
    %1368 = vmatprep.subr.bf16.mxu0 0
    %1369 = vmatpush1.bf16.msra.mxu0 %v1363
    %1370 = vmatprep.subr.bf16.mxu0 0
    %1371 = vmatpush1.bf16.msra.mxu0 0
    %1372 = vmatprep.subr.bf16.mxu0 0
    %1373 = vmatpush1.bf16.msra.mxu0 0
    %1374 = vmatprep.subr.bf16.mxu0 0
    %1375 = vmatpush1.bf16.msra.mxu0 0
    %1376 = vmatprep.subr.bf16.mxu0 0
    %1377 = vmatpush1.bf16.msra.mxu0 0
    %1378 = vmatprep.subr.bf16.mxu0 0
    %1379 = vmatpush1.bf16.msra.mxu0 0
    %1380 = vmatprep.subr.bf16.mxu0 0
    %1381 = vmatpush1.bf16.msra.mxu0 0
    %1382 = vmatprep.subr.bf16.mxu0 0
    %1383 = vmatpush1.bf16.msra.mxu0 0
    %1384 = vmatprep.subr.bf16.mxu0 0
    %1385 = vmatpush1.bf16.msra.mxu0 0
    %1386 = vmatprep.subr.bf16.mxu0 0
    %1387 = vmatpush1.bf16.msra.mxu0 0
    %1388 = vmatprep.subr.bf16.mxu0 0
    %1389 = vmatpush1.bf16.msra.mxu0 0
    %1390 = vmatprep.subr.bf16.mxu0 0
    %1391 = vmatpush1.bf16.msra.mxu0 0
    %1392 = vmatprep.subr.bf16.mxu0 0
    %1393 = vmatpush1.bf16.msra.mxu0 0
    %1394 = vmatprep.subr.bf16.mxu0 0
    %1395 = vmatpush1.bf16.msra.mxu0 0
    %1396 = vmatprep.subr.bf16.mxu0 0
    %1397 = vmatpush1.bf16.msra.mxu0 0
    %1398 = vmatprep.mubr.bf16.mxu0 0
    %1399 = vmatmul.mubr.bf16.gmra.mrb[0].mxu0 %v1052
    %v1400 = vpop.f32.mrb[0].mxu0
    %v1401 = vadd.f32 %v1026, %v1400
    %v1402 = vpop.f32.mrb[0].mxu0
    %v1403 = vpop.f32.mrb[0].mxu0
    %v1404 = vpop.f32.mrb[0].mxu0
    %1405 = vdwg.mxu0
    %v1410 = vunpack.c.l.b16 %v924
    %v1411 = vunpack.c.l.b16 %v925
    %v1412 = vunpack.c.l.b16 %v926
    %v1413 = vunpack.c.l.b16 %v927
    %v1414 = vpack.c.b16 %v1411, %v1410
    %v1415 = vpack.c.b16 %v1413, %v1412
    %1418 = vmatprep.subr.bf16.mxu0 0
    %1419 = vmatpush1.bf16.msra.mxu0 %v1414
    %1420 = vmatprep.subr.bf16.mxu0 0
    %1421 = vmatpush1.bf16.msra.mxu0 %v1415
    %1422 = vmatprep.subr.bf16.mxu0 0
    %1423 = vmatpush1.bf16.msra.mxu0 0
    %1424 = vmatprep.subr.bf16.mxu0 0
    %1425 = vmatpush1.bf16.msra.mxu0 0
    %1426 = vmatprep.subr.bf16.mxu0 0
    %1427 = vmatpush1.bf16.msra.mxu0 0
    %1428 = vmatprep.subr.bf16.mxu0 0
    %1429 = vmatpush1.bf16.msra.mxu0 0
    %1430 = vmatprep.subr.bf16.mxu0 0
    %1431 = vmatpush1.bf16.msra.mxu0 0
    %1432 = vmatprep.subr.bf16.mxu0 0
    %1433 = vmatpush1.bf16.msra.mxu0 0
    %1434 = vmatprep.subr.bf16.mxu0 0
    %1435 = vmatpush1.bf16.msra.mxu0 0
    %1436 = vmatprep.subr.bf16.mxu0 0
    %1437 = vmatpush1.bf16.msra.mxu0 0
    %1438 = vmatprep.subr.bf16.mxu0 0
    %1439 = vmatpush1.bf16.msra.mxu0 0
    %1440 = vmatprep.subr.bf16.mxu0 0
    %1441 = vmatpush1.bf16.msra.mxu0 0
    %1442 = vmatprep.subr.bf16.mxu0 0
    %1443 = vmatpush1.bf16.msra.mxu0 0
    %1444 = vmatprep.subr.bf16.mxu0 0
    %1445 = vmatpush1.bf16.msra.mxu0 0
    %1446 = vmatprep.subr.bf16.mxu0 0
    %1447 = vmatpush1.bf16.msra.mxu0 0
    %1448 = vmatprep.subr.bf16.mxu0 0
    %1449 = vmatpush1.bf16.msra.mxu0 0
    %1450 = vmatprep.mubr.bf16.mxu0 0
    %1451 = vmatmul.mubr.bf16.gmra.mrb[0].mxu0 %v1052
    %v1452 = vpop.f32.mrb[0].mxu0
    %v1453 = vadd.f32 %v1030, %v1452
    %v1454 = vpop.f32.mrb[0].mxu0
    %v1455 = vpop.f32.mrb[0].mxu0
    %v1456 = vpop.f32.mrb[0].mxu0
    %1457 = vdwg.mxu0
    %v1458 = vpack.c.bf16 %v1089, %v1089
    %v1459 = vpack.c.bf16 %v1141, %v1141
    %v1460 = vpack.c.bf16 %v1193, %v1193
    %v1461 = vpack.c.bf16 %v1245, %v1245
    %v1462 = vpack.c.bf16 %v1297, %v1297
    %v1463 = vpack.c.bf16 %v1349, %v1349
    %v1464 = vpack.c.bf16 %v1401, %v1401
    %v1465 = vpack.c.bf16 %v1453, %v1453
    %v1466 = vld [vmem:[%s11] sm:$0x1]
    %v1468 = vlaneseq
    %v1469 = vshrl.u32 %v1468, 7
    %v1470 = vsub.s32 0, %v1469
    %v1471 = vrot.slane %v1466, %v1470
    %1474 = vrot.lane.b32.xlu0 %v1458, 124
    %v1475 = vpop.permute.xlu0 %1474
    %vm1476 = vcmask 31744
    %v1478 = vsel %vm1476, %v1458, 0
    %v1481 = vsel %vm1476, %v1475, 0
    %1483 = vmatprep.subr.bf16.mxu0 0
    %1484 = vmatpush1.bf16.xpose.msra.mxu0 %v1481
    %1485 = vmatprep.subr.bf16.mxu0 0
    %1486 = vmatpush1.bf16.xpose.msra.mxu0 0
    %1487 = vmatprep.subr.bf16.mxu0 0
    %1488 = vmatpush1.bf16.xpose.msra.mxu0 0
    %1489 = vmatprep.subr.bf16.mxu0 0
    %1490 = vmatpush1.bf16.xpose.msra.mxu0 0
    %1491 = vmatprep.subr.bf16.mxu0 0
    %1492 = vmatpush1.bf16.xpose.msra.mxu0 0
    %1493 = vmatprep.subr.bf16.mxu0 0
    %1494 = vmatpush1.bf16.xpose.msra.mxu0 0
    %1495 = vmatprep.subr.bf16.mxu0 0
    %1496 = vmatpush1.bf16.xpose.msra.mxu0 0
    %1497 = vmatprep.subr.bf16.mxu0 0
    %1498 = vmatpush1.bf16.xpose.msra.mxu0 0
    %1499 = vmatprep.subr.bf16.mxu0 0
    %1500 = vmatpush1.bf16.xpose.msra.mxu0 0
    %1501 = vmatprep.subr.bf16.mxu0 0
    %1502 = vmatpush1.bf16.xpose.msra.mxu0 0
    %1503 = vmatprep.subr.bf16.mxu0 0
    %1504 = vmatpush1.bf16.xpose.msra.mxu0 0
    %1505 = vmatprep.subr.bf16.mxu0 0
    %1506 = vmatpush1.bf16.xpose.msra.mxu0 0
    %1507 = vmatprep.subr.bf16.mxu0 0
    %1508 = vmatpush1.bf16.xpose.msra.mxu0 0
    %1509 = vmatprep.subr.bf16.mxu0 0
    %1510 = vmatpush1.bf16.xpose.msra.mxu0 0
    %1511 = vmatprep.subr.bf16.mxu0 0
    %1512 = vmatpush1.bf16.xpose.msra.mxu0 0
    %1513 = vmatprep.subr.bf16.mxu0 0
    %1514 = vmatpush1.bf16.xpose.msra.mxu0 0
    %1515 = vmatprep.mubr.bf16.mxu0 0
    %1516 = vmatmul.mubr.bf16.gmra.mrb[0].mxu0 %v1478
    %v1517 = vpop.f32.mrb[0].mxu0
    %v1518 = vadd.f32 %v1471, %v1517
    %v1519 = vpop.f32.mrb[0].mxu0
    %v1520 = vpop.f32.mrb[0].mxu0
    %v1521 = vpop.f32.mrb[0].mxu0
    %1522 = vdwg.mxu0
    %1524 = vrot.lane.b32.xlu0 %v1459, 124
    %v1525 = vpop.permute.xlu0 %1524
    %v1527 = vsel %vm1476, %v1459, 0
    %v1530 = vsel %vm1476, %v1525, 0
    %1532 = vmatprep.subr.bf16.mxu0 0
    %1533 = vmatpush1.bf16.xpose.msra.mxu0 %v1530
    %1534 = vmatprep.subr.bf16.mxu0 0
    %1535 = vmatpush1.bf16.xpose.msra.mxu0 0
    %1536 = vmatprep.subr.bf16.mxu0 0
    %1537 = vmatpush1.bf16.xpose.msra.mxu0 0
    %1538 = vmatprep.subr.bf16.mxu0 0
    %1539 = vmatpush1.bf16.xpose.msra.mxu0 0
    %1540 = vmatprep.subr.bf16.mxu0 0
    %1541 = vmatpush1.bf16.xpose.msra.mxu0 0
    %1542 = vmatprep.subr.bf16.mxu0 0
    %1543 = vmatpush1.bf16.xpose.msra.mxu0 0
    %1544 = vmatprep.subr.bf16.mxu0 0
    %1545 = vmatpush1.bf16.xpose.msra.mxu0 0
    %1546 = vmatprep.subr.bf16.mxu0 0
    %1547 = vmatpush1.bf16.xpose.msra.mxu0 0
    %1548 = vmatprep.subr.bf16.mxu0 0
    %1549 = vmatpush1.bf16.xpose.msra.mxu0 0
    %1550 = vmatprep.subr.bf16.mxu0 0
    %1551 = vmatpush1.bf16.xpose.msra.mxu0 0
    %1552 = vmatprep.subr.bf16.mxu0 0
    %1553 = vmatpush1.bf16.xpose.msra.mxu0 0
    %1554 = vmatprep.subr.bf16.mxu0 0
    %1555 = vmatpush1.bf16.xpose.msra.mxu0 0
    %1556 = vmatprep.subr.bf16.mxu0 0
    %1557 = vmatpush1.bf16.xpose.msra.mxu0 0
    %1558 = vmatprep.subr.bf16.mxu0 0
    %1559 = vmatpush1.bf16.xpose.msra.mxu0 0
    %1560 = vmatprep.subr.bf16.mxu0 0
    %1561 = vmatpush1.bf16.xpose.msra.mxu0 0
    %1562 = vmatprep.subr.bf16.mxu0 0
    %1563 = vmatpush1.bf16.xpose.msra.mxu0 0
    %1564 = vmatprep.mubr.bf16.mxu0 0
    %1565 = vmatmul.mubr.bf16.gmra.mrb[0].mxu0 %v1527
    %v1566 = vpop.f32.mrb[0].mxu0
    %v1567 = vadd.f32 %v1471, %v1566
    %v1568 = vpop.f32.mrb[0].mxu0
    %v1569 = vpop.f32.mrb[0].mxu0
    %v1570 = vpop.f32.mrb[0].mxu0
    %1571 = vdwg.mxu0
    %1573 = vrot.lane.b32.xlu0 %v1460, 124
    %v1574 = vpop.permute.xlu0 %1573
    %v1576 = vsel %vm1476, %v1460, 0
    %v1579 = vsel %vm1476, %v1574, 0
    %1581 = vmatprep.subr.bf16.mxu0 0
    %1582 = vmatpush1.bf16.xpose.msra.mxu0 %v1579
    %1583 = vmatprep.subr.bf16.mxu0 0
    %1584 = vmatpush1.bf16.xpose.msra.mxu0 0
    %1585 = vmatprep.subr.bf16.mxu0 0
    %1586 = vmatpush1.bf16.xpose.msra.mxu0 0
    %1587 = vmatprep.subr.bf16.mxu0 0
    %1588 = vmatpush1.bf16.xpose.msra.mxu0 0
    %1589 = vmatprep.subr.bf16.mxu0 0
    %1590 = vmatpush1.bf16.xpose.msra.mxu0 0
    %1591 = vmatprep.subr.bf16.mxu0 0
    %1592 = vmatpush1.bf16.xpose.msra.mxu0 0
    %1593 = vmatprep.subr.bf16.mxu0 0
    %1594 = vmatpush1.bf16.xpose.msra.mxu0 0
    %1595 = vmatprep.subr.bf16.mxu0 0
    %1596 = vmatpush1.bf16.xpose.msra.mxu0 0
    %1597 = vmatprep.subr.bf16.mxu0 0
    %1598 = vmatpush1.bf16.xpose.msra.mxu0 0
    %1599 = vmatprep.subr.bf16.mxu0 0
    %1600 = vmatpush1.bf16.xpose.msra.mxu0 0
    %1601 = vmatprep.subr.bf16.mxu0 0
    %1602 = vmatpush1.bf16.xpose.msra.mxu0 0
    %1603 = vmatprep.subr.bf16.mxu0 0
    %1604 = vmatpush1.bf16.xpose.msra.mxu0 0
    %1605 = vmatprep.subr.bf16.mxu0 0
    %1606 = vmatpush1.bf16.xpose.msra.mxu0 0
    %1607 = vmatprep.subr.bf16.mxu0 0
    %1608 = vmatpush1.bf16.xpose.msra.mxu0 0
    %1609 = vmatprep.subr.bf16.mxu0 0
    %1610 = vmatpush1.bf16.xpose.msra.mxu0 0
    %1611 = vmatprep.subr.bf16.mxu0 0
    %1612 = vmatpush1.bf16.xpose.msra.mxu0 0
    %1613 = vmatprep.mubr.bf16.mxu0 0
    %1614 = vmatmul.mubr.bf16.gmra.mrb[0].mxu0 %v1576
    %v1615 = vpop.f32.mrb[0].mxu0
    %v1616 = vadd.f32 %v1471, %v1615
    %v1617 = vpop.f32.mrb[0].mxu0
    %v1618 = vpop.f32.mrb[0].mxu0
    %v1619 = vpop.f32.mrb[0].mxu0
    %1620 = vdwg.mxu0
    %1622 = vrot.lane.b32.xlu0 %v1461, 124
    %v1623 = vpop.permute.xlu0 %1622
    %v1625 = vsel %vm1476, %v1461, 0
    %v1628 = vsel %vm1476, %v1623, 0
    %1630 = vmatprep.subr.bf16.mxu0 0
    %1631 = vmatpush1.bf16.xpose.msra.mxu0 %v1628
    %1632 = vmatprep.subr.bf16.mxu0 0
    %1633 = vmatpush1.bf16.xpose.msra.mxu0 0
    %1634 = vmatprep.subr.bf16.mxu0 0
    %1635 = vmatpush1.bf16.xpose.msra.mxu0 0
    %1636 = vmatprep.subr.bf16.mxu0 0
    %1637 = vmatpush1.bf16.xpose.msra.mxu0 0
    %1638 = vmatprep.subr.bf16.mxu0 0
    %1639 = vmatpush1.bf16.xpose.msra.mxu0 0
    %1640 = vmatprep.subr.bf16.mxu0 0
    %1641 = vmatpush1.bf16.xpose.msra.mxu0 0
    %1642 = vmatprep.subr.bf16.mxu0 0
    %1643 = vmatpush1.bf16.xpose.msra.mxu0 0
    %1644 = vmatprep.subr.bf16.mxu0 0
    %1645 = vmatpush1.bf16.xpose.msra.mxu0 0
    %1646 = vmatprep.subr.bf16.mxu0 0
    %1647 = vmatpush1.bf16.xpose.msra.mxu0 0
    %1648 = vmatprep.subr.bf16.mxu0 0
    %1649 = vmatpush1.bf16.xpose.msra.mxu0 0
    %1650 = vmatprep.subr.bf16.mxu0 0
    %1651 = vmatpush1.bf16.xpose.msra.mxu0 0
    %1652 = vmatprep.subr.bf16.mxu0 0
    %1653 = vmatpush1.bf16.xpose.msra.mxu0 0
    %1654 = vmatprep.subr.bf16.mxu0 0
    %1655 = vmatpush1.bf16.xpose.msra.mxu0 0
    %1656 = vmatprep.subr.bf16.mxu0 0
    %1657 = vmatpush1.bf16.xpose.msra.mxu0 0
    %1658 = vmatprep.subr.bf16.mxu0 0
    %1659 = vmatpush1.bf16.xpose.msra.mxu0 0
    %1660 = vmatprep.subr.bf16.mxu0 0
    %1661 = vmatpush1.bf16.xpose.msra.mxu0 0
    %1662 = vmatprep.mubr.bf16.mxu0 0
    %1663 = vmatmul.mubr.bf16.gmra.mrb[0].mxu0 %v1625
    %v1664 = vpop.f32.mrb[0].mxu0
    %v1665 = vadd.f32 %v1471, %v1664
    %v1666 = vpop.f32.mrb[0].mxu0
    %v1667 = vpop.f32.mrb[0].mxu0
    %v1668 = vpop.f32.mrb[0].mxu0
    %1669 = vdwg.mxu0
    %1671 = vrot.lane.b32.xlu0 %v1462, 124
    %v1672 = vpop.permute.xlu0 %1671
    %v1674 = vsel %vm1476, %v1462, 0
    %v1677 = vsel %vm1476, %v1672, 0
    %1679 = vmatprep.subr.bf16.mxu0 0
    %1680 = vmatpush1.bf16.xpose.msra.mxu0 %v1677
    %1681 = vmatprep.subr.bf16.mxu0 0
    %1682 = vmatpush1.bf16.xpose.msra.mxu0 0
    %1683 = vmatprep.subr.bf16.mxu0 0
    %1684 = vmatpush1.bf16.xpose.msra.mxu0 0
    %1685 = vmatprep.subr.bf16.mxu0 0
    %1686 = vmatpush1.bf16.xpose.msra.mxu0 0
    %1687 = vmatprep.subr.bf16.mxu0 0
    %1688 = vmatpush1.bf16.xpose.msra.mxu0 0
    %1689 = vmatprep.subr.bf16.mxu0 0
    %1690 = vmatpush1.bf16.xpose.msra.mxu0 0
    %1691 = vmatprep.subr.bf16.mxu0 0
    %1692 = vmatpush1.bf16.xpose.msra.mxu0 0
    %1693 = vmatprep.subr.bf16.mxu0 0
    %1694 = vmatpush1.bf16.xpose.msra.mxu0 0
    %1695 = vmatprep.subr.bf16.mxu0 0
    %1696 = vmatpush1.bf16.xpose.msra.mxu0 0
    %1697 = vmatprep.subr.bf16.mxu0 0
    %1698 = vmatpush1.bf16.xpose.msra.mxu0 0
    %1699 = vmatprep.subr.bf16.mxu0 0
    %1700 = vmatpush1.bf16.xpose.msra.mxu0 0
    %1701 = vmatprep.subr.bf16.mxu0 0
    %1702 = vmatpush1.bf16.xpose.msra.mxu0 0
    %1703 = vmatprep.subr.bf16.mxu0 0
    %1704 = vmatpush1.bf16.xpose.msra.mxu0 0
    %1705 = vmatprep.subr.bf16.mxu0 0
    %1706 = vmatpush1.bf16.xpose.msra.mxu0 0
    %1707 = vmatprep.subr.bf16.mxu0 0
    %1708 = vmatpush1.bf16.xpose.msra.mxu0 0
    %1709 = vmatprep.subr.bf16.mxu0 0
    %1710 = vmatpush1.bf16.xpose.msra.mxu0 0
    %1711 = vmatprep.mubr.bf16.mxu0 0
    %1712 = vmatmul.mubr.bf16.gmra.mrb[0].mxu0 %v1674
    %v1713 = vpop.f32.mrb[0].mxu0
    %v1714 = vadd.f32 %v1471, %v1713
    %v1715 = vpop.f32.mrb[0].mxu0
    %v1716 = vpop.f32.mrb[0].mxu0
    %v1717 = vpop.f32.mrb[0].mxu0
    %1718 = vdwg.mxu0
    %1720 = vrot.lane.b32.xlu0 %v1463, 124
    %v1721 = vpop.permute.xlu0 %1720
    %v1723 = vsel %vm1476, %v1463, 0
    %v1726 = vsel %vm1476, %v1721, 0
    %1728 = vmatprep.subr.bf16.mxu0 0
    %1729 = vmatpush1.bf16.xpose.msra.mxu0 %v1726
    %1730 = vmatprep.subr.bf16.mxu0 0
    %1731 = vmatpush1.bf16.xpose.msra.mxu0 0
    %1732 = vmatprep.subr.bf16.mxu0 0
    %1733 = vmatpush1.bf16.xpose.msra.mxu0 0
    %1734 = vmatprep.subr.bf16.mxu0 0
    %1735 = vmatpush1.bf16.xpose.msra.mxu0 0
    %1736 = vmatprep.subr.bf16.mxu0 0
    %1737 = vmatpush1.bf16.xpose.msra.mxu0 0
    %1738 = vmatprep.subr.bf16.mxu0 0
    %1739 = vmatpush1.bf16.xpose.msra.mxu0 0
    %1740 = vmatprep.subr.bf16.mxu0 0
    %1741 = vmatpush1.bf16.xpose.msra.mxu0 0
    %1742 = vmatprep.subr.bf16.mxu0 0
    %1743 = vmatpush1.bf16.xpose.msra.mxu0 0
    %1744 = vmatprep.subr.bf16.mxu0 0
    %1745 = vmatpush1.bf16.xpose.msra.mxu0 0
    %1746 = vmatprep.subr.bf16.mxu0 0
    %1747 = vmatpush1.bf16.xpose.msra.mxu0 0
    %1748 = vmatprep.subr.bf16.mxu0 0
    %1749 = vmatpush1.bf16.xpose.msra.mxu0 0
    %1750 = vmatprep.subr.bf16.mxu0 0
    %1751 = vmatpush1.bf16.xpose.msra.mxu0 0
    %1752 = vmatprep.subr.bf16.mxu0 0
    %1753 = vmatpush1.bf16.xpose.msra.mxu0 0
    %1754 = vmatprep.subr.bf16.mxu0 0
    %1755 = vmatpush1.bf16.xpose.msra.mxu0 0
    %1756 = vmatprep.subr.bf16.mxu0 0
    %1757 = vmatpush1.bf16.xpose.msra.mxu0 0
    %1758 = vmatprep.subr.bf16.mxu0 0
    %1759 = vmatpush1.bf16.xpose.msra.mxu0 0
    %1760 = vmatprep.mubr.bf16.mxu0 0
    %1761 = vmatmul.mubr.bf16.gmra.mrb[0].mxu0 %v1723
    %v1762 = vpop.f32.mrb[0].mxu0
    %v1763 = vadd.f32 %v1471, %v1762
    %v1764 = vpop.f32.mrb[0].mxu0
    %v1765 = vpop.f32.mrb[0].mxu0
    %v1766 = vpop.f32.mrb[0].mxu0
    %1767 = vdwg.mxu0
    %1769 = vrot.lane.b32.xlu0 %v1464, 124
    %v1770 = vpop.permute.xlu0 %1769
    %v1772 = vsel %vm1476, %v1464, 0
    %v1775 = vsel %vm1476, %v1770, 0
    %1777 = vmatprep.subr.bf16.mxu0 0
    %1778 = vmatpush1.bf16.xpose.msra.mxu0 %v1775
    %1779 = vmatprep.subr.bf16.mxu0 0
    %1780 = vmatpush1.bf16.xpose.msra.mxu0 0
    %1781 = vmatprep.subr.bf16.mxu0 0
    %1782 = vmatpush1.bf16.xpose.msra.mxu0 0
    %1783 = vmatprep.subr.bf16.mxu0 0
    %1784 = vmatpush1.bf16.xpose.msra.mxu0 0
    %1785 = vmatprep.subr.bf16.mxu0 0
    %1786 = vmatpush1.bf16.xpose.msra.mxu0 0
    %1787 = vmatprep.subr.bf16.mxu0 0
    %1788 = vmatpush1.bf16.xpose.msra.mxu0 0
    %1789 = vmatprep.subr.bf16.mxu0 0
    %1790 = vmatpush1.bf16.xpose.msra.mxu0 0
    %1791 = vmatprep.subr.bf16.mxu0 0
    %1792 = vmatpush1.bf16.xpose.msra.mxu0 0
    %1793 = vmatprep.subr.bf16.mxu0 0
    %1794 = vmatpush1.bf16.xpose.msra.mxu0 0
    %1795 = vmatprep.subr.bf16.mxu0 0
    %1796 = vmatpush1.bf16.xpose.msra.mxu0 0
    %1797 = vmatprep.subr.bf16.mxu0 0
    %1798 = vmatpush1.bf16.xpose.msra.mxu0 0
    %1799 = vmatprep.subr.bf16.mxu0 0
    %1800 = vmatpush1.bf16.xpose.msra.mxu0 0
    %1801 = vmatprep.subr.bf16.mxu0 0
    %1802 = vmatpush1.bf16.xpose.msra.mxu0 0
    %1803 = vmatprep.subr.bf16.mxu0 0
    %1804 = vmatpush1.bf16.xpose.msra.mxu0 0
    %1805 = vmatprep.subr.bf16.mxu0 0
    %1806 = vmatpush1.bf16.xpose.msra.mxu0 0
    %1807 = vmatprep.subr.bf16.mxu0 0
    %1808 = vmatpush1.bf16.xpose.msra.mxu0 0
    %1809 = vmatprep.mubr.bf16.mxu0 0
    %1810 = vmatmul.mubr.bf16.gmra.mrb[0].mxu0 %v1772
    %v1811 = vpop.f32.mrb[0].mxu0
    %v1812 = vadd.f32 %v1471, %v1811
    %v1813 = vpop.f32.mrb[0].mxu0
    %v1814 = vpop.f32.mrb[0].mxu0
    %v1815 = vpop.f32.mrb[0].mxu0
    %1816 = vdwg.mxu0
    %1818 = vrot.lane.b32.xlu0 %v1465, 124
    %v1819 = vpop.permute.xlu0 %1818
    %v1821 = vsel %vm1476, %v1465, 0
    %v1824 = vsel %vm1476, %v1819, 0
    %1826 = vmatprep.subr.bf16.mxu0 0
    %1827 = vmatpush1.bf16.xpose.msra.mxu0 %v1824
    %1828 = vmatprep.subr.bf16.mxu0 0
    %1829 = vmatpush1.bf16.xpose.msra.mxu0 0
    %1830 = vmatprep.subr.bf16.mxu0 0
    %1831 = vmatpush1.bf16.xpose.msra.mxu0 0
    %1832 = vmatprep.subr.bf16.mxu0 0
    %1833 = vmatpush1.bf16.xpose.msra.mxu0 0
    %1834 = vmatprep.subr.bf16.mxu0 0
    %1835 = vmatpush1.bf16.xpose.msra.mxu0 0
    %1836 = vmatprep.subr.bf16.mxu0 0
    %1837 = vmatpush1.bf16.xpose.msra.mxu0 0
    %1838 = vmatprep.subr.bf16.mxu0 0
    %1839 = vmatpush1.bf16.xpose.msra.mxu0 0
    %1840 = vmatprep.subr.bf16.mxu0 0
    %1841 = vmatpush1.bf16.xpose.msra.mxu0 0
    %1842 = vmatprep.subr.bf16.mxu0 0
    %1843 = vmatpush1.bf16.xpose.msra.mxu0 0
    %1844 = vmatprep.subr.bf16.mxu0 0
    %1845 = vmatpush1.bf16.xpose.msra.mxu0 0
    %1846 = vmatprep.subr.bf16.mxu0 0
    %1847 = vmatpush1.bf16.xpose.msra.mxu0 0
    %1848 = vmatprep.subr.bf16.mxu0 0
    %1849 = vmatpush1.bf16.xpose.msra.mxu0 0
    %1850 = vmatprep.subr.bf16.mxu0 0
    %1851 = vmatpush1.bf16.xpose.msra.mxu0 0
    %1852 = vmatprep.subr.bf16.mxu0 0
    %1853 = vmatpush1.bf16.xpose.msra.mxu0 0
    %1854 = vmatprep.subr.bf16.mxu0 0
    %1855 = vmatpush1.bf16.xpose.msra.mxu0 0
    %1856 = vmatprep.subr.bf16.mxu0 0
    %1857 = vmatpush1.bf16.xpose.msra.mxu0 0
    %1858 = vmatprep.mubr.bf16.mxu0 0
    %1859 = vmatmul.mubr.bf16.gmra.mrb[0].mxu0 %v1821
    %v1860 = vpop.f32.mrb[0].mxu0
    %v1861 = vadd.f32 %v1471, %v1860
    %v1862 = vpop.f32.mrb[0].mxu0
    %v1863 = vpop.f32.mrb[0].mxu0
    %v1864 = vpop.f32.mrb[0].mxu0
    %1865 = vdwg.mxu0
    %vm1866 = vcmask 46080
    %v1867 = vsel %vm1866, %v1518, -inf
    %1868 = vmax.xlane.f32.xlu0 %v1867
    %v1869 = vpop.xlane.xlu0 %1868
    %v1870 = vsel %vm1866, %v1567, -inf
    %1871 = vmax.xlane.f32.xlu0 %v1870
    %v1872 = vpop.xlane.xlu0 %1871
    %v1873 = vsel %vm1866, %v1616, -inf
    %1874 = vmax.xlane.f32.xlu0 %v1873
    %v1875 = vpop.xlane.xlu0 %1874
    %v1876 = vsel %vm1866, %v1665, -inf
    %1877 = vmax.xlane.f32.xlu0 %v1876
    %v1878 = vpop.xlane.xlu0 %1877
    %v1879 = vsel %vm1866, %v1714, -inf
    %1880 = vmax.xlane.f32.xlu0 %v1879
    %v1881 = vpop.xlane.xlu0 %1880
    %v1882 = vsel %vm1866, %v1763, -inf
    %1883 = vmax.xlane.f32.xlu0 %v1882
    %v1884 = vpop.xlane.xlu0 %1883
    %v1885 = vsel %vm1866, %v1812, -inf
    %1886 = vmax.xlane.f32.xlu0 %v1885
    %v1887 = vpop.xlane.xlu0 %1886
    %v1888 = vsel %vm1866, %v1861, -inf
    %1889 = vmax.xlane.f32.xlu0 %v1888
    %v1890 = vpop.xlane.xlu0 %1889
    %v1891 = vsub.f32 %v1518, %v1869
    %v1892 = vsub.f32 %v1567, %v1872
    %v1893 = vsub.f32 %v1616, %v1875
    %v1894 = vsub.f32 %v1665, %v1878
    %v1895 = vsub.f32 %v1714, %v1881
    %v1896 = vsub.f32 %v1763, %v1884
    %v1897 = vsub.f32 %v1812, %v1887
    %v1898 = vsub.f32 %v1861, %v1890
    %v1899 = vmul.f32 %v1891, 1.442695
    %v1900 = vpow.pop %v1899
    %v1901 = vmul.f32 %v1892, 1.442695
    %v1902 = vpow.pop %v1901
    %v1903 = vmul.f32 %v1893, 1.442695
    %v1904 = vpow.pop %v1903
    %v1905 = vmul.f32 %v1894, 1.442695
    %v1906 = vpow.pop %v1905
    %v1907 = vmul.f32 %v1895, 1.442695
    %v1908 = vpow.pop %v1907
    %v1909 = vmul.f32 %v1896, 1.442695
    %v1910 = vpow.pop %v1909
    %v1911 = vmul.f32 %v1897, 1.442695
    %v1912 = vpow.pop %v1911
    %v1913 = vmul.f32 %v1898, 1.442695
    %v1914 = vpow.pop %v1913
    %v1915 = vsel %vm1866, %v1900, 0.0
    %1916 = vadd.xlane.f32.xlu0 %v1915
    %v1917 = vpop.xlane.xlu0 %1916
    %v1918 = vsel %vm1866, %v1902, 0.0
    %1919 = vadd.xlane.f32.xlu0 %v1918
    %v1920 = vpop.xlane.xlu0 %1919
    %v1921 = vsel %vm1866, %v1904, 0.0
    %1922 = vadd.xlane.f32.xlu0 %v1921
    %v1923 = vpop.xlane.xlu0 %1922
    %v1924 = vsel %vm1866, %v1906, 0.0
    %1925 = vadd.xlane.f32.xlu0 %v1924
    %v1926 = vpop.xlane.xlu0 %1925
    %v1927 = vsel %vm1866, %v1908, 0.0
    %1928 = vadd.xlane.f32.xlu0 %v1927
    %v1929 = vpop.xlane.xlu0 %1928
    %v1930 = vsel %vm1866, %v1910, 0.0
    %1931 = vadd.xlane.f32.xlu0 %v1930
    %v1932 = vpop.xlane.xlu0 %1931
    %v1933 = vsel %vm1866, %v1912, 0.0
    %1934 = vadd.xlane.f32.xlu0 %v1933
    %v1935 = vpop.xlane.xlu0 %1934
    %v1936 = vsel %vm1866, %v1914, 0.0
    %1937 = vadd.xlane.f32.xlu0 %v1936
    %v1938 = vpop.xlane.xlu0 %1937
    %v1939 = vrcp.pop %v1917
    %v1940 = vrcp.pop %v1920
    %v1941 = vrcp.pop %v1923
    %v1942 = vrcp.pop %v1926
    %v1943 = vrcp.pop %v1929
    %v1944 = vrcp.pop %v1932
    %v1945 = vrcp.pop %v1935
    %v1946 = vrcp.pop %v1938
    %v1947 = vmul.f32 %v1900, %v1939
    %v1948 = vmul.f32 %v1902, %v1940
    %v1949 = vmul.f32 %v1904, %v1941
    %v1950 = vmul.f32 %v1906, %v1942
    %v1951 = vmul.f32 %v1908, %v1943
    %v1952 = vmul.f32 %v1910, %v1944
    %v1953 = vmul.f32 %v1912, %v1945
    %v1954 = vmul.f32 %v1914, %v1946
    %v1955 = vpack.c.bf16 %v1947, %v1947
    %v1956 = vpack.c.bf16 %v1948, %v1948
    %v1957 = vpack.c.bf16 %v1949, %v1949
    %v1958 = vpack.c.bf16 %v1950, %v1950
    %v1959 = vpack.c.bf16 %v1951, %v1951
    %v1960 = vpack.c.bf16 %v1952, %v1952
    %v1961 = vpack.c.bf16 %v1953, %v1953
    %v1962 = vpack.c.bf16 %v1954, %v1954
    %1963 = vrot.lane.b32.xlu0 %v1458, 120
    %v1964 = vpop.permute.xlu0 %1963
    %vm1965 = vcmask 48128
    %v1967 = vsel %vm1965, %v1955, 0
    %v1970 = vsel %vm166, %v1964, 0
    %1972 = vmatprep.subr.bf16.mxu0 0
    %1973 = vmatpush1.bf16.msra.mxu0 %v1970
    %1974 = vmatprep.subr.bf16.mxu0 0
    %1975 = vmatpush1.bf16.msra.mxu0 0
    %1976 = vmatprep.subr.bf16.mxu0 0
    %1977 = vmatpush1.bf16.msra.mxu0 0
    %1978 = vmatprep.subr.bf16.mxu0 0
    %1979 = vmatpush1.bf16.msra.mxu0 0
    %1980 = vmatprep.subr.bf16.mxu0 0
    %1981 = vmatpush1.bf16.msra.mxu0 0
    %1982 = vmatprep.subr.bf16.mxu0 0
    %1983 = vmatpush1.bf16.msra.mxu0 0
    %1984 = vmatprep.subr.bf16.mxu0 0
    %1985 = vmatpush1.bf16.msra.mxu0 0
    %1986 = vmatprep.subr.bf16.mxu0 0
    %1987 = vmatpush1.bf16.msra.mxu0 0
    %1988 = vmatprep.subr.bf16.mxu0 0
    %1989 = vmatpush1.bf16.msra.mxu0 0
    %1990 = vmatprep.subr.bf16.mxu0 0
    %1991 = vmatpush1.bf16.msra.mxu0 0
    %1992 = vmatprep.subr.bf16.mxu0 0
    %1993 = vmatpush1.bf16.msra.mxu0 0
    %1994 = vmatprep.subr.bf16.mxu0 0
    %1995 = vmatpush1.bf16.msra.mxu0 0
    %1996 = vmatprep.subr.bf16.mxu0 0
    %1997 = vmatpush1.bf16.msra.mxu0 0
    %1998 = vmatprep.subr.bf16.mxu0 0
    %1999 = vmatpush1.bf16.msra.mxu0 0
    %2000 = vmatprep.subr.bf16.mxu0 0
    %2001 = vmatpush1.bf16.msra.mxu0 0
    %2002 = vmatprep.subr.bf16.mxu0 0
    %2003 = vmatpush1.bf16.msra.mxu0 0
    %2004 = vmatprep.mubr.bf16.mxu0 0
    %2005 = vmatmul.mubr.bf16.gmra.mrb[0].mxu0 %v1967
    %v2006 = vpop.f32.mrb[0].mxu0
    %v2007 = vadd.f32 0.0, %v2006
    %v2008 = vpop.f32.mrb[0].mxu0
    %v2009 = vpop.f32.mrb[0].mxu0
    %v2010 = vpop.f32.mrb[0].mxu0
    %2011 = vdwg.mxu0
    %2012 = vrot.lane.b32.xlu0 %v1459, 120
    %v2013 = vpop.permute.xlu0 %2012
    %v2015 = vsel %vm1965, %v1956, 0
    %v2018 = vsel %vm166, %v2013, 0
    %2020 = vmatprep.subr.bf16.mxu0 0
    %2021 = vmatpush1.bf16.msra.mxu0 %v2018
    %2022 = vmatprep.subr.bf16.mxu0 0
    %2023 = vmatpush1.bf16.msra.mxu0 0
    %2024 = vmatprep.subr.bf16.mxu0 0
    %2025 = vmatpush1.bf16.msra.mxu0 0
    %2026 = vmatprep.subr.bf16.mxu0 0
    %2027 = vmatpush1.bf16.msra.mxu0 0
    %2028 = vmatprep.subr.bf16.mxu0 0
    %2029 = vmatpush1.bf16.msra.mxu0 0
    %2030 = vmatprep.subr.bf16.mxu0 0
    %2031 = vmatpush1.bf16.msra.mxu0 0
    %2032 = vmatprep.subr.bf16.mxu0 0
    %2033 = vmatpush1.bf16.msra.mxu0 0
    %2034 = vmatprep.subr.bf16.mxu0 0
    %2035 = vmatpush1.bf16.msra.mxu0 0
    %2036 = vmatprep.subr.bf16.mxu0 0
    %2037 = vmatpush1.bf16.msra.mxu0 0
    %2038 = vmatprep.subr.bf16.mxu0 0
    %2039 = vmatpush1.bf16.msra.mxu0 0
    %2040 = vmatprep.subr.bf16.mxu0 0
    %2041 = vmatpush1.bf16.msra.mxu0 0
    %2042 = vmatprep.subr.bf16.mxu0 0
    %2043 = vmatpush1.bf16.msra.mxu0 0
    %2044 = vmatprep.subr.bf16.mxu0 0
    %2045 = vmatpush1.bf16.msra.mxu0 0
    %2046 = vmatprep.subr.bf16.mxu0 0
    %2047 = vmatpush1.bf16.msra.mxu0 0
    %2048 = vmatprep.subr.bf16.mxu0 0
    %2049 = vmatpush1.bf16.msra.mxu0 0
    %2050 = vmatprep.subr.bf16.mxu0 0
    %2051 = vmatpush1.bf16.msra.mxu0 0
    %2052 = vmatprep.mubr.bf16.mxu0 0
    %2053 = vmatmul.mubr.bf16.gmra.mrb[0].mxu0 %v2015
    %v2054 = vpop.f32.mrb[0].mxu0
    %v2055 = vadd.f32 0.0, %v2054
    %v2056 = vpop.f32.mrb[0].mxu0
    %v2057 = vpop.f32.mrb[0].mxu0
    %v2058 = vpop.f32.mrb[0].mxu0
    %2059 = vdwg.mxu0
    %2060 = vrot.lane.b32.xlu0 %v1460, 120
    %v2061 = vpop.permute.xlu0 %2060
    %v2063 = vsel %vm1965, %v1957, 0
    %v2066 = vsel %vm166, %v2061, 0
    %2068 = vmatprep.subr.bf16.mxu0 0
    %2069 = vmatpush1.bf16.msra.mxu0 %v2066
    %2070 = vmatprep.subr.bf16.mxu0 0
    %2071 = vmatpush1.bf16.msra.mxu0 0
    %2072 = vmatprep.subr.bf16.mxu0 0
    %2073 = vmatpush1.bf16.msra.mxu0 0
    %2074 = vmatprep.subr.bf16.mxu0 0
    %2075 = vmatpush1.bf16.msra.mxu0 0
    %2076 = vmatprep.subr.bf16.mxu0 0
    %2077 = vmatpush1.bf16.msra.mxu0 0
    %2078 = vmatprep.subr.bf16.mxu0 0
    %2079 = vmatpush1.bf16.msra.mxu0 0
    %2080 = vmatprep.subr.bf16.mxu0 0
    %2081 = vmatpush1.bf16.msra.mxu0 0
    %2082 = vmatprep.subr.bf16.mxu0 0
    %2083 = vmatpush1.bf16.msra.mxu0 0
    %2084 = vmatprep.subr.bf16.mxu0 0
    %2085 = vmatpush1.bf16.msra.mxu0 0
    %2086 = vmatprep.subr.bf16.mxu0 0
    %2087 = vmatpush1.bf16.msra.mxu0 0
    %2088 = vmatprep.subr.bf16.mxu0 0
    %2089 = vmatpush1.bf16.msra.mxu0 0
    %2090 = vmatprep.subr.bf16.mxu0 0
    %2091 = vmatpush1.bf16.msra.mxu0 0
    %2092 = vmatprep.subr.bf16.mxu0 0
    %2093 = vmatpush1.bf16.msra.mxu0 0
    %2094 = vmatprep.subr.bf16.mxu0 0
    %2095 = vmatpush1.bf16.msra.mxu0 0
    %2096 = vmatprep.subr.bf16.mxu0 0
    %2097 = vmatpush1.bf16.msra.mxu0 0
    %2098 = vmatprep.subr.bf16.mxu0 0
    %2099 = vmatpush1.bf16.msra.mxu0 0
    %2100 = vmatprep.mubr.bf16.mxu0 0
    %2101 = vmatmul.mubr.bf16.gmra.mrb[0].mxu0 %v2063
    %v2102 = vpop.f32.mrb[0].mxu0
    %v2103 = vadd.f32 0.0, %v2102
    %v2104 = vpop.f32.mrb[0].mxu0
    %v2105 = vpop.f32.mrb[0].mxu0
    %v2106 = vpop.f32.mrb[0].mxu0
    %2107 = vdwg.mxu0
    %2108 = vrot.lane.b32.xlu0 %v1461, 120
    %v2109 = vpop.permute.xlu0 %2108
    %v2111 = vsel %vm1965, %v1958, 0
    %v2114 = vsel %vm166, %v2109, 0
    %2116 = vmatprep.subr.bf16.mxu0 0
    %2117 = vmatpush1.bf16.msra.mxu0 %v2114
    %2118 = vmatprep.subr.bf16.mxu0 0
    %2119 = vmatpush1.bf16.msra.mxu0 0
    %2120 = vmatprep.subr.bf16.mxu0 0
    %2121 = vmatpush1.bf16.msra.mxu0 0
    %2122 = vmatprep.subr.bf16.mxu0 0
    %2123 = vmatpush1.bf16.msra.mxu0 0
    %2124 = vmatprep.subr.bf16.mxu0 0
    %2125 = vmatpush1.bf16.msra.mxu0 0
    %2126 = vmatprep.subr.bf16.mxu0 0
    %2127 = vmatpush1.bf16.msra.mxu0 0
    %2128 = vmatprep.subr.bf16.mxu0 0
    %2129 = vmatpush1.bf16.msra.mxu0 0
    %2130 = vmatprep.subr.bf16.mxu0 0
    %2131 = vmatpush1.bf16.msra.mxu0 0
    %2132 = vmatprep.subr.bf16.mxu0 0
    %2133 = vmatpush1.bf16.msra.mxu0 0
    %2134 = vmatprep.subr.bf16.mxu0 0
    %2135 = vmatpush1.bf16.msra.mxu0 0
    %2136 = vmatprep.subr.bf16.mxu0 0
    %2137 = vmatpush1.bf16.msra.mxu0 0
    %2138 = vmatprep.subr.bf16.mxu0 0
    %2139 = vmatpush1.bf16.msra.mxu0 0
    %2140 = vmatprep.subr.bf16.mxu0 0
    %2141 = vmatpush1.bf16.msra.mxu0 0
    %2142 = vmatprep.subr.bf16.mxu0 0
    %2143 = vmatpush1.bf16.msra.mxu0 0
    %2144 = vmatprep.subr.bf16.mxu0 0
    %2145 = vmatpush1.bf16.msra.mxu0 0
    %2146 = vmatprep.subr.bf16.mxu0 0
    %2147 = vmatpush1.bf16.msra.mxu0 0
    %2148 = vmatprep.mubr.bf16.mxu0 0
    %2149 = vmatmul.mubr.bf16.gmra.mrb[0].mxu0 %v2111
    %v2150 = vpop.f32.mrb[0].mxu0
    %v2151 = vadd.f32 0.0, %v2150
    %v2152 = vpop.f32.mrb[0].mxu0
    %v2153 = vpop.f32.mrb[0].mxu0
    %v2154 = vpop.f32.mrb[0].mxu0
    %2155 = vdwg.mxu0
    %2156 = vrot.lane.b32.xlu0 %v1462, 120
    %v2157 = vpop.permute.xlu0 %2156
    %v2159 = vsel %vm1965, %v1959, 0
    %v2162 = vsel %vm166, %v2157, 0
    %2164 = vmatprep.subr.bf16.mxu0 0
    %2165 = vmatpush1.bf16.msra.mxu0 %v2162
    %2166 = vmatprep.subr.bf16.mxu0 0
    %2167 = vmatpush1.bf16.msra.mxu0 0
    %2168 = vmatprep.subr.bf16.mxu0 0
    %2169 = vmatpush1.bf16.msra.mxu0 0
    %2170 = vmatprep.subr.bf16.mxu0 0
    %2171 = vmatpush1.bf16.msra.mxu0 0
    %2172 = vmatprep.subr.bf16.mxu0 0
    %2173 = vmatpush1.bf16.msra.mxu0 0
    %2174 = vmatprep.subr.bf16.mxu0 0
    %2175 = vmatpush1.bf16.msra.mxu0 0
    %2176 = vmatprep.subr.bf16.mxu0 0
    %2177 = vmatpush1.bf16.msra.mxu0 0
    %2178 = vmatprep.subr.bf16.mxu0 0
    %2179 = vmatpush1.bf16.msra.mxu0 0
    %2180 = vmatprep.subr.bf16.mxu0 0
    %2181 = vmatpush1.bf16.msra.mxu0 0
    %2182 = vmatprep.subr.bf16.mxu0 0
    %2183 = vmatpush1.bf16.msra.mxu0 0
    %2184 = vmatprep.subr.bf16.mxu0 0
    %2185 = vmatpush1.bf16.msra.mxu0 0
    %2186 = vmatprep.subr.bf16.mxu0 0
    %2187 = vmatpush1.bf16.msra.mxu0 0
    %2188 = vmatprep.subr.bf16.mxu0 0
    %2189 = vmatpush1.bf16.msra.mxu0 0
    %2190 = vmatprep.subr.bf16.mxu0 0
    %2191 = vmatpush1.bf16.msra.mxu0 0
    %2192 = vmatprep.subr.bf16.mxu0 0
    %2193 = vmatpush1.bf16.msra.mxu0 0
    %2194 = vmatprep.subr.bf16.mxu0 0
    %2195 = vmatpush1.bf16.msra.mxu0 0
    %2196 = vmatprep.mubr.bf16.mxu0 0
    %2197 = vmatmul.mubr.bf16.gmra.mrb[0].mxu0 %v2159
    %v2198 = vpop.f32.mrb[0].mxu0
    %v2199 = vadd.f32 0.0, %v2198
    %v2200 = vpop.f32.mrb[0].mxu0
    %v2201 = vpop.f32.mrb[0].mxu0
    %v2202 = vpop.f32.mrb[0].mxu0
    %2203 = vdwg.mxu0
    %2204 = vrot.lane.b32.xlu0 %v1463, 120
    %v2205 = vpop.permute.xlu0 %2204
    %v2207 = vsel %vm1965, %v1960, 0
    %v2210 = vsel %vm166, %v2205, 0
    %2212 = vmatprep.subr.bf16.mxu0 0
    %2213 = vmatpush1.bf16.msra.mxu0 %v2210
    %2214 = vmatprep.subr.bf16.mxu0 0
    %2215 = vmatpush1.bf16.msra.mxu0 0
    %2216 = vmatprep.subr.bf16.mxu0 0
    %2217 = vmatpush1.bf16.msra.mxu0 0
    %2218 = vmatprep.subr.bf16.mxu0 0
    %2219 = vmatpush1.bf16.msra.mxu0 0
    %2220 = vmatprep.subr.bf16.mxu0 0
    %2221 = vmatpush1.bf16.msra.mxu0 0
    %2222 = vmatprep.subr.bf16.mxu0 0
    %2223 = vmatpush1.bf16.msra.mxu0 0
    %2224 = vmatprep.subr.bf16.mxu0 0
    %2225 = vmatpush1.bf16.msra.mxu0 0
    %2226 = vmatprep.subr.bf16.mxu0 0
    %2227 = vmatpush1.bf16.msra.mxu0 0
    %2228 = vmatprep.subr.bf16.mxu0 0
    %2229 = vmatpush1.bf16.msra.mxu0 0
    %2230 = vmatprep.subr.bf16.mxu0 0
    %2231 = vmatpush1.bf16.msra.mxu0 0
    %2232 = vmatprep.subr.bf16.mxu0 0
    %2233 = vmatpush1.bf16.msra.mxu0 0
    %2234 = vmatprep.subr.bf16.mxu0 0
    %2235 = vmatpush1.bf16.msra.mxu0 0
    %2236 = vmatprep.subr.bf16.mxu0 0
    %2237 = vmatpush1.bf16.msra.mxu0 0
    %2238 = vmatprep.subr.bf16.mxu0 0
    %2239 = vmatpush1.bf16.msra.mxu0 0
    %2240 = vmatprep.subr.bf16.mxu0 0
    %2241 = vmatpush1.bf16.msra.mxu0 0
    %2242 = vmatprep.subr.bf16.mxu0 0
    %2243 = vmatpush1.bf16.msra.mxu0 0
    %2244 = vmatprep.mubr.bf16.mxu0 0
    %2245 = vmatmul.mubr.bf16.gmra.mrb[0].mxu0 %v2207
    %v2246 = vpop.f32.mrb[0].mxu0
    %v2247 = vadd.f32 0.0, %v2246
    %v2248 = vpop.f32.mrb[0].mxu0
    %v2249 = vpop.f32.mrb[0].mxu0
    %v2250 = vpop.f32.mrb[0].mxu0
    %2251 = vdwg.mxu0
    %2252 = vrot.lane.b32.xlu0 %v1464, 120
    %v2253 = vpop.permute.xlu0 %2252
    %v2255 = vsel %vm1965, %v1961, 0
    %v2258 = vsel %vm166, %v2253, 0
    %2260 = vmatprep.subr.bf16.mxu0 0
    %2261 = vmatpush1.bf16.msra.mxu0 %v2258
    %2262 = vmatprep.subr.bf16.mxu0 0
    %2263 = vmatpush1.bf16.msra.mxu0 0
    %2264 = vmatprep.subr.bf16.mxu0 0
    %2265 = vmatpush1.bf16.msra.mxu0 0
    %2266 = vmatprep.subr.bf16.mxu0 0
    %2267 = vmatpush1.bf16.msra.mxu0 0
    %2268 = vmatprep.subr.bf16.mxu0 0
    %2269 = vmatpush1.bf16.msra.mxu0 0
    %2270 = vmatprep.subr.bf16.mxu0 0
    %2271 = vmatpush1.bf16.msra.mxu0 0
    %2272 = vmatprep.subr.bf16.mxu0 0
    %2273 = vmatpush1.bf16.msra.mxu0 0
    %2274 = vmatprep.subr.bf16.mxu0 0
    %2275 = vmatpush1.bf16.msra.mxu0 0
    %2276 = vmatprep.subr.bf16.mxu0 0
    %2277 = vmatpush1.bf16.msra.mxu0 0
    %2278 = vmatprep.subr.bf16.mxu0 0
    %2279 = vmatpush1.bf16.msra.mxu0 0
    %2280 = vmatprep.subr.bf16.mxu0 0
    %2281 = vmatpush1.bf16.msra.mxu0 0
    %2282 = vmatprep.subr.bf16.mxu0 0
    %2283 = vmatpush1.bf16.msra.mxu0 0
    %2284 = vmatprep.subr.bf16.mxu0 0
    %2285 = vmatpush1.bf16.msra.mxu0 0
    %2286 = vmatprep.subr.bf16.mxu0 0
    %2287 = vmatpush1.bf16.msra.mxu0 0
    %2288 = vmatprep.subr.bf16.mxu0 0
    %2289 = vmatpush1.bf16.msra.mxu0 0
    %2290 = vmatprep.subr.bf16.mxu0 0
    %2291 = vmatpush1.bf16.msra.mxu0 0
    %2292 = vmatprep.mubr.bf16.mxu0 0
    %2293 = vmatmul.mubr.bf16.gmra.mrb[0].mxu0 %v2255
    %v2294 = vpop.f32.mrb[0].mxu0
    %v2295 = vadd.f32 0.0, %v2294
    %v2296 = vpop.f32.mrb[0].mxu0
    %v2297 = vpop.f32.mrb[0].mxu0
    %v2298 = vpop.f32.mrb[0].mxu0
    %2299 = vdwg.mxu0
    %2300 = vrot.lane.b32.xlu0 %v1465, 120
    %v2301 = vpop.permute.xlu0 %2300
    %v2303 = vsel %vm1965, %v1962, 0
    %v2306 = vsel %vm166, %v2301, 0
    %2308 = vmatprep.subr.bf16.mxu0 0
    %2309 = vmatpush1.bf16.msra.mxu0 %v2306
    %2310 = vmatprep.subr.bf16.mxu0 0
    %2311 = vmatpush1.bf16.msra.mxu0 0
    %2312 = vmatprep.subr.bf16.mxu0 0
    %2313 = vmatpush1.bf16.msra.mxu0 0
    %2314 = vmatprep.subr.bf16.mxu0 0
    %2315 = vmatpush1.bf16.msra.mxu0 0
    %2316 = vmatprep.subr.bf16.mxu0 0
    %2317 = vmatpush1.bf16.msra.mxu0 0
    %2318 = vmatprep.subr.bf16.mxu0 0
    %2319 = vmatpush1.bf16.msra.mxu0 0
    %2320 = vmatprep.subr.bf16.mxu0 0
    %2321 = vmatpush1.bf16.msra.mxu0 0
    %2322 = vmatprep.subr.bf16.mxu0 0
    %2323 = vmatpush1.bf16.msra.mxu0 0
    %2324 = vmatprep.subr.bf16.mxu0 0
    %2325 = vmatpush1.bf16.msra.mxu0 0
    %2326 = vmatprep.subr.bf16.mxu0 0
    %2327 = vmatpush1.bf16.msra.mxu0 0
    %2328 = vmatprep.subr.bf16.mxu0 0
    %2329 = vmatpush1.bf16.msra.mxu0 0
    %2330 = vmatprep.subr.bf16.mxu0 0
    %2331 = vmatpush1.bf16.msra.mxu0 0
    %2332 = vmatprep.subr.bf16.mxu0 0
    %2333 = vmatpush1.bf16.msra.mxu0 0
    %2334 = vmatprep.subr.bf16.mxu0 0
    %2335 = vmatpush1.bf16.msra.mxu0 0
    %2336 = vmatprep.subr.bf16.mxu0 0
    %2337 = vmatpush1.bf16.msra.mxu0 0
    %2338 = vmatprep.subr.bf16.mxu0 0
    %2339 = vmatpush1.bf16.msra.mxu0 0
    %2340 = vmatprep.mubr.bf16.mxu0 0
    %2341 = vmatmul.mubr.bf16.gmra.mrb[0].mxu0 %v2303
    %v2342 = vpop.f32.mrb[0].mxu0
    %v2343 = vadd.f32 0.0, %v2342
    %v2344 = vpop.f32.mrb[0].mxu0
    %v2345 = vpop.f32.mrb[0].mxu0
    %v2346 = vpop.f32.mrb[0].mxu0
    %2347 = vdwg.mxu0
    %v2348 = vpack.c.bf16 %v2007, %v2007
    %v2349 = vpack.c.bf16 %v2055, %v2055
    %v2350 = vpack.c.bf16 %v2103, %v2103
    %v2351 = vpack.c.bf16 %v2151, %v2151
    %v2352 = vpack.c.bf16 %v2199, %v2199
    %v2353 = vpack.c.bf16 %v2247, %v2247
    %v2354 = vpack.c.bf16 %v2295, %v2295
    %v2355 = vpack.c.bf16 %v2343, %v2343
    %v2357 = vsel %vm1476, %v2348, 0
    %vm2359 = vcmask 1041408
    %v2361 = vsel %vm2359, %v936, 0
    %2363 = vmatprep.subr.bf16.mxu0 0
    %2364 = vmatpush1.bf16.msra.mxu0 %v2361
    %2365 = vmatprep.subr.bf16.mxu0 0
    %2366 = vmatpush1.bf16.msra.mxu0 0
    %2367 = vmatprep.subr.bf16.mxu0 0
    %2368 = vmatpush1.bf16.msra.mxu0 0
    %2369 = vmatprep.subr.bf16.mxu0 0
    %2370 = vmatpush1.bf16.msra.mxu0 0
    %2371 = vmatprep.subr.bf16.mxu0 0
    %2372 = vmatpush1.bf16.msra.mxu0 0
    %2373 = vmatprep.subr.bf16.mxu0 0
    %2374 = vmatpush1.bf16.msra.mxu0 0
    %2375 = vmatprep.subr.bf16.mxu0 0
    %2376 = vmatpush1.bf16.msra.mxu0 0
    %2377 = vmatprep.subr.bf16.mxu0 0
    %2378 = vmatpush1.bf16.msra.mxu0 0
    %2379 = vmatprep.subr.bf16.mxu0 0
    %2380 = vmatpush1.bf16.msra.mxu0 0
    %2381 = vmatprep.subr.bf16.mxu0 0
    %2382 = vmatpush1.bf16.msra.mxu0 0
    %2383 = vmatprep.subr.bf16.mxu0 0
    %2384 = vmatpush1.bf16.msra.mxu0 0
    %2385 = vmatprep.subr.bf16.mxu0 0
    %2386 = vmatpush1.bf16.msra.mxu0 0
    %2387 = vmatprep.subr.bf16.mxu0 0
    %2388 = vmatpush1.bf16.msra.mxu0 0
    %2389 = vmatprep.subr.bf16.mxu0 0
    %2390 = vmatpush1.bf16.msra.mxu0 0
    %2391 = vmatprep.subr.bf16.mxu0 0
    %2392 = vmatpush1.bf16.msra.mxu0 0
    %2393 = vmatprep.subr.bf16.mxu0 0
    %2394 = vmatpush1.bf16.msra.mxu0 0
    %2395 = vmatprep.mubr.bf16.mxu0 0
    %2396 = vmatmul.mubr.bf16.gmra.mrb[0].mxu0 %v2357
    %v2397 = vpop.f32.mrb[0].mxu0
    %v2398 = vadd.f32 0.0, %v2397
    %v2399 = vpop.f32.mrb[0].mxu0
    %v2400 = vpop.f32.mrb[0].mxu0
    %v2401 = vpop.f32.mrb[0].mxu0
    %2402 = vdwg.mxu0
    %v2404 = vsel %vm1476, %v2349, 0
    %v2407 = vsel %vm2359, %v937, 0
    %2409 = vmatprep.subr.bf16.mxu0 0
    %2410 = vmatpush1.bf16.msra.mxu0 %v2407
    %2411 = vmatprep.subr.bf16.mxu0 0
    %2412 = vmatpush1.bf16.msra.mxu0 0
    %2413 = vmatprep.subr.bf16.mxu0 0
    %2414 = vmatpush1.bf16.msra.mxu0 0
    %2415 = vmatprep.subr.bf16.mxu0 0
    %2416 = vmatpush1.bf16.msra.mxu0 0
    %2417 = vmatprep.subr.bf16.mxu0 0
    %2418 = vmatpush1.bf16.msra.mxu0 0
    %2419 = vmatprep.subr.bf16.mxu0 0
    %2420 = vmatpush1.bf16.msra.mxu0 0
    %2421 = vmatprep.subr.bf16.mxu0 0
    %2422 = vmatpush1.bf16.msra.mxu0 0
    %2423 = vmatprep.subr.bf16.mxu0 0
    %2424 = vmatpush1.bf16.msra.mxu0 0
    %2425 = vmatprep.subr.bf16.mxu0 0
    %2426 = vmatpush1.bf16.msra.mxu0 0
    %2427 = vmatprep.subr.bf16.mxu0 0
    %2428 = vmatpush1.bf16.msra.mxu0 0
    %2429 = vmatprep.subr.bf16.mxu0 0
    %2430 = vmatpush1.bf16.msra.mxu0 0
    %2431 = vmatprep.subr.bf16.mxu0 0
    %2432 = vmatpush1.bf16.msra.mxu0 0
    %2433 = vmatprep.subr.bf16.mxu0 0
    %2434 = vmatpush1.bf16.msra.mxu0 0
    %2435 = vmatprep.subr.bf16.mxu0 0
    %2436 = vmatpush1.bf16.msra.mxu0 0
    %2437 = vmatprep.subr.bf16.mxu0 0
    %2438 = vmatpush1.bf16.msra.mxu0 0
    %2439 = vmatprep.subr.bf16.mxu0 0
    %2440 = vmatpush1.bf16.msra.mxu0 0
    %2441 = vmatprep.mubr.bf16.mxu0 0
    %2442 = vmatmul.mubr.bf16.gmra.mrb[0].mxu0 %v2404
    %v2443 = vpop.f32.mrb[0].mxu0
    %v2444 = vadd.f32 0.0, %v2443
    %v2445 = vpop.f32.mrb[0].mxu0
    %v2446 = vpop.f32.mrb[0].mxu0
    %v2447 = vpop.f32.mrb[0].mxu0
    %2448 = vdwg.mxu0
    %v2450 = vsel %vm1476, %v2350, 0
    %v2453 = vsel %vm2359, %v938, 0
    %2455 = vmatprep.subr.bf16.mxu0 0
    %2456 = vmatpush1.bf16.msra.mxu0 %v2453
    %2457 = vmatprep.subr.bf16.mxu0 0
    %2458 = vmatpush1.bf16.msra.mxu0 0
    %2459 = vmatprep.subr.bf16.mxu0 0
    %2460 = vmatpush1.bf16.msra.mxu0 0
    %2461 = vmatprep.subr.bf16.mxu0 0
    %2462 = vmatpush1.bf16.msra.mxu0 0
    %2463 = vmatprep.subr.bf16.mxu0 0
    %2464 = vmatpush1.bf16.msra.mxu0 0
    %2465 = vmatprep.subr.bf16.mxu0 0
    %2466 = vmatpush1.bf16.msra.mxu0 0
    %2467 = vmatprep.subr.bf16.mxu0 0
    %2468 = vmatpush1.bf16.msra.mxu0 0
    %2469 = vmatprep.subr.bf16.mxu0 0
    %2470 = vmatpush1.bf16.msra.mxu0 0
    %2471 = vmatprep.subr.bf16.mxu0 0
    %2472 = vmatpush1.bf16.msra.mxu0 0
    %2473 = vmatprep.subr.bf16.mxu0 0
    %2474 = vmatpush1.bf16.msra.mxu0 0
    %2475 = vmatprep.subr.bf16.mxu0 0
    %2476 = vmatpush1.bf16.msra.mxu0 0
    %2477 = vmatprep.subr.bf16.mxu0 0
    %2478 = vmatpush1.bf16.msra.mxu0 0
    %2479 = vmatprep.subr.bf16.mxu0 0
    %2480 = vmatpush1.bf16.msra.mxu0 0
    %2481 = vmatprep.subr.bf16.mxu0 0
    %2482 = vmatpush1.bf16.msra.mxu0 0
    %2483 = vmatprep.subr.bf16.mxu0 0
    %2484 = vmatpush1.bf16.msra.mxu0 0
    %2485 = vmatprep.subr.bf16.mxu0 0
    %2486 = vmatpush1.bf16.msra.mxu0 0
    %2487 = vmatprep.mubr.bf16.mxu0 0
    %2488 = vmatmul.mubr.bf16.gmra.mrb[0].mxu0 %v2450
    %v2489 = vpop.f32.mrb[0].mxu0
    %v2490 = vadd.f32 0.0, %v2489
    %v2491 = vpop.f32.mrb[0].mxu0
    %v2492 = vpop.f32.mrb[0].mxu0
    %v2493 = vpop.f32.mrb[0].mxu0
    %2494 = vdwg.mxu0
    %v2496 = vsel %vm1476, %v2351, 0
    %v2499 = vsel %vm2359, %v939, 0
    %2501 = vmatprep.subr.bf16.mxu0 0
    %2502 = vmatpush1.bf16.msra.mxu0 %v2499
    %2503 = vmatprep.subr.bf16.mxu0 0
    %2504 = vmatpush1.bf16.msra.mxu0 0
    %2505 = vmatprep.subr.bf16.mxu0 0
    %2506 = vmatpush1.bf16.msra.mxu0 0
    %2507 = vmatprep.subr.bf16.mxu0 0
    %2508 = vmatpush1.bf16.msra.mxu0 0
    %2509 = vmatprep.subr.bf16.mxu0 0
    %2510 = vmatpush1.bf16.msra.mxu0 0
    %2511 = vmatprep.subr.bf16.mxu0 0
    %2512 = vmatpush1.bf16.msra.mxu0 0
    %2513 = vmatprep.subr.bf16.mxu0 0
    %2514 = vmatpush1.bf16.msra.mxu0 0
    %2515 = vmatprep.subr.bf16.mxu0 0
    %2516 = vmatpush1.bf16.msra.mxu0 0
    %2517 = vmatprep.subr.bf16.mxu0 0
    %2518 = vmatpush1.bf16.msra.mxu0 0
    %2519 = vmatprep.subr.bf16.mxu0 0
    %2520 = vmatpush1.bf16.msra.mxu0 0
    %2521 = vmatprep.subr.bf16.mxu0 0
    %2522 = vmatpush1.bf16.msra.mxu0 0
    %2523 = vmatprep.subr.bf16.mxu0 0
    %2524 = vmatpush1.bf16.msra.mxu0 0
    %2525 = vmatprep.subr.bf16.mxu0 0
    %2526 = vmatpush1.bf16.msra.mxu0 0
    %2527 = vmatprep.subr.bf16.mxu0 0
    %2528 = vmatpush1.bf16.msra.mxu0 0
    %2529 = vmatprep.subr.bf16.mxu0 0
    %2530 = vmatpush1.bf16.msra.mxu0 0
    %2531 = vmatprep.subr.bf16.mxu0 0
    %2532 = vmatpush1.bf16.msra.mxu0 0
    %2533 = vmatprep.mubr.bf16.mxu0 0
    %2534 = vmatmul.mubr.bf16.gmra.mrb[0].mxu0 %v2496
    %v2535 = vpop.f32.mrb[0].mxu0
    %v2536 = vadd.f32 0.0, %v2535
    %v2537 = vpop.f32.mrb[0].mxu0
    %v2538 = vpop.f32.mrb[0].mxu0
    %v2539 = vpop.f32.mrb[0].mxu0
    %2540 = vdwg.mxu0
    %v2542 = vsel %vm1476, %v2352, 0
    %v2545 = vsel %vm2359, %v940, 0
    %2547 = vmatprep.subr.bf16.mxu0 0
    %2548 = vmatpush1.bf16.msra.mxu0 %v2545
    %2549 = vmatprep.subr.bf16.mxu0 0
    %2550 = vmatpush1.bf16.msra.mxu0 0
    %2551 = vmatprep.subr.bf16.mxu0 0
    %2552 = vmatpush1.bf16.msra.mxu0 0
    %2553 = vmatprep.subr.bf16.mxu0 0
    %2554 = vmatpush1.bf16.msra.mxu0 0
    %2555 = vmatprep.subr.bf16.mxu0 0
    %2556 = vmatpush1.bf16.msra.mxu0 0
    %2557 = vmatprep.subr.bf16.mxu0 0
    %2558 = vmatpush1.bf16.msra.mxu0 0
    %2559 = vmatprep.subr.bf16.mxu0 0
    %2560 = vmatpush1.bf16.msra.mxu0 0
    %2561 = vmatprep.subr.bf16.mxu0 0
    %2562 = vmatpush1.bf16.msra.mxu0 0
    %2563 = vmatprep.subr.bf16.mxu0 0
    %2564 = vmatpush1.bf16.msra.mxu0 0
    %2565 = vmatprep.subr.bf16.mxu0 0
    %2566 = vmatpush1.bf16.msra.mxu0 0
    %2567 = vmatprep.subr.bf16.mxu0 0
    %2568 = vmatpush1.bf16.msra.mxu0 0
    %2569 = vmatprep.subr.bf16.mxu0 0
    %2570 = vmatpush1.bf16.msra.mxu0 0
    %2571 = vmatprep.subr.bf16.mxu0 0
    %2572 = vmatpush1.bf16.msra.mxu0 0
    %2573 = vmatprep.subr.bf16.mxu0 0
    %2574 = vmatpush1.bf16.msra.mxu0 0
    %2575 = vmatprep.subr.bf16.mxu0 0
    %2576 = vmatpush1.bf16.msra.mxu0 0
    %2577 = vmatprep.subr.bf16.mxu0 0
    %2578 = vmatpush1.bf16.msra.mxu0 0
    %2579 = vmatprep.mubr.bf16.mxu0 0
    %2580 = vmatmul.mubr.bf16.gmra.mrb[0].mxu0 %v2542
    %v2581 = vpop.f32.mrb[0].mxu0
    %v2582 = vadd.f32 0.0, %v2581
    %v2583 = vpop.f32.mrb[0].mxu0
    %v2584 = vpop.f32.mrb[0].mxu0
    %v2585 = vpop.f32.mrb[0].mxu0
    %2586 = vdwg.mxu0
    %v2588 = vsel %vm1476, %v2353, 0
    %v2591 = vsel %vm2359, %v941, 0
    %2593 = vmatprep.subr.bf16.mxu0 0
    %2594 = vmatpush1.bf16.msra.mxu0 %v2591
    %2595 = vmatprep.subr.bf16.mxu0 0
    %2596 = vmatpush1.bf16.msra.mxu0 0
    %2597 = vmatprep.subr.bf16.mxu0 0
    %2598 = vmatpush1.bf16.msra.mxu0 0
    %2599 = vmatprep.subr.bf16.mxu0 0
    %2600 = vmatpush1.bf16.msra.mxu0 0
    %2601 = vmatprep.subr.bf16.mxu0 0
    %2602 = vmatpush1.bf16.msra.mxu0 0
    %2603 = vmatprep.subr.bf16.mxu0 0
    %2604 = vmatpush1.bf16.msra.mxu0 0
    %2605 = vmatprep.subr.bf16.mxu0 0
    %2606 = vmatpush1.bf16.msra.mxu0 0
    %2607 = vmatprep.subr.bf16.mxu0 0
    %2608 = vmatpush1.bf16.msra.mxu0 0
    %2609 = vmatprep.subr.bf16.mxu0 0
    %2610 = vmatpush1.bf16.msra.mxu0 0
    %2611 = vmatprep.subr.bf16.mxu0 0
    %2612 = vmatpush1.bf16.msra.mxu0 0
    %2613 = vmatprep.subr.bf16.mxu0 0
    %2614 = vmatpush1.bf16.msra.mxu0 0
    %2615 = vmatprep.subr.bf16.mxu0 0
    %2616 = vmatpush1.bf16.msra.mxu0 0
    %2617 = vmatprep.subr.bf16.mxu0 0
    %2618 = vmatpush1.bf16.msra.mxu0 0
    %2619 = vmatprep.subr.bf16.mxu0 0
    %2620 = vmatpush1.bf16.msra.mxu0 0
    %2621 = vmatprep.subr.bf16.mxu0 0
    %2622 = vmatpush1.bf16.msra.mxu0 0
    %2623 = vmatprep.subr.bf16.mxu0 0
    %2624 = vmatpush1.bf16.msra.mxu0 0
    %2625 = vmatprep.mubr.bf16.mxu0 0
    %2626 = vmatmul.mubr.bf16.gmra.mrb[0].mxu0 %v2588
    %v2627 = vpop.f32.mrb[0].mxu0
    %v2628 = vadd.f32 0.0, %v2627
    %v2629 = vpop.f32.mrb[0].mxu0
    %v2630 = vpop.f32.mrb[0].mxu0
    %v2631 = vpop.f32.mrb[0].mxu0
    %2632 = vdwg.mxu0
    %v2634 = vsel %vm1476, %v2354, 0
    %v2637 = vsel %vm2359, %v942, 0
    %2639 = vmatprep.subr.bf16.mxu0 0
    %2640 = vmatpush1.bf16.msra.mxu0 %v2637
    %2641 = vmatprep.subr.bf16.mxu0 0
    %2642 = vmatpush1.bf16.msra.mxu0 0
    %2643 = vmatprep.subr.bf16.mxu0 0
    %2644 = vmatpush1.bf16.msra.mxu0 0
    %2645 = vmatprep.subr.bf16.mxu0 0
    %2646 = vmatpush1.bf16.msra.mxu0 0
    %2647 = vmatprep.subr.bf16.mxu0 0
    %2648 = vmatpush1.bf16.msra.mxu0 0
    %2649 = vmatprep.subr.bf16.mxu0 0
    %2650 = vmatpush1.bf16.msra.mxu0 0
    %2651 = vmatprep.subr.bf16.mxu0 0
    %2652 = vmatpush1.bf16.msra.mxu0 0
    %2653 = vmatprep.subr.bf16.mxu0 0
    %2654 = vmatpush1.bf16.msra.mxu0 0
    %2655 = vmatprep.subr.bf16.mxu0 0
    %2656 = vmatpush1.bf16.msra.mxu0 0
    %2657 = vmatprep.subr.bf16.mxu0 0
    %2658 = vmatpush1.bf16.msra.mxu0 0
    %2659 = vmatprep.subr.bf16.mxu0 0
    %2660 = vmatpush1.bf16.msra.mxu0 0
    %2661 = vmatprep.subr.bf16.mxu0 0
    %2662 = vmatpush1.bf16.msra.mxu0 0
    %2663 = vmatprep.subr.bf16.mxu0 0
    %2664 = vmatpush1.bf16.msra.mxu0 0
    %2665 = vmatprep.subr.bf16.mxu0 0
    %2666 = vmatpush1.bf16.msra.mxu0 0
    %2667 = vmatprep.subr.bf16.mxu0 0
    %2668 = vmatpush1.bf16.msra.mxu0 0
    %2669 = vmatprep.subr.bf16.mxu0 0
    %2670 = vmatpush1.bf16.msra.mxu0 0
    %2671 = vmatprep.mubr.bf16.mxu0 0
    %2672 = vmatmul.mubr.bf16.gmra.mrb[0].mxu0 %v2634
    %v2673 = vpop.f32.mrb[0].mxu0
    %v2674 = vadd.f32 0.0, %v2673
    %v2675 = vpop.f32.mrb[0].mxu0
    %v2676 = vpop.f32.mrb[0].mxu0
    %v2677 = vpop.f32.mrb[0].mxu0
    %2678 = vdwg.mxu0
    %v2680 = vsel %vm1476, %v2355, 0
    %v2683 = vsel %vm2359, %v943, 0
    %2685 = vmatprep.subr.bf16.mxu0 0
    %2686 = vmatpush1.bf16.msra.mxu0 %v2683
    %2687 = vmatprep.subr.bf16.mxu0 0
    %2688 = vmatpush1.bf16.msra.mxu0 0
    %2689 = vmatprep.subr.bf16.mxu0 0
    %2690 = vmatpush1.bf16.msra.mxu0 0
    %2691 = vmatprep.subr.bf16.mxu0 0
    %2692 = vmatpush1.bf16.msra.mxu0 0
    %2693 = vmatprep.subr.bf16.mxu0 0
    %2694 = vmatpush1.bf16.msra.mxu0 0
    %2695 = vmatprep.subr.bf16.mxu0 0
    %2696 = vmatpush1.bf16.msra.mxu0 0
    %2697 = vmatprep.subr.bf16.mxu0 0
    %2698 = vmatpush1.bf16.msra.mxu0 0
    %2699 = vmatprep.subr.bf16.mxu0 0
    %2700 = vmatpush1.bf16.msra.mxu0 0
    %2701 = vmatprep.subr.bf16.mxu0 0
    %2702 = vmatpush1.bf16.msra.mxu0 0
    %2703 = vmatprep.subr.bf16.mxu0 0
    %2704 = vmatpush1.bf16.msra.mxu0 0
    %2705 = vmatprep.subr.bf16.mxu0 0
    %2706 = vmatpush1.bf16.msra.mxu0 0
    %2707 = vmatprep.subr.bf16.mxu0 0
    %2708 = vmatpush1.bf16.msra.mxu0 0
    %2709 = vmatprep.subr.bf16.mxu0 0
    %2710 = vmatpush1.bf16.msra.mxu0 0
    %2711 = vmatprep.subr.bf16.mxu0 0
    %2712 = vmatpush1.bf16.msra.mxu0 0
    %2713 = vmatprep.subr.bf16.mxu0 0
    %2714 = vmatpush1.bf16.msra.mxu0 0
    %2715 = vmatprep.subr.bf16.mxu0 0
    %2716 = vmatpush1.bf16.msra.mxu0 0
    %2717 = vmatprep.mubr.bf16.mxu0 0
    %2718 = vmatmul.mubr.bf16.gmra.mrb[0].mxu0 %v2680
    %v2719 = vpop.f32.mrb[0].mxu0
    %v2720 = vadd.f32 0.0, %v2719
    %v2721 = vpop.f32.mrb[0].mxu0
    %v2722 = vpop.f32.mrb[0].mxu0
    %v2723 = vpop.f32.mrb[0].mxu0
    %2724 = vdwg.mxu0
    %vm2725 = vcmask 259072
    %v2726 = vsel %vm2725, %v2398, 0.0
    %v2727 = vsel %vm2725, %v2444, 0.0
    %v2728 = vadd.f32 %v2726, %v2727
    %v2729 = vsel %vm2725, %v2490, 0.0
    %v2730 = vadd.f32 %v2728, %v2729
    %v2731 = vsel %vm2725, %v2536, 0.0
    %v2732 = vadd.f32 %v2730, %v2731
    %v2733 = vsel %vm2725, %v2582, 0.0
    %v2734 = vadd.f32 %v2732, %v2733
    %v2735 = vsel %vm2725, %v2628, 0.0
    %v2736 = vadd.f32 %v2734, %v2735
    %v2737 = vsel %vm2725, %v2674, 0.0
    %v2738 = vadd.f32 %v2736, %v2737
    %v2739 = vsel %vm2725, %v2720, 0.0
    %v2740 = vadd.f32 %v2738, %v2739
    %v2741 = vld [vmem:[%s49] sm:$0x1]
    %v2743 = vlaneseq
    %v2744 = vshrl.u32 %v2743, 7
    %v2745 = vsub.s32 0, %v2744
    %v2746 = vrot.slane %v2741, %v2745
    %v2748 = vadd.f32 %v2740, %v2746
    %v2749 = vpack.c.bf16 %v2748, %v2748
    %s2750 = scalar_lea.vmem %s9, 4
    %v2751 = vld [vmem:[%s2750] sm:$0x7]
    %v2753 = vsel %vm654, %v2751, 0
    %2755 = vmatprep.subr.bf16.mxu0 0
    %2756 = vmatpush1.bf16.msra.mxu0 %v948
    %2757 = vmatprep.subr.bf16.mxu0 0
    %2758 = vmatpush1.bf16.msra.mxu0 0
    %2759 = vmatprep.subr.bf16.mxu0 0
    %2760 = vmatpush1.bf16.msra.mxu0 0
    %2761 = vmatprep.subr.bf16.mxu0 0
    %2762 = vmatpush1.bf16.msra.mxu0 0
    %2763 = vmatprep.subr.bf16.mxu0 0
    %2764 = vmatpush1.bf16.msra.mxu0 0
    %2765 = vmatprep.subr.bf16.mxu0 0
    %2766 = vmatpush1.bf16.msra.mxu0 0
    %2767 = vmatprep.subr.bf16.mxu0 0
    %2768 = vmatpush1.bf16.msra.mxu0 0
    %2769 = vmatprep.subr.bf16.mxu0 0
    %2770 = vmatpush1.bf16.msra.mxu0 0
    %2771 = vmatprep.subr.bf16.mxu0 0
    %2772 = vmatpush1.bf16.msra.mxu0 0
    %2773 = vmatprep.subr.bf16.mxu0 0
    %2774 = vmatpush1.bf16.msra.mxu0 0
    %2775 = vmatprep.subr.bf16.mxu0 0
    %2776 = vmatpush1.bf16.msra.mxu0 0
    %2777 = vmatprep.subr.bf16.mxu0 0
    %2778 = vmatpush1.bf16.msra.mxu0 0
    %2779 = vmatprep.subr.bf16.mxu0 0
    %2780 = vmatpush1.bf16.msra.mxu0 0
    %2781 = vmatprep.subr.bf16.mxu0 0
    %2782 = vmatpush1.bf16.msra.mxu0 0
    %2783 = vmatprep.subr.bf16.mxu0 0
    %2784 = vmatpush1.bf16.msra.mxu0 0
    %2785 = vmatprep.subr.bf16.mxu0 0
    %2786 = vmatpush1.bf16.msra.mxu0 0
    %2787 = vmatprep.mubr.bf16.mxu0 0
    %2788 = vmatmul.mubr.bf16.gmra.mrb[0].mxu0 %v2753
    %v2789 = vpop.f32.mrb[0].mxu0
    %v2790 = vadd.f32 0.0, %v2789
    %v2791 = vpop.f32.mrb[0].mxu0
    %v2792 = vpop.f32.mrb[0].mxu0
    %v2793 = vpop.f32.mrb[0].mxu0
    %2794 = vdwg.mxu0
    %v2795 = vpack.c.bf16 %v2790, %v2790
    %v2797 = vsel %vm331, %v2795, 0
    %2799 = vmatprep.subr.bf16.mxu0 0
    %2800 = vmatpush1.bf16.msra.mxu0 %v1047
    %2801 = vmatprep.subr.bf16.mxu0 0
    %2802 = vmatpush1.bf16.msra.mxu0 %v1048
    %2803 = vmatprep.subr.bf16.mxu0 0
    %2804 = vmatpush1.bf16.msra.mxu0 0
    %2805 = vmatprep.subr.bf16.mxu0 0
    %2806 = vmatpush1.bf16.msra.mxu0 0
    %2807 = vmatprep.subr.bf16.mxu0 0
    %2808 = vmatpush1.bf16.msra.mxu0 0
    %2809 = vmatprep.subr.bf16.mxu0 0
    %2810 = vmatpush1.bf16.msra.mxu0 0
    %2811 = vmatprep.subr.bf16.mxu0 0
    %2812 = vmatpush1.bf16.msra.mxu0 0
    %2813 = vmatprep.subr.bf16.mxu0 0
    %2814 = vmatpush1.bf16.msra.mxu0 0
    %2815 = vmatprep.subr.bf16.mxu0 0
    %2816 = vmatpush1.bf16.msra.mxu0 0
    %2817 = vmatprep.subr.bf16.mxu0 0
    %2818 = vmatpush1.bf16.msra.mxu0 0
    %2819 = vmatprep.subr.bf16.mxu0 0
    %2820 = vmatpush1.bf16.msra.mxu0 0
    %2821 = vmatprep.subr.bf16.mxu0 0
    %2822 = vmatpush1.bf16.msra.mxu0 0
    %2823 = vmatprep.subr.bf16.mxu0 0
    %2824 = vmatpush1.bf16.msra.mxu0 0
    %2825 = vmatprep.subr.bf16.mxu0 0
    %2826 = vmatpush1.bf16.msra.mxu0 0
    %2827 = vmatprep.subr.bf16.mxu0 0
    %2828 = vmatpush1.bf16.msra.mxu0 0
    %2829 = vmatprep.subr.bf16.mxu0 0
    %2830 = vmatpush1.bf16.msra.mxu0 0
    %2831 = vmatprep.mubr.bf16.mxu0 0
    %2832 = vmatmul.mubr.bf16.gmra.mrb[0].mxu0 %v2797
    %v2833 = vpop.f32.mrb[0].mxu0
    %v2834 = vadd.f32 %v1002, %v2833
    %v2835 = vpop.f32.mrb[0].mxu0
    %v2836 = vpop.f32.mrb[0].mxu0
    %v2837 = vpop.f32.mrb[0].mxu0
    %2838 = vdwg.mxu0
    %2839 = vmatprep.subr.bf16.mxu0 0
    %2840 = vmatpush1.bf16.msra.mxu0 %v1102
    %2841 = vmatprep.subr.bf16.mxu0 0
    %2842 = vmatpush1.bf16.msra.mxu0 %v1103
    %2843 = vmatprep.subr.bf16.mxu0 0
    %2844 = vmatpush1.bf16.msra.mxu0 0
    %2845 = vmatprep.subr.bf16.mxu0 0
    %2846 = vmatpush1.bf16.msra.mxu0 0
    %2847 = vmatprep.subr.bf16.mxu0 0
    %2848 = vmatpush1.bf16.msra.mxu0 0
    %2849 = vmatprep.subr.bf16.mxu0 0
    %2850 = vmatpush1.bf16.msra.mxu0 0
    %2851 = vmatprep.subr.bf16.mxu0 0
    %2852 = vmatpush1.bf16.msra.mxu0 0
    %2853 = vmatprep.subr.bf16.mxu0 0
    %2854 = vmatpush1.bf16.msra.mxu0 0
    %2855 = vmatprep.subr.bf16.mxu0 0
    %2856 = vmatpush1.bf16.msra.mxu0 0
    %2857 = vmatprep.subr.bf16.mxu0 0
    %2858 = vmatpush1.bf16.msra.mxu0 0
    %2859 = vmatprep.subr.bf16.mxu0 0
    %2860 = vmatpush1.bf16.msra.mxu0 0
    %2861 = vmatprep.subr.bf16.mxu0 0
    %2862 = vmatpush1.bf16.msra.mxu0 0
    %2863 = vmatprep.subr.bf16.mxu0 0
    %2864 = vmatpush1.bf16.msra.mxu0 0
    %2865 = vmatprep.subr.bf16.mxu0 0
    %2866 = vmatpush1.bf16.msra.mxu0 0
    %2867 = vmatprep.subr.bf16.mxu0 0
    %2868 = vmatpush1.bf16.msra.mxu0 0
    %2869 = vmatprep.subr.bf16.mxu0 0
    %2870 = vmatpush1.bf16.msra.mxu0 0
    %2871 = vmatprep.mubr.bf16.mxu0 0
    %2872 = vmatmul.mubr.bf16.gmra.mrb[0].mxu0 %v2797
    %v2873 = vpop.f32.mrb[0].mxu0
    %v2874 = vadd.f32 %v1006, %v2873
    %v2875 = vpop.f32.mrb[0].mxu0
    %v2876 = vpop.f32.mrb[0].mxu0
    %v2877 = vpop.f32.mrb[0].mxu0
    %2878 = vdwg.mxu0
    %2879 = vmatprep.subr.bf16.mxu0 0
    %2880 = vmatpush1.bf16.msra.mxu0 %v1154
    %2881 = vmatprep.subr.bf16.mxu0 0
    %2882 = vmatpush1.bf16.msra.mxu0 %v1155
    %2883 = vmatprep.subr.bf16.mxu0 0
    %2884 = vmatpush1.bf16.msra.mxu0 0
    %2885 = vmatprep.subr.bf16.mxu0 0
    %2886 = vmatpush1.bf16.msra.mxu0 0
    %2887 = vmatprep.subr.bf16.mxu0 0
    %2888 = vmatpush1.bf16.msra.mxu0 0
    %2889 = vmatprep.subr.bf16.mxu0 0
    %2890 = vmatpush1.bf16.msra.mxu0 0
    %2891 = vmatprep.subr.bf16.mxu0 0
    %2892 = vmatpush1.bf16.msra.mxu0 0
    %2893 = vmatprep.subr.bf16.mxu0 0
    %2894 = vmatpush1.bf16.msra.mxu0 0
    %2895 = vmatprep.subr.bf16.mxu0 0
    %2896 = vmatpush1.bf16.msra.mxu0 0
    %2897 = vmatprep.subr.bf16.mxu0 0
    %2898 = vmatpush1.bf16.msra.mxu0 0
    %2899 = vmatprep.subr.bf16.mxu0 0
    %2900 = vmatpush1.bf16.msra.mxu0 0
    %2901 = vmatprep.subr.bf16.mxu0 0
    %2902 = vmatpush1.bf16.msra.mxu0 0
    %2903 = vmatprep.subr.bf16.mxu0 0
    %2904 = vmatpush1.bf16.msra.mxu0 0
    %2905 = vmatprep.subr.bf16.mxu0 0
    %2906 = vmatpush1.bf16.msra.mxu0 0
    %2907 = vmatprep.subr.bf16.mxu0 0
    %2908 = vmatpush1.bf16.msra.mxu0 0
    %2909 = vmatprep.subr.bf16.mxu0 0
    %2910 = vmatpush1.bf16.msra.mxu0 0
    %2911 = vmatprep.mubr.bf16.mxu0 0
    %2912 = vmatmul.mubr.bf16.gmra.mrb[0].mxu0 %v2797
    %v2913 = vpop.f32.mrb[0].mxu0
    %v2914 = vadd.f32 %v1010, %v2913
    %v2915 = vpop.f32.mrb[0].mxu0
    %v2916 = vpop.f32.mrb[0].mxu0
    %v2917 = vpop.f32.mrb[0].mxu0
    %2918 = vdwg.mxu0
    %2919 = vmatprep.subr.bf16.mxu0 0
    %2920 = vmatpush1.bf16.msra.mxu0 %v1206
    %2921 = vmatprep.subr.bf16.mxu0 0
    %2922 = vmatpush1.bf16.msra.mxu0 %v1207
    %2923 = vmatprep.subr.bf16.mxu0 0
    %2924 = vmatpush1.bf16.msra.mxu0 0
    %2925 = vmatprep.subr.bf16.mxu0 0
    %2926 = vmatpush1.bf16.msra.mxu0 0
    %2927 = vmatprep.subr.bf16.mxu0 0
    %2928 = vmatpush1.bf16.msra.mxu0 0
    %2929 = vmatprep.subr.bf16.mxu0 0
    %2930 = vmatpush1.bf16.msra.mxu0 0
    %2931 = vmatprep.subr.bf16.mxu0 0
    %2932 = vmatpush1.bf16.msra.mxu0 0
    %2933 = vmatprep.subr.bf16.mxu0 0
    %2934 = vmatpush1.bf16.msra.mxu0 0
    %2935 = vmatprep.subr.bf16.mxu0 0
    %2936 = vmatpush1.bf16.msra.mxu0 0
    %2937 = vmatprep.subr.bf16.mxu0 0
    %2938 = vmatpush1.bf16.msra.mxu0 0
    %2939 = vmatprep.subr.bf16.mxu0 0
    %2940 = vmatpush1.bf16.msra.mxu0 0
    %2941 = vmatprep.subr.bf16.mxu0 0
    %2942 = vmatpush1.bf16.msra.mxu0 0
    %2943 = vmatprep.subr.bf16.mxu0 0
    %2944 = vmatpush1.bf16.msra.mxu0 0
    %2945 = vmatprep.subr.bf16.mxu0 0
    %2946 = vmatpush1.bf16.msra.mxu0 0
    %2947 = vmatprep.subr.bf16.mxu0 0
    %2948 = vmatpush1.bf16.msra.mxu0 0
    %2949 = vmatprep.subr.bf16.mxu0 0
    %2950 = vmatpush1.bf16.msra.mxu0 0
    %2951 = vmatprep.mubr.bf16.mxu0 0
    %2952 = vmatmul.mubr.bf16.gmra.mrb[0].mxu0 %v2797
    %v2953 = vpop.f32.mrb[0].mxu0
    %v2954 = vadd.f32 %v1014, %v2953
    %v2955 = vpop.f32.mrb[0].mxu0
    %v2956 = vpop.f32.mrb[0].mxu0
    %v2957 = vpop.f32.mrb[0].mxu0
    %2958 = vdwg.mxu0
    %2959 = vmatprep.subr.bf16.mxu0 0
    %2960 = vmatpush1.bf16.msra.mxu0 %v1258
    %2961 = vmatprep.subr.bf16.mxu0 0
    %2962 = vmatpush1.bf16.msra.mxu0 %v1259
    %2963 = vmatprep.subr.bf16.mxu0 0
    %2964 = vmatpush1.bf16.msra.mxu0 0
    %2965 = vmatprep.subr.bf16.mxu0 0
    %2966 = vmatpush1.bf16.msra.mxu0 0
    %2967 = vmatprep.subr.bf16.mxu0 0
    %2968 = vmatpush1.bf16.msra.mxu0 0
    %2969 = vmatprep.subr.bf16.mxu0 0
    %2970 = vmatpush1.bf16.msra.mxu0 0
    %2971 = vmatprep.subr.bf16.mxu0 0
    %2972 = vmatpush1.bf16.msra.mxu0 0
    %2973 = vmatprep.subr.bf16.mxu0 0
    %2974 = vmatpush1.bf16.msra.mxu0 0
    %2975 = vmatprep.subr.bf16.mxu0 0
    %2976 = vmatpush1.bf16.msra.mxu0 0
    %2977 = vmatprep.subr.bf16.mxu0 0
    %2978 = vmatpush1.bf16.msra.mxu0 0
    %2979 = vmatprep.subr.bf16.mxu0 0
    %2980 = vmatpush1.bf16.msra.mxu0 0
    %2981 = vmatprep.subr.bf16.mxu0 0
    %2982 = vmatpush1.bf16.msra.mxu0 0
    %2983 = vmatprep.subr.bf16.mxu0 0
    %2984 = vmatpush1.bf16.msra.mxu0 0
    %2985 = vmatprep.subr.bf16.mxu0 0
    %2986 = vmatpush1.bf16.msra.mxu0 0
    %2987 = vmatprep.subr.bf16.mxu0 0
    %2988 = vmatpush1.bf16.msra.mxu0 0
    %2989 = vmatprep.subr.bf16.mxu0 0
    %2990 = vmatpush1.bf16.msra.mxu0 0
    %2991 = vmatprep.mubr.bf16.mxu0 0
    %2992 = vmatmul.mubr.bf16.gmra.mrb[0].mxu0 %v2797
    %v2993 = vpop.f32.mrb[0].mxu0
    %v2994 = vadd.f32 %v1018, %v2993
    %v2995 = vpop.f32.mrb[0].mxu0
    %v2996 = vpop.f32.mrb[0].mxu0
    %v2997 = vpop.f32.mrb[0].mxu0
    %2998 = vdwg.mxu0
    %2999 = vmatprep.subr.bf16.mxu0 0
    %3000 = vmatpush1.bf16.msra.mxu0 %v1310
    %3001 = vmatprep.subr.bf16.mxu0 0
    %3002 = vmatpush1.bf16.msra.mxu0 %v1311
    %3003 = vmatprep.subr.bf16.mxu0 0
    %3004 = vmatpush1.bf16.msra.mxu0 0
    %3005 = vmatprep.subr.bf16.mxu0 0
    %3006 = vmatpush1.bf16.msra.mxu0 0
    %3007 = vmatprep.subr.bf16.mxu0 0
    %3008 = vmatpush1.bf16.msra.mxu0 0
    %3009 = vmatprep.subr.bf16.mxu0 0
    %3010 = vmatpush1.bf16.msra.mxu0 0
    %3011 = vmatprep.subr.bf16.mxu0 0
    %3012 = vmatpush1.bf16.msra.mxu0 0
    %3013 = vmatprep.subr.bf16.mxu0 0
    %3014 = vmatpush1.bf16.msra.mxu0 0
    %3015 = vmatprep.subr.bf16.mxu0 0
    %3016 = vmatpush1.bf16.msra.mxu0 0
    %3017 = vmatprep.subr.bf16.mxu0 0
    %3018 = vmatpush1.bf16.msra.mxu0 0
    %3019 = vmatprep.subr.bf16.mxu0 0
    %3020 = vmatpush1.bf16.msra.mxu0 0
    %3021 = vmatprep.subr.bf16.mxu0 0
    %3022 = vmatpush1.bf16.msra.mxu0 0
    %3023 = vmatprep.subr.bf16.mxu0 0
    %3024 = vmatpush1.bf16.msra.mxu0 0
    %3025 = vmatprep.subr.bf16.mxu0 0
    %3026 = vmatpush1.bf16.msra.mxu0 0
    %3027 = vmatprep.subr.bf16.mxu0 0
    %3028 = vmatpush1.bf16.msra.mxu0 0
    %3029 = vmatprep.subr.bf16.mxu0 0
    %3030 = vmatpush1.bf16.msra.mxu0 0
    %3031 = vmatprep.mubr.bf16.mxu0 0
    %3032 = vmatmul.mubr.bf16.gmra.mrb[0].mxu0 %v2797
    %v3033 = vpop.f32.mrb[0].mxu0
    %v3034 = vadd.f32 %v1022, %v3033
    %v3035 = vpop.f32.mrb[0].mxu0
    %v3036 = vpop.f32.mrb[0].mxu0
    %v3037 = vpop.f32.mrb[0].mxu0
    %3038 = vdwg.mxu0
    %3039 = vmatprep.subr.bf16.mxu0 0
    %3040 = vmatpush1.bf16.msra.mxu0 %v1362
    %3041 = vmatprep.subr.bf16.mxu0 0
    %3042 = vmatpush1.bf16.msra.mxu0 %v1363
    %3043 = vmatprep.subr.bf16.mxu0 0
    %3044 = vmatpush1.bf16.msra.mxu0 0
    %3045 = vmatprep.subr.bf16.mxu0 0
    %3046 = vmatpush1.bf16.msra.mxu0 0
    %3047 = vmatprep.subr.bf16.mxu0 0
    %3048 = vmatpush1.bf16.msra.mxu0 0
    %3049 = vmatprep.subr.bf16.mxu0 0
    %3050 = vmatpush1.bf16.msra.mxu0 0
    %3051 = vmatprep.subr.bf16.mxu0 0
    %3052 = vmatpush1.bf16.msra.mxu0 0
    %3053 = vmatprep.subr.bf16.mxu0 0
    %3054 = vmatpush1.bf16.msra.mxu0 0
    %3055 = vmatprep.subr.bf16.mxu0 0
    %3056 = vmatpush1.bf16.msra.mxu0 0
    %3057 = vmatprep.subr.bf16.mxu0 0
    %3058 = vmatpush1.bf16.msra.mxu0 0
    %3059 = vmatprep.subr.bf16.mxu0 0
    %3060 = vmatpush1.bf16.msra.mxu0 0
    %3061 = vmatprep.subr.bf16.mxu0 0
    %3062 = vmatpush1.bf16.msra.mxu0 0
    %3063 = vmatprep.subr.bf16.mxu0 0
    %3064 = vmatpush1.bf16.msra.mxu0 0
    %3065 = vmatprep.subr.bf16.mxu0 0
    %3066 = vmatpush1.bf16.msra.mxu0 0
    %3067 = vmatprep.subr.bf16.mxu0 0
    %3068 = vmatpush1.bf16.msra.mxu0 0
    %3069 = vmatprep.subr.bf16.mxu0 0
    %3070 = vmatpush1.bf16.msra.mxu0 0
    %3071 = vmatprep.mubr.bf16.mxu0 0
    %3072 = vmatmul.mubr.bf16.gmra.mrb[0].mxu0 %v2797
    %v3073 = vpop.f32.mrb[0].mxu0
    %v3074 = vadd.f32 %v1026, %v3073
    %v3075 = vpop.f32.mrb[0].mxu0
    %v3076 = vpop.f32.mrb[0].mxu0
    %v3077 = vpop.f32.mrb[0].mxu0
    %3078 = vdwg.mxu0
    %3079 = vmatprep.subr.bf16.mxu0 0
    %3080 = vmatpush1.bf16.msra.mxu0 %v1414
    %3081 = vmatprep.subr.bf16.mxu0 0
    %3082 = vmatpush1.bf16.msra.mxu0 %v1415
    %3083 = vmatprep.subr.bf16.mxu0 0
    %3084 = vmatpush1.bf16.msra.mxu0 0
    %3085 = vmatprep.subr.bf16.mxu0 0
    %3086 = vmatpush1.bf16.msra.mxu0 0
    %3087 = vmatprep.subr.bf16.mxu0 0
    %3088 = vmatpush1.bf16.msra.mxu0 0
    %3089 = vmatprep.subr.bf16.mxu0 0
    %3090 = vmatpush1.bf16.msra.mxu0 0
    %3091 = vmatprep.subr.bf16.mxu0 0
    %3092 = vmatpush1.bf16.msra.mxu0 0
    %3093 = vmatprep.subr.bf16.mxu0 0
    %3094 = vmatpush1.bf16.msra.mxu0 0
    %3095 = vmatprep.subr.bf16.mxu0 0
    %3096 = vmatpush1.bf16.msra.mxu0 0
    %3097 = vmatprep.subr.bf16.mxu0 0
    %3098 = vmatpush1.bf16.msra.mxu0 0
    %3099 = vmatprep.subr.bf16.mxu0 0
    %3100 = vmatpush1.bf16.msra.mxu0 0
    %3101 = vmatprep.subr.bf16.mxu0 0
    %3102 = vmatpush1.bf16.msra.mxu0 0
    %3103 = vmatprep.subr.bf16.mxu0 0
    %3104 = vmatpush1.bf16.msra.mxu0 0
    %3105 = vmatprep.subr.bf16.mxu0 0
    %3106 = vmatpush1.bf16.msra.mxu0 0
    %3107 = vmatprep.subr.bf16.mxu0 0
    %3108 = vmatpush1.bf16.msra.mxu0 0
    %3109 = vmatprep.subr.bf16.mxu0 0
    %3110 = vmatpush1.bf16.msra.mxu0 0
    %3111 = vmatprep.mubr.bf16.mxu0 0
    %3112 = vmatmul.mubr.bf16.gmra.mrb[0].mxu0 %v2797
    %v3113 = vpop.f32.mrb[0].mxu0
    %v3114 = vadd.f32 %v1030, %v3113
    %v3115 = vpop.f32.mrb[0].mxu0
    %v3116 = vpop.f32.mrb[0].mxu0
    %v3117 = vpop.f32.mrb[0].mxu0
    %3118 = vdwg.mxu0
    %v3119 = vpack.c.bf16 %v2834, %v2834
    %v3120 = vpack.c.bf16 %v2874, %v2874
    %v3121 = vpack.c.bf16 %v2914, %v2914
    %v3122 = vpack.c.bf16 %v2954, %v2954
    %v3123 = vpack.c.bf16 %v2994, %v2994
    %v3124 = vpack.c.bf16 %v3034, %v3034
    %v3125 = vpack.c.bf16 %v3074, %v3074
    %v3126 = vpack.c.bf16 %v3114, %v3114
    %s3127 = scalar_lea.vmem %s11, 1
    %v3128 = vld [vmem:[%s3127] sm:$0x1]
    %v3130 = vlaneseq
    %v3131 = vshrl.u32 %v3130, 7
    %v3132 = vsub.s32 0, %v3131
    %v3133 = vrot.slane %v3128, %v3132
    %3136 = vrot.lane.b32.xlu0 %v3119, 124
    %v3137 = vpop.permute.xlu0 %3136
    %v3139 = vsel %vm1476, %v3119, 0
    %v3142 = vsel %vm1476, %v3137, 0
    %3144 = vmatprep.subr.bf16.mxu0 0
    %3145 = vmatpush1.bf16.xpose.msra.mxu0 %v3142
    %3146 = vmatprep.subr.bf16.mxu0 0
    %3147 = vmatpush1.bf16.xpose.msra.mxu0 0
    %3148 = vmatprep.subr.bf16.mxu0 0
    %3149 = vmatpush1.bf16.xpose.msra.mxu0 0
    %3150 = vmatprep.subr.bf16.mxu0 0
    %3151 = vmatpush1.bf16.xpose.msra.mxu0 0
    %3152 = vmatprep.subr.bf16.mxu0 0
    %3153 = vmatpush1.bf16.xpose.msra.mxu0 0
    %3154 = vmatprep.subr.bf16.mxu0 0
    %3155 = vmatpush1.bf16.xpose.msra.mxu0 0
    %3156 = vmatprep.subr.bf16.mxu0 0
    %3157 = vmatpush1.bf16.xpose.msra.mxu0 0
    %3158 = vmatprep.subr.bf16.mxu0 0
    %3159 = vmatpush1.bf16.xpose.msra.mxu0 0
    %3160 = vmatprep.subr.bf16.mxu0 0
    %3161 = vmatpush1.bf16.xpose.msra.mxu0 0
    %3162 = vmatprep.subr.bf16.mxu0 0
    %3163 = vmatpush1.bf16.xpose.msra.mxu0 0
    %3164 = vmatprep.subr.bf16.mxu0 0
    %3165 = vmatpush1.bf16.xpose.msra.mxu0 0
    %3166 = vmatprep.subr.bf16.mxu0 0
    %3167 = vmatpush1.bf16.xpose.msra.mxu0 0
    %3168 = vmatprep.subr.bf16.mxu0 0
    %3169 = vmatpush1.bf16.xpose.msra.mxu0 0
    %3170 = vmatprep.subr.bf16.mxu0 0
    %3171 = vmatpush1.bf16.xpose.msra.mxu0 0
    %3172 = vmatprep.subr.bf16.mxu0 0
    %3173 = vmatpush1.bf16.xpose.msra.mxu0 0
    %3174 = vmatprep.subr.bf16.mxu0 0
    %3175 = vmatpush1.bf16.xpose.msra.mxu0 0
    %3176 = vmatprep.mubr.bf16.mxu0 0
    %3177 = vmatmul.mubr.bf16.gmra.mrb[0].mxu0 %v3139
    %v3178 = vpop.f32.mrb[0].mxu0
    %v3179 = vadd.f32 %v3133, %v3178
    %v3180 = vpop.f32.mrb[0].mxu0
    %v3181 = vpop.f32.mrb[0].mxu0
    %v3182 = vpop.f32.mrb[0].mxu0
    %3183 = vdwg.mxu0
    %3185 = vrot.lane.b32.xlu0 %v3120, 124
    %v3186 = vpop.permute.xlu0 %3185
    %v3188 = vsel %vm1476, %v3120, 0
    %v3191 = vsel %vm1476, %v3186, 0
    %3193 = vmatprep.subr.bf16.mxu0 0
    %3194 = vmatpush1.bf16.xpose.msra.mxu0 %v3191
    %3195 = vmatprep.subr.bf16.mxu0 0
    %3196 = vmatpush1.bf16.xpose.msra.mxu0 0
    %3197 = vmatprep.subr.bf16.mxu0 0
    %3198 = vmatpush1.bf16.xpose.msra.mxu0 0
    %3199 = vmatprep.subr.bf16.mxu0 0
    %3200 = vmatpush1.bf16.xpose.msra.mxu0 0
    %3201 = vmatprep.subr.bf16.mxu0 0
    %3202 = vmatpush1.bf16.xpose.msra.mxu0 0
    %3203 = vmatprep.subr.bf16.mxu0 0
    %3204 = vmatpush1.bf16.xpose.msra.mxu0 0
    %3205 = vmatprep.subr.bf16.mxu0 0
    %3206 = vmatpush1.bf16.xpose.msra.mxu0 0
    %3207 = vmatprep.subr.bf16.mxu0 0
    %3208 = vmatpush1.bf16.xpose.msra.mxu0 0
    %3209 = vmatprep.subr.bf16.mxu0 0
    %3210 = vmatpush1.bf16.xpose.msra.mxu0 0
    %3211 = vmatprep.subr.bf16.mxu0 0
    %3212 = vmatpush1.bf16.xpose.msra.mxu0 0
    %3213 = vmatprep.subr.bf16.mxu0 0
    %3214 = vmatpush1.bf16.xpose.msra.mxu0 0
    %3215 = vmatprep.subr.bf16.mxu0 0
    %3216 = vmatpush1.bf16.xpose.msra.mxu0 0
    %3217 = vmatprep.subr.bf16.mxu0 0
    %3218 = vmatpush1.bf16.xpose.msra.mxu0 0
    %3219 = vmatprep.subr.bf16.mxu0 0
    %3220 = vmatpush1.bf16.xpose.msra.mxu0 0
    %3221 = vmatprep.subr.bf16.mxu0 0
    %3222 = vmatpush1.bf16.xpose.msra.mxu0 0
    %3223 = vmatprep.subr.bf16.mxu0 0
    %3224 = vmatpush1.bf16.xpose.msra.mxu0 0
    %3225 = vmatprep.mubr.bf16.mxu0 0
    %3226 = vmatmul.mubr.bf16.gmra.mrb[0].mxu0 %v3188
    %v3227 = vpop.f32.mrb[0].mxu0
    %v3228 = vadd.f32 %v3133, %v3227
    %v3229 = vpop.f32.mrb[0].mxu0
    %v3230 = vpop.f32.mrb[0].mxu0
    %v3231 = vpop.f32.mrb[0].mxu0
    %3232 = vdwg.mxu0
    %3234 = vrot.lane.b32.xlu0 %v3121, 124
    %v3235 = vpop.permute.xlu0 %3234
    %v3237 = vsel %vm1476, %v3121, 0
    %v3240 = vsel %vm1476, %v3235, 0
    %3242 = vmatprep.subr.bf16.mxu0 0
    %3243 = vmatpush1.bf16.xpose.msra.mxu0 %v3240
    %3244 = vmatprep.subr.bf16.mxu0 0
    %3245 = vmatpush1.bf16.xpose.msra.mxu0 0
    %3246 = vmatprep.subr.bf16.mxu0 0
    %3247 = vmatpush1.bf16.xpose.msra.mxu0 0
    %3248 = vmatprep.subr.bf16.mxu0 0
    %3249 = vmatpush1.bf16.xpose.msra.mxu0 0
    %3250 = vmatprep.subr.bf16.mxu0 0
    %3251 = vmatpush1.bf16.xpose.msra.mxu0 0
    %3252 = vmatprep.subr.bf16.mxu0 0
    %3253 = vmatpush1.bf16.xpose.msra.mxu0 0
    %3254 = vmatprep.subr.bf16.mxu0 0
    %3255 = vmatpush1.bf16.xpose.msra.mxu0 0
    %3256 = vmatprep.subr.bf16.mxu0 0
    %3257 = vmatpush1.bf16.xpose.msra.mxu0 0
    %3258 = vmatprep.subr.bf16.mxu0 0
    %3259 = vmatpush1.bf16.xpose.msra.mxu0 0
    %3260 = vmatprep.subr.bf16.mxu0 0
    %3261 = vmatpush1.bf16.xpose.msra.mxu0 0
    %3262 = vmatprep.subr.bf16.mxu0 0
    %3263 = vmatpush1.bf16.xpose.msra.mxu0 0
    %3264 = vmatprep.subr.bf16.mxu0 0
    %3265 = vmatpush1.bf16.xpose.msra.mxu0 0
    %3266 = vmatprep.subr.bf16.mxu0 0
    %3267 = vmatpush1.bf16.xpose.msra.mxu0 0
    %3268 = vmatprep.subr.bf16.mxu0 0
    %3269 = vmatpush1.bf16.xpose.msra.mxu0 0
    %3270 = vmatprep.subr.bf16.mxu0 0
    %3271 = vmatpush1.bf16.xpose.msra.mxu0 0
    %3272 = vmatprep.subr.bf16.mxu0 0
    %3273 = vmatpush1.bf16.xpose.msra.mxu0 0
    %3274 = vmatprep.mubr.bf16.mxu0 0
    %3275 = vmatmul.mubr.bf16.gmra.mrb[0].mxu0 %v3237
    %v3276 = vpop.f32.mrb[0].mxu0
    %v3277 = vadd.f32 %v3133, %v3276
    %v3278 = vpop.f32.mrb[0].mxu0
    %v3279 = vpop.f32.mrb[0].mxu0
    %v3280 = vpop.f32.mrb[0].mxu0
    %3281 = vdwg.mxu0
    %3283 = vrot.lane.b32.xlu0 %v3122, 124
    %v3284 = vpop.permute.xlu0 %3283
    %v3286 = vsel %vm1476, %v3122, 0
    %v3289 = vsel %vm1476, %v3284, 0
    %3291 = vmatprep.subr.bf16.mxu0 0
    %3292 = vmatpush1.bf16.xpose.msra.mxu0 %v3289
    %3293 = vmatprep.subr.bf16.mxu0 0
    %3294 = vmatpush1.bf16.xpose.msra.mxu0 0
    %3295 = vmatprep.subr.bf16.mxu0 0
    %3296 = vmatpush1.bf16.xpose.msra.mxu0 0
    %3297 = vmatprep.subr.bf16.mxu0 0
    %3298 = vmatpush1.bf16.xpose.msra.mxu0 0
    %3299 = vmatprep.subr.bf16.mxu0 0
    %3300 = vmatpush1.bf16.xpose.msra.mxu0 0
    %3301 = vmatprep.subr.bf16.mxu0 0
    %3302 = vmatpush1.bf16.xpose.msra.mxu0 0
    %3303 = vmatprep.subr.bf16.mxu0 0
    %3304 = vmatpush1.bf16.xpose.msra.mxu0 0
    %3305 = vmatprep.subr.bf16.mxu0 0
    %3306 = vmatpush1.bf16.xpose.msra.mxu0 0
    %3307 = vmatprep.subr.bf16.mxu0 0
    %3308 = vmatpush1.bf16.xpose.msra.mxu0 0
    %3309 = vmatprep.subr.bf16.mxu0 0
    %3310 = vmatpush1.bf16.xpose.msra.mxu0 0
    %3311 = vmatprep.subr.bf16.mxu0 0
    %3312 = vmatpush1.bf16.xpose.msra.mxu0 0
    %3313 = vmatprep.subr.bf16.mxu0 0
    %3314 = vmatpush1.bf16.xpose.msra.mxu0 0
    %3315 = vmatprep.subr.bf16.mxu0 0
    %3316 = vmatpush1.bf16.xpose.msra.mxu0 0
    %3317 = vmatprep.subr.bf16.mxu0 0
    %3318 = vmatpush1.bf16.xpose.msra.mxu0 0
    %3319 = vmatprep.subr.bf16.mxu0 0
    %3320 = vmatpush1.bf16.xpose.msra.mxu0 0
    %3321 = vmatprep.subr.bf16.mxu0 0
    %3322 = vmatpush1.bf16.xpose.msra.mxu0 0
    %3323 = vmatprep.mubr.bf16.mxu0 0
    %3324 = vmatmul.mubr.bf16.gmra.mrb[0].mxu0 %v3286
    %v3325 = vpop.f32.mrb[0].mxu0
    %v3326 = vadd.f32 %v3133, %v3325
    %v3327 = vpop.f32.mrb[0].mxu0
    %v3328 = vpop.f32.mrb[0].mxu0
    %v3329 = vpop.f32.mrb[0].mxu0
    %3330 = vdwg.mxu0
    %3332 = vrot.lane.b32.xlu0 %v3123, 124
    %v3333 = vpop.permute.xlu0 %3332
    %v3335 = vsel %vm1476, %v3123, 0
    %v3338 = vsel %vm1476, %v3333, 0
    %3340 = vmatprep.subr.bf16.mxu0 0
    %3341 = vmatpush1.bf16.xpose.msra.mxu0 %v3338
    %3342 = vmatprep.subr.bf16.mxu0 0
    %3343 = vmatpush1.bf16.xpose.msra.mxu0 0
    %3344 = vmatprep.subr.bf16.mxu0 0
    %3345 = vmatpush1.bf16.xpose.msra.mxu0 0
    %3346 = vmatprep.subr.bf16.mxu0 0
    %3347 = vmatpush1.bf16.xpose.msra.mxu0 0
    %3348 = vmatprep.subr.bf16.mxu0 0
    %3349 = vmatpush1.bf16.xpose.msra.mxu0 0
    %3350 = vmatprep.subr.bf16.mxu0 0
    %3351 = vmatpush1.bf16.xpose.msra.mxu0 0
    %3352 = vmatprep.subr.bf16.mxu0 0
    %3353 = vmatpush1.bf16.xpose.msra.mxu0 0
    %3354 = vmatprep.subr.bf16.mxu0 0
    %3355 = vmatpush1.bf16.xpose.msra.mxu0 0
    %3356 = vmatprep.subr.bf16.mxu0 0
    %3357 = vmatpush1.bf16.xpose.msra.mxu0 0
    %3358 = vmatprep.subr.bf16.mxu0 0
    %3359 = vmatpush1.bf16.xpose.msra.mxu0 0
    %3360 = vmatprep.subr.bf16.mxu0 0
    %3361 = vmatpush1.bf16.xpose.msra.mxu0 0
    %3362 = vmatprep.subr.bf16.mxu0 0
    %3363 = vmatpush1.bf16.xpose.msra.mxu0 0
    %3364 = vmatprep.subr.bf16.mxu0 0
    %3365 = vmatpush1.bf16.xpose.msra.mxu0 0
    %3366 = vmatprep.subr.bf16.mxu0 0
    %3367 = vmatpush1.bf16.xpose.msra.mxu0 0
    %3368 = vmatprep.subr.bf16.mxu0 0
    %3369 = vmatpush1.bf16.xpose.msra.mxu0 0
    %3370 = vmatprep.subr.bf16.mxu0 0
    %3371 = vmatpush1.bf16.xpose.msra.mxu0 0
    %3372 = vmatprep.mubr.bf16.mxu0 0
    %3373 = vmatmul.mubr.bf16.gmra.mrb[0].mxu0 %v3335
    %v3374 = vpop.f32.mrb[0].mxu0
    %v3375 = vadd.f32 %v3133, %v3374
    %v3376 = vpop.f32.mrb[0].mxu0
    %v3377 = vpop.f32.mrb[0].mxu0
    %v3378 = vpop.f32.mrb[0].mxu0
    %3379 = vdwg.mxu0
    %3381 = vrot.lane.b32.xlu0 %v3124, 124
    %v3382 = vpop.permute.xlu0 %3381
    %v3384 = vsel %vm1476, %v3124, 0
    %v3387 = vsel %vm1476, %v3382, 0
    %3389 = vmatprep.subr.bf16.mxu0 0
    %3390 = vmatpush1.bf16.xpose.msra.mxu0 %v3387
    %3391 = vmatprep.subr.bf16.mxu0 0
    %3392 = vmatpush1.bf16.xpose.msra.mxu0 0
    %3393 = vmatprep.subr.bf16.mxu0 0
    %3394 = vmatpush1.bf16.xpose.msra.mxu0 0
    %3395 = vmatprep.subr.bf16.mxu0 0
    %3396 = vmatpush1.bf16.xpose.msra.mxu0 0
    %3397 = vmatprep.subr.bf16.mxu0 0
    %3398 = vmatpush1.bf16.xpose.msra.mxu0 0
    %3399 = vmatprep.subr.bf16.mxu0 0
    %3400 = vmatpush1.bf16.xpose.msra.mxu0 0
    %3401 = vmatprep.subr.bf16.mxu0 0
    %3402 = vmatpush1.bf16.xpose.msra.mxu0 0
    %3403 = vmatprep.subr.bf16.mxu0 0
    %3404 = vmatpush1.bf16.xpose.msra.mxu0 0
    %3405 = vmatprep.subr.bf16.mxu0 0
    %3406 = vmatpush1.bf16.xpose.msra.mxu0 0
    %3407 = vmatprep.subr.bf16.mxu0 0
    %3408 = vmatpush1.bf16.xpose.msra.mxu0 0
    %3409 = vmatprep.subr.bf16.mxu0 0
    %3410 = vmatpush1.bf16.xpose.msra.mxu0 0
    %3411 = vmatprep.subr.bf16.mxu0 0
    %3412 = vmatpush1.bf16.xpose.msra.mxu0 0
    %3413 = vmatprep.subr.bf16.mxu0 0
    %3414 = vmatpush1.bf16.xpose.msra.mxu0 0
    %3415 = vmatprep.subr.bf16.mxu0 0
    %3416 = vmatpush1.bf16.xpose.msra.mxu0 0
    %3417 = vmatprep.subr.bf16.mxu0 0
    %3418 = vmatpush1.bf16.xpose.msra.mxu0 0
    %3419 = vmatprep.subr.bf16.mxu0 0
    %3420 = vmatpush1.bf16.xpose.msra.mxu0 0
    %3421 = vmatprep.mubr.bf16.mxu0 0
    %3422 = vmatmul.mubr.bf16.gmra.mrb[0].mxu0 %v3384
    %v3423 = vpop.f32.mrb[0].mxu0
    %v3424 = vadd.f32 %v3133, %v3423
    %v3425 = vpop.f32.mrb[0].mxu0
    %v3426 = vpop.f32.mrb[0].mxu0
    %v3427 = vpop.f32.mrb[0].mxu0
    %3428 = vdwg.mxu0
    %3430 = vrot.lane.b32.xlu0 %v3125, 124
    %v3431 = vpop.permute.xlu0 %3430
    %v3433 = vsel %vm1476, %v3125, 0
    %v3436 = vsel %vm1476, %v3431, 0
    %3438 = vmatprep.subr.bf16.mxu0 0
    %3439 = vmatpush1.bf16.xpose.msra.mxu0 %v3436
    %3440 = vmatprep.subr.bf16.mxu0 0
    %3441 = vmatpush1.bf16.xpose.msra.mxu0 0
    %3442 = vmatprep.subr.bf16.mxu0 0
    %3443 = vmatpush1.bf16.xpose.msra.mxu0 0
    %3444 = vmatprep.subr.bf16.mxu0 0
    %3445 = vmatpush1.bf16.xpose.msra.mxu0 0
    %3446 = vmatprep.subr.bf16.mxu0 0
    %3447 = vmatpush1.bf16.xpose.msra.mxu0 0
    %3448 = vmatprep.subr.bf16.mxu0 0
    %3449 = vmatpush1.bf16.xpose.msra.mxu0 0
    %3450 = vmatprep.subr.bf16.mxu0 0
    %3451 = vmatpush1.bf16.xpose.msra.mxu0 0
    %3452 = vmatprep.subr.bf16.mxu0 0
    %3453 = vmatpush1.bf16.xpose.msra.mxu0 0
    %3454 = vmatprep.subr.bf16.mxu0 0
    %3455 = vmatpush1.bf16.xpose.msra.mxu0 0
    %3456 = vmatprep.subr.bf16.mxu0 0
    %3457 = vmatpush1.bf16.xpose.msra.mxu0 0
    %3458 = vmatprep.subr.bf16.mxu0 0
    %3459 = vmatpush1.bf16.xpose.msra.mxu0 0
    %3460 = vmatprep.subr.bf16.mxu0 0
    %3461 = vmatpush1.bf16.xpose.msra.mxu0 0
    %3462 = vmatprep.subr.bf16.mxu0 0
    %3463 = vmatpush1.bf16.xpose.msra.mxu0 0
    %3464 = vmatprep.subr.bf16.mxu0 0
    %3465 = vmatpush1.bf16.xpose.msra.mxu0 0
    %3466 = vmatprep.subr.bf16.mxu0 0
    %3467 = vmatpush1.bf16.xpose.msra.mxu0 0
    %3468 = vmatprep.subr.bf16.mxu0 0
    %3469 = vmatpush1.bf16.xpose.msra.mxu0 0
    %3470 = vmatprep.mubr.bf16.mxu0 0
    %3471 = vmatmul.mubr.bf16.gmra.mrb[0].mxu0 %v3433
    %v3472 = vpop.f32.mrb[0].mxu0
    %v3473 = vadd.f32 %v3133, %v3472
    %v3474 = vpop.f32.mrb[0].mxu0
    %v3475 = vpop.f32.mrb[0].mxu0
    %v3476 = vpop.f32.mrb[0].mxu0
    %3477 = vdwg.mxu0
    %3479 = vrot.lane.b32.xlu0 %v3126, 124
    %v3480 = vpop.permute.xlu0 %3479
    %v3482 = vsel %vm1476, %v3126, 0
    %v3485 = vsel %vm1476, %v3480, 0
    %3487 = vmatprep.subr.bf16.mxu0 0
    %3488 = vmatpush1.bf16.xpose.msra.mxu0 %v3485
    %3489 = vmatprep.subr.bf16.mxu0 0
    %3490 = vmatpush1.bf16.xpose.msra.mxu0 0
    %3491 = vmatprep.subr.bf16.mxu0 0
    %3492 = vmatpush1.bf16.xpose.msra.mxu0 0
    %3493 = vmatprep.subr.bf16.mxu0 0
    %3494 = vmatpush1.bf16.xpose.msra.mxu0 0
    %3495 = vmatprep.subr.bf16.mxu0 0
    %3496 = vmatpush1.bf16.xpose.msra.mxu0 0
    %3497 = vmatprep.subr.bf16.mxu0 0
    %3498 = vmatpush1.bf16.xpose.msra.mxu0 0
    %3499 = vmatprep.subr.bf16.mxu0 0
    %3500 = vmatpush1.bf16.xpose.msra.mxu0 0
    %3501 = vmatprep.subr.bf16.mxu0 0
    %3502 = vmatpush1.bf16.xpose.msra.mxu0 0
    %3503 = vmatprep.subr.bf16.mxu0 0
    %3504 = vmatpush1.bf16.xpose.msra.mxu0 0
    %3505 = vmatprep.subr.bf16.mxu0 0
    %3506 = vmatpush1.bf16.xpose.msra.mxu0 0
    %3507 = vmatprep.subr.bf16.mxu0 0
    %3508 = vmatpush1.bf16.xpose.msra.mxu0 0
    %3509 = vmatprep.subr.bf16.mxu0 0
    %3510 = vmatpush1.bf16.xpose.msra.mxu0 0
    %3511 = vmatprep.subr.bf16.mxu0 0
    %3512 = vmatpush1.bf16.xpose.msra.mxu0 0
    %3513 = vmatprep.subr.bf16.mxu0 0
    %3514 = vmatpush1.bf16.xpose.msra.mxu0 0
    %3515 = vmatprep.subr.bf16.mxu0 0
    %3516 = vmatpush1.bf16.xpose.msra.mxu0 0
    %3517 = vmatprep.subr.bf16.mxu0 0
    %3518 = vmatpush1.bf16.xpose.msra.mxu0 0
    %3519 = vmatprep.mubr.bf16.mxu0 0
    %3520 = vmatmul.mubr.bf16.gmra.mrb[0].mxu0 %v3482
    %v3521 = vpop.f32.mrb[0].mxu0
    %v3522 = vadd.f32 %v3133, %v3521
    %v3523 = vpop.f32.mrb[0].mxu0
    %v3524 = vpop.f32.mrb[0].mxu0
    %v3525 = vpop.f32.mrb[0].mxu0
    %3526 = vdwg.mxu0
    %v3527 = vsel %vm1866, %v3179, -inf
    %3528 = vmax.xlane.f32.xlu0 %v3527
    %v3529 = vpop.xlane.xlu0 %3528
    %v3530 = vsel %vm1866, %v3228, -inf
    %3531 = vmax.xlane.f32.xlu0 %v3530
    %v3532 = vpop.xlane.xlu0 %3531
    %v3533 = vsel %vm1866, %v3277, -inf
    %3534 = vmax.xlane.f32.xlu0 %v3533
    %v3535 = vpop.xlane.xlu0 %3534
    %v3536 = vsel %vm1866, %v3326, -inf
    %3537 = vmax.xlane.f32.xlu0 %v3536
    %v3538 = vpop.xlane.xlu0 %3537
    %v3539 = vsel %vm1866, %v3375, -inf
    %3540 = vmax.xlane.f32.xlu0 %v3539
    %v3541 = vpop.xlane.xlu0 %3540
    %v3542 = vsel %vm1866, %v3424, -inf
    %3543 = vmax.xlane.f32.xlu0 %v3542
    %v3544 = vpop.xlane.xlu0 %3543
    %v3545 = vsel %vm1866, %v3473, -inf
    %3546 = vmax.xlane.f32.xlu0 %v3545
    %v3547 = vpop.xlane.xlu0 %3546
    %v3548 = vsel %vm1866, %v3522, -inf
    %3549 = vmax.xlane.f32.xlu0 %v3548
    %v3550 = vpop.xlane.xlu0 %3549
    %v3551 = vsub.f32 %v3179, %v3529
    %v3552 = vsub.f32 %v3228, %v3532
    %v3553 = vsub.f32 %v3277, %v3535
    %v3554 = vsub.f32 %v3326, %v3538
    %v3555 = vsub.f32 %v3375, %v3541
    %v3556 = vsub.f32 %v3424, %v3544
    %v3557 = vsub.f32 %v3473, %v3547
    %v3558 = vsub.f32 %v3522, %v3550
    %v3559 = vmul.f32 %v3551, 1.442695
    %v3560 = vpow.pop %v3559
    %v3561 = vmul.f32 %v3552, 1.442695
    %v3562 = vpow.pop %v3561
    %v3563 = vmul.f32 %v3553, 1.442695
    %v3564 = vpow.pop %v3563
    %v3565 = vmul.f32 %v3554, 1.442695
    %v3566 = vpow.pop %v3565
    %v3567 = vmul.f32 %v3555, 1.442695
    %v3568 = vpow.pop %v3567
    %v3569 = vmul.f32 %v3556, 1.442695
    %v3570 = vpow.pop %v3569
    %v3571 = vmul.f32 %v3557, 1.442695
    %v3572 = vpow.pop %v3571
    %v3573 = vmul.f32 %v3558, 1.442695
    %v3574 = vpow.pop %v3573
    %v3575 = vsel %vm1866, %v3560, 0.0
    %3576 = vadd.xlane.f32.xlu0 %v3575
    %v3577 = vpop.xlane.xlu0 %3576
    %v3578 = vsel %vm1866, %v3562, 0.0
    %3579 = vadd.xlane.f32.xlu0 %v3578
    %v3580 = vpop.xlane.xlu0 %3579
    %v3581 = vsel %vm1866, %v3564, 0.0
    %3582 = vadd.xlane.f32.xlu0 %v3581
    %v3583 = vpop.xlane.xlu0 %3582
    %v3584 = vsel %vm1866, %v3566, 0.0
    %3585 = vadd.xlane.f32.xlu0 %v3584
    %v3586 = vpop.xlane.xlu0 %3585
    %v3587 = vsel %vm1866, %v3568, 0.0
    %3588 = vadd.xlane.f32.xlu0 %v3587
    %v3589 = vpop.xlane.xlu0 %3588
    %v3590 = vsel %vm1866, %v3570, 0.0
    %3591 = vadd.xlane.f32.xlu0 %v3590
    %v3592 = vpop.xlane.xlu0 %3591
    %v3593 = vsel %vm1866, %v3572, 0.0
    %3594 = vadd.xlane.f32.xlu0 %v3593
    %v3595 = vpop.xlane.xlu0 %3594
    %v3596 = vsel %vm1866, %v3574, 0.0
    %3597 = vadd.xlane.f32.xlu0 %v3596
    %v3598 = vpop.xlane.xlu0 %3597
    %v3599 = vrcp.pop %v3577
    %v3600 = vrcp.pop %v3580
    %v3601 = vrcp.pop %v3583
    %v3602 = vrcp.pop %v3586
    %v3603 = vrcp.pop %v3589
    %v3604 = vrcp.pop %v3592
    %v3605 = vrcp.pop %v3595
    %v3606 = vrcp.pop %v3598
    %v3607 = vmul.f32 %v3560, %v3599
    %v3608 = vmul.f32 %v3562, %v3600
    %v3609 = vmul.f32 %v3564, %v3601
    %v3610 = vmul.f32 %v3566, %v3602
    %v3611 = vmul.f32 %v3568, %v3603
    %v3612 = vmul.f32 %v3570, %v3604
    %v3613 = vmul.f32 %v3572, %v3605
    %v3614 = vmul.f32 %v3574, %v3606
    %v3615 = vpack.c.bf16 %v3607, %v3607
    %v3616 = vpack.c.bf16 %v3608, %v3608
    %v3617 = vpack.c.bf16 %v3609, %v3609
    %v3618 = vpack.c.bf16 %v3610, %v3610
    %v3619 = vpack.c.bf16 %v3611, %v3611
    %v3620 = vpack.c.bf16 %v3612, %v3612
    %v3621 = vpack.c.bf16 %v3613, %v3613
    %v3622 = vpack.c.bf16 %v3614, %v3614
    %3623 = vrot.lane.b32.xlu0 %v3119, 120
    %v3624 = vpop.permute.xlu0 %3623
    %v3626 = vsel %vm1965, %v3615, 0
    %v3629 = vsel %vm166, %v3624, 0
    %3631 = vmatprep.subr.bf16.mxu0 0
    %3632 = vmatpush1.bf16.msra.mxu0 %v3629
    %3633 = vmatprep.subr.bf16.mxu0 0
    %3634 = vmatpush1.bf16.msra.mxu0 0
    %3635 = vmatprep.subr.bf16.mxu0 0
    %3636 = vmatpush1.bf16.msra.mxu0 0
    %3637 = vmatprep.subr.bf16.mxu0 0
    %3638 = vmatpush1.bf16.msra.mxu0 0
    %3639 = vmatprep.subr.bf16.mxu0 0
    %3640 = vmatpush1.bf16.msra.mxu0 0
    %3641 = vmatprep.subr.bf16.mxu0 0
    %3642 = vmatpush1.bf16.msra.mxu0 0
    %3643 = vmatprep.subr.bf16.mxu0 0
    %3644 = vmatpush1.bf16.msra.mxu0 0
    %3645 = vmatprep.subr.bf16.mxu0 0
    %3646 = vmatpush1.bf16.msra.mxu0 0
    %3647 = vmatprep.subr.bf16.mxu0 0
    %3648 = vmatpush1.bf16.msra.mxu0 0
    %3649 = vmatprep.subr.bf16.mxu0 0
    %3650 = vmatpush1.bf16.msra.mxu0 0
    %3651 = vmatprep.subr.bf16.mxu0 0
    %3652 = vmatpush1.bf16.msra.mxu0 0
    %3653 = vmatprep.subr.bf16.mxu0 0
    %3654 = vmatpush1.bf16.msra.mxu0 0
    %3655 = vmatprep.subr.bf16.mxu0 0
    %3656 = vmatpush1.bf16.msra.mxu0 0
    %3657 = vmatprep.subr.bf16.mxu0 0
    %3658 = vmatpush1.bf16.msra.mxu0 0
    %3659 = vmatprep.subr.bf16.mxu0 0
    %3660 = vmatpush1.bf16.msra.mxu0 0
    %3661 = vmatprep.subr.bf16.mxu0 0
    %3662 = vmatpush1.bf16.msra.mxu0 0
    %3663 = vmatprep.mubr.bf16.mxu0 0
    %3664 = vmatmul.mubr.bf16.gmra.mrb[0].mxu0 %v3626
    %v3665 = vpop.f32.mrb[0].mxu0
    %v3666 = vadd.f32 0.0, %v3665
    %v3667 = vpop.f32.mrb[0].mxu0
    %v3668 = vpop.f32.mrb[0].mxu0
    %v3669 = vpop.f32.mrb[0].mxu0
    %3670 = vdwg.mxu0
    %3671 = vrot.lane.b32.xlu0 %v3120, 120
    %v3672 = vpop.permute.xlu0 %3671
    %v3674 = vsel %vm1965, %v3616, 0
    %v3677 = vsel %vm166, %v3672, 0
    %3679 = vmatprep.subr.bf16.mxu0 0
    %3680 = vmatpush1.bf16.msra.mxu0 %v3677
    %3681 = vmatprep.subr.bf16.mxu0 0
    %3682 = vmatpush1.bf16.msra.mxu0 0
    %3683 = vmatprep.subr.bf16.mxu0 0
    %3684 = vmatpush1.bf16.msra.mxu0 0
    %3685 = vmatprep.subr.bf16.mxu0 0
    %3686 = vmatpush1.bf16.msra.mxu0 0
    %3687 = vmatprep.subr.bf16.mxu0 0
    %3688 = vmatpush1.bf16.msra.mxu0 0
    %3689 = vmatprep.subr.bf16.mxu0 0
    %3690 = vmatpush1.bf16.msra.mxu0 0
    %3691 = vmatprep.subr.bf16.mxu0 0
    %3692 = vmatpush1.bf16.msra.mxu0 0
    %3693 = vmatprep.subr.bf16.mxu0 0
    %3694 = vmatpush1.bf16.msra.mxu0 0
    %3695 = vmatprep.subr.bf16.mxu0 0
    %3696 = vmatpush1.bf16.msra.mxu0 0
    %3697 = vmatprep.subr.bf16.mxu0 0
    %3698 = vmatpush1.bf16.msra.mxu0 0
    %3699 = vmatprep.subr.bf16.mxu0 0
    %3700 = vmatpush1.bf16.msra.mxu0 0
    %3701 = vmatprep.subr.bf16.mxu0 0
    %3702 = vmatpush1.bf16.msra.mxu0 0
    %3703 = vmatprep.subr.bf16.mxu0 0
    %3704 = vmatpush1.bf16.msra.mxu0 0
    %3705 = vmatprep.subr.bf16.mxu0 0
    %3706 = vmatpush1.bf16.msra.mxu0 0
    %3707 = vmatprep.subr.bf16.mxu0 0
    %3708 = vmatpush1.bf16.msra.mxu0 0
    %3709 = vmatprep.subr.bf16.mxu0 0
    %3710 = vmatpush1.bf16.msra.mxu0 0
    %3711 = vmatprep.mubr.bf16.mxu0 0
    %3712 = vmatmul.mubr.bf16.gmra.mrb[0].mxu0 %v3674
    %v3713 = vpop.f32.mrb[0].mxu0
    %v3714 = vadd.f32 0.0, %v3713
    %v3715 = vpop.f32.mrb[0].mxu0
    %v3716 = vpop.f32.mrb[0].mxu0
    %v3717 = vpop.f32.mrb[0].mxu0
    %3718 = vdwg.mxu0
    %3719 = vrot.lane.b32.xlu0 %v3121, 120
    %v3720 = vpop.permute.xlu0 %3719
    %v3722 = vsel %vm1965, %v3617, 0
    %v3725 = vsel %vm166, %v3720, 0
    %3727 = vmatprep.subr.bf16.mxu0 0
    %3728 = vmatpush1.bf16.msra.mxu0 %v3725
    %3729 = vmatprep.subr.bf16.mxu0 0
    %3730 = vmatpush1.bf16.msra.mxu0 0
    %3731 = vmatprep.subr.bf16.mxu0 0
    %3732 = vmatpush1.bf16.msra.mxu0 0
    %3733 = vmatprep.subr.bf16.mxu0 0
    %3734 = vmatpush1.bf16.msra.mxu0 0
    %3735 = vmatprep.subr.bf16.mxu0 0
    %3736 = vmatpush1.bf16.msra.mxu0 0
    %3737 = vmatprep.subr.bf16.mxu0 0
    %3738 = vmatpush1.bf16.msra.mxu0 0
    %3739 = vmatprep.subr.bf16.mxu0 0
    %3740 = vmatpush1.bf16.msra.mxu0 0
    %3741 = vmatprep.subr.bf16.mxu0 0
    %3742 = vmatpush1.bf16.msra.mxu0 0
    %3743 = vmatprep.subr.bf16.mxu0 0
    %3744 = vmatpush1.bf16.msra.mxu0 0
    %3745 = vmatprep.subr.bf16.mxu0 0
    %3746 = vmatpush1.bf16.msra.mxu0 0
    %3747 = vmatprep.subr.bf16.mxu0 0
    %3748 = vmatpush1.bf16.msra.mxu0 0
    %3749 = vmatprep.subr.bf16.mxu0 0
    %3750 = vmatpush1.bf16.msra.mxu0 0
    %3751 = vmatprep.subr.bf16.mxu0 0
    %3752 = vmatpush1.bf16.msra.mxu0 0
    %3753 = vmatprep.subr.bf16.mxu0 0
    %3754 = vmatpush1.bf16.msra.mxu0 0
    %3755 = vmatprep.subr.bf16.mxu0 0
    %3756 = vmatpush1.bf16.msra.mxu0 0
    %3757 = vmatprep.subr.bf16.mxu0 0
    %3758 = vmatpush1.bf16.msra.mxu0 0
    %3759 = vmatprep.mubr.bf16.mxu0 0
    %3760 = vmatmul.mubr.bf16.gmra.mrb[0].mxu0 %v3722
    %v3761 = vpop.f32.mrb[0].mxu0
    %v3762 = vadd.f32 0.0, %v3761
    %v3763 = vpop.f32.mrb[0].mxu0
    %v3764 = vpop.f32.mrb[0].mxu0
    %v3765 = vpop.f32.mrb[0].mxu0
    %3766 = vdwg.mxu0
    %3767 = vrot.lane.b32.xlu0 %v3122, 120
    %v3768 = vpop.permute.xlu0 %3767
    %v3770 = vsel %vm1965, %v3618, 0
    %v3773 = vsel %vm166, %v3768, 0
    %3775 = vmatprep.subr.bf16.mxu0 0
    %3776 = vmatpush1.bf16.msra.mxu0 %v3773
    %3777 = vmatprep.subr.bf16.mxu0 0
    %3778 = vmatpush1.bf16.msra.mxu0 0
    %3779 = vmatprep.subr.bf16.mxu0 0
    %3780 = vmatpush1.bf16.msra.mxu0 0
    %3781 = vmatprep.subr.bf16.mxu0 0
    %3782 = vmatpush1.bf16.msra.mxu0 0
    %3783 = vmatprep.subr.bf16.mxu0 0
    %3784 = vmatpush1.bf16.msra.mxu0 0
    %3785 = vmatprep.subr.bf16.mxu0 0
    %3786 = vmatpush1.bf16.msra.mxu0 0
    %3787 = vmatprep.subr.bf16.mxu0 0
    %3788 = vmatpush1.bf16.msra.mxu0 0
    %3789 = vmatprep.subr.bf16.mxu0 0
    %3790 = vmatpush1.bf16.msra.mxu0 0
    %3791 = vmatprep.subr.bf16.mxu0 0
    %3792 = vmatpush1.bf16.msra.mxu0 0
    %3793 = vmatprep.subr.bf16.mxu0 0
    %3794 = vmatpush1.bf16.msra.mxu0 0
    %3795 = vmatprep.subr.bf16.mxu0 0
    %3796 = vmatpush1.bf16.msra.mxu0 0
    %3797 = vmatprep.subr.bf16.mxu0 0
    %3798 = vmatpush1.bf16.msra.mxu0 0
    %3799 = vmatprep.subr.bf16.mxu0 0
    %3800 = vmatpush1.bf16.msra.mxu0 0
    %3801 = vmatprep.subr.bf16.mxu0 0
    %3802 = vmatpush1.bf16.msra.mxu0 0
    %3803 = vmatprep.subr.bf16.mxu0 0
    %3804 = vmatpush1.bf16.msra.mxu0 0
    %3805 = vmatprep.subr.bf16.mxu0 0
    %3806 = vmatpush1.bf16.msra.mxu0 0
    %3807 = vmatprep.mubr.bf16.mxu0 0
    %3808 = vmatmul.mubr.bf16.gmra.mrb[0].mxu0 %v3770
    %v3809 = vpop.f32.mrb[0].mxu0
    %v3810 = vadd.f32 0.0, %v3809
    %v3811 = vpop.f32.mrb[0].mxu0
    %v3812 = vpop.f32.mrb[0].mxu0
    %v3813 = vpop.f32.mrb[0].mxu0
    %3814 = vdwg.mxu0
    %3815 = vrot.lane.b32.xlu0 %v3123, 120
    %v3816 = vpop.permute.xlu0 %3815
    %v3818 = vsel %vm1965, %v3619, 0
    %v3821 = vsel %vm166, %v3816, 0
    %3823 = vmatprep.subr.bf16.mxu0 0
    %3824 = vmatpush1.bf16.msra.mxu0 %v3821
    %3825 = vmatprep.subr.bf16.mxu0 0
    %3826 = vmatpush1.bf16.msra.mxu0 0
    %3827 = vmatprep.subr.bf16.mxu0 0
    %3828 = vmatpush1.bf16.msra.mxu0 0
    %3829 = vmatprep.subr.bf16.mxu0 0
    %3830 = vmatpush1.bf16.msra.mxu0 0
    %3831 = vmatprep.subr.bf16.mxu0 0
    %3832 = vmatpush1.bf16.msra.mxu0 0
    %3833 = vmatprep.subr.bf16.mxu0 0
    %3834 = vmatpush1.bf16.msra.mxu0 0
    %3835 = vmatprep.subr.bf16.mxu0 0
    %3836 = vmatpush1.bf16.msra.mxu0 0
    %3837 = vmatprep.subr.bf16.mxu0 0
    %3838 = vmatpush1.bf16.msra.mxu0 0
    %3839 = vmatprep.subr.bf16.mxu0 0
    %3840 = vmatpush1.bf16.msra.mxu0 0
    %3841 = vmatprep.subr.bf16.mxu0 0
    %3842 = vmatpush1.bf16.msra.mxu0 0
    %3843 = vmatprep.subr.bf16.mxu0 0
    %3844 = vmatpush1.bf16.msra.mxu0 0
    %3845 = vmatprep.subr.bf16.mxu0 0
    %3846 = vmatpush1.bf16.msra.mxu0 0
    %3847 = vmatprep.subr.bf16.mxu0 0
    %3848 = vmatpush1.bf16.msra.mxu0 0
    %3849 = vmatprep.subr.bf16.mxu0 0
    %3850 = vmatpush1.bf16.msra.mxu0 0
    %3851 = vmatprep.subr.bf16.mxu0 0
    %3852 = vmatpush1.bf16.msra.mxu0 0
    %3853 = vmatprep.subr.bf16.mxu0 0
    %3854 = vmatpush1.bf16.msra.mxu0 0
    %3855 = vmatprep.mubr.bf16.mxu0 0
    %3856 = vmatmul.mubr.bf16.gmra.mrb[0].mxu0 %v3818
    %v3857 = vpop.f32.mrb[0].mxu0
    %v3858 = vadd.f32 0.0, %v3857
    %v3859 = vpop.f32.mrb[0].mxu0
    %v3860 = vpop.f32.mrb[0].mxu0
    %v3861 = vpop.f32.mrb[0].mxu0
    %3862 = vdwg.mxu0
    %3863 = vrot.lane.b32.xlu0 %v3124, 120
    %v3864 = vpop.permute.xlu0 %3863
    %v3866 = vsel %vm1965, %v3620, 0
    %v3869 = vsel %vm166, %v3864, 0
    %3871 = vmatprep.subr.bf16.mxu0 0
    %3872 = vmatpush1.bf16.msra.mxu0 %v3869
    %3873 = vmatprep.subr.bf16.mxu0 0
    %3874 = vmatpush1.bf16.msra.mxu0 0
    %3875 = vmatprep.subr.bf16.mxu0 0
    %3876 = vmatpush1.bf16.msra.mxu0 0
    %3877 = vmatprep.subr.bf16.mxu0 0
    %3878 = vmatpush1.bf16.msra.mxu0 0
    %3879 = vmatprep.subr.bf16.mxu0 0
    %3880 = vmatpush1.bf16.msra.mxu0 0
    %3881 = vmatprep.subr.bf16.mxu0 0
    %3882 = vmatpush1.bf16.msra.mxu0 0
    %3883 = vmatprep.subr.bf16.mxu0 0
    %3884 = vmatpush1.bf16.msra.mxu0 0
    %3885 = vmatprep.subr.bf16.mxu0 0
    %3886 = vmatpush1.bf16.msra.mxu0 0
    %3887 = vmatprep.subr.bf16.mxu0 0
    %3888 = vmatpush1.bf16.msra.mxu0 0
    %3889 = vmatprep.subr.bf16.mxu0 0
    %3890 = vmatpush1.bf16.msra.mxu0 0
    %3891 = vmatprep.subr.bf16.mxu0 0
    %3892 = vmatpush1.bf16.msra.mxu0 0
    %3893 = vmatprep.subr.bf16.mxu0 0
    %3894 = vmatpush1.bf16.msra.mxu0 0
    %3895 = vmatprep.subr.bf16.mxu0 0
    %3896 = vmatpush1.bf16.msra.mxu0 0
    %3897 = vmatprep.subr.bf16.mxu0 0
    %3898 = vmatpush1.bf16.msra.mxu0 0
    %3899 = vmatprep.subr.bf16.mxu0 0
    %3900 = vmatpush1.bf16.msra.mxu0 0
    %3901 = vmatprep.subr.bf16.mxu0 0
    %3902 = vmatpush1.bf16.msra.mxu0 0
    %3903 = vmatprep.mubr.bf16.mxu0 0
    %3904 = vmatmul.mubr.bf16.gmra.mrb[0].mxu0 %v3866
    %v3905 = vpop.f32.mrb[0].mxu0
    %v3906 = vadd.f32 0.0, %v3905
    %v3907 = vpop.f32.mrb[0].mxu0
    %v3908 = vpop.f32.mrb[0].mxu0
    %v3909 = vpop.f32.mrb[0].mxu0
    %3910 = vdwg.mxu0
    %3911 = vrot.lane.b32.xlu0 %v3125, 120
    %v3912 = vpop.permute.xlu0 %3911
    %v3914 = vsel %vm1965, %v3621, 0
    %v3917 = vsel %vm166, %v3912, 0
    %3919 = vmatprep.subr.bf16.mxu0 0
    %3920 = vmatpush1.bf16.msra.mxu0 %v3917
    %3921 = vmatprep.subr.bf16.mxu0 0
    %3922 = vmatpush1.bf16.msra.mxu0 0
    %3923 = vmatprep.subr.bf16.mxu0 0
    %3924 = vmatpush1.bf16.msra.mxu0 0
    %3925 = vmatprep.subr.bf16.mxu0 0
    %3926 = vmatpush1.bf16.msra.mxu0 0
    %3927 = vmatprep.subr.bf16.mxu0 0
    %3928 = vmatpush1.bf16.msra.mxu0 0
    %3929 = vmatprep.subr.bf16.mxu0 0
    %3930 = vmatpush1.bf16.msra.mxu0 0
    %3931 = vmatprep.subr.bf16.mxu0 0
    %3932 = vmatpush1.bf16.msra.mxu0 0
    %3933 = vmatprep.subr.bf16.mxu0 0
    %3934 = vmatpush1.bf16.msra.mxu0 0
    %3935 = vmatprep.subr.bf16.mxu0 0
    %3936 = vmatpush1.bf16.msra.mxu0 0
    %3937 = vmatprep.subr.bf16.mxu0 0
    %3938 = vmatpush1.bf16.msra.mxu0 0
    %3939 = vmatprep.subr.bf16.mxu0 0
    %3940 = vmatpush1.bf16.msra.mxu0 0
    %3941 = vmatprep.subr.bf16.mxu0 0
    %3942 = vmatpush1.bf16.msra.mxu0 0
    %3943 = vmatprep.subr.bf16.mxu0 0
    %3944 = vmatpush1.bf16.msra.mxu0 0
    %3945 = vmatprep.subr.bf16.mxu0 0
    %3946 = vmatpush1.bf16.msra.mxu0 0
    %3947 = vmatprep.subr.bf16.mxu0 0
    %3948 = vmatpush1.bf16.msra.mxu0 0
    %3949 = vmatprep.subr.bf16.mxu0 0
    %3950 = vmatpush1.bf16.msra.mxu0 0
    %3951 = vmatprep.mubr.bf16.mxu0 0
    %3952 = vmatmul.mubr.bf16.gmra.mrb[0].mxu0 %v3914
    %v3953 = vpop.f32.mrb[0].mxu0
    %v3954 = vadd.f32 0.0, %v3953
    %v3955 = vpop.f32.mrb[0].mxu0
    %v3956 = vpop.f32.mrb[0].mxu0
    %v3957 = vpop.f32.mrb[0].mxu0
    %3958 = vdwg.mxu0
    %3959 = vrot.lane.b32.xlu0 %v3126, 120
    %v3960 = vpop.permute.xlu0 %3959
    %v3962 = vsel %vm1965, %v3622, 0
    %v3965 = vsel %vm166, %v3960, 0
    %3967 = vmatprep.subr.bf16.mxu0 0
    %3968 = vmatpush1.bf16.msra.mxu0 %v3965
    %3969 = vmatprep.subr.bf16.mxu0 0
    %3970 = vmatpush1.bf16.msra.mxu0 0
    %3971 = vmatprep.subr.bf16.mxu0 0
    %3972 = vmatpush1.bf16.msra.mxu0 0
    %3973 = vmatprep.subr.bf16.mxu0 0
    %3974 = vmatpush1.bf16.msra.mxu0 0
    %3975 = vmatprep.subr.bf16.mxu0 0
    %3976 = vmatpush1.bf16.msra.mxu0 0
    %3977 = vmatprep.subr.bf16.mxu0 0
    %3978 = vmatpush1.bf16.msra.mxu0 0
    %3979 = vmatprep.subr.bf16.mxu0 0
    %3980 = vmatpush1.bf16.msra.mxu0 0
    %3981 = vmatprep.subr.bf16.mxu0 0
    %3982 = vmatpush1.bf16.msra.mxu0 0
    %3983 = vmatprep.subr.bf16.mxu0 0
    %3984 = vmatpush1.bf16.msra.mxu0 0
    %3985 = vmatprep.subr.bf16.mxu0 0
    %3986 = vmatpush1.bf16.msra.mxu0 0
    %3987 = vmatprep.subr.bf16.mxu0 0
    %3988 = vmatpush1.bf16.msra.mxu0 0
    %3989 = vmatprep.subr.bf16.mxu0 0
    %3990 = vmatpush1.bf16.msra.mxu0 0
    %3991 = vmatprep.subr.bf16.mxu0 0
    %3992 = vmatpush1.bf16.msra.mxu0 0
    %3993 = vmatprep.subr.bf16.mxu0 0
    %3994 = vmatpush1.bf16.msra.mxu0 0
    %3995 = vmatprep.subr.bf16.mxu0 0
    %3996 = vmatpush1.bf16.msra.mxu0 0
    %3997 = vmatprep.subr.bf16.mxu0 0
    %3998 = vmatpush1.bf16.msra.mxu0 0
    %3999 = vmatprep.mubr.bf16.mxu0 0
    %4000 = vmatmul.mubr.bf16.gmra.mrb[0].mxu0 %v3962
    %v4001 = vpop.f32.mrb[0].mxu0
    %v4002 = vadd.f32 0.0, %v4001
    %v4003 = vpop.f32.mrb[0].mxu0
    %v4004 = vpop.f32.mrb[0].mxu0
    %v4005 = vpop.f32.mrb[0].mxu0
    %4006 = vdwg.mxu0
    %v4007 = vpack.c.bf16 %v3666, %v3666
    %v4008 = vpack.c.bf16 %v3714, %v3714
    %v4009 = vpack.c.bf16 %v3762, %v3762
    %v4010 = vpack.c.bf16 %v3810, %v3810
    %v4011 = vpack.c.bf16 %v3858, %v3858
    %v4012 = vpack.c.bf16 %v3906, %v3906
    %v4013 = vpack.c.bf16 %v3954, %v3954
    %v4014 = vpack.c.bf16 %v4002, %v4002
    %v4016 = vsel %vm1476, %v4007, 0
    %4018 = vmatprep.subr.bf16.mxu0 0
    %4019 = vmatpush1.bf16.msra.mxu0 %v2361
    %4020 = vmatprep.subr.bf16.mxu0 0
    %4021 = vmatpush1.bf16.msra.mxu0 0
    %4022 = vmatprep.subr.bf16.mxu0 0
    %4023 = vmatpush1.bf16.msra.mxu0 0
    %4024 = vmatprep.subr.bf16.mxu0 0
    %4025 = vmatpush1.bf16.msra.mxu0 0
    %4026 = vmatprep.subr.bf16.mxu0 0
    %4027 = vmatpush1.bf16.msra.mxu0 0
    %4028 = vmatprep.subr.bf16.mxu0 0
    %4029 = vmatpush1.bf16.msra.mxu0 0
    %4030 = vmatprep.subr.bf16.mxu0 0
    %4031 = vmatpush1.bf16.msra.mxu0 0
    %4032 = vmatprep.subr.bf16.mxu0 0
    %4033 = vmatpush1.bf16.msra.mxu0 0
    %4034 = vmatprep.subr.bf16.mxu0 0
    %4035 = vmatpush1.bf16.msra.mxu0 0
    %4036 = vmatprep.subr.bf16.mxu0 0
    %4037 = vmatpush1.bf16.msra.mxu0 0
    %4038 = vmatprep.subr.bf16.mxu0 0
    %4039 = vmatpush1.bf16.msra.mxu0 0
    %4040 = vmatprep.subr.bf16.mxu0 0
    %4041 = vmatpush1.bf16.msra.mxu0 0
    %4042 = vmatprep.subr.bf16.mxu0 0
    %4043 = vmatpush1.bf16.msra.mxu0 0
    %4044 = vmatprep.subr.bf16.mxu0 0
    %4045 = vmatpush1.bf16.msra.mxu0 0
    %4046 = vmatprep.subr.bf16.mxu0 0
    %4047 = vmatpush1.bf16.msra.mxu0 0
    %4048 = vmatprep.subr.bf16.mxu0 0
    %4049 = vmatpush1.bf16.msra.mxu0 0
    %4050 = vmatprep.mubr.bf16.mxu0 0
    %4051 = vmatmul.mubr.bf16.gmra.mrb[0].mxu0 %v4016
    %v4052 = vpop.f32.mrb[0].mxu0
    %v4053 = vadd.f32 0.0, %v4052
    %v4054 = vpop.f32.mrb[0].mxu0
    %v4055 = vpop.f32.mrb[0].mxu0
    %v4056 = vpop.f32.mrb[0].mxu0
    %4057 = vdwg.mxu0
    %v4059 = vsel %vm1476, %v4008, 0
    %4061 = vmatprep.subr.bf16.mxu0 0
    %4062 = vmatpush1.bf16.msra.mxu0 %v2407
    %4063 = vmatprep.subr.bf16.mxu0 0
    %4064 = vmatpush1.bf16.msra.mxu0 0
    %4065 = vmatprep.subr.bf16.mxu0 0
    %4066 = vmatpush1.bf16.msra.mxu0 0
    %4067 = vmatprep.subr.bf16.mxu0 0
    %4068 = vmatpush1.bf16.msra.mxu0 0
    %4069 = vmatprep.subr.bf16.mxu0 0
    %4070 = vmatpush1.bf16.msra.mxu0 0
    %4071 = vmatprep.subr.bf16.mxu0 0
    %4072 = vmatpush1.bf16.msra.mxu0 0
    %4073 = vmatprep.subr.bf16.mxu0 0
    %4074 = vmatpush1.bf16.msra.mxu0 0
    %4075 = vmatprep.subr.bf16.mxu0 0
    %4076 = vmatpush1.bf16.msra.mxu0 0
    %4077 = vmatprep.subr.bf16.mxu0 0
    %4078 = vmatpush1.bf16.msra.mxu0 0
    %4079 = vmatprep.subr.bf16.mxu0 0
    %4080 = vmatpush1.bf16.msra.mxu0 0
    %4081 = vmatprep.subr.bf16.mxu0 0
    %4082 = vmatpush1.bf16.msra.mxu0 0
    %4083 = vmatprep.subr.bf16.mxu0 0
    %4084 = vmatpush1.bf16.msra.mxu0 0
    %4085 = vmatprep.subr.bf16.mxu0 0
    %4086 = vmatpush1.bf16.msra.mxu0 0
    %4087 = vmatprep.subr.bf16.mxu0 0
    %4088 = vmatpush1.bf16.msra.mxu0 0
    %4089 = vmatprep.subr.bf16.mxu0 0
    %4090 = vmatpush1.bf16.msra.mxu0 0
    %4091 = vmatprep.subr.bf16.mxu0 0
    %4092 = vmatpush1.bf16.msra.mxu0 0
    %4093 = vmatprep.mubr.bf16.mxu0 0
    %4094 = vmatmul.mubr.bf16.gmra.mrb[0].mxu0 %v4059
    %v4095 = vpop.f32.mrb[0].mxu0
    %v4096 = vadd.f32 0.0, %v4095
    %v4097 = vpop.f32.mrb[0].mxu0
    %v4098 = vpop.f32.mrb[0].mxu0
    %v4099 = vpop.f32.mrb[0].mxu0
    %4100 = vdwg.mxu0
    %v4102 = vsel %vm1476, %v4009, 0
    %4104 = vmatprep.subr.bf16.mxu0 0
    %4105 = vmatpush1.bf16.msra.mxu0 %v2453
    %4106 = vmatprep.subr.bf16.mxu0 0
    %4107 = vmatpush1.bf16.msra.mxu0 0
    %4108 = vmatprep.subr.bf16.mxu0 0
    %4109 = vmatpush1.bf16.msra.mxu0 0
    %4110 = vmatprep.subr.bf16.mxu0 0
    %4111 = vmatpush1.bf16.msra.mxu0 0
    %4112 = vmatprep.subr.bf16.mxu0 0
    %4113 = vmatpush1.bf16.msra.mxu0 0
    %4114 = vmatprep.subr.bf16.mxu0 0
    %4115 = vmatpush1.bf16.msra.mxu0 0
    %4116 = vmatprep.subr.bf16.mxu0 0
    %4117 = vmatpush1.bf16.msra.mxu0 0
    %4118 = vmatprep.subr.bf16.mxu0 0
    %4119 = vmatpush1.bf16.msra.mxu0 0
    %4120 = vmatprep.subr.bf16.mxu0 0
    %4121 = vmatpush1.bf16.msra.mxu0 0
    %4122 = vmatprep.subr.bf16.mxu0 0
    %4123 = vmatpush1.bf16.msra.mxu0 0
    %4124 = vmatprep.subr.bf16.mxu0 0
    %4125 = vmatpush1.bf16.msra.mxu0 0
    %4126 = vmatprep.subr.bf16.mxu0 0
    %4127 = vmatpush1.bf16.msra.mxu0 0
    %4128 = vmatprep.subr.bf16.mxu0 0
    %4129 = vmatpush1.bf16.msra.mxu0 0
    %4130 = vmatprep.subr.bf16.mxu0 0
    %4131 = vmatpush1.bf16.msra.mxu0 0
    %4132 = vmatprep.subr.bf16.mxu0 0
    %4133 = vmatpush1.bf16.msra.mxu0 0
    %4134 = vmatprep.subr.bf16.mxu0 0
    %4135 = vmatpush1.bf16.msra.mxu0 0
    %4136 = vmatprep.mubr.bf16.mxu0 0
    %4137 = vmatmul.mubr.bf16.gmra.mrb[0].mxu0 %v4102
    %v4138 = vpop.f32.mrb[0].mxu0
    %v4139 = vadd.f32 0.0, %v4138
    %v4140 = vpop.f32.mrb[0].mxu0
    %v4141 = vpop.f32.mrb[0].mxu0
    %v4142 = vpop.f32.mrb[0].mxu0
    %4143 = vdwg.mxu0
    %v4145 = vsel %vm1476, %v4010, 0
    %4147 = vmatprep.subr.bf16.mxu0 0
    %4148 = vmatpush1.bf16.msra.mxu0 %v2499
    %4149 = vmatprep.subr.bf16.mxu0 0
    %4150 = vmatpush1.bf16.msra.mxu0 0
    %4151 = vmatprep.subr.bf16.mxu0 0
    %4152 = vmatpush1.bf16.msra.mxu0 0
    %4153 = vmatprep.subr.bf16.mxu0 0
    %4154 = vmatpush1.bf16.msra.mxu0 0
    %4155 = vmatprep.subr.bf16.mxu0 0
    %4156 = vmatpush1.bf16.msra.mxu0 0
    %4157 = vmatprep.subr.bf16.mxu0 0
    %4158 = vmatpush1.bf16.msra.mxu0 0
    %4159 = vmatprep.subr.bf16.mxu0 0
    %4160 = vmatpush1.bf16.msra.mxu0 0
    %4161 = vmatprep.subr.bf16.mxu0 0
    %4162 = vmatpush1.bf16.msra.mxu0 0
    %4163 = vmatprep.subr.bf16.mxu0 0
    %4164 = vmatpush1.bf16.msra.mxu0 0
    %4165 = vmatprep.subr.bf16.mxu0 0
    %4166 = vmatpush1.bf16.msra.mxu0 0
    %4167 = vmatprep.subr.bf16.mxu0 0
    %4168 = vmatpush1.bf16.msra.mxu0 0
    %4169 = vmatprep.subr.bf16.mxu0 0
    %4170 = vmatpush1.bf16.msra.mxu0 0
    %4171 = vmatprep.subr.bf16.mxu0 0
    %4172 = vmatpush1.bf16.msra.mxu0 0
    %4173 = vmatprep.subr.bf16.mxu0 0
    %4174 = vmatpush1.bf16.msra.mxu0 0
    %4175 = vmatprep.subr.bf16.mxu0 0
    %4176 = vmatpush1.bf16.msra.mxu0 0
    %4177 = vmatprep.subr.bf16.mxu0 0
    %4178 = vmatpush1.bf16.msra.mxu0 0
    %4179 = vmatprep.mubr.bf16.mxu0 0
    %4180 = vmatmul.mubr.bf16.gmra.mrb[0].mxu0 %v4145
    %v4181 = vpop.f32.mrb[0].mxu0
    %v4182 = vadd.f32 0.0, %v4181
    %v4183 = vpop.f32.mrb[0].mxu0
    %v4184 = vpop.f32.mrb[0].mxu0
    %v4185 = vpop.f32.mrb[0].mxu0
    %4186 = vdwg.mxu0
    %v4188 = vsel %vm1476, %v4011, 0
    %4190 = vmatprep.subr.bf16.mxu0 0
    %4191 = vmatpush1.bf16.msra.mxu0 %v2545
    %4192 = vmatprep.subr.bf16.mxu0 0
    %4193 = vmatpush1.bf16.msra.mxu0 0
    %4194 = vmatprep.subr.bf16.mxu0 0
    %4195 = vmatpush1.bf16.msra.mxu0 0
    %4196 = vmatprep.subr.bf16.mxu0 0
    %4197 = vmatpush1.bf16.msra.mxu0 0
    %4198 = vmatprep.subr.bf16.mxu0 0
    %4199 = vmatpush1.bf16.msra.mxu0 0
    %4200 = vmatprep.subr.bf16.mxu0 0
    %4201 = vmatpush1.bf16.msra.mxu0 0
    %4202 = vmatprep.subr.bf16.mxu0 0
    %4203 = vmatpush1.bf16.msra.mxu0 0
    %4204 = vmatprep.subr.bf16.mxu0 0
    %4205 = vmatpush1.bf16.msra.mxu0 0
    %4206 = vmatprep.subr.bf16.mxu0 0
    %4207 = vmatpush1.bf16.msra.mxu0 0
    %4208 = vmatprep.subr.bf16.mxu0 0
    %4209 = vmatpush1.bf16.msra.mxu0 0
    %4210 = vmatprep.subr.bf16.mxu0 0
    %4211 = vmatpush1.bf16.msra.mxu0 0
    %4212 = vmatprep.subr.bf16.mxu0 0
    %4213 = vmatpush1.bf16.msra.mxu0 0
    %4214 = vmatprep.subr.bf16.mxu0 0
    %4215 = vmatpush1.bf16.msra.mxu0 0
    %4216 = vmatprep.subr.bf16.mxu0 0
    %4217 = vmatpush1.bf16.msra.mxu0 0
    %4218 = vmatprep.subr.bf16.mxu0 0
    %4219 = vmatpush1.bf16.msra.mxu0 0
    %4220 = vmatprep.subr.bf16.mxu0 0
    %4221 = vmatpush1.bf16.msra.mxu0 0
    %4222 = vmatprep.mubr.bf16.mxu0 0
    %4223 = vmatmul.mubr.bf16.gmra.mrb[0].mxu0 %v4188
    %v4224 = vpop.f32.mrb[0].mxu0
    %v4225 = vadd.f32 0.0, %v4224
    %v4226 = vpop.f32.mrb[0].mxu0
    %v4227 = vpop.f32.mrb[0].mxu0
    %v4228 = vpop.f32.mrb[0].mxu0
    %4229 = vdwg.mxu0
    %v4231 = vsel %vm1476, %v4012, 0
    %4233 = vmatprep.subr.bf16.mxu0 0
    %4234 = vmatpush1.bf16.msra.mxu0 %v2591
    %4235 = vmatprep.subr.bf16.mxu0 0
    %4236 = vmatpush1.bf16.msra.mxu0 0
    %4237 = vmatprep.subr.bf16.mxu0 0
    %4238 = vmatpush1.bf16.msra.mxu0 0
    %4239 = vmatprep.subr.bf16.mxu0 0
    %4240 = vmatpush1.bf16.msra.mxu0 0
    %4241 = vmatprep.subr.bf16.mxu0 0
    %4242 = vmatpush1.bf16.msra.mxu0 0
    %4243 = vmatprep.subr.bf16.mxu0 0
    %4244 = vmatpush1.bf16.msra.mxu0 0
    %4245 = vmatprep.subr.bf16.mxu0 0
    %4246 = vmatpush1.bf16.msra.mxu0 0
    %4247 = vmatprep.subr.bf16.mxu0 0
    %4248 = vmatpush1.bf16.msra.mxu0 0
    %4249 = vmatprep.subr.bf16.mxu0 0
    %4250 = vmatpush1.bf16.msra.mxu0 0
    %4251 = vmatprep.subr.bf16.mxu0 0
    %4252 = vmatpush1.bf16.msra.mxu0 0
    %4253 = vmatprep.subr.bf16.mxu0 0
    %4254 = vmatpush1.bf16.msra.mxu0 0
    %4255 = vmatprep.subr.bf16.mxu0 0
    %4256 = vmatpush1.bf16.msra.mxu0 0
    %4257 = vmatprep.subr.bf16.mxu0 0
    %4258 = vmatpush1.bf16.msra.mxu0 0
    %4259 = vmatprep.subr.bf16.mxu0 0
    %4260 = vmatpush1.bf16.msra.mxu0 0
    %4261 = vmatprep.subr.bf16.mxu0 0
    %4262 = vmatpush1.bf16.msra.mxu0 0
    %4263 = vmatprep.subr.bf16.mxu0 0
    %4264 = vmatpush1.bf16.msra.mxu0 0
    %4265 = vmatprep.mubr.bf16.mxu0 0
    %4266 = vmatmul.mubr.bf16.gmra.mrb[0].mxu0 %v4231
    %v4267 = vpop.f32.mrb[0].mxu0
    %v4268 = vadd.f32 0.0, %v4267
    %v4269 = vpop.f32.mrb[0].mxu0
    %v4270 = vpop.f32.mrb[0].mxu0
    %v4271 = vpop.f32.mrb[0].mxu0
    %4272 = vdwg.mxu0
    %v4274 = vsel %vm1476, %v4013, 0
    %4276 = vmatprep.subr.bf16.mxu0 0
    %4277 = vmatpush1.bf16.msra.mxu0 %v2637
    %4278 = vmatprep.subr.bf16.mxu0 0
    %4279 = vmatpush1.bf16.msra.mxu0 0
    %4280 = vmatprep.subr.bf16.mxu0 0
    %4281 = vmatpush1.bf16.msra.mxu0 0
    %4282 = vmatprep.subr.bf16.mxu0 0
    %4283 = vmatpush1.bf16.msra.mxu0 0
    %4284 = vmatprep.subr.bf16.mxu0 0
    %4285 = vmatpush1.bf16.msra.mxu0 0
    %4286 = vmatprep.subr.bf16.mxu0 0
    %4287 = vmatpush1.bf16.msra.mxu0 0
    %4288 = vmatprep.subr.bf16.mxu0 0
    %4289 = vmatpush1.bf16.msra.mxu0 0
    %4290 = vmatprep.subr.bf16.mxu0 0
    %4291 = vmatpush1.bf16.msra.mxu0 0
    %4292 = vmatprep.subr.bf16.mxu0 0
    %4293 = vmatpush1.bf16.msra.mxu0 0
    %4294 = vmatprep.subr.bf16.mxu0 0
    %4295 = vmatpush1.bf16.msra.mxu0 0
    %4296 = vmatprep.subr.bf16.mxu0 0
    %4297 = vmatpush1.bf16.msra.mxu0 0
    %4298 = vmatprep.subr.bf16.mxu0 0
    %4299 = vmatpush1.bf16.msra.mxu0 0
    %4300 = vmatprep.subr.bf16.mxu0 0
    %4301 = vmatpush1.bf16.msra.mxu0 0
    %4302 = vmatprep.subr.bf16.mxu0 0
    %4303 = vmatpush1.bf16.msra.mxu0 0
    %4304 = vmatprep.subr.bf16.mxu0 0
    %4305 = vmatpush1.bf16.msra.mxu0 0
    %4306 = vmatprep.subr.bf16.mxu0 0
    %4307 = vmatpush1.bf16.msra.mxu0 0
    %4308 = vmatprep.mubr.bf16.mxu0 0
    %4309 = vmatmul.mubr.bf16.gmra.mrb[0].mxu0 %v4274
    %v4310 = vpop.f32.mrb[0].mxu0
    %v4311 = vadd.f32 0.0, %v4310
    %v4312 = vpop.f32.mrb[0].mxu0
    %v4313 = vpop.f32.mrb[0].mxu0
    %v4314 = vpop.f32.mrb[0].mxu0
    %4315 = vdwg.mxu0
    %v4317 = vsel %vm1476, %v4014, 0
    %4319 = vmatprep.subr.bf16.mxu0 0
    %4320 = vmatpush1.bf16.msra.mxu0 %v2683
    %4321 = vmatprep.subr.bf16.mxu0 0
    %4322 = vmatpush1.bf16.msra.mxu0 0
    %4323 = vmatprep.subr.bf16.mxu0 0
    %4324 = vmatpush1.bf16.msra.mxu0 0
    %4325 = vmatprep.subr.bf16.mxu0 0
    %4326 = vmatpush1.bf16.msra.mxu0 0
    %4327 = vmatprep.subr.bf16.mxu0 0
    %4328 = vmatpush1.bf16.msra.mxu0 0
    %4329 = vmatprep.subr.bf16.mxu0 0
    %4330 = vmatpush1.bf16.msra.mxu0 0
    %4331 = vmatprep.subr.bf16.mxu0 0
    %4332 = vmatpush1.bf16.msra.mxu0 0
    %4333 = vmatprep.subr.bf16.mxu0 0
    %4334 = vmatpush1.bf16.msra.mxu0 0
    %4335 = vmatprep.subr.bf16.mxu0 0
    %4336 = vmatpush1.bf16.msra.mxu0 0
    %4337 = vmatprep.subr.bf16.mxu0 0
    %4338 = vmatpush1.bf16.msra.mxu0 0
    %4339 = vmatprep.subr.bf16.mxu0 0
    %4340 = vmatpush1.bf16.msra.mxu0 0
    %4341 = vmatprep.subr.bf16.mxu0 0
    %4342 = vmatpush1.bf16.msra.mxu0 0
    %4343 = vmatprep.subr.bf16.mxu0 0
    %4344 = vmatpush1.bf16.msra.mxu0 0
    %4345 = vmatprep.subr.bf16.mxu0 0
    %4346 = vmatpush1.bf16.msra.mxu0 0
    %4347 = vmatprep.subr.bf16.mxu0 0
    %4348 = vmatpush1.bf16.msra.mxu0 0
    %4349 = vmatprep.subr.bf16.mxu0 0
    %4350 = vmatpush1.bf16.msra.mxu0 0
    %4351 = vmatprep.mubr.bf16.mxu0 0
    %4352 = vmatmul.mubr.bf16.gmra.mrb[0].mxu0 %v4317
    %v4353 = vpop.f32.mrb[0].mxu0
    %v4354 = vadd.f32 0.0, %v4353
    %v4355 = vpop.f32.mrb[0].mxu0
    %v4356 = vpop.f32.mrb[0].mxu0
    %v4357 = vpop.f32.mrb[0].mxu0
    %4358 = vdwg.mxu0
    %v4359 = vsel %vm2725, %v4053, 0.0
    %v4360 = vsel %vm2725, %v4096, 0.0
    %v4361 = vadd.f32 %v4359, %v4360
    %v4362 = vsel %vm2725, %v4139, 0.0
    %v4363 = vadd.f32 %v4361, %v4362
    %v4364 = vsel %vm2725, %v4182, 0.0
    %v4365 = vadd.f32 %v4363, %v4364
    %v4366 = vsel %vm2725, %v4225, 0.0
    %v4367 = vadd.f32 %v4365, %v4366
    %v4368 = vsel %vm2725, %v4268, 0.0
    %v4369 = vadd.f32 %v4367, %v4368
    %v4370 = vsel %vm2725, %v4311, 0.0
    %v4371 = vadd.f32 %v4369, %v4370
    %v4372 = vsel %vm2725, %v4354, 0.0
    %v4373 = vadd.f32 %v4371, %v4372
    %v4374 = vadd.f32 %v4373, %v2746
    %v4375 = vpack.c.bf16 %v4374, %v4374
    %4376 = vxpose.xlu0.c.b16.start [1/8] %v2751, 128
    %4377 = vxpose.xlu0.c.b16.cont [2/8] 0, 128
    %4378 = vxpose.xlu0.c.b16.cont [3/8] 0, 128
    %4379 = vxpose.xlu0.c.b16.cont [4/8] 0, 128
    %4380 = vxpose.xlu0.c.b16.cont [5/8] 0, 128
    %4381 = vxpose.xlu0.c.b16.cont [6/8] 0, 128
    %4382 = vxpose.xlu0.c.b16.cont [7/8] 0, 128
    %4383 = vxpose.xlu0.c.b16.end [8/8] 0, 128
    %v4384 = vpop.trf.xlu0
    %v4385 = vpop.trf.xlu0
    %v4386 = vpop.trf.xlu0
    %v4387 = vpop.trf.xlu0
    %v4388 = vpop.trf.xlu0
    %v4389 = vpop.trf.xlu0
    %v4390 = vpop.trf.xlu0
    %v4391 = vpop.trf.xlu0
    %v4393 = vsel %vm1965, %v4384, 0
    %v4396 = vsel %vm166, %v4375, 0
    %4398 = vmatprep.subr.bf16.mxu0 0
    %4399 = vmatpush1.bf16.msra.mxu0 %v4396
    %4400 = vmatprep.subr.bf16.mxu0 0
    %4401 = vmatpush1.bf16.msra.mxu0 0
    %4402 = vmatprep.subr.bf16.mxu0 0
    %4403 = vmatpush1.bf16.msra.mxu0 0
    %4404 = vmatprep.subr.bf16.mxu0 0
    %4405 = vmatpush1.bf16.msra.mxu0 0
    %4406 = vmatprep.subr.bf16.mxu0 0
    %4407 = vmatpush1.bf16.msra.mxu0 0
    %4408 = vmatprep.subr.bf16.mxu0 0
    %4409 = vmatpush1.bf16.msra.mxu0 0
    %4410 = vmatprep.subr.bf16.mxu0 0
    %4411 = vmatpush1.bf16.msra.mxu0 0
    %4412 = vmatprep.subr.bf16.mxu0 0
    %4413 = vmatpush1.bf16.msra.mxu0 0
    %4414 = vmatprep.subr.bf16.mxu0 0
    %4415 = vmatpush1.bf16.msra.mxu0 0
    %4416 = vmatprep.subr.bf16.mxu0 0
    %4417 = vmatpush1.bf16.msra.mxu0 0
    %4418 = vmatprep.subr.bf16.mxu0 0
    %4419 = vmatpush1.bf16.msra.mxu0 0
    %4420 = vmatprep.subr.bf16.mxu0 0
    %4421 = vmatpush1.bf16.msra.mxu0 0
    %4422 = vmatprep.subr.bf16.mxu0 0
    %4423 = vmatpush1.bf16.msra.mxu0 0
    %4424 = vmatprep.subr.bf16.mxu0 0
    %4425 = vmatpush1.bf16.msra.mxu0 0
    %4426 = vmatprep.subr.bf16.mxu0 0
    %4427 = vmatpush1.bf16.msra.mxu0 0
    %4428 = vmatprep.subr.bf16.mxu0 0
    %4429 = vmatpush1.bf16.msra.mxu0 0
    %4430 = vmatprep.mubr.bf16.mxu0 0
    %4431 = vmatmul.mubr.bf16.gmra.mrb[0].mxu0 %v4393
    %v4432 = vpop.f32.mrb[0].mxu0
    %v4433 = vadd.f32 0.0, %v4432
    %v4434 = vpop.f32.mrb[0].mxu0
    %v4435 = vpop.f32.mrb[0].mxu0
    %v4436 = vadd.f32 0.0, %v4435
    %v4437 = vpop.f32.mrb[0].mxu0
    %4438 = vdwg.mxu0
    %4439 = vxpose.xlu0.c.b16.start [1/8] %v944, 128
    %4440 = vxpose.xlu0.c.b16.cont [2/8] 0, 128
    %4441 = vxpose.xlu0.c.b16.cont [3/8] 0, 128
    %4442 = vxpose.xlu0.c.b16.cont [4/8] 0, 128
    %4443 = vxpose.xlu0.c.b16.cont [5/8] 0, 128
    %4444 = vxpose.xlu0.c.b16.cont [6/8] 0, 128
    %4445 = vxpose.xlu0.c.b16.cont [7/8] 0, 128
    %4446 = vxpose.xlu0.c.b16.end [8/8] 0, 128
    %v4447 = vpop.trf.xlu0
    %v4448 = vpop.trf.xlu0
    %v4449 = vpop.trf.xlu0
    %v4450 = vpop.trf.xlu0
    %v4451 = vpop.trf.xlu0
    %v4452 = vpop.trf.xlu0
    %v4453 = vpop.trf.xlu0
    %v4454 = vpop.trf.xlu0
    %v4456 = vsel %vm1965, %v4447, 0
    %v4459 = vsel %vm166, %v2749, 0
    %4461 = vmatprep.subr.bf16.mxu0 0
    %4462 = vmatpush1.bf16.msra.mxu0 %v4459
    %4463 = vmatprep.subr.bf16.mxu0 0
    %4464 = vmatpush1.bf16.msra.mxu0 0
    %4465 = vmatprep.subr.bf16.mxu0 0
    %4466 = vmatpush1.bf16.msra.mxu0 0
    %4467 = vmatprep.subr.bf16.mxu0 0
    %4468 = vmatpush1.bf16.msra.mxu0 0
    %4469 = vmatprep.subr.bf16.mxu0 0
    %4470 = vmatpush1.bf16.msra.mxu0 0
    %4471 = vmatprep.subr.bf16.mxu0 0
    %4472 = vmatpush1.bf16.msra.mxu0 0
    %4473 = vmatprep.subr.bf16.mxu0 0
    %4474 = vmatpush1.bf16.msra.mxu0 0
    %4475 = vmatprep.subr.bf16.mxu0 0
    %4476 = vmatpush1.bf16.msra.mxu0 0
    %4477 = vmatprep.subr.bf16.mxu0 0
    %4478 = vmatpush1.bf16.msra.mxu0 0
    %4479 = vmatprep.subr.bf16.mxu0 0
    %4480 = vmatpush1.bf16.msra.mxu0 0
    %4481 = vmatprep.subr.bf16.mxu0 0
    %4482 = vmatpush1.bf16.msra.mxu0 0
    %4483 = vmatprep.subr.bf16.mxu0 0
    %4484 = vmatpush1.bf16.msra.mxu0 0
    %4485 = vmatprep.subr.bf16.mxu0 0
    %4486 = vmatpush1.bf16.msra.mxu0 0
    %4487 = vmatprep.subr.bf16.mxu0 0
    %4488 = vmatpush1.bf16.msra.mxu0 0
    %4489 = vmatprep.subr.bf16.mxu0 0
    %4490 = vmatpush1.bf16.msra.mxu0 0
    %4491 = vmatprep.subr.bf16.mxu0 0
    %4492 = vmatpush1.bf16.msra.mxu0 0
    %4493 = vmatprep.mubr.bf16.mxu0 0
    %4494 = vmatmul.mubr.bf16.gmra.mrb[0].mxu0 %v4456
    %v4495 = vpop.f32.mrb[0].mxu0
    %v4496 = vadd.f32 %v4433, %v4495
    %v4497 = vpop.f32.mrb[0].mxu0
    %v4498 = vpop.f32.mrb[0].mxu0
    %v4499 = vadd.f32 %v4436, %v4498
    %v4500 = vpop.f32.mrb[0].mxu0
    %4501 = vdwg.mxu0
    %v4502 = vadd.f32 %v4496, %v208
    %v4503 = vadd.f32 %v4499, %v211
    %v4504 = vld [vmem:[%s51] sm:$0x1]
    %v4506 = vlaneseq
    %v4507 = vshrl.u32 %v4506, 7
    %v4508 = vsub.s32 0, %v4507
    %v4509 = vrot.slane %v4504, %v4508
    %v4511 = vmul.f32 %v4502, %v4509
    %v4512 = vmul.f32 %v4503, %v4509
    %v4513 = vld [vmem:[%s53] sm:$0x1]
    %v4515 = vlaneseq
    %v4516 = vshrl.u32 %v4515, 7
    %v4517 = vsub.s32 0, %v4516
    %v4518 = vrot.slane %v4513, %v4517
    %v4520 = vadd.f32 %v4511, %v4518
    %v4521 = vadd.f32 %v4512, %v4518
    %v4522 = vadd.f32 %v894, %v4520
    %v4523 = vadd.f32 %v895, %v4521
    %v4524 = vpack.c.bf16 %v4523, %v4522
    %v4525 = vld [vmem:[%s55] sm:$0xf]
    %v4526 = vld [vmem:[%s55 + $0x4] sm:$0xf]
    %v4527 = vld [vmem:[%s55 + $0x8] sm:$0xf]
    %v4528 = vld [vmem:[%s55 + $0xc] sm:$0xf]
    %v4529 = vld [vmem:[%s57] sm:$0x1]
    %v4531 = vlaneseq
    %v4532 = vshrl.u32 %v4531, 7
    %v4533 = vsub.s32 0, %v4532
    %v4534 = vrot.slane %v4529, %v4533
    %v4540 = vunpack.c.l.b16 %v4525
    %v4541 = vunpack.c.l.b16 %v4526
    %v4542 = vunpack.c.l.b16 %v4527
    %v4543 = vunpack.c.l.b16 %v4528
    %v4544 = vpack.c.b16 %v4541, %v4540
    %v4545 = vpack.c.b16 %v4543, %v4542
    %v4549 = vsel %vm331, %v4524, 0
    %4551 = vmatprep.subr.bf16.mxu0 0
    %4552 = vmatpush1.bf16.msra.mxu0 %v4544
    %4553 = vmatprep.subr.bf16.mxu0 0
    %4554 = vmatpush1.bf16.msra.mxu0 %v4545
    %4555 = vmatprep.subr.bf16.mxu0 0
    %4556 = vmatpush1.bf16.msra.mxu0 0
    %4557 = vmatprep.subr.bf16.mxu0 0
    %4558 = vmatpush1.bf16.msra.mxu0 0
    %4559 = vmatprep.subr.bf16.mxu0 0
    %4560 = vmatpush1.bf16.msra.mxu0 0
    %4561 = vmatprep.subr.bf16.mxu0 0
    %4562 = vmatpush1.bf16.msra.mxu0 0
    %4563 = vmatprep.subr.bf16.mxu0 0
    %4564 = vmatpush1.bf16.msra.mxu0 0
    %4565 = vmatprep.subr.bf16.mxu0 0
    %4566 = vmatpush1.bf16.msra.mxu0 0
    %4567 = vmatprep.subr.bf16.mxu0 0
    %4568 = vmatpush1.bf16.msra.mxu0 0
    %4569 = vmatprep.subr.bf16.mxu0 0
    %4570 = vmatpush1.bf16.msra.mxu0 0
    %4571 = vmatprep.subr.bf16.mxu0 0
    %4572 = vmatpush1.bf16.msra.mxu0 0
    %4573 = vmatprep.subr.bf16.mxu0 0
    %4574 = vmatpush1.bf16.msra.mxu0 0
    %4575 = vmatprep.subr.bf16.mxu0 0
    %4576 = vmatpush1.bf16.msra.mxu0 0
    %4577 = vmatprep.subr.bf16.mxu0 0
    %4578 = vmatpush1.bf16.msra.mxu0 0
    %4579 = vmatprep.subr.bf16.mxu0 0
    %4580 = vmatpush1.bf16.msra.mxu0 0
    %4581 = vmatprep.subr.bf16.mxu0 0
    %4582 = vmatpush1.bf16.msra.mxu0 0
    %4583 = vmatprep.mubr.bf16.mxu0 0
    %4584 = vmatmul.mubr.bf16.gmra.mrb[0].mxu0 %v4549
    %v4585 = vpop.f32.mrb[0].mxu0
    %v4586 = vadd.f32 %v4534, %v4585
    %v4587 = vpop.f32.mrb[0].mxu0
    %v4588 = vpop.f32.mrb[0].mxu0
    %v4589 = vadd.f32 %v4534, %v4588
    %v4590 = vpop.f32.mrb[0].mxu0
    %4591 = vdwg.mxu0
    %v4592 = vmax.f32 %v4586, 0.0
    %v4593 = vmax.f32 %v4589, 0.0
    %v4594 = vpack.c.bf16 %v4593, %v4592
    %v4595 = vld [vmem:[%s59] sm:$0xf]
    %v4596 = vld [vmem:[%s59 + $0x4] sm:$0xf]
    %v4597 = vld [vmem:[%s59 + $0x8] sm:$0xf]
    %v4598 = vld [vmem:[%s59 + $0xc] sm:$0xf]
    %v4599 = vld [vmem:[%s59 + $0x10] sm:$0xf]
    %v4600 = vld [vmem:[%s59 + $0x14] sm:$0xf]
    %v4601 = vld [vmem:[%s59 + $0x18] sm:$0xf]
    %v4602 = vld [vmem:[%s59 + $0x1c] sm:$0xf]
    %v4603 = vld [vmem:[%s61] sm:$0x1]
    %v4605 = vlaneseq
    %v4606 = vshrl.u32 %v4605, 7
    %v4607 = vsub.s32 0, %v4606
    %v4608 = vrot.slane %v4603, %v4607
    %v4618 = vunpack.c.l.b16 %v4595
    %v4619 = vunpack.c.l.b16 %v4596
    %v4620 = vunpack.c.l.b16 %v4597
    %v4621 = vunpack.c.l.b16 %v4598
    %v4622 = vunpack.c.l.b16 %v4599
    %v4623 = vunpack.c.l.b16 %v4600
    %v4624 = vunpack.c.l.b16 %v4601
    %v4625 = vunpack.c.l.b16 %v4602
    %v4626 = vpack.c.b16 %v4619, %v4618
    %v4627 = vpack.c.b16 %v4621, %v4620
    %v4628 = vpack.c.b16 %v4623, %v4622
    %v4629 = vpack.c.b16 %v4625, %v4624
    %v4635 = vsel %vm257, %v4594, 0
    %4637 = vmatprep.subr.bf16.mxu0 0
    %4638 = vmatpush1.bf16.msra.mxu0 %v4626
    %4639 = vmatprep.subr.bf16.mxu0 0
    %4640 = vmatpush1.bf16.msra.mxu0 %v4627
    %4641 = vmatprep.subr.bf16.mxu0 0
    %4642 = vmatpush1.bf16.msra.mxu0 %v4628
    %4643 = vmatprep.subr.bf16.mxu0 0
    %4644 = vmatpush1.bf16.msra.mxu0 %v4629
    %4645 = vmatprep.subr.bf16.mxu0 0
    %4646 = vmatpush1.bf16.msra.mxu0 0
    %4647 = vmatprep.subr.bf16.mxu0 0
    %4648 = vmatpush1.bf16.msra.mxu0 0
    %4649 = vmatprep.subr.bf16.mxu0 0
    %4650 = vmatpush1.bf16.msra.mxu0 0
    %4651 = vmatprep.subr.bf16.mxu0 0
    %4652 = vmatpush1.bf16.msra.mxu0 0
    %4653 = vmatprep.subr.bf16.mxu0 0
    %4654 = vmatpush1.bf16.msra.mxu0 0
    %4655 = vmatprep.subr.bf16.mxu0 0
    %4656 = vmatpush1.bf16.msra.mxu0 0
    %4657 = vmatprep.subr.bf16.mxu0 0
    %4658 = vmatpush1.bf16.msra.mxu0 0
    %4659 = vmatprep.subr.bf16.mxu0 0
    %4660 = vmatpush1.bf16.msra.mxu0 0
    %4661 = vmatprep.subr.bf16.mxu0 0
    %4662 = vmatpush1.bf16.msra.mxu0 0
    %4663 = vmatprep.subr.bf16.mxu0 0
    %4664 = vmatpush1.bf16.msra.mxu0 0
    %4665 = vmatprep.subr.bf16.mxu0 0
    %4666 = vmatpush1.bf16.msra.mxu0 0
    %4667 = vmatprep.subr.bf16.mxu0 0
    %4668 = vmatpush1.bf16.msra.mxu0 0
    %4669 = vmatprep.mubr.bf16.mxu0 0
    %4670 = vmatmul.mubr.bf16.gmra.mrb[0].mxu0 %v4635
    %v4671 = vpop.f32.mrb[0].mxu0
    %v4672 = vadd.f32 %v4608, %v4671
    %v4673 = vpop.f32.mrb[0].mxu0
    %v4674 = vpop.f32.mrb[0].mxu0
    %v4675 = vadd.f32 %v4608, %v4674
    %v4676 = vpop.f32.mrb[0].mxu0
    %4677 = vdwg.mxu0
    %v4678 = vadd.f32 %v4522, %v4672
    %v4679 = vadd.f32 %v4523, %v4675
    %v4680 = vld [vmem:[%s63] sm:$0x1]
    %v4682 = vlaneseq
    %v4683 = vshrl.u32 %v4682, 7
    %v4684 = vsub.s32 0, %v4683
    %v4685 = vrot.slane %v4680, %v4684
    %v4687 = vmul.f32 %v4678, %v4685
    %v4688 = vmul.f32 %v4679, %v4685
    %v4689 = vld [vmem:[%s65] sm:$0x1]
    %v4691 = vlaneseq
    %v4692 = vshrl.u32 %v4691, 7
    %v4693 = vsub.s32 0, %v4692
    %v4694 = vrot.slane %v4689, %v4693
    %v4696 = vadd.f32 %v4687, %v4694
    %v4697 = vadd.f32 %v4688, %v4694
    %v4698 = vpack.c.bf16 %v4697, %v4696
    %s4699 = scalar_lea.vmem %s23, 16
    %v4700 = vld [vmem:[%s4699] sm:$0xf]
    %v4701 = vld [vmem:[%s4699 + $0x4] sm:$0xf]
    %v4702 = vld [vmem:[%s4699 + $0x8] sm:$0xf]
    %v4703 = vld [vmem:[%s4699 + $0xc] sm:$0xf]
    %v4708 = vunpack.c.l.b16 %v4700
    %v4709 = vunpack.c.l.b16 %v4701
    %v4710 = vunpack.c.l.b16 %v4702
    %v4711 = vunpack.c.l.b16 %v4703
    %v4712 = vpack.c.b16 %v4709, %v4708
    %v4713 = vpack.c.b16 %v4711, %v4710
    %v4717 = vsel %vm331, %v4698, 0
    %4719 = vmatprep.subr.bf16.mxu0 0
    %4720 = vmatpush1.bf16.msra.mxu0 %v4712
    %4721 = vmatprep.subr.bf16.mxu0 0
    %4722 = vmatpush1.bf16.msra.mxu0 %v4713
    %4723 = vmatprep.subr.bf16.mxu0 0
    %4724 = vmatpush1.bf16.msra.mxu0 0
    %4725 = vmatprep.subr.bf16.mxu0 0
    %4726 = vmatpush1.bf16.msra.mxu0 0
    %4727 = vmatprep.subr.bf16.mxu0 0
    %4728 = vmatpush1.bf16.msra.mxu0 0
    %4729 = vmatprep.subr.bf16.mxu0 0
    %4730 = vmatpush1.bf16.msra.mxu0 0
    %4731 = vmatprep.subr.bf16.mxu0 0
    %4732 = vmatpush1.bf16.msra.mxu0 0
    %4733 = vmatprep.subr.bf16.mxu0 0
    %4734 = vmatpush1.bf16.msra.mxu0 0
    %4735 = vmatprep.subr.bf16.mxu0 0
    %4736 = vmatpush1.bf16.msra.mxu0 0
    %4737 = vmatprep.subr.bf16.mxu0 0
    %4738 = vmatpush1.bf16.msra.mxu0 0
    %4739 = vmatprep.subr.bf16.mxu0 0
    %4740 = vmatpush1.bf16.msra.mxu0 0
    %4741 = vmatprep.subr.bf16.mxu0 0
    %4742 = vmatpush1.bf16.msra.mxu0 0
    %4743 = vmatprep.subr.bf16.mxu0 0
    %4744 = vmatpush1.bf16.msra.mxu0 0
    %4745 = vmatprep.subr.bf16.mxu0 0
    %4746 = vmatpush1.bf16.msra.mxu0 0
    %4747 = vmatprep.subr.bf16.mxu0 0
    %4748 = vmatpush1.bf16.msra.mxu0 0
    %4749 = vmatprep.subr.bf16.mxu0 0
    %4750 = vmatpush1.bf16.msra.mxu0 0
    %4751 = vmatprep.mubr.bf16.mxu0 0
    %4752 = vmatmul.mubr.bf16.gmra.mrb[0].mxu0 %v4717
    %v4753 = vpop.f32.mrb[0].mxu0
    %v4754 = vadd.f32 0.0, %v4753
    %v4755 = vpop.f32.mrb[0].mxu0
    %v4756 = vpop.f32.mrb[0].mxu0
    %v4757 = vadd.f32 0.0, %v4756
    %v4758 = vpop.f32.mrb[0].mxu0
    %4759 = vdwg.mxu0
    %s4760 = scalar_lea.vmem %s25, 16
    %v4761 = vld [vmem:[%s4760] sm:$0xf]
    %v4762 = vld [vmem:[%s4760 + $0x4] sm:$0xf]
    %v4763 = vld [vmem:[%s4760 + $0x8] sm:$0xf]
    %v4764 = vld [vmem:[%s4760 + $0xc] sm:$0xf]
    %v4769 = vunpack.c.l.b16 %v4761
    %v4770 = vunpack.c.l.b16 %v4762
    %v4771 = vunpack.c.l.b16 %v4763
    %v4772 = vunpack.c.l.b16 %v4764
    %v4773 = vpack.c.b16 %v4770, %v4769
    %v4774 = vpack.c.b16 %v4772, %v4771
    %4777 = vmatprep.subr.bf16.mxu0 0
    %4778 = vmatpush1.bf16.msra.mxu0 %v4773
    %4779 = vmatprep.subr.bf16.mxu0 0
    %4780 = vmatpush1.bf16.msra.mxu0 %v4774
    %4781 = vmatprep.subr.bf16.mxu0 0
    %4782 = vmatpush1.bf16.msra.mxu0 0
    %4783 = vmatprep.subr.bf16.mxu0 0
    %4784 = vmatpush1.bf16.msra.mxu0 0
    %4785 = vmatprep.subr.bf16.mxu0 0
    %4786 = vmatpush1.bf16.msra.mxu0 0
    %4787 = vmatprep.subr.bf16.mxu0 0
    %4788 = vmatpush1.bf16.msra.mxu0 0
    %4789 = vmatprep.subr.bf16.mxu0 0
    %4790 = vmatpush1.bf16.msra.mxu0 0
    %4791 = vmatprep.subr.bf16.mxu0 0
    %4792 = vmatpush1.bf16.msra.mxu0 0
    %4793 = vmatprep.subr.bf16.mxu0 0
    %4794 = vmatpush1.bf16.msra.mxu0 0
    %4795 = vmatprep.subr.bf16.mxu0 0
    %4796 = vmatpush1.bf16.msra.mxu0 0
    %4797 = vmatprep.subr.bf16.mxu0 0
    %4798 = vmatpush1.bf16.msra.mxu0 0
    %4799 = vmatprep.subr.bf16.mxu0 0
    %4800 = vmatpush1.bf16.msra.mxu0 0
    %4801 = vmatprep.subr.bf16.mxu0 0
    %4802 = vmatpush1.bf16.msra.mxu0 0
    %4803 = vmatprep.subr.bf16.mxu0 0
    %4804 = vmatpush1.bf16.msra.mxu0 0
    %4805 = vmatprep.subr.bf16.mxu0 0
    %4806 = vmatpush1.bf16.msra.mxu0 0
    %4807 = vmatprep.subr.bf16.mxu0 0
    %4808 = vmatpush1.bf16.msra.mxu0 0
    %4809 = vmatprep.mubr.bf16.mxu0 0
    %4810 = vmatmul.mubr.bf16.gmra.mrb[0].mxu0 %v4717
    %v4811 = vpop.f32.mrb[0].mxu0
    %v4812 = vadd.f32 0.0, %v4811
    %v4813 = vpop.f32.mrb[0].mxu0
    %v4814 = vpop.f32.mrb[0].mxu0
    %v4815 = vadd.f32 0.0, %v4814
    %v4816 = vpop.f32.mrb[0].mxu0
    %4817 = vdwg.mxu0
    %s4818 = scalar_lea.vmem %s27, 16
    %v4819 = vld [vmem:[%s4818] sm:$0xf]
    %v4820 = vld [vmem:[%s4818 + $0x4] sm:$0xf]
    %v4821 = vld [vmem:[%s4818 + $0x8] sm:$0xf]
    %v4822 = vld [vmem:[%s4818 + $0xc] sm:$0xf]
    %v4827 = vunpack.c.l.b16 %v4819
    %v4828 = vunpack.c.l.b16 %v4820
    %v4829 = vunpack.c.l.b16 %v4821
    %v4830 = vunpack.c.l.b16 %v4822
    %v4831 = vpack.c.b16 %v4828, %v4827
    %v4832 = vpack.c.b16 %v4830, %v4829
    %4835 = vmatprep.subr.bf16.mxu0 0
    %4836 = vmatpush1.bf16.msra.mxu0 %v4831
    %4837 = vmatprep.subr.bf16.mxu0 0
    %4838 = vmatpush1.bf16.msra.mxu0 %v4832
    %4839 = vmatprep.subr.bf16.mxu0 0
    %4840 = vmatpush1.bf16.msra.mxu0 0
    %4841 = vmatprep.subr.bf16.mxu0 0
    %4842 = vmatpush1.bf16.msra.mxu0 0
    %4843 = vmatprep.subr.bf16.mxu0 0
    %4844 = vmatpush1.bf16.msra.mxu0 0
    %4845 = vmatprep.subr.bf16.mxu0 0
    %4846 = vmatpush1.bf16.msra.mxu0 0
    %4847 = vmatprep.subr.bf16.mxu0 0
    %4848 = vmatpush1.bf16.msra.mxu0 0
    %4849 = vmatprep.subr.bf16.mxu0 0
    %4850 = vmatpush1.bf16.msra.mxu0 0
    %4851 = vmatprep.subr.bf16.mxu0 0
    %4852 = vmatpush1.bf16.msra.mxu0 0
    %4853 = vmatprep.subr.bf16.mxu0 0
    %4854 = vmatpush1.bf16.msra.mxu0 0
    %4855 = vmatprep.subr.bf16.mxu0 0
    %4856 = vmatpush1.bf16.msra.mxu0 0
    %4857 = vmatprep.subr.bf16.mxu0 0
    %4858 = vmatpush1.bf16.msra.mxu0 0
    %4859 = vmatprep.subr.bf16.mxu0 0
    %4860 = vmatpush1.bf16.msra.mxu0 0
    %4861 = vmatprep.subr.bf16.mxu0 0
    %4862 = vmatpush1.bf16.msra.mxu0 0
    %4863 = vmatprep.subr.bf16.mxu0 0
    %4864 = vmatpush1.bf16.msra.mxu0 0
    %4865 = vmatprep.subr.bf16.mxu0 0
    %4866 = vmatpush1.bf16.msra.mxu0 0
    %4867 = vmatprep.mubr.bf16.mxu0 0
    %4868 = vmatmul.mubr.bf16.gmra.mrb[0].mxu0 %v4717
    %v4869 = vpop.f32.mrb[0].mxu0
    %v4870 = vadd.f32 0.0, %v4869
    %v4871 = vpop.f32.mrb[0].mxu0
    %v4872 = vpop.f32.mrb[0].mxu0
    %v4873 = vadd.f32 0.0, %v4872
    %v4874 = vpop.f32.mrb[0].mxu0
    %4875 = vdwg.mxu0
    %s4876 = scalar_lea.vmem %s31, 16
    %v4877 = vld [vmem:[%s4876] sm:$0xf]
    %v4878 = vld [vmem:[%s4876 + $0x4] sm:$0xf]
    %v4879 = vld [vmem:[%s4876 + $0x8] sm:$0xf]
    %v4880 = vld [vmem:[%s4876 + $0xc] sm:$0xf]
    %s4881 = scalar_lea.vmem %s33, 1
    %v4882 = vld [vmem:[%s4881] sm:$0x1]
    %v4884 = vlaneseq
    %v4885 = vshrl.u32 %v4884, 7
    %v4886 = vsub.s32 0, %v4885
    %v4887 = vrot.slane %v4882, %v4886
    %v4893 = vunpack.c.l.b16 %v4877
    %v4894 = vunpack.c.l.b16 %v4878
    %v4895 = vunpack.c.l.b16 %v4879
    %v4896 = vunpack.c.l.b16 %v4880
    %v4897 = vpack.c.b16 %v4894, %v4893
    %v4898 = vpack.c.b16 %v4896, %v4895
    %4901 = vmatprep.subr.bf16.mxu0 0
    %4902 = vmatpush1.bf16.msra.mxu0 %v4897
    %4903 = vmatprep.subr.bf16.mxu0 0
    %4904 = vmatpush1.bf16.msra.mxu0 %v4898
    %4905 = vmatprep.subr.bf16.mxu0 0
    %4906 = vmatpush1.bf16.msra.mxu0 0
    %4907 = vmatprep.subr.bf16.mxu0 0
    %4908 = vmatpush1.bf16.msra.mxu0 0
    %4909 = vmatprep.subr.bf16.mxu0 0
    %4910 = vmatpush1.bf16.msra.mxu0 0
    %4911 = vmatprep.subr.bf16.mxu0 0
    %4912 = vmatpush1.bf16.msra.mxu0 0
    %4913 = vmatprep.subr.bf16.mxu0 0
    %4914 = vmatpush1.bf16.msra.mxu0 0
    %4915 = vmatprep.subr.bf16.mxu0 0
    %4916 = vmatpush1.bf16.msra.mxu0 0
    %4917 = vmatprep.subr.bf16.mxu0 0
    %4918 = vmatpush1.bf16.msra.mxu0 0
    %4919 = vmatprep.subr.bf16.mxu0 0
    %4920 = vmatpush1.bf16.msra.mxu0 0
    %4921 = vmatprep.subr.bf16.mxu0 0
    %4922 = vmatpush1.bf16.msra.mxu0 0
    %4923 = vmatprep.subr.bf16.mxu0 0
    %4924 = vmatpush1.bf16.msra.mxu0 0
    %4925 = vmatprep.subr.bf16.mxu0 0
    %4926 = vmatpush1.bf16.msra.mxu0 0
    %4927 = vmatprep.subr.bf16.mxu0 0
    %4928 = vmatpush1.bf16.msra.mxu0 0
    %4929 = vmatprep.subr.bf16.mxu0 0
    %4930 = vmatpush1.bf16.msra.mxu0 0
    %4931 = vmatprep.subr.bf16.mxu0 0
    %4932 = vmatpush1.bf16.msra.mxu0 0
    %4933 = vmatprep.mubr.bf16.mxu0 0
    %4934 = vmatmul.mubr.bf16.gmra.mrb[0].mxu0 %v514
    %v4935 = vpop.f32.mrb[0].mxu0
    %v4936 = vadd.f32 %v4887, %v4935
    %v4937 = vpop.f32.mrb[0].mxu0
    %v4938 = vpop.f32.mrb[0].mxu0
    %v4939 = vadd.f32 %v4887, %v4938
    %v4940 = vpop.f32.mrb[0].mxu0
    %4941 = vmatprep.mubr.bf16.mxu0 0
    %4942 = vmatmul.mubr.bf16.gmra.mrb[0].mxu0 %v517
    %v4943 = vpop.f32.mrb[0].mxu0
    %v4944 = vadd.f32 %v4887, %v4943
    %v4945 = vpop.f32.mrb[0].mxu0
    %v4946 = vpop.f32.mrb[0].mxu0
    %v4947 = vpop.f32.mrb[0].mxu0
    %4948 = vdwg.mxu0
    %s4949 = scalar_lea.vmem %s35, 16
    %v4950 = vld [vmem:[%s4949] sm:$0xf]
    %v4951 = vld [vmem:[%s4949 + $0x4] sm:$0xf]
    %v4952 = vld [vmem:[%s4949 + $0x8] sm:$0xf]
    %v4953 = vld [vmem:[%s4949 + $0xc] sm:$0xf]
    %s4954 = scalar_lea.vmem %s37, 1
    %v4955 = vld [vmem:[%s4954] sm:$0x1]
    %v4957 = vlaneseq
    %v4958 = vshrl.u32 %v4957, 7
    %v4959 = vsub.s32 0, %v4958
    %v4960 = vrot.slane %v4955, %v4959
    %v4966 = vunpack.c.l.b16 %v4950
    %v4967 = vunpack.c.l.b16 %v4951
    %v4968 = vunpack.c.l.b16 %v4952
    %v4969 = vunpack.c.l.b16 %v4953
    %v4970 = vpack.c.b16 %v4967, %v4966
    %v4971 = vpack.c.b16 %v4969, %v4968
    %4974 = vmatprep.subr.bf16.mxu0 0
    %4975 = vmatpush1.bf16.msra.mxu0 %v4970
    %4976 = vmatprep.subr.bf16.mxu0 0
    %4977 = vmatpush1.bf16.msra.mxu0 %v4971
    %4978 = vmatprep.subr.bf16.mxu0 0
    %4979 = vmatpush1.bf16.msra.mxu0 0
    %4980 = vmatprep.subr.bf16.mxu0 0
    %4981 = vmatpush1.bf16.msra.mxu0 0
    %4982 = vmatprep.subr.bf16.mxu0 0
    %4983 = vmatpush1.bf16.msra.mxu0 0
    %4984 = vmatprep.subr.bf16.mxu0 0
    %4985 = vmatpush1.bf16.msra.mxu0 0
    %4986 = vmatprep.subr.bf16.mxu0 0
    %4987 = vmatpush1.bf16.msra.mxu0 0
    %4988 = vmatprep.subr.bf16.mxu0 0
    %4989 = vmatpush1.bf16.msra.mxu0 0
    %4990 = vmatprep.subr.bf16.mxu0 0
    %4991 = vmatpush1.bf16.msra.mxu0 0
    %4992 = vmatprep.subr.bf16.mxu0 0
    %4993 = vmatpush1.bf16.msra.mxu0 0
    %4994 = vmatprep.subr.bf16.mxu0 0
    %4995 = vmatpush1.bf16.msra.mxu0 0
    %4996 = vmatprep.subr.bf16.mxu0 0
    %4997 = vmatpush1.bf16.msra.mxu0 0
    %4998 = vmatprep.subr.bf16.mxu0 0
    %4999 = vmatpush1.bf16.msra.mxu0 0
    %5000 = vmatprep.subr.bf16.mxu0 0
    %5001 = vmatpush1.bf16.msra.mxu0 0
    %5002 = vmatprep.subr.bf16.mxu0 0
    %5003 = vmatpush1.bf16.msra.mxu0 0
    %5004 = vmatprep.subr.bf16.mxu0 0
    %5005 = vmatpush1.bf16.msra.mxu0 0
    %5006 = vmatprep.mubr.bf16.mxu0 0
    %5007 = vmatmul.mubr.bf16.gmra.mrb[0].mxu0 %v514
    %v5008 = vpop.f32.mrb[0].mxu0
    %v5009 = vadd.f32 %v4960, %v5008
    %v5010 = vpop.f32.mrb[0].mxu0
    %v5011 = vpop.f32.mrb[0].mxu0
    %v5012 = vadd.f32 %v4960, %v5011
    %v5013 = vpop.f32.mrb[0].mxu0
    %5014 = vmatprep.mubr.bf16.mxu0 0
    %5015 = vmatmul.mubr.bf16.gmra.mrb[0].mxu0 %v517
    %v5016 = vpop.f32.mrb[0].mxu0
    %v5017 = vadd.f32 %v4960, %v5016
    %v5018 = vpop.f32.mrb[0].mxu0
    %v5019 = vpop.f32.mrb[0].mxu0
    %v5020 = vpop.f32.mrb[0].mxu0
    %5021 = vdwg.mxu0
    %v5022 = vpack.c.bf16 %v4757, %v4754
    %v5023 = vpack.c.bf16 %v4815, %v4812
    %v5025 = vsel %vm661, %v5022, 0
    %5027 = vmatprep.subr.bf16.mxu0 0
    %5028 = vmatpush1.bf16.msra.mxu0 %v5025
    %5029 = vmatprep.subr.bf16.mxu0 0
    %5030 = vmatpush1.bf16.msra.mxu0 0
    %5031 = vmatprep.subr.bf16.mxu0 0
    %5032 = vmatpush1.bf16.msra.mxu0 0
    %5033 = vmatprep.subr.bf16.mxu0 0
    %5034 = vmatpush1.bf16.msra.mxu0 0
    %5035 = vmatprep.subr.bf16.mxu0 0
    %5036 = vmatpush1.bf16.msra.mxu0 0
    %5037 = vmatprep.subr.bf16.mxu0 0
    %5038 = vmatpush1.bf16.msra.mxu0 0
    %5039 = vmatprep.subr.bf16.mxu0 0
    %5040 = vmatpush1.bf16.msra.mxu0 0
    %5041 = vmatprep.subr.bf16.mxu0 0
    %5042 = vmatpush1.bf16.msra.mxu0 0
    %5043 = vmatprep.subr.bf16.mxu0 0
    %5044 = vmatpush1.bf16.msra.mxu0 0
    %5045 = vmatprep.subr.bf16.mxu0 0
    %5046 = vmatpush1.bf16.msra.mxu0 0
    %5047 = vmatprep.subr.bf16.mxu0 0
    %5048 = vmatpush1.bf16.msra.mxu0 0
    %5049 = vmatprep.subr.bf16.mxu0 0
    %5050 = vmatpush1.bf16.msra.mxu0 0
    %5051 = vmatprep.subr.bf16.mxu0 0
    %5052 = vmatpush1.bf16.msra.mxu0 0
    %5053 = vmatprep.subr.bf16.mxu0 0
    %5054 = vmatpush1.bf16.msra.mxu0 0
    %5055 = vmatprep.subr.bf16.mxu0 0
    %5056 = vmatpush1.bf16.msra.mxu0 0
    %5057 = vmatprep.subr.bf16.mxu0 0
    %5058 = vmatpush1.bf16.msra.mxu0 0
    %5059 = vmatprep.mubr.bf16.mxu0 0
    %5060 = vmatmul.mubr.bf16.gmra.mrb[0].mxu0 %v656
    %v5061 = vpop.f32.mrb[0].mxu0
    %v5062 = vadd.f32 %v4936, %v5061
    %v5063 = vpop.f32.mrb[0].mxu0
    %v5064 = vpop.f32.mrb[0].mxu0
    %v5065 = vadd.f32 %v4939, %v5064
    %v5066 = vpop.f32.mrb[0].mxu0
    %5067 = vmatprep.mubr.bf16.mxu0 0
    %5068 = vmatmul.mubr.bf16.gmra.mrb[0].mxu0 %v659
    %v5069 = vpop.f32.mrb[0].mxu0
    %v5070 = vadd.f32 %v4944, %v5069
    %v5071 = vpop.f32.mrb[0].mxu0
    %v5072 = vpop.f32.mrb[0].mxu0
    %v5073 = vpop.f32.mrb[0].mxu0
    %5074 = vdwg.mxu0
    %v5076 = vsel %vm661, %v5023, 0
    %5078 = vmatprep.subr.bf16.mxu0 0
    %5079 = vmatpush1.bf16.msra.mxu0 %v5076
    %5080 = vmatprep.subr.bf16.mxu0 0
    %5081 = vmatpush1.bf16.msra.mxu0 0
    %5082 = vmatprep.subr.bf16.mxu0 0
    %5083 = vmatpush1.bf16.msra.mxu0 0
    %5084 = vmatprep.subr.bf16.mxu0 0
    %5085 = vmatpush1.bf16.msra.mxu0 0
    %5086 = vmatprep.subr.bf16.mxu0 0
    %5087 = vmatpush1.bf16.msra.mxu0 0
    %5088 = vmatprep.subr.bf16.mxu0 0
    %5089 = vmatpush1.bf16.msra.mxu0 0
    %5090 = vmatprep.subr.bf16.mxu0 0
    %5091 = vmatpush1.bf16.msra.mxu0 0
    %5092 = vmatprep.subr.bf16.mxu0 0
    %5093 = vmatpush1.bf16.msra.mxu0 0
    %5094 = vmatprep.subr.bf16.mxu0 0
    %5095 = vmatpush1.bf16.msra.mxu0 0
    %5096 = vmatprep.subr.bf16.mxu0 0
    %5097 = vmatpush1.bf16.msra.mxu0 0
    %5098 = vmatprep.subr.bf16.mxu0 0
    %5099 = vmatpush1.bf16.msra.mxu0 0
    %5100 = vmatprep.subr.bf16.mxu0 0
    %5101 = vmatpush1.bf16.msra.mxu0 0
    %5102 = vmatprep.subr.bf16.mxu0 0
    %5103 = vmatpush1.bf16.msra.mxu0 0
    %5104 = vmatprep.subr.bf16.mxu0 0
    %5105 = vmatpush1.bf16.msra.mxu0 0
    %5106 = vmatprep.subr.bf16.mxu0 0
    %5107 = vmatpush1.bf16.msra.mxu0 0
    %5108 = vmatprep.subr.bf16.mxu0 0
    %5109 = vmatpush1.bf16.msra.mxu0 0
    %5110 = vmatprep.mubr.bf16.mxu0 0
    %5111 = vmatmul.mubr.bf16.gmra.mrb[0].mxu0 %v722
    %v5112 = vpop.f32.mrb[0].mxu0
    %v5113 = vadd.f32 %v5009, %v5112
    %v5114 = vpop.f32.mrb[0].mxu0
    %v5115 = vpop.f32.mrb[0].mxu0
    %v5116 = vadd.f32 %v5012, %v5115
    %v5117 = vpop.f32.mrb[0].mxu0
    %5118 = vmatprep.mubr.bf16.mxu0 0
    %5119 = vmatmul.mubr.bf16.gmra.mrb[0].mxu0 %v725
    %v5120 = vpop.f32.mrb[0].mxu0
    %v5121 = vadd.f32 %v5017, %v5120
    %v5122 = vpop.f32.mrb[0].mxu0
    %v5123 = vpop.f32.mrb[0].mxu0
    %v5124 = vpop.f32.mrb[0].mxu0
    %5125 = vdwg.mxu0
    %v5126 = vadd.f32 %v5062, %v5113
    %v5127 = vadd.f32 %v5065, %v5116
    %v5128 = vadd.f32 %v5070, %v5121
    %v5129 = vmax.f32 %v5126, 0.0
    %v5130 = vmax.f32 %v5127, 0.0
    %v5131 = vmax.f32 %v5128, 0.0
    %5135 = vrot.lane.b32.xlu0 %v5113, 96
    %v5136 = vpop.permute.xlu0 %5135
    %5137 = vrot.lane.b32.xlu0 %v5116, 96
    %v5138 = vpop.permute.xlu0 %5137
    %5139 = vrot.lane.b32.xlu0 %v5121, 96
    %v5140 = vpop.permute.xlu0 %5139
    %v5144 = vmul.f32 %v5129, %v5136
    %v5145 = vmul.f32 %v5130, %v5138
    %v5146 = vmul.f32 %v5131, %v5140
    %v5147 = vpack.c.bf16 %v5145, %v5144
    %v5148 = vpack.c.bf16 %v5146, %v5146
    %v5150 = vsel %vm167, %v5148, 0
    %5152 = vmatprep.subr.bf16.mxu0 0
    %5153 = vmatpush1.bf16.msra.mxu0 %v5147
    %5154 = vmatprep.subr.bf16.mxu0 0
    %5155 = vmatpush1.bf16.msra.mxu0 %v5150
    %5156 = vmatprep.subr.bf16.mxu0 0
    %5157 = vmatpush1.bf16.msra.mxu0 0
    %5158 = vmatprep.subr.bf16.mxu0 0
    %5159 = vmatpush1.bf16.msra.mxu0 0
    %5160 = vmatprep.subr.bf16.mxu0 0
    %5161 = vmatpush1.bf16.msra.mxu0 0
    %5162 = vmatprep.subr.bf16.mxu0 0
    %5163 = vmatpush1.bf16.msra.mxu0 0
    %5164 = vmatprep.subr.bf16.mxu0 0
    %5165 = vmatpush1.bf16.msra.mxu0 0
    %5166 = vmatprep.subr.bf16.mxu0 0
    %5167 = vmatpush1.bf16.msra.mxu0 0
    %5168 = vmatprep.subr.bf16.mxu0 0
    %5169 = vmatpush1.bf16.msra.mxu0 0
    %5170 = vmatprep.subr.bf16.mxu0 0
    %5171 = vmatpush1.bf16.msra.mxu0 0
    %5172 = vmatprep.subr.bf16.mxu0 0
    %5173 = vmatpush1.bf16.msra.mxu0 0
    %5174 = vmatprep.subr.bf16.mxu0 0
    %5175 = vmatpush1.bf16.msra.mxu0 0
    %5176 = vmatprep.subr.bf16.mxu0 0
    %5177 = vmatpush1.bf16.msra.mxu0 0
    %5178 = vmatprep.subr.bf16.mxu0 0
    %5179 = vmatpush1.bf16.msra.mxu0 0
    %5180 = vmatprep.subr.bf16.mxu0 0
    %5181 = vmatpush1.bf16.msra.mxu0 0
    %5182 = vmatprep.subr.bf16.mxu0 0
    %5183 = vmatpush1.bf16.msra.mxu0 0
    %5184 = vmatprep.mubr.bf16.mxu0 0
    %5185 = vmatmul.mubr.bf16.gmra.mrb[0].mxu0 %v821
    %v5186 = vpop.f32.mrb[0].mxu0
    %v5187 = vadd.f32 %v4870, %v5186
    %v5188 = vpop.f32.mrb[0].mxu0
    %v5189 = vpop.f32.mrb[0].mxu0
    %v5190 = vadd.f32 %v4873, %v5189
    %v5191 = vpop.f32.mrb[0].mxu0
    %5192 = vdwg.mxu0
    %s5193 = scalar_lea.vmem %s29, 1
    %v5194 = vld [vmem:[%s5193] sm:$0x1]
    %v5196 = vlaneseq
    %v5197 = vshrl.u32 %v5196, 7
    %v5198 = vsub.s32 0, %v5197
    %v5199 = vrot.slane %v5194, %v5198
    %v5201 = vadd.f32 %v5187, %v5199
    %v5202 = vadd.f32 %v5190, %v5199
    %v5203 = vadd.f32 %v5201, %v4696
    %v5204 = vadd.f32 %v5202, %v4697
    %s5205 = scalar_lea.vmem %s39, 1
    %v5206 = vld [vmem:[%s5205] sm:$0x1]
    %v5208 = vlaneseq
    %v5209 = vshrl.u32 %v5208, 7
    %v5210 = vsub.s32 0, %v5209
    %v5211 = vrot.slane %v5206, %v5210
    %v5213 = vmul.f32 %v5203, %v5211
    %v5214 = vmul.f32 %v5204, %v5211
    %s5215 = scalar_lea.vmem %s41, 1
    %v5216 = vld [vmem:[%s5215] sm:$0x1]
    %v5218 = vlaneseq
    %v5219 = vshrl.u32 %v5218, 7
    %v5220 = vsub.s32 0, %v5219
    %v5221 = vrot.slane %v5216, %v5220
    %v5223 = vadd.f32 %v5213, %v5221
    %v5224 = vadd.f32 %v5214, %v5221
    %s5225 = scalar_lea.vmem %s43, 128
    %v5226 = vld [vmem:[%s5225] sm:$0xf]
    %v5227 = vld [vmem:[%s5225 + $0x4] sm:$0xf]
    %v5228 = vld [vmem:[%s5225 + $0x8] sm:$0xf]
    %v5229 = vld [vmem:[%s5225 + $0xc] sm:$0xf]
    %v5230 = vld [vmem:[%s5225 + $0x10] sm:$0xf]
    %v5231 = vld [vmem:[%s5225 + $0x14] sm:$0xf]
    %v5232 = vld [vmem:[%s5225 + $0x18] sm:$0xf]
    %v5233 = vld [vmem:[%s5225 + $0x1c] sm:$0xf]
    %v5234 = vld [vmem:[%s5225 + $0x20] sm:$0xf]
    %v5235 = vld [vmem:[%s5225 + $0x24] sm:$0xf]
    %v5236 = vld [vmem:[%s5225 + $0x28] sm:$0xf]
    %v5237 = vld [vmem:[%s5225 + $0x2c] sm:$0xf]
    %v5238 = vld [vmem:[%s5225 + $0x30] sm:$0xf]
    %v5239 = vld [vmem:[%s5225 + $0x34] sm:$0xf]
    %v5240 = vld [vmem:[%s5225 + $0x38] sm:$0xf]
    %v5241 = vld [vmem:[%s5225 + $0x3c] sm:$0xf]
    %v5242 = vld [vmem:[%s5225 + $0x40] sm:$0xf]
    %v5243 = vld [vmem:[%s5225 + $0x44] sm:$0xf]
    %v5244 = vld [vmem:[%s5225 + $0x48] sm:$0xf]
    %v5245 = vld [vmem:[%s5225 + $0x4c] sm:$0xf]
    %v5246 = vld [vmem:[%s5225 + $0x50] sm:$0xf]
    %v5247 = vld [vmem:[%s5225 + $0x54] sm:$0xf]
    %v5248 = vld [vmem:[%s5225 + $0x58] sm:$0xf]
    %v5249 = vld [vmem:[%s5225 + $0x5c] sm:$0xf]
    %v5250 = vld [vmem:[%s5225 + $0x60] sm:$0xf]
    %v5251 = vld [vmem:[%s5225 + $0x64] sm:$0xf]
    %v5252 = vld [vmem:[%s5225 + $0x68] sm:$0xf]
    %v5253 = vld [vmem:[%s5225 + $0x6c] sm:$0xf]
    %v5254 = vld [vmem:[%s5225 + $0x70] sm:$0xf]
    %v5255 = vld [vmem:[%s5225 + $0x74] sm:$0xf]
    %v5256 = vld [vmem:[%s5225 + $0x78] sm:$0xf]
    %v5257 = vld [vmem:[%s5225 + $0x7c] sm:$0xf]
    %s5258 = scalar_lea.vmem %s45, 8
    %v5259 = vld [vmem:[%s5258] sm:$0x1]
    %v5260 = vld [vmem:[%s5258 + $0x1] sm:$0x1]
    %v5261 = vld [vmem:[%s5258 + $0x2] sm:$0x1]
    %v5262 = vld [vmem:[%s5258 + $0x3] sm:$0x1]
    %v5263 = vld [vmem:[%s5258 + $0x4] sm:$0x1]
    %v5264 = vld [vmem:[%s5258 + $0x5] sm:$0x1]
    %v5265 = vld [vmem:[%s5258 + $0x6] sm:$0x1]
    %v5266 = vld [vmem:[%s5258 + $0x7] sm:$0x1]
    %s5267 = scalar_lea.vmem %s47, 16
    %v5268 = vld [vmem:[%s5267] sm:$0x3]
    %v5269 = vld [vmem:[%s5267 + $0x2] sm:$0x3]
    %v5270 = vld [vmem:[%s5267 + $0x4] sm:$0x3]
    %v5271 = vld [vmem:[%s5267 + $0x6] sm:$0x3]
    %v5272 = vld [vmem:[%s5267 + $0x8] sm:$0x3]
    %v5273 = vld [vmem:[%s5267 + $0xa] sm:$0x3]
    %v5274 = vld [vmem:[%s5267 + $0xc] sm:$0x3]
    %v5275 = vld [vmem:[%s5267 + $0xe] sm:$0x3]
    %v5276 = vsel %vm661, %v4698, 0
    %5278 = vmatprep.subr.bf16.mxu0 0
    %5279 = vmatpush1.bf16.msra.mxu0 %v5276
    %5280 = vmatprep.subr.bf16.mxu0 0
    %5281 = vmatpush1.bf16.msra.mxu0 0
    %5282 = vmatprep.subr.bf16.mxu0 0
    %5283 = vmatpush1.bf16.msra.mxu0 0
    %5284 = vmatprep.subr.bf16.mxu0 0
    %5285 = vmatpush1.bf16.msra.mxu0 0
    %5286 = vmatprep.subr.bf16.mxu0 0
    %5287 = vmatpush1.bf16.msra.mxu0 0
    %5288 = vmatprep.subr.bf16.mxu0 0
    %5289 = vmatpush1.bf16.msra.mxu0 0
    %5290 = vmatprep.subr.bf16.mxu0 0
    %5291 = vmatpush1.bf16.msra.mxu0 0
    %5292 = vmatprep.subr.bf16.mxu0 0
    %5293 = vmatpush1.bf16.msra.mxu0 0
    %5294 = vmatprep.subr.bf16.mxu0 0
    %5295 = vmatpush1.bf16.msra.mxu0 0
    %5296 = vmatprep.subr.bf16.mxu0 0
    %5297 = vmatpush1.bf16.msra.mxu0 0
    %5298 = vmatprep.subr.bf16.mxu0 0
    %5299 = vmatpush1.bf16.msra.mxu0 0
    %5300 = vmatprep.subr.bf16.mxu0 0
    %5301 = vmatpush1.bf16.msra.mxu0 0
    %5302 = vmatprep.subr.bf16.mxu0 0
    %5303 = vmatpush1.bf16.msra.mxu0 0
    %5304 = vmatprep.subr.bf16.mxu0 0
    %5305 = vmatpush1.bf16.msra.mxu0 0
    %5306 = vmatprep.subr.bf16.mxu0 0
    %5307 = vmatpush1.bf16.msra.mxu0 0
    %5308 = vmatprep.subr.bf16.mxu0 0
    %5309 = vmatpush1.bf16.msra.mxu0 0
    %5310 = vmatprep.mubr.bf16.mxu0 0
    %5311 = vmatmul.mubr.bf16.gmra.mrb[0].mxu0 %v946
    %v5312 = vpop.f32.mrb[0].mxu0
    %v5313 = vadd.f32 0.0, %v5312
    %v5314 = vpop.f32.mrb[0].mxu0
    %v5315 = vpop.f32.mrb[0].mxu0
    %v5316 = vpop.f32.mrb[0].mxu0
    %5317 = vdwg.mxu0
    %v5318 = vpack.c.bf16 %v5313, %v5313
    %v5327 = vlaneseq
    %v5328 = vshrl.u32 %v5327, 7
    %v5329 = vsub.s32 0, %v5328
    %v5330 = vrot.slane %v5259, %v5329
    %v5331 = vlaneseq
    %v5332 = vshrl.u32 %v5331, 7
    %v5333 = vsub.s32 0, %v5332
    %v5334 = vrot.slane %v5260, %v5333
    %v5335 = vlaneseq
    %v5336 = vshrl.u32 %v5335, 7
    %v5337 = vsub.s32 0, %v5336
    %v5338 = vrot.slane %v5261, %v5337
    %v5339 = vlaneseq
    %v5340 = vshrl.u32 %v5339, 7
    %v5341 = vsub.s32 0, %v5340
    %v5342 = vrot.slane %v5262, %v5341
    %v5343 = vlaneseq
    %v5344 = vshrl.u32 %v5343, 7
    %v5345 = vsub.s32 0, %v5344
    %v5346 = vrot.slane %v5263, %v5345
    %v5347 = vlaneseq
    %v5348 = vshrl.u32 %v5347, 7
    %v5349 = vsub.s32 0, %v5348
    %v5350 = vrot.slane %v5264, %v5349
    %v5351 = vlaneseq
    %v5352 = vshrl.u32 %v5351, 7
    %v5353 = vsub.s32 0, %v5352
    %v5354 = vrot.slane %v5265, %v5353
    %v5355 = vlaneseq
    %v5356 = vshrl.u32 %v5355, 7
    %v5357 = vsub.s32 0, %v5356
    %v5358 = vrot.slane %v5266, %v5357
    %v5371 = vunpack.c.l.b16 %v5226
    %v5372 = vunpack.c.l.b16 %v5227
    %v5373 = vunpack.c.l.b16 %v5228
    %v5374 = vunpack.c.l.b16 %v5229
    %v5375 = vpack.c.b16 %v5372, %v5371
    %v5376 = vpack.c.b16 %v5374, %v5373
    %v5380 = vsel %vm331, %v5318, 0
    %5382 = vmatprep.subr.bf16.mxu0 0
    %5383 = vmatpush1.bf16.msra.mxu0 %v5375
    %5384 = vmatprep.subr.bf16.mxu0 0
    %5385 = vmatpush1.bf16.msra.mxu0 %v5376
    %5386 = vmatprep.subr.bf16.mxu0 0
    %5387 = vmatpush1.bf16.msra.mxu0 0
    %5388 = vmatprep.subr.bf16.mxu0 0
    %5389 = vmatpush1.bf16.msra.mxu0 0
    %5390 = vmatprep.subr.bf16.mxu0 0
    %5391 = vmatpush1.bf16.msra.mxu0 0
    %5392 = vmatprep.subr.bf16.mxu0 0
    %5393 = vmatpush1.bf16.msra.mxu0 0
    %5394 = vmatprep.subr.bf16.mxu0 0
    %5395 = vmatpush1.bf16.msra.mxu0 0
    %5396 = vmatprep.subr.bf16.mxu0 0
    %5397 = vmatpush1.bf16.msra.mxu0 0
    %5398 = vmatprep.subr.bf16.mxu0 0
    %5399 = vmatpush1.bf16.msra.mxu0 0
    %5400 = vmatprep.subr.bf16.mxu0 0
    %5401 = vmatpush1.bf16.msra.mxu0 0
    %5402 = vmatprep.subr.bf16.mxu0 0
    %5403 = vmatpush1.bf16.msra.mxu0 0
    %5404 = vmatprep.subr.bf16.mxu0 0
    %5405 = vmatpush1.bf16.msra.mxu0 0
    %5406 = vmatprep.subr.bf16.mxu0 0
    %5407 = vmatpush1.bf16.msra.mxu0 0
    %5408 = vmatprep.subr.bf16.mxu0 0
    %5409 = vmatpush1.bf16.msra.mxu0 0
    %5410 = vmatprep.subr.bf16.mxu0 0
    %5411 = vmatpush1.bf16.msra.mxu0 0
    %5412 = vmatprep.subr.bf16.mxu0 0
    %5413 = vmatpush1.bf16.msra.mxu0 0
    %5414 = vmatprep.mubr.bf16.mxu0 0
    %5415 = vmatmul.mubr.bf16.gmra.mrb[0].mxu0 %v5380
    %v5416 = vpop.f32.mrb[0].mxu0
    %v5417 = vadd.f32 %v5330, %v5416
    %v5418 = vpop.f32.mrb[0].mxu0
    %v5419 = vpop.f32.mrb[0].mxu0
    %v5420 = vpop.f32.mrb[0].mxu0
    %5421 = vdwg.mxu0
    %v5426 = vunpack.c.l.b16 %v5230
    %v5427 = vunpack.c.l.b16 %v5231
    %v5428 = vunpack.c.l.b16 %v5232
    %v5429 = vunpack.c.l.b16 %v5233
    %v5430 = vpack.c.b16 %v5427, %v5426
    %v5431 = vpack.c.b16 %v5429, %v5428
    %5434 = vmatprep.subr.bf16.mxu0 0
    %5435 = vmatpush1.bf16.msra.mxu0 %v5430
    %5436 = vmatprep.subr.bf16.mxu0 0
    %5437 = vmatpush1.bf16.msra.mxu0 %v5431
    %5438 = vmatprep.subr.bf16.mxu0 0
    %5439 = vmatpush1.bf16.msra.mxu0 0
    %5440 = vmatprep.subr.bf16.mxu0 0
    %5441 = vmatpush1.bf16.msra.mxu0 0
    %5442 = vmatprep.subr.bf16.mxu0 0
    %5443 = vmatpush1.bf16.msra.mxu0 0
    %5444 = vmatprep.subr.bf16.mxu0 0
    %5445 = vmatpush1.bf16.msra.mxu0 0
    %5446 = vmatprep.subr.bf16.mxu0 0
    %5447 = vmatpush1.bf16.msra.mxu0 0
    %5448 = vmatprep.subr.bf16.mxu0 0
    %5449 = vmatpush1.bf16.msra.mxu0 0
    %5450 = vmatprep.subr.bf16.mxu0 0
    %5451 = vmatpush1.bf16.msra.mxu0 0
    %5452 = vmatprep.subr.bf16.mxu0 0
    %5453 = vmatpush1.bf16.msra.mxu0 0
    %5454 = vmatprep.subr.bf16.mxu0 0
    %5455 = vmatpush1.bf16.msra.mxu0 0
    %5456 = vmatprep.subr.bf16.mxu0 0
    %5457 = vmatpush1.bf16.msra.mxu0 0
    %5458 = vmatprep.subr.bf16.mxu0 0
    %5459 = vmatpush1.bf16.msra.mxu0 0
    %5460 = vmatprep.subr.bf16.mxu0 0
    %5461 = vmatpush1.bf16.msra.mxu0 0
    %5462 = vmatprep.subr.bf16.mxu0 0
    %5463 = vmatpush1.bf16.msra.mxu0 0
    %5464 = vmatprep.subr.bf16.mxu0 0
    %5465 = vmatpush1.bf16.msra.mxu0 0
    %5466 = vmatprep.mubr.bf16.mxu0 0
    %5467 = vmatmul.mubr.bf16.gmra.mrb[0].mxu0 %v5380
    %v5468 = vpop.f32.mrb[0].mxu0
    %v5469 = vadd.f32 %v5334, %v5468
    %v5470 = vpop.f32.mrb[0].mxu0
    %v5471 = vpop.f32.mrb[0].mxu0
    %v5472 = vpop.f32.mrb[0].mxu0
    %5473 = vdwg.mxu0
    %v5478 = vunpack.c.l.b16 %v5234
    %v5479 = vunpack.c.l.b16 %v5235
    %v5480 = vunpack.c.l.b16 %v5236
    %v5481 = vunpack.c.l.b16 %v5237
    %v5482 = vpack.c.b16 %v5479, %v5478
    %v5483 = vpack.c.b16 %v5481, %v5480
    %5486 = vmatprep.subr.bf16.mxu0 0
    %5487 = vmatpush1.bf16.msra.mxu0 %v5482
    %5488 = vmatprep.subr.bf16.mxu0 0
    %5489 = vmatpush1.bf16.msra.mxu0 %v5483
    %5490 = vmatprep.subr.bf16.mxu0 0
    %5491 = vmatpush1.bf16.msra.mxu0 0
    %5492 = vmatprep.subr.bf16.mxu0 0
    %5493 = vmatpush1.bf16.msra.mxu0 0
    %5494 = vmatprep.subr.bf16.mxu0 0
    %5495 = vmatpush1.bf16.msra.mxu0 0
    %5496 = vmatprep.subr.bf16.mxu0 0
    %5497 = vmatpush1.bf16.msra.mxu0 0
    %5498 = vmatprep.subr.bf16.mxu0 0
    %5499 = vmatpush1.bf16.msra.mxu0 0
    %5500 = vmatprep.subr.bf16.mxu0 0
    %5501 = vmatpush1.bf16.msra.mxu0 0
    %5502 = vmatprep.subr.bf16.mxu0 0
    %5503 = vmatpush1.bf16.msra.mxu0 0
    %5504 = vmatprep.subr.bf16.mxu0 0
    %5505 = vmatpush1.bf16.msra.mxu0 0
    %5506 = vmatprep.subr.bf16.mxu0 0
    %5507 = vmatpush1.bf16.msra.mxu0 0
    %5508 = vmatprep.subr.bf16.mxu0 0
    %5509 = vmatpush1.bf16.msra.mxu0 0
    %5510 = vmatprep.subr.bf16.mxu0 0
    %5511 = vmatpush1.bf16.msra.mxu0 0
    %5512 = vmatprep.subr.bf16.mxu0 0
    %5513 = vmatpush1.bf16.msra.mxu0 0
    %5514 = vmatprep.subr.bf16.mxu0 0
    %5515 = vmatpush1.bf16.msra.mxu0 0
    %5516 = vmatprep.subr.bf16.mxu0 0
    %5517 = vmatpush1.bf16.msra.mxu0 0
    %5518 = vmatprep.mubr.bf16.mxu0 0
    %5519 = vmatmul.mubr.bf16.gmra.mrb[0].mxu0 %v5380
    %v5520 = vpop.f32.mrb[0].mxu0
    %v5521 = vadd.f32 %v5338, %v5520
    %v5522 = vpop.f32.mrb[0].mxu0
    %v5523 = vpop.f32.mrb[0].mxu0
    %v5524 = vpop.f32.mrb[0].mxu0
    %5525 = vdwg.mxu0
    %v5530 = vunpack.c.l.b16 %v5238
    %v5531 = vunpack.c.l.b16 %v5239
    %v5532 = vunpack.c.l.b16 %v5240
    %v5533 = vunpack.c.l.b16 %v5241
    %v5534 = vpack.c.b16 %v5531, %v5530
    %v5535 = vpack.c.b16 %v5533, %v5532
    %5538 = vmatprep.subr.bf16.mxu0 0
    %5539 = vmatpush1.bf16.msra.mxu0 %v5534
    %5540 = vmatprep.subr.bf16.mxu0 0
    %5541 = vmatpush1.bf16.msra.mxu0 %v5535
    %5542 = vmatprep.subr.bf16.mxu0 0
    %5543 = vmatpush1.bf16.msra.mxu0 0
    %5544 = vmatprep.subr.bf16.mxu0 0
    %5545 = vmatpush1.bf16.msra.mxu0 0
    %5546 = vmatprep.subr.bf16.mxu0 0
    %5547 = vmatpush1.bf16.msra.mxu0 0
    %5548 = vmatprep.subr.bf16.mxu0 0
    %5549 = vmatpush1.bf16.msra.mxu0 0
    %5550 = vmatprep.subr.bf16.mxu0 0
    %5551 = vmatpush1.bf16.msra.mxu0 0
    %5552 = vmatprep.subr.bf16.mxu0 0
    %5553 = vmatpush1.bf16.msra.mxu0 0
    %5554 = vmatprep.subr.bf16.mxu0 0
    %5555 = vmatpush1.bf16.msra.mxu0 0
    %5556 = vmatprep.subr.bf16.mxu0 0
    %5557 = vmatpush1.bf16.msra.mxu0 0
    %5558 = vmatprep.subr.bf16.mxu0 0
    %5559 = vmatpush1.bf16.msra.mxu0 0
    %5560 = vmatprep.subr.bf16.mxu0 0
    %5561 = vmatpush1.bf16.msra.mxu0 0
    %5562 = vmatprep.subr.bf16.mxu0 0
    %5563 = vmatpush1.bf16.msra.mxu0 0
    %5564 = vmatprep.subr.bf16.mxu0 0
    %5565 = vmatpush1.bf16.msra.mxu0 0
    %5566 = vmatprep.subr.bf16.mxu0 0
    %5567 = vmatpush1.bf16.msra.mxu0 0
    %5568 = vmatprep.subr.bf16.mxu0 0
    %5569 = vmatpush1.bf16.msra.mxu0 0
    %5570 = vmatprep.mubr.bf16.mxu0 0
    %5571 = vmatmul.mubr.bf16.gmra.mrb[0].mxu0 %v5380
    %v5572 = vpop.f32.mrb[0].mxu0
    %v5573 = vadd.f32 %v5342, %v5572
    %v5574 = vpop.f32.mrb[0].mxu0
    %v5575 = vpop.f32.mrb[0].mxu0
    %v5576 = vpop.f32.mrb[0].mxu0
    %5577 = vdwg.mxu0
    %v5582 = vunpack.c.l.b16 %v5242
    %v5583 = vunpack.c.l.b16 %v5243
    %v5584 = vunpack.c.l.b16 %v5244
    %v5585 = vunpack.c.l.b16 %v5245
    %v5586 = vpack.c.b16 %v5583, %v5582
    %v5587 = vpack.c.b16 %v5585, %v5584
    %5590 = vmatprep.subr.bf16.mxu0 0
    %5591 = vmatpush1.bf16.msra.mxu0 %v5586
    %5592 = vmatprep.subr.bf16.mxu0 0
    %5593 = vmatpush1.bf16.msra.mxu0 %v5587
    %5594 = vmatprep.subr.bf16.mxu0 0
    %5595 = vmatpush1.bf16.msra.mxu0 0
    %5596 = vmatprep.subr.bf16.mxu0 0
    %5597 = vmatpush1.bf16.msra.mxu0 0
    %5598 = vmatprep.subr.bf16.mxu0 0
    %5599 = vmatpush1.bf16.msra.mxu0 0
    %5600 = vmatprep.subr.bf16.mxu0 0
    %5601 = vmatpush1.bf16.msra.mxu0 0
    %5602 = vmatprep.subr.bf16.mxu0 0
    %5603 = vmatpush1.bf16.msra.mxu0 0
    %5604 = vmatprep.subr.bf16.mxu0 0
    %5605 = vmatpush1.bf16.msra.mxu0 0
    %5606 = vmatprep.subr.bf16.mxu0 0
    %5607 = vmatpush1.bf16.msra.mxu0 0
    %5608 = vmatprep.subr.bf16.mxu0 0
    %5609 = vmatpush1.bf16.msra.mxu0 0
    %5610 = vmatprep.subr.bf16.mxu0 0
    %5611 = vmatpush1.bf16.msra.mxu0 0
    %5612 = vmatprep.subr.bf16.mxu0 0
    %5613 = vmatpush1.bf16.msra.mxu0 0
    %5614 = vmatprep.subr.bf16.mxu0 0
    %5615 = vmatpush1.bf16.msra.mxu0 0
    %5616 = vmatprep.subr.bf16.mxu0 0
    %5617 = vmatpush1.bf16.msra.mxu0 0
    %5618 = vmatprep.subr.bf16.mxu0 0
    %5619 = vmatpush1.bf16.msra.mxu0 0
    %5620 = vmatprep.subr.bf16.mxu0 0
    %5621 = vmatpush1.bf16.msra.mxu0 0
    %5622 = vmatprep.mubr.bf16.mxu0 0
    %5623 = vmatmul.mubr.bf16.gmra.mrb[0].mxu0 %v5380
    %v5624 = vpop.f32.mrb[0].mxu0
    %v5625 = vadd.f32 %v5346, %v5624
    %v5626 = vpop.f32.mrb[0].mxu0
    %v5627 = vpop.f32.mrb[0].mxu0
    %v5628 = vpop.f32.mrb[0].mxu0
    %5629 = vdwg.mxu0
    %v5634 = vunpack.c.l.b16 %v5246
    %v5635 = vunpack.c.l.b16 %v5247
    %v5636 = vunpack.c.l.b16 %v5248
    %v5637 = vunpack.c.l.b16 %v5249
    %v5638 = vpack.c.b16 %v5635, %v5634
    %v5639 = vpack.c.b16 %v5637, %v5636
    %5642 = vmatprep.subr.bf16.mxu0 0
    %5643 = vmatpush1.bf16.msra.mxu0 %v5638
    %5644 = vmatprep.subr.bf16.mxu0 0
    %5645 = vmatpush1.bf16.msra.mxu0 %v5639
    %5646 = vmatprep.subr.bf16.mxu0 0
    %5647 = vmatpush1.bf16.msra.mxu0 0
    %5648 = vmatprep.subr.bf16.mxu0 0
    %5649 = vmatpush1.bf16.msra.mxu0 0
    %5650 = vmatprep.subr.bf16.mxu0 0
    %5651 = vmatpush1.bf16.msra.mxu0 0
    %5652 = vmatprep.subr.bf16.mxu0 0
    %5653 = vmatpush1.bf16.msra.mxu0 0
    %5654 = vmatprep.subr.bf16.mxu0 0
    %5655 = vmatpush1.bf16.msra.mxu0 0
    %5656 = vmatprep.subr.bf16.mxu0 0
    %5657 = vmatpush1.bf16.msra.mxu0 0
    %5658 = vmatprep.subr.bf16.mxu0 0
    %5659 = vmatpush1.bf16.msra.mxu0 0
    %5660 = vmatprep.subr.bf16.mxu0 0
    %5661 = vmatpush1.bf16.msra.mxu0 0
    %5662 = vmatprep.subr.bf16.mxu0 0
    %5663 = vmatpush1.bf16.msra.mxu0 0
    %5664 = vmatprep.subr.bf16.mxu0 0
    %5665 = vmatpush1.bf16.msra.mxu0 0
    %5666 = vmatprep.subr.bf16.mxu0 0
    %5667 = vmatpush1.bf16.msra.mxu0 0
    %5668 = vmatprep.subr.bf16.mxu0 0
    %5669 = vmatpush1.bf16.msra.mxu0 0
    %5670 = vmatprep.subr.bf16.mxu0 0
    %5671 = vmatpush1.bf16.msra.mxu0 0
    %5672 = vmatprep.subr.bf16.mxu0 0
    %5673 = vmatpush1.bf16.msra.mxu0 0
    %5674 = vmatprep.mubr.bf16.mxu0 0
    %5675 = vmatmul.mubr.bf16.gmra.mrb[0].mxu0 %v5380
    %v5676 = vpop.f32.mrb[0].mxu0
    %v5677 = vadd.f32 %v5350, %v5676
    %v5678 = vpop.f32.mrb[0].mxu0
    %v5679 = vpop.f32.mrb[0].mxu0
    %v5680 = vpop.f32.mrb[0].mxu0
    %5681 = vdwg.mxu0
    %v5686 = vunpack.c.l.b16 %v5250
    %v5687 = vunpack.c.l.b16 %v5251
    %v5688 = vunpack.c.l.b16 %v5252
    %v5689 = vunpack.c.l.b16 %v5253
    %v5690 = vpack.c.b16 %v5687, %v5686
    %v5691 = vpack.c.b16 %v5689, %v5688
    %5694 = vmatprep.subr.bf16.mxu0 0
    %5695 = vmatpush1.bf16.msra.mxu0 %v5690
    %5696 = vmatprep.subr.bf16.mxu0 0
    %5697 = vmatpush1.bf16.msra.mxu0 %v5691
    %5698 = vmatprep.subr.bf16.mxu0 0
    %5699 = vmatpush1.bf16.msra.mxu0 0
    %5700 = vmatprep.subr.bf16.mxu0 0
    %5701 = vmatpush1.bf16.msra.mxu0 0
    %5702 = vmatprep.subr.bf16.mxu0 0
    %5703 = vmatpush1.bf16.msra.mxu0 0
    %5704 = vmatprep.subr.bf16.mxu0 0
    %5705 = vmatpush1.bf16.msra.mxu0 0
    %5706 = vmatprep.subr.bf16.mxu0 0
    %5707 = vmatpush1.bf16.msra.mxu0 0
    %5708 = vmatprep.subr.bf16.mxu0 0
    %5709 = vmatpush1.bf16.msra.mxu0 0
    %5710 = vmatprep.subr.bf16.mxu0 0
    %5711 = vmatpush1.bf16.msra.mxu0 0
    %5712 = vmatprep.subr.bf16.mxu0 0
    %5713 = vmatpush1.bf16.msra.mxu0 0
    %5714 = vmatprep.subr.bf16.mxu0 0
    %5715 = vmatpush1.bf16.msra.mxu0 0
    %5716 = vmatprep.subr.bf16.mxu0 0
    %5717 = vmatpush1.bf16.msra.mxu0 0
    %5718 = vmatprep.subr.bf16.mxu0 0
    %5719 = vmatpush1.bf16.msra.mxu0 0
    %5720 = vmatprep.subr.bf16.mxu0 0
    %5721 = vmatpush1.bf16.msra.mxu0 0
    %5722 = vmatprep.subr.bf16.mxu0 0
    %5723 = vmatpush1.bf16.msra.mxu0 0
    %5724 = vmatprep.subr.bf16.mxu0 0
    %5725 = vmatpush1.bf16.msra.mxu0 0
    %5726 = vmatprep.mubr.bf16.mxu0 0
    %5727 = vmatmul.mubr.bf16.gmra.mrb[0].mxu0 %v5380
    %v5728 = vpop.f32.mrb[0].mxu0
    %v5729 = vadd.f32 %v5354, %v5728
    %v5730 = vpop.f32.mrb[0].mxu0
    %v5731 = vpop.f32.mrb[0].mxu0
    %v5732 = vpop.f32.mrb[0].mxu0
    %5733 = vdwg.mxu0
    %v5738 = vunpack.c.l.b16 %v5254
    %v5739 = vunpack.c.l.b16 %v5255
    %v5740 = vunpack.c.l.b16 %v5256
    %v5741 = vunpack.c.l.b16 %v5257
    %v5742 = vpack.c.b16 %v5739, %v5738
    %v5743 = vpack.c.b16 %v5741, %v5740
    %5746 = vmatprep.subr.bf16.mxu0 0
    %5747 = vmatpush1.bf16.msra.mxu0 %v5742
    %5748 = vmatprep.subr.bf16.mxu0 0
    %5749 = vmatpush1.bf16.msra.mxu0 %v5743
    %5750 = vmatprep.subr.bf16.mxu0 0
    %5751 = vmatpush1.bf16.msra.mxu0 0
    %5752 = vmatprep.subr.bf16.mxu0 0
    %5753 = vmatpush1.bf16.msra.mxu0 0
    %5754 = vmatprep.subr.bf16.mxu0 0
    %5755 = vmatpush1.bf16.msra.mxu0 0
    %5756 = vmatprep.subr.bf16.mxu0 0
    %5757 = vmatpush1.bf16.msra.mxu0 0
    %5758 = vmatprep.subr.bf16.mxu0 0
    %5759 = vmatpush1.bf16.msra.mxu0 0
    %5760 = vmatprep.subr.bf16.mxu0 0
    %5761 = vmatpush1.bf16.msra.mxu0 0
    %5762 = vmatprep.subr.bf16.mxu0 0
    %5763 = vmatpush1.bf16.msra.mxu0 0
    %5764 = vmatprep.subr.bf16.mxu0 0
    %5765 = vmatpush1.bf16.msra.mxu0 0
    %5766 = vmatprep.subr.bf16.mxu0 0
    %5767 = vmatpush1.bf16.msra.mxu0 0
    %5768 = vmatprep.subr.bf16.mxu0 0
    %5769 = vmatpush1.bf16.msra.mxu0 0
    %5770 = vmatprep.subr.bf16.mxu0 0
    %5771 = vmatpush1.bf16.msra.mxu0 0
    %5772 = vmatprep.subr.bf16.mxu0 0
    %5773 = vmatpush1.bf16.msra.mxu0 0
    %5774 = vmatprep.subr.bf16.mxu0 0
    %5775 = vmatpush1.bf16.msra.mxu0 0
    %5776 = vmatprep.subr.bf16.mxu0 0
    %5777 = vmatpush1.bf16.msra.mxu0 0
    %5778 = vmatprep.mubr.bf16.mxu0 0
    %5779 = vmatmul.mubr.bf16.gmra.mrb[0].mxu0 %v5380
    %v5780 = vpop.f32.mrb[0].mxu0
    %v5781 = vadd.f32 %v5358, %v5780
    %v5782 = vpop.f32.mrb[0].mxu0
    %v5783 = vpop.f32.mrb[0].mxu0
    %v5784 = vpop.f32.mrb[0].mxu0
    %5785 = vdwg.mxu0
    %v5786 = vpack.c.bf16 %v5417, %v5417
    %v5787 = vpack.c.bf16 %v5469, %v5469
    %v5788 = vpack.c.bf16 %v5521, %v5521
    %v5789 = vpack.c.bf16 %v5573, %v5573
    %v5790 = vpack.c.bf16 %v5625, %v5625
    %v5791 = vpack.c.bf16 %v5677, %v5677
    %v5792 = vpack.c.bf16 %v5729, %v5729
    %v5793 = vpack.c.bf16 %v5781, %v5781
    %5795 = vrot.lane.b32.xlu0 %v5786, 124
    %v5796 = vpop.permute.xlu0 %5795
    %v5798 = vsel %vm1476, %v5786, 0
    %v5801 = vsel %vm1476, %v5796, 0
    %5803 = vmatprep.subr.bf16.mxu0 0
    %5804 = vmatpush1.bf16.xpose.msra.mxu0 %v5801
    %5805 = vmatprep.subr.bf16.mxu0 0
    %5806 = vmatpush1.bf16.xpose.msra.mxu0 0
    %5807 = vmatprep.subr.bf16.mxu0 0
    %5808 = vmatpush1.bf16.xpose.msra.mxu0 0
    %5809 = vmatprep.subr.bf16.mxu0 0
    %5810 = vmatpush1.bf16.xpose.msra.mxu0 0
    %5811 = vmatprep.subr.bf16.mxu0 0
    %5812 = vmatpush1.bf16.xpose.msra.mxu0 0
    %5813 = vmatprep.subr.bf16.mxu0 0
    %5814 = vmatpush1.bf16.xpose.msra.mxu0 0
    %5815 = vmatprep.subr.bf16.mxu0 0
    %5816 = vmatpush1.bf16.xpose.msra.mxu0 0
    %5817 = vmatprep.subr.bf16.mxu0 0
    %5818 = vmatpush1.bf16.xpose.msra.mxu0 0
    %5819 = vmatprep.subr.bf16.mxu0 0
    %5820 = vmatpush1.bf16.xpose.msra.mxu0 0
    %5821 = vmatprep.subr.bf16.mxu0 0
    %5822 = vmatpush1.bf16.xpose.msra.mxu0 0
    %5823 = vmatprep.subr.bf16.mxu0 0
    %5824 = vmatpush1.bf16.xpose.msra.mxu0 0
    %5825 = vmatprep.subr.bf16.mxu0 0
    %5826 = vmatpush1.bf16.xpose.msra.mxu0 0
    %5827 = vmatprep.subr.bf16.mxu0 0
    %5828 = vmatpush1.bf16.xpose.msra.mxu0 0
    %5829 = vmatprep.subr.bf16.mxu0 0
    %5830 = vmatpush1.bf16.xpose.msra.mxu0 0
    %5831 = vmatprep.subr.bf16.mxu0 0
    %5832 = vmatpush1.bf16.xpose.msra.mxu0 0
    %5833 = vmatprep.subr.bf16.mxu0 0
    %5834 = vmatpush1.bf16.xpose.msra.mxu0 0
    %5835 = vmatprep.mubr.bf16.mxu0 0
    %5836 = vmatmul.mubr.bf16.gmra.mrb[0].mxu0 %v5798
    %v5837 = vpop.f32.mrb[0].mxu0
    %v5838 = vadd.f32 %v1471, %v5837
    %v5839 = vpop.f32.mrb[0].mxu0
    %v5840 = vpop.f32.mrb[0].mxu0
    %v5841 = vpop.f32.mrb[0].mxu0
    %5842 = vdwg.mxu0
    %5844 = vrot.lane.b32.xlu0 %v5787, 124
    %v5845 = vpop.permute.xlu0 %5844
    %v5847 = vsel %vm1476, %v5787, 0
    %v5850 = vsel %vm1476, %v5845, 0
    %5852 = vmatprep.subr.bf16.mxu0 0
    %5853 = vmatpush1.bf16.xpose.msra.mxu0 %v5850
    %5854 = vmatprep.subr.bf16.mxu0 0
    %5855 = vmatpush1.bf16.xpose.msra.mxu0 0
    %5856 = vmatprep.subr.bf16.mxu0 0
    %5857 = vmatpush1.bf16.xpose.msra.mxu0 0
    %5858 = vmatprep.subr.bf16.mxu0 0
    %5859 = vmatpush1.bf16.xpose.msra.mxu0 0
    %5860 = vmatprep.subr.bf16.mxu0 0
    %5861 = vmatpush1.bf16.xpose.msra.mxu0 0
    %5862 = vmatprep.subr.bf16.mxu0 0
    %5863 = vmatpush1.bf16.xpose.msra.mxu0 0
    %5864 = vmatprep.subr.bf16.mxu0 0
    %5865 = vmatpush1.bf16.xpose.msra.mxu0 0
    %5866 = vmatprep.subr.bf16.mxu0 0
    %5867 = vmatpush1.bf16.xpose.msra.mxu0 0
    %5868 = vmatprep.subr.bf16.mxu0 0
    %5869 = vmatpush1.bf16.xpose.msra.mxu0 0
    %5870 = vmatprep.subr.bf16.mxu0 0
    %5871 = vmatpush1.bf16.xpose.msra.mxu0 0
    %5872 = vmatprep.subr.bf16.mxu0 0
    %5873 = vmatpush1.bf16.xpose.msra.mxu0 0
    %5874 = vmatprep.subr.bf16.mxu0 0
    %5875 = vmatpush1.bf16.xpose.msra.mxu0 0
    %5876 = vmatprep.subr.bf16.mxu0 0
    %5877 = vmatpush1.bf16.xpose.msra.mxu0 0
    %5878 = vmatprep.subr.bf16.mxu0 0
    %5879 = vmatpush1.bf16.xpose.msra.mxu0 0
    %5880 = vmatprep.subr.bf16.mxu0 0
    %5881 = vmatpush1.bf16.xpose.msra.mxu0 0
    %5882 = vmatprep.subr.bf16.mxu0 0
    %5883 = vmatpush1.bf16.xpose.msra.mxu0 0
    %5884 = vmatprep.mubr.bf16.mxu0 0
    %5885 = vmatmul.mubr.bf16.gmra.mrb[0].mxu0 %v5847
    %v5886 = vpop.f32.mrb[0].mxu0
    %v5887 = vadd.f32 %v1471, %v5886
    %v5888 = vpop.f32.mrb[0].mxu0
    %v5889 = vpop.f32.mrb[0].mxu0
    %v5890 = vpop.f32.mrb[0].mxu0
    %5891 = vdwg.mxu0
    %5893 = vrot.lane.b32.xlu0 %v5788, 124
    %v5894 = vpop.permute.xlu0 %5893
    %v5896 = vsel %vm1476, %v5788, 0
    %v5899 = vsel %vm1476, %v5894, 0
    %5901 = vmatprep.subr.bf16.mxu0 0
    %5902 = vmatpush1.bf16.xpose.msra.mxu0 %v5899
    %5903 = vmatprep.subr.bf16.mxu0 0
    %5904 = vmatpush1.bf16.xpose.msra.mxu0 0
    %5905 = vmatprep.subr.bf16.mxu0 0
    %5906 = vmatpush1.bf16.xpose.msra.mxu0 0
    %5907 = vmatprep.subr.bf16.mxu0 0
    %5908 = vmatpush1.bf16.xpose.msra.mxu0 0
    %5909 = vmatprep.subr.bf16.mxu0 0
    %5910 = vmatpush1.bf16.xpose.msra.mxu0 0
    %5911 = vmatprep.subr.bf16.mxu0 0
    %5912 = vmatpush1.bf16.xpose.msra.mxu0 0
    %5913 = vmatprep.subr.bf16.mxu0 0
    %5914 = vmatpush1.bf16.xpose.msra.mxu0 0
    %5915 = vmatprep.subr.bf16.mxu0 0
    %5916 = vmatpush1.bf16.xpose.msra.mxu0 0
    %5917 = vmatprep.subr.bf16.mxu0 0
    %5918 = vmatpush1.bf16.xpose.msra.mxu0 0
    %5919 = vmatprep.subr.bf16.mxu0 0
    %5920 = vmatpush1.bf16.xpose.msra.mxu0 0
    %5921 = vmatprep.subr.bf16.mxu0 0
    %5922 = vmatpush1.bf16.xpose.msra.mxu0 0
    %5923 = vmatprep.subr.bf16.mxu0 0
    %5924 = vmatpush1.bf16.xpose.msra.mxu0 0
    %5925 = vmatprep.subr.bf16.mxu0 0
    %5926 = vmatpush1.bf16.xpose.msra.mxu0 0
    %5927 = vmatprep.subr.bf16.mxu0 0
    %5928 = vmatpush1.bf16.xpose.msra.mxu0 0
    %5929 = vmatprep.subr.bf16.mxu0 0
    %5930 = vmatpush1.bf16.xpose.msra.mxu0 0
    %5931 = vmatprep.subr.bf16.mxu0 0
    %5932 = vmatpush1.bf16.xpose.msra.mxu0 0
    %5933 = vmatprep.mubr.bf16.mxu0 0
    %5934 = vmatmul.mubr.bf16.gmra.mrb[0].mxu0 %v5896
    %v5935 = vpop.f32.mrb[0].mxu0
    %v5936 = vadd.f32 %v1471, %v5935
    %v5937 = vpop.f32.mrb[0].mxu0
    %v5938 = vpop.f32.mrb[0].mxu0
    %v5939 = vpop.f32.mrb[0].mxu0
    %5940 = vdwg.mxu0
    %5942 = vrot.lane.b32.xlu0 %v5789, 124
    %v5943 = vpop.permute.xlu0 %5942
    %v5945 = vsel %vm1476, %v5789, 0
    %v5948 = vsel %vm1476, %v5943, 0
    %5950 = vmatprep.subr.bf16.mxu0 0
    %5951 = vmatpush1.bf16.xpose.msra.mxu0 %v5948
    %5952 = vmatprep.subr.bf16.mxu0 0
    %5953 = vmatpush1.bf16.xpose.msra.mxu0 0
    %5954 = vmatprep.subr.bf16.mxu0 0
    %5955 = vmatpush1.bf16.xpose.msra.mxu0 0
    %5956 = vmatprep.subr.bf16.mxu0 0
    %5957 = vmatpush1.bf16.xpose.msra.mxu0 0
    %5958 = vmatprep.subr.bf16.mxu0 0
    %5959 = vmatpush1.bf16.xpose.msra.mxu0 0
    %5960 = vmatprep.subr.bf16.mxu0 0
    %5961 = vmatpush1.bf16.xpose.msra.mxu0 0
    %5962 = vmatprep.subr.bf16.mxu0 0
    %5963 = vmatpush1.bf16.xpose.msra.mxu0 0
    %5964 = vmatprep.subr.bf16.mxu0 0
    %5965 = vmatpush1.bf16.xpose.msra.mxu0 0
    %5966 = vmatprep.subr.bf16.mxu0 0
    %5967 = vmatpush1.bf16.xpose.msra.mxu0 0
    %5968 = vmatprep.subr.bf16.mxu0 0
    %5969 = vmatpush1.bf16.xpose.msra.mxu0 0
    %5970 = vmatprep.subr.bf16.mxu0 0
    %5971 = vmatpush1.bf16.xpose.msra.mxu0 0
    %5972 = vmatprep.subr.bf16.mxu0 0
    %5973 = vmatpush1.bf16.xpose.msra.mxu0 0
    %5974 = vmatprep.subr.bf16.mxu0 0
    %5975 = vmatpush1.bf16.xpose.msra.mxu0 0
    %5976 = vmatprep.subr.bf16.mxu0 0
    %5977 = vmatpush1.bf16.xpose.msra.mxu0 0
    %5978 = vmatprep.subr.bf16.mxu0 0
    %5979 = vmatpush1.bf16.xpose.msra.mxu0 0
    %5980 = vmatprep.subr.bf16.mxu0 0
    %5981 = vmatpush1.bf16.xpose.msra.mxu0 0
    %5982 = vmatprep.mubr.bf16.mxu0 0
    %5983 = vmatmul.mubr.bf16.gmra.mrb[0].mxu0 %v5945
    %v5984 = vpop.f32.mrb[0].mxu0
    %v5985 = vadd.f32 %v1471, %v5984
    %v5986 = vpop.f32.mrb[0].mxu0
    %v5987 = vpop.f32.mrb[0].mxu0
    %v5988 = vpop.f32.mrb[0].mxu0
    %5989 = vdwg.mxu0
    %5991 = vrot.lane.b32.xlu0 %v5790, 124
    %v5992 = vpop.permute.xlu0 %5991
    %v5994 = vsel %vm1476, %v5790, 0
    %v5997 = vsel %vm1476, %v5992, 0
    %5999 = vmatprep.subr.bf16.mxu0 0
    %6000 = vmatpush1.bf16.xpose.msra.mxu0 %v5997
    %6001 = vmatprep.subr.bf16.mxu0 0
    %6002 = vmatpush1.bf16.xpose.msra.mxu0 0
    %6003 = vmatprep.subr.bf16.mxu0 0
    %6004 = vmatpush1.bf16.xpose.msra.mxu0 0
    %6005 = vmatprep.subr.bf16.mxu0 0
    %6006 = vmatpush1.bf16.xpose.msra.mxu0 0
    %6007 = vmatprep.subr.bf16.mxu0 0
    %6008 = vmatpush1.bf16.xpose.msra.mxu0 0
    %6009 = vmatprep.subr.bf16.mxu0 0
    %6010 = vmatpush1.bf16.xpose.msra.mxu0 0
    %6011 = vmatprep.subr.bf16.mxu0 0
    %6012 = vmatpush1.bf16.xpose.msra.mxu0 0
    %6013 = vmatprep.subr.bf16.mxu0 0
    %6014 = vmatpush1.bf16.xpose.msra.mxu0 0
    %6015 = vmatprep.subr.bf16.mxu0 0
    %6016 = vmatpush1.bf16.xpose.msra.mxu0 0
    %6017 = vmatprep.subr.bf16.mxu0 0
    %6018 = vmatpush1.bf16.xpose.msra.mxu0 0
    %6019 = vmatprep.subr.bf16.mxu0 0
    %6020 = vmatpush1.bf16.xpose.msra.mxu0 0
    %6021 = vmatprep.subr.bf16.mxu0 0
    %6022 = vmatpush1.bf16.xpose.msra.mxu0 0
    %6023 = vmatprep.subr.bf16.mxu0 0
    %6024 = vmatpush1.bf16.xpose.msra.mxu0 0
    %6025 = vmatprep.subr.bf16.mxu0 0
    %6026 = vmatpush1.bf16.xpose.msra.mxu0 0
    %6027 = vmatprep.subr.bf16.mxu0 0
    %6028 = vmatpush1.bf16.xpose.msra.mxu0 0
    %6029 = vmatprep.subr.bf16.mxu0 0
    %6030 = vmatpush1.bf16.xpose.msra.mxu0 0
    %6031 = vmatprep.mubr.bf16.mxu0 0
    %6032 = vmatmul.mubr.bf16.gmra.mrb[0].mxu0 %v5994
    %v6033 = vpop.f32.mrb[0].mxu0
    %v6034 = vadd.f32 %v1471, %v6033
    %v6035 = vpop.f32.mrb[0].mxu0
    %v6036 = vpop.f32.mrb[0].mxu0
    %v6037 = vpop.f32.mrb[0].mxu0
    %6038 = vdwg.mxu0
    %6040 = vrot.lane.b32.xlu0 %v5791, 124
    %v6041 = vpop.permute.xlu0 %6040
    %v6043 = vsel %vm1476, %v5791, 0
    %v6046 = vsel %vm1476, %v6041, 0
    %6048 = vmatprep.subr.bf16.mxu0 0
    %6049 = vmatpush1.bf16.xpose.msra.mxu0 %v6046
    %6050 = vmatprep.subr.bf16.mxu0 0
    %6051 = vmatpush1.bf16.xpose.msra.mxu0 0
    %6052 = vmatprep.subr.bf16.mxu0 0
    %6053 = vmatpush1.bf16.xpose.msra.mxu0 0
    %6054 = vmatprep.subr.bf16.mxu0 0
    %6055 = vmatpush1.bf16.xpose.msra.mxu0 0
    %6056 = vmatprep.subr.bf16.mxu0 0
    %6057 = vmatpush1.bf16.xpose.msra.mxu0 0
    %6058 = vmatprep.subr.bf16.mxu0 0
    %6059 = vmatpush1.bf16.xpose.msra.mxu0 0
    %6060 = vmatprep.subr.bf16.mxu0 0
    %6061 = vmatpush1.bf16.xpose.msra.mxu0 0
    %6062 = vmatprep.subr.bf16.mxu0 0
    %6063 = vmatpush1.bf16.xpose.msra.mxu0 0
    %6064 = vmatprep.subr.bf16.mxu0 0
    %6065 = vmatpush1.bf16.xpose.msra.mxu0 0
    %6066 = vmatprep.subr.bf16.mxu0 0
    %6067 = vmatpush1.bf16.xpose.msra.mxu0 0
    %6068 = vmatprep.subr.bf16.mxu0 0
    %6069 = vmatpush1.bf16.xpose.msra.mxu0 0
    %6070 = vmatprep.subr.bf16.mxu0 0
    %6071 = vmatpush1.bf16.xpose.msra.mxu0 0
    %6072 = vmatprep.subr.bf16.mxu0 0
    %6073 = vmatpush1.bf16.xpose.msra.mxu0 0
    %6074 = vmatprep.subr.bf16.mxu0 0
    %6075 = vmatpush1.bf16.xpose.msra.mxu0 0
    %6076 = vmatprep.subr.bf16.mxu0 0
    %6077 = vmatpush1.bf16.xpose.msra.mxu0 0
    %6078 = vmatprep.subr.bf16.mxu0 0
    %6079 = vmatpush1.bf16.xpose.msra.mxu0 0
    %6080 = vmatprep.mubr.bf16.mxu0 0
    %6081 = vmatmul.mubr.bf16.gmra.mrb[0].mxu0 %v6043
    %v6082 = vpop.f32.mrb[0].mxu0
    %v6083 = vadd.f32 %v1471, %v6082
    %v6084 = vpop.f32.mrb[0].mxu0
    %v6085 = vpop.f32.mrb[0].mxu0
    %v6086 = vpop.f32.mrb[0].mxu0
    %6087 = vdwg.mxu0
    %6089 = vrot.lane.b32.xlu0 %v5792, 124
    %v6090 = vpop.permute.xlu0 %6089
    %v6092 = vsel %vm1476, %v5792, 0
    %v6095 = vsel %vm1476, %v6090, 0
    %6097 = vmatprep.subr.bf16.mxu0 0
    %6098 = vmatpush1.bf16.xpose.msra.mxu0 %v6095
    %6099 = vmatprep.subr.bf16.mxu0 0
    %6100 = vmatpush1.bf16.xpose.msra.mxu0 0
    %6101 = vmatprep.subr.bf16.mxu0 0
    %6102 = vmatpush1.bf16.xpose.msra.mxu0 0
    %6103 = vmatprep.subr.bf16.mxu0 0
    %6104 = vmatpush1.bf16.xpose.msra.mxu0 0
    %6105 = vmatprep.subr.bf16.mxu0 0
    %6106 = vmatpush1.bf16.xpose.msra.mxu0 0
    %6107 = vmatprep.subr.bf16.mxu0 0
    %6108 = vmatpush1.bf16.xpose.msra.mxu0 0
    %6109 = vmatprep.subr.bf16.mxu0 0
    %6110 = vmatpush1.bf16.xpose.msra.mxu0 0
    %6111 = vmatprep.subr.bf16.mxu0 0
    %6112 = vmatpush1.bf16.xpose.msra.mxu0 0
    %6113 = vmatprep.subr.bf16.mxu0 0
    %6114 = vmatpush1.bf16.xpose.msra.mxu0 0
    %6115 = vmatprep.subr.bf16.mxu0 0
    %6116 = vmatpush1.bf16.xpose.msra.mxu0 0
    %6117 = vmatprep.subr.bf16.mxu0 0
    %6118 = vmatpush1.bf16.xpose.msra.mxu0 0
    %6119 = vmatprep.subr.bf16.mxu0 0
    %6120 = vmatpush1.bf16.xpose.msra.mxu0 0
    %6121 = vmatprep.subr.bf16.mxu0 0
    %6122 = vmatpush1.bf16.xpose.msra.mxu0 0
    %6123 = vmatprep.subr.bf16.mxu0 0
    %6124 = vmatpush1.bf16.xpose.msra.mxu0 0
    %6125 = vmatprep.subr.bf16.mxu0 0
    %6126 = vmatpush1.bf16.xpose.msra.mxu0 0
    %6127 = vmatprep.subr.bf16.mxu0 0
    %6128 = vmatpush1.bf16.xpose.msra.mxu0 0
    %6129 = vmatprep.mubr.bf16.mxu0 0
    %6130 = vmatmul.mubr.bf16.gmra.mrb[0].mxu0 %v6092
    %v6131 = vpop.f32.mrb[0].mxu0
    %v6132 = vadd.f32 %v1471, %v6131
    %v6133 = vpop.f32.mrb[0].mxu0
    %v6134 = vpop.f32.mrb[0].mxu0
    %v6135 = vpop.f32.mrb[0].mxu0
    %6136 = vdwg.mxu0
    %6138 = vrot.lane.b32.xlu0 %v5793, 124
    %v6139 = vpop.permute.xlu0 %6138
    %v6141 = vsel %vm1476, %v5793, 0
    %v6144 = vsel %vm1476, %v6139, 0
    %6146 = vmatprep.subr.bf16.mxu0 0
    %6147 = vmatpush1.bf16.xpose.msra.mxu0 %v6144
    %6148 = vmatprep.subr.bf16.mxu0 0
    %6149 = vmatpush1.bf16.xpose.msra.mxu0 0
    %6150 = vmatprep.subr.bf16.mxu0 0
    %6151 = vmatpush1.bf16.xpose.msra.mxu0 0
    %6152 = vmatprep.subr.bf16.mxu0 0
    %6153 = vmatpush1.bf16.xpose.msra.mxu0 0
    %6154 = vmatprep.subr.bf16.mxu0 0
    %6155 = vmatpush1.bf16.xpose.msra.mxu0 0
    %6156 = vmatprep.subr.bf16.mxu0 0
    %6157 = vmatpush1.bf16.xpose.msra.mxu0 0
    %6158 = vmatprep.subr.bf16.mxu0 0
    %6159 = vmatpush1.bf16.xpose.msra.mxu0 0
    %6160 = vmatprep.subr.bf16.mxu0 0
    %6161 = vmatpush1.bf16.xpose.msra.mxu0 0
    %6162 = vmatprep.subr.bf16.mxu0 0
    %6163 = vmatpush1.bf16.xpose.msra.mxu0 0
    %6164 = vmatprep.subr.bf16.mxu0 0
    %6165 = vmatpush1.bf16.xpose.msra.mxu0 0
    %6166 = vmatprep.subr.bf16.mxu0 0
    %6167 = vmatpush1.bf16.xpose.msra.mxu0 0
    %6168 = vmatprep.subr.bf16.mxu0 0
    %6169 = vmatpush1.bf16.xpose.msra.mxu0 0
    %6170 = vmatprep.subr.bf16.mxu0 0
    %6171 = vmatpush1.bf16.xpose.msra.mxu0 0
    %6172 = vmatprep.subr.bf16.mxu0 0
    %6173 = vmatpush1.bf16.xpose.msra.mxu0 0
    %6174 = vmatprep.subr.bf16.mxu0 0
    %6175 = vmatpush1.bf16.xpose.msra.mxu0 0
    %6176 = vmatprep.subr.bf16.mxu0 0
    %6177 = vmatpush1.bf16.xpose.msra.mxu0 0
    %6178 = vmatprep.mubr.bf16.mxu0 0
    %6179 = vmatmul.mubr.bf16.gmra.mrb[0].mxu0 %v6141
    %v6180 = vpop.f32.mrb[0].mxu0
    %v6181 = vadd.f32 %v1471, %v6180
    %v6182 = vpop.f32.mrb[0].mxu0
    %v6183 = vpop.f32.mrb[0].mxu0
    %v6184 = vpop.f32.mrb[0].mxu0
    %6185 = vdwg.mxu0
    %v6186 = vsel %vm1866, %v5838, -inf
    %6187 = vmax.xlane.f32.xlu0 %v6186
    %v6188 = vpop.xlane.xlu0 %6187
    %v6189 = vsel %vm1866, %v5887, -inf
    %6190 = vmax.xlane.f32.xlu0 %v6189
    %v6191 = vpop.xlane.xlu0 %6190
    %v6192 = vsel %vm1866, %v5936, -inf
    %6193 = vmax.xlane.f32.xlu0 %v6192
    %v6194 = vpop.xlane.xlu0 %6193
    %v6195 = vsel %vm1866, %v5985, -inf
    %6196 = vmax.xlane.f32.xlu0 %v6195
    %v6197 = vpop.xlane.xlu0 %6196
    %v6198 = vsel %vm1866, %v6034, -inf
    %6199 = vmax.xlane.f32.xlu0 %v6198
    %v6200 = vpop.xlane.xlu0 %6199
    %v6201 = vsel %vm1866, %v6083, -inf
    %6202 = vmax.xlane.f32.xlu0 %v6201
    %v6203 = vpop.xlane.xlu0 %6202
    %v6204 = vsel %vm1866, %v6132, -inf
    %6205 = vmax.xlane.f32.xlu0 %v6204
    %v6206 = vpop.xlane.xlu0 %6205
    %v6207 = vsel %vm1866, %v6181, -inf
    %6208 = vmax.xlane.f32.xlu0 %v6207
    %v6209 = vpop.xlane.xlu0 %6208
    %v6210 = vsub.f32 %v5838, %v6188
    %v6211 = vsub.f32 %v5887, %v6191
    %v6212 = vsub.f32 %v5936, %v6194
    %v6213 = vsub.f32 %v5985, %v6197
    %v6214 = vsub.f32 %v6034, %v6200
    %v6215 = vsub.f32 %v6083, %v6203
    %v6216 = vsub.f32 %v6132, %v6206
    %v6217 = vsub.f32 %v6181, %v6209
    %v6218 = vmul.f32 %v6210, 1.442695
    %v6219 = vpow.pop %v6218
    %v6220 = vmul.f32 %v6211, 1.442695
    %v6221 = vpow.pop %v6220
    %v6222 = vmul.f32 %v6212, 1.442695
    %v6223 = vpow.pop %v6222
    %v6224 = vmul.f32 %v6213, 1.442695
    %v6225 = vpow.pop %v6224
    %v6226 = vmul.f32 %v6214, 1.442695
    %v6227 = vpow.pop %v6226
    %v6228 = vmul.f32 %v6215, 1.442695
    %v6229 = vpow.pop %v6228
    %v6230 = vmul.f32 %v6216, 1.442695
    %v6231 = vpow.pop %v6230
    %v6232 = vmul.f32 %v6217, 1.442695
    %v6233 = vpow.pop %v6232
    %v6234 = vsel %vm1866, %v6219, 0.0
    %6235 = vadd.xlane.f32.xlu0 %v6234
    %v6236 = vpop.xlane.xlu0 %6235
    %v6237 = vsel %vm1866, %v6221, 0.0
    %6238 = vadd.xlane.f32.xlu0 %v6237
    %v6239 = vpop.xlane.xlu0 %6238
    %v6240 = vsel %vm1866, %v6223, 0.0
    %6241 = vadd.xlane.f32.xlu0 %v6240
    %v6242 = vpop.xlane.xlu0 %6241
    %v6243 = vsel %vm1866, %v6225, 0.0
    %6244 = vadd.xlane.f32.xlu0 %v6243
    %v6245 = vpop.xlane.xlu0 %6244
    %v6246 = vsel %vm1866, %v6227, 0.0
    %6247 = vadd.xlane.f32.xlu0 %v6246
    %v6248 = vpop.xlane.xlu0 %6247
    %v6249 = vsel %vm1866, %v6229, 0.0
    %6250 = vadd.xlane.f32.xlu0 %v6249
    %v6251 = vpop.xlane.xlu0 %6250
    %v6252 = vsel %vm1866, %v6231, 0.0
    %6253 = vadd.xlane.f32.xlu0 %v6252
    %v6254 = vpop.xlane.xlu0 %6253
    %v6255 = vsel %vm1866, %v6233, 0.0
    %6256 = vadd.xlane.f32.xlu0 %v6255
    %v6257 = vpop.xlane.xlu0 %6256
    %v6258 = vrcp.pop %v6236
    %v6259 = vrcp.pop %v6239
    %v6260 = vrcp.pop %v6242
    %v6261 = vrcp.pop %v6245
    %v6262 = vrcp.pop %v6248
    %v6263 = vrcp.pop %v6251
    %v6264 = vrcp.pop %v6254
    %v6265 = vrcp.pop %v6257
    %v6266 = vmul.f32 %v6219, %v6258
    %v6267 = vmul.f32 %v6221, %v6259
    %v6268 = vmul.f32 %v6223, %v6260
    %v6269 = vmul.f32 %v6225, %v6261
    %v6270 = vmul.f32 %v6227, %v6262
    %v6271 = vmul.f32 %v6229, %v6263
    %v6272 = vmul.f32 %v6231, %v6264
    %v6273 = vmul.f32 %v6233, %v6265
    %v6274 = vpack.c.bf16 %v6266, %v6266
    %v6275 = vpack.c.bf16 %v6267, %v6267
    %v6276 = vpack.c.bf16 %v6268, %v6268
    %v6277 = vpack.c.bf16 %v6269, %v6269
    %v6278 = vpack.c.bf16 %v6270, %v6270
    %v6279 = vpack.c.bf16 %v6271, %v6271
    %v6280 = vpack.c.bf16 %v6272, %v6272
    %v6281 = vpack.c.bf16 %v6273, %v6273
    %6282 = vrot.lane.b32.xlu0 %v5786, 120
    %v6283 = vpop.permute.xlu0 %6282
    %v6285 = vsel %vm1965, %v6274, 0
    %v6288 = vsel %vm166, %v6283, 0
    %6290 = vmatprep.subr.bf16.mxu0 0
    %6291 = vmatpush1.bf16.msra.mxu0 %v6288
    %6292 = vmatprep.subr.bf16.mxu0 0
    %6293 = vmatpush1.bf16.msra.mxu0 0
    %6294 = vmatprep.subr.bf16.mxu0 0
    %6295 = vmatpush1.bf16.msra.mxu0 0
    %6296 = vmatprep.subr.bf16.mxu0 0
    %6297 = vmatpush1.bf16.msra.mxu0 0
    %6298 = vmatprep.subr.bf16.mxu0 0
    %6299 = vmatpush1.bf16.msra.mxu0 0
    %6300 = vmatprep.subr.bf16.mxu0 0
    %6301 = vmatpush1.bf16.msra.mxu0 0
    %6302 = vmatprep.subr.bf16.mxu0 0
    %6303 = vmatpush1.bf16.msra.mxu0 0
    %6304 = vmatprep.subr.bf16.mxu0 0
    %6305 = vmatpush1.bf16.msra.mxu0 0
    %6306 = vmatprep.subr.bf16.mxu0 0
    %6307 = vmatpush1.bf16.msra.mxu0 0
    %6308 = vmatprep.subr.bf16.mxu0 0
    %6309 = vmatpush1.bf16.msra.mxu0 0
    %6310 = vmatprep.subr.bf16.mxu0 0
    %6311 = vmatpush1.bf16.msra.mxu0 0
    %6312 = vmatprep.subr.bf16.mxu0 0
    %6313 = vmatpush1.bf16.msra.mxu0 0
    %6314 = vmatprep.subr.bf16.mxu0 0
    %6315 = vmatpush1.bf16.msra.mxu0 0
    %6316 = vmatprep.subr.bf16.mxu0 0
    %6317 = vmatpush1.bf16.msra.mxu0 0
    %6318 = vmatprep.subr.bf16.mxu0 0
    %6319 = vmatpush1.bf16.msra.mxu0 0
    %6320 = vmatprep.subr.bf16.mxu0 0
    %6321 = vmatpush1.bf16.msra.mxu0 0
    %6322 = vmatprep.mubr.bf16.mxu0 0
    %6323 = vmatmul.mubr.bf16.gmra.mrb[0].mxu0 %v6285
    %v6324 = vpop.f32.mrb[0].mxu0
    %v6325 = vadd.f32 0.0, %v6324
    %v6326 = vpop.f32.mrb[0].mxu0
    %v6327 = vpop.f32.mrb[0].mxu0
    %v6328 = vpop.f32.mrb[0].mxu0
    %6329 = vdwg.mxu0
    %6330 = vrot.lane.b32.xlu0 %v5787, 120
    %v6331 = vpop.permute.xlu0 %6330
    %v6333 = vsel %vm1965, %v6275, 0
    %v6336 = vsel %vm166, %v6331, 0
    %6338 = vmatprep.subr.bf16.mxu0 0
    %6339 = vmatpush1.bf16.msra.mxu0 %v6336
    %6340 = vmatprep.subr.bf16.mxu0 0
    %6341 = vmatpush1.bf16.msra.mxu0 0
    %6342 = vmatprep.subr.bf16.mxu0 0
    %6343 = vmatpush1.bf16.msra.mxu0 0
    %6344 = vmatprep.subr.bf16.mxu0 0
    %6345 = vmatpush1.bf16.msra.mxu0 0
    %6346 = vmatprep.subr.bf16.mxu0 0
    %6347 = vmatpush1.bf16.msra.mxu0 0
    %6348 = vmatprep.subr.bf16.mxu0 0
    %6349 = vmatpush1.bf16.msra.mxu0 0
    %6350 = vmatprep.subr.bf16.mxu0 0
    %6351 = vmatpush1.bf16.msra.mxu0 0
    %6352 = vmatprep.subr.bf16.mxu0 0
    %6353 = vmatpush1.bf16.msra.mxu0 0
    %6354 = vmatprep.subr.bf16.mxu0 0
    %6355 = vmatpush1.bf16.msra.mxu0 0
    %6356 = vmatprep.subr.bf16.mxu0 0
    %6357 = vmatpush1.bf16.msra.mxu0 0
    %6358 = vmatprep.subr.bf16.mxu0 0
    %6359 = vmatpush1.bf16.msra.mxu0 0
    %6360 = vmatprep.subr.bf16.mxu0 0
    %6361 = vmatpush1.bf16.msra.mxu0 0
    %6362 = vmatprep.subr.bf16.mxu0 0
    %6363 = vmatpush1.bf16.msra.mxu0 0
    %6364 = vmatprep.subr.bf16.mxu0 0
    %6365 = vmatpush1.bf16.msra.mxu0 0
    %6366 = vmatprep.subr.bf16.mxu0 0
    %6367 = vmatpush1.bf16.msra.mxu0 0
    %6368 = vmatprep.subr.bf16.mxu0 0
    %6369 = vmatpush1.bf16.msra.mxu0 0
    %6370 = vmatprep.mubr.bf16.mxu0 0
    %6371 = vmatmul.mubr.bf16.gmra.mrb[0].mxu0 %v6333
    %v6372 = vpop.f32.mrb[0].mxu0
    %v6373 = vadd.f32 0.0, %v6372
    %v6374 = vpop.f32.mrb[0].mxu0
    %v6375 = vpop.f32.mrb[0].mxu0
    %v6376 = vpop.f32.mrb[0].mxu0
    %6377 = vdwg.mxu0
    %6378 = vrot.lane.b32.xlu0 %v5788, 120
    %v6379 = vpop.permute.xlu0 %6378
    %v6381 = vsel %vm1965, %v6276, 0
    %v6384 = vsel %vm166, %v6379, 0
    %6386 = vmatprep.subr.bf16.mxu0 0
    %6387 = vmatpush1.bf16.msra.mxu0 %v6384
    %6388 = vmatprep.subr.bf16.mxu0 0
    %6389 = vmatpush1.bf16.msra.mxu0 0
    %6390 = vmatprep.subr.bf16.mxu0 0
    %6391 = vmatpush1.bf16.msra.mxu0 0
    %6392 = vmatprep.subr.bf16.mxu0 0
    %6393 = vmatpush1.bf16.msra.mxu0 0
    %6394 = vmatprep.subr.bf16.mxu0 0
    %6395 = vmatpush1.bf16.msra.mxu0 0
    %6396 = vmatprep.subr.bf16.mxu0 0
    %6397 = vmatpush1.bf16.msra.mxu0 0
    %6398 = vmatprep.subr.bf16.mxu0 0
    %6399 = vmatpush1.bf16.msra.mxu0 0
    %6400 = vmatprep.subr.bf16.mxu0 0
    %6401 = vmatpush1.bf16.msra.mxu0 0
    %6402 = vmatprep.subr.bf16.mxu0 0
    %6403 = vmatpush1.bf16.msra.mxu0 0
    %6404 = vmatprep.subr.bf16.mxu0 0
    %6405 = vmatpush1.bf16.msra.mxu0 0
    %6406 = vmatprep.subr.bf16.mxu0 0
    %6407 = vmatpush1.bf16.msra.mxu0 0
    %6408 = vmatprep.subr.bf16.mxu0 0
    %6409 = vmatpush1.bf16.msra.mxu0 0
    %6410 = vmatprep.subr.bf16.mxu0 0
    %6411 = vmatpush1.bf16.msra.mxu0 0
    %6412 = vmatprep.subr.bf16.mxu0 0
    %6413 = vmatpush1.bf16.msra.mxu0 0
    %6414 = vmatprep.subr.bf16.mxu0 0
    %6415 = vmatpush1.bf16.msra.mxu0 0
    %6416 = vmatprep.subr.bf16.mxu0 0
    %6417 = vmatpush1.bf16.msra.mxu0 0
    %6418 = vmatprep.mubr.bf16.mxu0 0
    %6419 = vmatmul.mubr.bf16.gmra.mrb[0].mxu0 %v6381
    %v6420 = vpop.f32.mrb[0].mxu0
    %v6421 = vadd.f32 0.0, %v6420
    %v6422 = vpop.f32.mrb[0].mxu0
    %v6423 = vpop.f32.mrb[0].mxu0
    %v6424 = vpop.f32.mrb[0].mxu0
    %6425 = vdwg.mxu0
    %6426 = vrot.lane.b32.xlu0 %v5789, 120
    %v6427 = vpop.permute.xlu0 %6426
    %v6429 = vsel %vm1965, %v6277, 0
    %v6432 = vsel %vm166, %v6427, 0
    %6434 = vmatprep.subr.bf16.mxu0 0
    %6435 = vmatpush1.bf16.msra.mxu0 %v6432
    %6436 = vmatprep.subr.bf16.mxu0 0
    %6437 = vmatpush1.bf16.msra.mxu0 0
    %6438 = vmatprep.subr.bf16.mxu0 0
    %6439 = vmatpush1.bf16.msra.mxu0 0
    %6440 = vmatprep.subr.bf16.mxu0 0
    %6441 = vmatpush1.bf16.msra.mxu0 0
    %6442 = vmatprep.subr.bf16.mxu0 0
    %6443 = vmatpush1.bf16.msra.mxu0 0
    %6444 = vmatprep.subr.bf16.mxu0 0
    %6445 = vmatpush1.bf16.msra.mxu0 0
    %6446 = vmatprep.subr.bf16.mxu0 0
    %6447 = vmatpush1.bf16.msra.mxu0 0
    %6448 = vmatprep.subr.bf16.mxu0 0
    %6449 = vmatpush1.bf16.msra.mxu0 0
    %6450 = vmatprep.subr.bf16.mxu0 0
    %6451 = vmatpush1.bf16.msra.mxu0 0
    %6452 = vmatprep.subr.bf16.mxu0 0
    %6453 = vmatpush1.bf16.msra.mxu0 0
    %6454 = vmatprep.subr.bf16.mxu0 0
    %6455 = vmatpush1.bf16.msra.mxu0 0
    %6456 = vmatprep.subr.bf16.mxu0 0
    %6457 = vmatpush1.bf16.msra.mxu0 0
    %6458 = vmatprep.subr.bf16.mxu0 0
    %6459 = vmatpush1.bf16.msra.mxu0 0
    %6460 = vmatprep.subr.bf16.mxu0 0
    %6461 = vmatpush1.bf16.msra.mxu0 0
    %6462 = vmatprep.subr.bf16.mxu0 0
    %6463 = vmatpush1.bf16.msra.mxu0 0
    %6464 = vmatprep.subr.bf16.mxu0 0
    %6465 = vmatpush1.bf16.msra.mxu0 0
    %6466 = vmatprep.mubr.bf16.mxu0 0
    %6467 = vmatmul.mubr.bf16.gmra.mrb[0].mxu0 %v6429
    %v6468 = vpop.f32.mrb[0].mxu0
    %v6469 = vadd.f32 0.0, %v6468
    %v6470 = vpop.f32.mrb[0].mxu0
    %v6471 = vpop.f32.mrb[0].mxu0
    %v6472 = vpop.f32.mrb[0].mxu0
    %6473 = vdwg.mxu0
    %6474 = vrot.lane.b32.xlu0 %v5790, 120
    %v6475 = vpop.permute.xlu0 %6474
    %v6477 = vsel %vm1965, %v6278, 0
    %v6480 = vsel %vm166, %v6475, 0
    %6482 = vmatprep.subr.bf16.mxu0 0
    %6483 = vmatpush1.bf16.msra.mxu0 %v6480
    %6484 = vmatprep.subr.bf16.mxu0 0
    %6485 = vmatpush1.bf16.msra.mxu0 0
    %6486 = vmatprep.subr.bf16.mxu0 0
    %6487 = vmatpush1.bf16.msra.mxu0 0
    %6488 = vmatprep.subr.bf16.mxu0 0
    %6489 = vmatpush1.bf16.msra.mxu0 0
    %6490 = vmatprep.subr.bf16.mxu0 0
    %6491 = vmatpush1.bf16.msra.mxu0 0
    %6492 = vmatprep.subr.bf16.mxu0 0
    %6493 = vmatpush1.bf16.msra.mxu0 0
    %6494 = vmatprep.subr.bf16.mxu0 0
    %6495 = vmatpush1.bf16.msra.mxu0 0
    %6496 = vmatprep.subr.bf16.mxu0 0
    %6497 = vmatpush1.bf16.msra.mxu0 0
    %6498 = vmatprep.subr.bf16.mxu0 0
    %6499 = vmatpush1.bf16.msra.mxu0 0
    %6500 = vmatprep.subr.bf16.mxu0 0
    %6501 = vmatpush1.bf16.msra.mxu0 0
    %6502 = vmatprep.subr.bf16.mxu0 0
    %6503 = vmatpush1.bf16.msra.mxu0 0
    %6504 = vmatprep.subr.bf16.mxu0 0
    %6505 = vmatpush1.bf16.msra.mxu0 0
    %6506 = vmatprep.subr.bf16.mxu0 0
    %6507 = vmatpush1.bf16.msra.mxu0 0
    %6508 = vmatprep.subr.bf16.mxu0 0
    %6509 = vmatpush1.bf16.msra.mxu0 0
    %6510 = vmatprep.subr.bf16.mxu0 0
    %6511 = vmatpush1.bf16.msra.mxu0 0
    %6512 = vmatprep.subr.bf16.mxu0 0
    %6513 = vmatpush1.bf16.msra.mxu0 0
    %6514 = vmatprep.mubr.bf16.mxu0 0
    %6515 = vmatmul.mubr.bf16.gmra.mrb[0].mxu0 %v6477
    %v6516 = vpop.f32.mrb[0].mxu0
    %v6517 = vadd.f32 0.0, %v6516
    %v6518 = vpop.f32.mrb[0].mxu0
    %v6519 = vpop.f32.mrb[0].mxu0
    %v6520 = vpop.f32.mrb[0].mxu0
    %6521 = vdwg.mxu0
    %6522 = vrot.lane.b32.xlu0 %v5791, 120
    %v6523 = vpop.permute.xlu0 %6522
    %v6525 = vsel %vm1965, %v6279, 0
    %v6528 = vsel %vm166, %v6523, 0
    %6530 = vmatprep.subr.bf16.mxu0 0
    %6531 = vmatpush1.bf16.msra.mxu0 %v6528
    %6532 = vmatprep.subr.bf16.mxu0 0
    %6533 = vmatpush1.bf16.msra.mxu0 0
    %6534 = vmatprep.subr.bf16.mxu0 0
    %6535 = vmatpush1.bf16.msra.mxu0 0
    %6536 = vmatprep.subr.bf16.mxu0 0
    %6537 = vmatpush1.bf16.msra.mxu0 0
    %6538 = vmatprep.subr.bf16.mxu0 0
    %6539 = vmatpush1.bf16.msra.mxu0 0
    %6540 = vmatprep.subr.bf16.mxu0 0
    %6541 = vmatpush1.bf16.msra.mxu0 0
    %6542 = vmatprep.subr.bf16.mxu0 0
    %6543 = vmatpush1.bf16.msra.mxu0 0
    %6544 = vmatprep.subr.bf16.mxu0 0
    %6545 = vmatpush1.bf16.msra.mxu0 0
    %6546 = vmatprep.subr.bf16.mxu0 0
    %6547 = vmatpush1.bf16.msra.mxu0 0
    %6548 = vmatprep.subr.bf16.mxu0 0
    %6549 = vmatpush1.bf16.msra.mxu0 0
    %6550 = vmatprep.subr.bf16.mxu0 0
    %6551 = vmatpush1.bf16.msra.mxu0 0
    %6552 = vmatprep.subr.bf16.mxu0 0
    %6553 = vmatpush1.bf16.msra.mxu0 0
    %6554 = vmatprep.subr.bf16.mxu0 0
    %6555 = vmatpush1.bf16.msra.mxu0 0
    %6556 = vmatprep.subr.bf16.mxu0 0
    %6557 = vmatpush1.bf16.msra.mxu0 0
    %6558 = vmatprep.subr.bf16.mxu0 0
    %6559 = vmatpush1.bf16.msra.mxu0 0
    %6560 = vmatprep.subr.bf16.mxu0 0
    %6561 = vmatpush1.bf16.msra.mxu0 0
    %6562 = vmatprep.mubr.bf16.mxu0 0
    %6563 = vmatmul.mubr.bf16.gmra.mrb[0].mxu0 %v6525
    %v6564 = vpop.f32.mrb[0].mxu0
    %v6565 = vadd.f32 0.0, %v6564
    %v6566 = vpop.f32.mrb[0].mxu0
    %v6567 = vpop.f32.mrb[0].mxu0
    %v6568 = vpop.f32.mrb[0].mxu0
    %6569 = vdwg.mxu0
    %6570 = vrot.lane.b32.xlu0 %v5792, 120
    %v6571 = vpop.permute.xlu0 %6570
    %v6573 = vsel %vm1965, %v6280, 0
    %v6576 = vsel %vm166, %v6571, 0
    %6578 = vmatprep.subr.bf16.mxu0 0
    %6579 = vmatpush1.bf16.msra.mxu0 %v6576
    %6580 = vmatprep.subr.bf16.mxu0 0
    %6581 = vmatpush1.bf16.msra.mxu0 0
    %6582 = vmatprep.subr.bf16.mxu0 0
    %6583 = vmatpush1.bf16.msra.mxu0 0
    %6584 = vmatprep.subr.bf16.mxu0 0
    %6585 = vmatpush1.bf16.msra.mxu0 0
    %6586 = vmatprep.subr.bf16.mxu0 0
    %6587 = vmatpush1.bf16.msra.mxu0 0
    %6588 = vmatprep.subr.bf16.mxu0 0
    %6589 = vmatpush1.bf16.msra.mxu0 0
    %6590 = vmatprep.subr.bf16.mxu0 0
    %6591 = vmatpush1.bf16.msra.mxu0 0
    %6592 = vmatprep.subr.bf16.mxu0 0
    %6593 = vmatpush1.bf16.msra.mxu0 0
    %6594 = vmatprep.subr.bf16.mxu0 0
    %6595 = vmatpush1.bf16.msra.mxu0 0
    %6596 = vmatprep.subr.bf16.mxu0 0
    %6597 = vmatpush1.bf16.msra.mxu0 0
    %6598 = vmatprep.subr.bf16.mxu0 0
    %6599 = vmatpush1.bf16.msra.mxu0 0
    %6600 = vmatprep.subr.bf16.mxu0 0
    %6601 = vmatpush1.bf16.msra.mxu0 0
    %6602 = vmatprep.subr.bf16.mxu0 0
    %6603 = vmatpush1.bf16.msra.mxu0 0
    %6604 = vmatprep.subr.bf16.mxu0 0
    %6605 = vmatpush1.bf16.msra.mxu0 0
    %6606 = vmatprep.subr.bf16.mxu0 0
    %6607 = vmatpush1.bf16.msra.mxu0 0
    %6608 = vmatprep.subr.bf16.mxu0 0
    %6609 = vmatpush1.bf16.msra.mxu0 0
    %6610 = vmatprep.mubr.bf16.mxu0 0
    %6611 = vmatmul.mubr.bf16.gmra.mrb[0].mxu0 %v6573
    %v6612 = vpop.f32.mrb[0].mxu0
    %v6613 = vadd.f32 0.0, %v6612
    %v6614 = vpop.f32.mrb[0].mxu0
    %v6615 = vpop.f32.mrb[0].mxu0
    %v6616 = vpop.f32.mrb[0].mxu0
    %6617 = vdwg.mxu0
    %6618 = vrot.lane.b32.xlu0 %v5793, 120
    %v6619 = vpop.permute.xlu0 %6618
    %v6621 = vsel %vm1965, %v6281, 0
    %v6624 = vsel %vm166, %v6619, 0
    %6626 = vmatprep.subr.bf16.mxu0 0
    %6627 = vmatpush1.bf16.msra.mxu0 %v6624
    %6628 = vmatprep.subr.bf16.mxu0 0
    %6629 = vmatpush1.bf16.msra.mxu0 0
    %6630 = vmatprep.subr.bf16.mxu0 0
    %6631 = vmatpush1.bf16.msra.mxu0 0
    %6632 = vmatprep.subr.bf16.mxu0 0
    %6633 = vmatpush1.bf16.msra.mxu0 0
    %6634 = vmatprep.subr.bf16.mxu0 0
    %6635 = vmatpush1.bf16.msra.mxu0 0
    %6636 = vmatprep.subr.bf16.mxu0 0
    %6637 = vmatpush1.bf16.msra.mxu0 0
    %6638 = vmatprep.subr.bf16.mxu0 0
    %6639 = vmatpush1.bf16.msra.mxu0 0
    %6640 = vmatprep.subr.bf16.mxu0 0
    %6641 = vmatpush1.bf16.msra.mxu0 0
    %6642 = vmatprep.subr.bf16.mxu0 0
    %6643 = vmatpush1.bf16.msra.mxu0 0
    %6644 = vmatprep.subr.bf16.mxu0 0
    %6645 = vmatpush1.bf16.msra.mxu0 0
    %6646 = vmatprep.subr.bf16.mxu0 0
    %6647 = vmatpush1.bf16.msra.mxu0 0
    %6648 = vmatprep.subr.bf16.mxu0 0
    %6649 = vmatpush1.bf16.msra.mxu0 0
    %6650 = vmatprep.subr.bf16.mxu0 0
    %6651 = vmatpush1.bf16.msra.mxu0 0
    %6652 = vmatprep.subr.bf16.mxu0 0
    %6653 = vmatpush1.bf16.msra.mxu0 0
    %6654 = vmatprep.subr.bf16.mxu0 0
    %6655 = vmatpush1.bf16.msra.mxu0 0
    %6656 = vmatprep.subr.bf16.mxu0 0
    %6657 = vmatpush1.bf16.msra.mxu0 0
    %6658 = vmatprep.mubr.bf16.mxu0 0
    %6659 = vmatmul.mubr.bf16.gmra.mrb[0].mxu0 %v6621
    %v6660 = vpop.f32.mrb[0].mxu0
    %v6661 = vadd.f32 0.0, %v6660
    %v6662 = vpop.f32.mrb[0].mxu0
    %v6663 = vpop.f32.mrb[0].mxu0
    %v6664 = vpop.f32.mrb[0].mxu0
    %6665 = vdwg.mxu0
    %v6666 = vpack.c.bf16 %v6325, %v6325
    %v6667 = vpack.c.bf16 %v6373, %v6373
    %v6668 = vpack.c.bf16 %v6421, %v6421
    %v6669 = vpack.c.bf16 %v6469, %v6469
    %v6670 = vpack.c.bf16 %v6517, %v6517
    %v6671 = vpack.c.bf16 %v6565, %v6565
    %v6672 = vpack.c.bf16 %v6613, %v6613
    %v6673 = vpack.c.bf16 %v6661, %v6661
    %v6675 = vsel %vm1476, %v6666, 0
    %v6678 = vsel %vm2359, %v5268, 0
    %6680 = vmatprep.subr.bf16.mxu0 0
    %6681 = vmatpush1.bf16.msra.mxu0 %v6678
    %6682 = vmatprep.subr.bf16.mxu0 0
    %6683 = vmatpush1.bf16.msra.mxu0 0
    %6684 = vmatprep.subr.bf16.mxu0 0
    %6685 = vmatpush1.bf16.msra.mxu0 0
    %6686 = vmatprep.subr.bf16.mxu0 0
    %6687 = vmatpush1.bf16.msra.mxu0 0
    %6688 = vmatprep.subr.bf16.mxu0 0
    %6689 = vmatpush1.bf16.msra.mxu0 0
    %6690 = vmatprep.subr.bf16.mxu0 0
    %6691 = vmatpush1.bf16.msra.mxu0 0
    %6692 = vmatprep.subr.bf16.mxu0 0
    %6693 = vmatpush1.bf16.msra.mxu0 0
    %6694 = vmatprep.subr.bf16.mxu0 0
    %6695 = vmatpush1.bf16.msra.mxu0 0
    %6696 = vmatprep.subr.bf16.mxu0 0
    %6697 = vmatpush1.bf16.msra.mxu0 0
    %6698 = vmatprep.subr.bf16.mxu0 0
    %6699 = vmatpush1.bf16.msra.mxu0 0
    %6700 = vmatprep.subr.bf16.mxu0 0
    %6701 = vmatpush1.bf16.msra.mxu0 0
    %6702 = vmatprep.subr.bf16.mxu0 0
    %6703 = vmatpush1.bf16.msra.mxu0 0
    %6704 = vmatprep.subr.bf16.mxu0 0
    %6705 = vmatpush1.bf16.msra.mxu0 0
    %6706 = vmatprep.subr.bf16.mxu0 0
    %6707 = vmatpush1.bf16.msra.mxu0 0
    %6708 = vmatprep.subr.bf16.mxu0 0
    %6709 = vmatpush1.bf16.msra.mxu0 0
    %6710 = vmatprep.subr.bf16.mxu0 0
    %6711 = vmatpush1.bf16.msra.mxu0 0
    %6712 = vmatprep.mubr.bf16.mxu0 0
    %6713 = vmatmul.mubr.bf16.gmra.mrb[0].mxu0 %v6675
    %v6714 = vpop.f32.mrb[0].mxu0
    %v6715 = vadd.f32 0.0, %v6714
    %v6716 = vpop.f32.mrb[0].mxu0
    %v6717 = vpop.f32.mrb[0].mxu0
    %v6718 = vpop.f32.mrb[0].mxu0
    %6719 = vdwg.mxu0
    %v6721 = vsel %vm1476, %v6667, 0
    %v6724 = vsel %vm2359, %v5269, 0
    %6726 = vmatprep.subr.bf16.mxu0 0
    %6727 = vmatpush1.bf16.msra.mxu0 %v6724
    %6728 = vmatprep.subr.bf16.mxu0 0
    %6729 = vmatpush1.bf16.msra.mxu0 0
    %6730 = vmatprep.subr.bf16.mxu0 0
    %6731 = vmatpush1.bf16.msra.mxu0 0
    %6732 = vmatprep.subr.bf16.mxu0 0
    %6733 = vmatpush1.bf16.msra.mxu0 0
    %6734 = vmatprep.subr.bf16.mxu0 0
    %6735 = vmatpush1.bf16.msra.mxu0 0
    %6736 = vmatprep.subr.bf16.mxu0 0
    %6737 = vmatpush1.bf16.msra.mxu0 0
    %6738 = vmatprep.subr.bf16.mxu0 0
    %6739 = vmatpush1.bf16.msra.mxu0 0
    %6740 = vmatprep.subr.bf16.mxu0 0
    %6741 = vmatpush1.bf16.msra.mxu0 0
    %6742 = vmatprep.subr.bf16.mxu0 0
    %6743 = vmatpush1.bf16.msra.mxu0 0
    %6744 = vmatprep.subr.bf16.mxu0 0
    %6745 = vmatpush1.bf16.msra.mxu0 0
    %6746 = vmatprep.subr.bf16.mxu0 0
    %6747 = vmatpush1.bf16.msra.mxu0 0
    %6748 = vmatprep.subr.bf16.mxu0 0
    %6749 = vmatpush1.bf16.msra.mxu0 0
    %6750 = vmatprep.subr.bf16.mxu0 0
    %6751 = vmatpush1.bf16.msra.mxu0 0
    %6752 = vmatprep.subr.bf16.mxu0 0
    %6753 = vmatpush1.bf16.msra.mxu0 0
    %6754 = vmatprep.subr.bf16.mxu0 0
    %6755 = vmatpush1.bf16.msra.mxu0 0
    %6756 = vmatprep.subr.bf16.mxu0 0
    %6757 = vmatpush1.bf16.msra.mxu0 0
    %6758 = vmatprep.mubr.bf16.mxu0 0
    %6759 = vmatmul.mubr.bf16.gmra.mrb[0].mxu0 %v6721
    %v6760 = vpop.f32.mrb[0].mxu0
    %v6761 = vadd.f32 0.0, %v6760
    %v6762 = vpop.f32.mrb[0].mxu0
    %v6763 = vpop.f32.mrb[0].mxu0
    %v6764 = vpop.f32.mrb[0].mxu0
    %6765 = vdwg.mxu0
    %v6767 = vsel %vm1476, %v6668, 0
    %v6770 = vsel %vm2359, %v5270, 0
    %6772 = vmatprep.subr.bf16.mxu0 0
    %6773 = vmatpush1.bf16.msra.mxu0 %v6770
    %6774 = vmatprep.subr.bf16.mxu0 0
    %6775 = vmatpush1.bf16.msra.mxu0 0
    %6776 = vmatprep.subr.bf16.mxu0 0
    %6777 = vmatpush1.bf16.msra.mxu0 0
    %6778 = vmatprep.subr.bf16.mxu0 0
    %6779 = vmatpush1.bf16.msra.mxu0 0
    %6780 = vmatprep.subr.bf16.mxu0 0
    %6781 = vmatpush1.bf16.msra.mxu0 0
    %6782 = vmatprep.subr.bf16.mxu0 0
    %6783 = vmatpush1.bf16.msra.mxu0 0
    %6784 = vmatprep.subr.bf16.mxu0 0
    %6785 = vmatpush1.bf16.msra.mxu0 0
    %6786 = vmatprep.subr.bf16.mxu0 0
    %6787 = vmatpush1.bf16.msra.mxu0 0
    %6788 = vmatprep.subr.bf16.mxu0 0
    %6789 = vmatpush1.bf16.msra.mxu0 0
    %6790 = vmatprep.subr.bf16.mxu0 0
    %6791 = vmatpush1.bf16.msra.mxu0 0
    %6792 = vmatprep.subr.bf16.mxu0 0
    %6793 = vmatpush1.bf16.msra.mxu0 0
    %6794 = vmatprep.subr.bf16.mxu0 0
    %6795 = vmatpush1.bf16.msra.mxu0 0
    %6796 = vmatprep.subr.bf16.mxu0 0
    %6797 = vmatpush1.bf16.msra.mxu0 0
    %6798 = vmatprep.subr.bf16.mxu0 0
    %6799 = vmatpush1.bf16.msra.mxu0 0
    %6800 = vmatprep.subr.bf16.mxu0 0
    %6801 = vmatpush1.bf16.msra.mxu0 0
    %6802 = vmatprep.subr.bf16.mxu0 0
    %6803 = vmatpush1.bf16.msra.mxu0 0
    %6804 = vmatprep.mubr.bf16.mxu0 0
    %6805 = vmatmul.mubr.bf16.gmra.mrb[0].mxu0 %v6767
    %v6806 = vpop.f32.mrb[0].mxu0
    %v6807 = vadd.f32 0.0, %v6806
    %v6808 = vpop.f32.mrb[0].mxu0
    %v6809 = vpop.f32.mrb[0].mxu0
    %v6810 = vpop.f32.mrb[0].mxu0
    %6811 = vdwg.mxu0
    %v6813 = vsel %vm1476, %v6669, 0
    %v6816 = vsel %vm2359, %v5271, 0
    %6818 = vmatprep.subr.bf16.mxu0 0
    %6819 = vmatpush1.bf16.msra.mxu0 %v6816
    %6820 = vmatprep.subr.bf16.mxu0 0
    %6821 = vmatpush1.bf16.msra.mxu0 0
    %6822 = vmatprep.subr.bf16.mxu0 0
    %6823 = vmatpush1.bf16.msra.mxu0 0
    %6824 = vmatprep.subr.bf16.mxu0 0
    %6825 = vmatpush1.bf16.msra.mxu0 0
    %6826 = vmatprep.subr.bf16.mxu0 0
    %6827 = vmatpush1.bf16.msra.mxu0 0
    %6828 = vmatprep.subr.bf16.mxu0 0
    %6829 = vmatpush1.bf16.msra.mxu0 0
    %6830 = vmatprep.subr.bf16.mxu0 0
    %6831 = vmatpush1.bf16.msra.mxu0 0
    %6832 = vmatprep.subr.bf16.mxu0 0
    %6833 = vmatpush1.bf16.msra.mxu0 0
    %6834 = vmatprep.subr.bf16.mxu0 0
    %6835 = vmatpush1.bf16.msra.mxu0 0
    %6836 = vmatprep.subr.bf16.mxu0 0
    %6837 = vmatpush1.bf16.msra.mxu0 0
    %6838 = vmatprep.subr.bf16.mxu0 0
    %6839 = vmatpush1.bf16.msra.mxu0 0
    %6840 = vmatprep.subr.bf16.mxu0 0
    %6841 = vmatpush1.bf16.msra.mxu0 0
    %6842 = vmatprep.subr.bf16.mxu0 0
    %6843 = vmatpush1.bf16.msra.mxu0 0
    %6844 = vmatprep.subr.bf16.mxu0 0
    %6845 = vmatpush1.bf16.msra.mxu0 0
    %6846 = vmatprep.subr.bf16.mxu0 0
    %6847 = vmatpush1.bf16.msra.mxu0 0
    %6848 = vmatprep.subr.bf16.mxu0 0
    %6849 = vmatpush1.bf16.msra.mxu0 0
    %6850 = vmatprep.mubr.bf16.mxu0 0
    %6851 = vmatmul.mubr.bf16.gmra.mrb[0].mxu0 %v6813
    %v6852 = vpop.f32.mrb[0].mxu0
    %v6853 = vadd.f32 0.0, %v6852
    %v6854 = vpop.f32.mrb[0].mxu0
    %v6855 = vpop.f32.mrb[0].mxu0
    %v6856 = vpop.f32.mrb[0].mxu0
    %6857 = vdwg.mxu0
    %v6859 = vsel %vm1476, %v6670, 0
    %v6862 = vsel %vm2359, %v5272, 0
    %6864 = vmatprep.subr.bf16.mxu0 0
    %6865 = vmatpush1.bf16.msra.mxu0 %v6862
    %6866 = vmatprep.subr.bf16.mxu0 0
    %6867 = vmatpush1.bf16.msra.mxu0 0
    %6868 = vmatprep.subr.bf16.mxu0 0
    %6869 = vmatpush1.bf16.msra.mxu0 0
    %6870 = vmatprep.subr.bf16.mxu0 0
    %6871 = vmatpush1.bf16.msra.mxu0 0
    %6872 = vmatprep.subr.bf16.mxu0 0
    %6873 = vmatpush1.bf16.msra.mxu0 0
    %6874 = vmatprep.subr.bf16.mxu0 0
    %6875 = vmatpush1.bf16.msra.mxu0 0
    %6876 = vmatprep.subr.bf16.mxu0 0
    %6877 = vmatpush1.bf16.msra.mxu0 0
    %6878 = vmatprep.subr.bf16.mxu0 0
    %6879 = vmatpush1.bf16.msra.mxu0 0
    %6880 = vmatprep.subr.bf16.mxu0 0
    %6881 = vmatpush1.bf16.msra.mxu0 0
    %6882 = vmatprep.subr.bf16.mxu0 0
    %6883 = vmatpush1.bf16.msra.mxu0 0
    %6884 = vmatprep.subr.bf16.mxu0 0
    %6885 = vmatpush1.bf16.msra.mxu0 0
    %6886 = vmatprep.subr.bf16.mxu0 0
    %6887 = vmatpush1.bf16.msra.mxu0 0
    %6888 = vmatprep.subr.bf16.mxu0 0
    %6889 = vmatpush1.bf16.msra.mxu0 0
    %6890 = vmatprep.subr.bf16.mxu0 0
    %6891 = vmatpush1.bf16.msra.mxu0 0
    %6892 = vmatprep.subr.bf16.mxu0 0
    %6893 = vmatpush1.bf16.msra.mxu0 0
    %6894 = vmatprep.subr.bf16.mxu0 0
    %6895 = vmatpush1.bf16.msra.mxu0 0
    %6896 = vmatprep.mubr.bf16.mxu0 0
    %6897 = vmatmul.mubr.bf16.gmra.mrb[0].mxu0 %v6859
    %v6898 = vpop.f32.mrb[0].mxu0
    %v6899 = vadd.f32 0.0, %v6898
    %v6900 = vpop.f32.mrb[0].mxu0
    %v6901 = vpop.f32.mrb[0].mxu0
    %v6902 = vpop.f32.mrb[0].mxu0
    %6903 = vdwg.mxu0
    %v6905 = vsel %vm1476, %v6671, 0
    %v6908 = vsel %vm2359, %v5273, 0
    %6910 = vmatprep.subr.bf16.mxu0 0
    %6911 = vmatpush1.bf16.msra.mxu0 %v6908
    %6912 = vmatprep.subr.bf16.mxu0 0
    %6913 = vmatpush1.bf16.msra.mxu0 0
    %6914 = vmatprep.subr.bf16.mxu0 0
    %6915 = vmatpush1.bf16.msra.mxu0 0
    %6916 = vmatprep.subr.bf16.mxu0 0
    %6917 = vmatpush1.bf16.msra.mxu0 0
    %6918 = vmatprep.subr.bf16.mxu0 0
    %6919 = vmatpush1.bf16.msra.mxu0 0
    %6920 = vmatprep.subr.bf16.mxu0 0
    %6921 = vmatpush1.bf16.msra.mxu0 0
    %6922 = vmatprep.subr.bf16.mxu0 0
    %6923 = vmatpush1.bf16.msra.mxu0 0
    %6924 = vmatprep.subr.bf16.mxu0 0
    %6925 = vmatpush1.bf16.msra.mxu0 0
    %6926 = vmatprep.subr.bf16.mxu0 0
    %6927 = vmatpush1.bf16.msra.mxu0 0
    %6928 = vmatprep.subr.bf16.mxu0 0
    %6929 = vmatpush1.bf16.msra.mxu0 0
    %6930 = vmatprep.subr.bf16.mxu0 0
    %6931 = vmatpush1.bf16.msra.mxu0 0
    %6932 = vmatprep.subr.bf16.mxu0 0
    %6933 = vmatpush1.bf16.msra.mxu0 0
    %6934 = vmatprep.subr.bf16.mxu0 0
    %6935 = vmatpush1.bf16.msra.mxu0 0
    %6936 = vmatprep.subr.bf16.mxu0 0
    %6937 = vmatpush1.bf16.msra.mxu0 0
    %6938 = vmatprep.subr.bf16.mxu0 0
    %6939 = vmatpush1.bf16.msra.mxu0 0
    %6940 = vmatprep.subr.bf16.mxu0 0
    %6941 = vmatpush1.bf16.msra.mxu0 0
    %6942 = vmatprep.mubr.bf16.mxu0 0
    %6943 = vmatmul.mubr.bf16.gmra.mrb[0].mxu0 %v6905
    %v6944 = vpop.f32.mrb[0].mxu0
    %v6945 = vadd.f32 0.0, %v6944
    %v6946 = vpop.f32.mrb[0].mxu0
    %v6947 = vpop.f32.mrb[0].mxu0
    %v6948 = vpop.f32.mrb[0].mxu0
    %6949 = vdwg.mxu0
    %v6951 = vsel %vm1476, %v6672, 0
    %v6954 = vsel %vm2359, %v5274, 0
    %6956 = vmatprep.subr.bf16.mxu0 0
    %6957 = vmatpush1.bf16.msra.mxu0 %v6954
    %6958 = vmatprep.subr.bf16.mxu0 0
    %6959 = vmatpush1.bf16.msra.mxu0 0
    %6960 = vmatprep.subr.bf16.mxu0 0
    %6961 = vmatpush1.bf16.msra.mxu0 0
    %6962 = vmatprep.subr.bf16.mxu0 0
    %6963 = vmatpush1.bf16.msra.mxu0 0
    %6964 = vmatprep.subr.bf16.mxu0 0
    %6965 = vmatpush1.bf16.msra.mxu0 0
    %6966 = vmatprep.subr.bf16.mxu0 0
    %6967 = vmatpush1.bf16.msra.mxu0 0
    %6968 = vmatprep.subr.bf16.mxu0 0
    %6969 = vmatpush1.bf16.msra.mxu0 0
    %6970 = vmatprep.subr.bf16.mxu0 0
    %6971 = vmatpush1.bf16.msra.mxu0 0
    %6972 = vmatprep.subr.bf16.mxu0 0
    %6973 = vmatpush1.bf16.msra.mxu0 0
    %6974 = vmatprep.subr.bf16.mxu0 0
    %6975 = vmatpush1.bf16.msra.mxu0 0
    %6976 = vmatprep.subr.bf16.mxu0 0
    %6977 = vmatpush1.bf16.msra.mxu0 0
    %6978 = vmatprep.subr.bf16.mxu0 0
    %6979 = vmatpush1.bf16.msra.mxu0 0
    %6980 = vmatprep.subr.bf16.mxu0 0
    %6981 = vmatpush1.bf16.msra.mxu0 0
    %6982 = vmatprep.subr.bf16.mxu0 0
    %6983 = vmatpush1.bf16.msra.mxu0 0
    %6984 = vmatprep.subr.bf16.mxu0 0
    %6985 = vmatpush1.bf16.msra.mxu0 0
    %6986 = vmatprep.subr.bf16.mxu0 0
    %6987 = vmatpush1.bf16.msra.mxu0 0
    %6988 = vmatprep.mubr.bf16.mxu0 0
    %6989 = vmatmul.mubr.bf16.gmra.mrb[0].mxu0 %v6951
    %v6990 = vpop.f32.mrb[0].mxu0
    %v6991 = vadd.f32 0.0, %v6990
    %v6992 = vpop.f32.mrb[0].mxu0
    %v6993 = vpop.f32.mrb[0].mxu0
    %v6994 = vpop.f32.mrb[0].mxu0
    %6995 = vdwg.mxu0
    %v6997 = vsel %vm1476, %v6673, 0
    %v7000 = vsel %vm2359, %v5275, 0
    %7002 = vmatprep.subr.bf16.mxu0 0
    %7003 = vmatpush1.bf16.msra.mxu0 %v7000
    %7004 = vmatprep.subr.bf16.mxu0 0
    %7005 = vmatpush1.bf16.msra.mxu0 0
    %7006 = vmatprep.subr.bf16.mxu0 0
    %7007 = vmatpush1.bf16.msra.mxu0 0
    %7008 = vmatprep.subr.bf16.mxu0 0
    %7009 = vmatpush1.bf16.msra.mxu0 0
    %7010 = vmatprep.subr.bf16.mxu0 0
    %7011 = vmatpush1.bf16.msra.mxu0 0
    %7012 = vmatprep.subr.bf16.mxu0 0
    %7013 = vmatpush1.bf16.msra.mxu0 0
    %7014 = vmatprep.subr.bf16.mxu0 0
    %7015 = vmatpush1.bf16.msra.mxu0 0
    %7016 = vmatprep.subr.bf16.mxu0 0
    %7017 = vmatpush1.bf16.msra.mxu0 0
    %7018 = vmatprep.subr.bf16.mxu0 0
    %7019 = vmatpush1.bf16.msra.mxu0 0
    %7020 = vmatprep.subr.bf16.mxu0 0
    %7021 = vmatpush1.bf16.msra.mxu0 0
    %7022 = vmatprep.subr.bf16.mxu0 0
    %7023 = vmatpush1.bf16.msra.mxu0 0
    %7024 = vmatprep.subr.bf16.mxu0 0
    %7025 = vmatpush1.bf16.msra.mxu0 0
    %7026 = vmatprep.subr.bf16.mxu0 0
    %7027 = vmatpush1.bf16.msra.mxu0 0
    %7028 = vmatprep.subr.bf16.mxu0 0
    %7029 = vmatpush1.bf16.msra.mxu0 0
    %7030 = vmatprep.subr.bf16.mxu0 0
    %7031 = vmatpush1.bf16.msra.mxu0 0
    %7032 = vmatprep.subr.bf16.mxu0 0
    %7033 = vmatpush1.bf16.msra.mxu0 0
    %7034 = vmatprep.mubr.bf16.mxu0 0
    %7035 = vmatmul.mubr.bf16.gmra.mrb[0].mxu0 %v6997
    %v7036 = vpop.f32.mrb[0].mxu0
    %v7037 = vadd.f32 0.0, %v7036
    %v7038 = vpop.f32.mrb[0].mxu0
    %v7039 = vpop.f32.mrb[0].mxu0
    %v7040 = vpop.f32.mrb[0].mxu0
    %7041 = vdwg.mxu0
    %v7042 = vsel %vm2725, %v6715, 0.0
    %v7043 = vsel %vm2725, %v6761, 0.0
    %v7044 = vadd.f32 %v7042, %v7043
    %v7045 = vsel %vm2725, %v6807, 0.0
    %v7046 = vadd.f32 %v7044, %v7045
    %v7047 = vsel %vm2725, %v6853, 0.0
    %v7048 = vadd.f32 %v7046, %v7047
    %v7049 = vsel %vm2725, %v6899, 0.0
    %v7050 = vadd.f32 %v7048, %v7049
    %v7051 = vsel %vm2725, %v6945, 0.0
    %v7052 = vadd.f32 %v7050, %v7051
    %v7053 = vsel %vm2725, %v6991, 0.0
    %v7054 = vadd.f32 %v7052, %v7053
    %v7055 = vsel %vm2725, %v7037, 0.0
    %v7056 = vadd.f32 %v7054, %v7055
    %s7057 = scalar_lea.vmem %s49, 1
    %v7058 = vld [vmem:[%s7057] sm:$0x1]
    %v7060 = vlaneseq
    %v7061 = vshrl.u32 %v7060, 7
    %v7062 = vsub.s32 0, %v7061
    %v7063 = vrot.slane %v7058, %v7062
    %v7065 = vadd.f32 %v7056, %v7063
    %v7066 = vpack.c.bf16 %v7065, %v7065
    %7067 = vmatprep.subr.bf16.mxu0 0
    %7068 = vmatpush1.bf16.msra.mxu0 %v5276
    %7069 = vmatprep.subr.bf16.mxu0 0
    %7070 = vmatpush1.bf16.msra.mxu0 0
    %7071 = vmatprep.subr.bf16.mxu0 0
    %7072 = vmatpush1.bf16.msra.mxu0 0
    %7073 = vmatprep.subr.bf16.mxu0 0
    %7074 = vmatpush1.bf16.msra.mxu0 0
    %7075 = vmatprep.subr.bf16.mxu0 0
    %7076 = vmatpush1.bf16.msra.mxu0 0
    %7077 = vmatprep.subr.bf16.mxu0 0
    %7078 = vmatpush1.bf16.msra.mxu0 0
    %7079 = vmatprep.subr.bf16.mxu0 0
    %7080 = vmatpush1.bf16.msra.mxu0 0
    %7081 = vmatprep.subr.bf16.mxu0 0
    %7082 = vmatpush1.bf16.msra.mxu0 0
    %7083 = vmatprep.subr.bf16.mxu0 0
    %7084 = vmatpush1.bf16.msra.mxu0 0
    %7085 = vmatprep.subr.bf16.mxu0 0
    %7086 = vmatpush1.bf16.msra.mxu0 0
    %7087 = vmatprep.subr.bf16.mxu0 0
    %7088 = vmatpush1.bf16.msra.mxu0 0
    %7089 = vmatprep.subr.bf16.mxu0 0
    %7090 = vmatpush1.bf16.msra.mxu0 0
    %7091 = vmatprep.subr.bf16.mxu0 0
    %7092 = vmatpush1.bf16.msra.mxu0 0
    %7093 = vmatprep.subr.bf16.mxu0 0
    %7094 = vmatpush1.bf16.msra.mxu0 0
    %7095 = vmatprep.subr.bf16.mxu0 0
    %7096 = vmatpush1.bf16.msra.mxu0 0
    %7097 = vmatprep.subr.bf16.mxu0 0
    %7098 = vmatpush1.bf16.msra.mxu0 0
    %7099 = vmatprep.mubr.bf16.mxu0 0
    %7100 = vmatmul.mubr.bf16.gmra.mrb[0].mxu0 %v2753
    %v7101 = vpop.f32.mrb[0].mxu0
    %v7102 = vadd.f32 0.0, %v7101
    %v7103 = vpop.f32.mrb[0].mxu0
    %v7104 = vpop.f32.mrb[0].mxu0
    %v7105 = vpop.f32.mrb[0].mxu0
    %7106 = vdwg.mxu0
    %v7107 = vpack.c.bf16 %v7102, %v7102
    %v7109 = vsel %vm331, %v7107, 0
    %7111 = vmatprep.subr.bf16.mxu0 0
    %7112 = vmatpush1.bf16.msra.mxu0 %v5375
    %7113 = vmatprep.subr.bf16.mxu0 0
    %7114 = vmatpush1.bf16.msra.mxu0 %v5376
    %7115 = vmatprep.subr.bf16.mxu0 0
    %7116 = vmatpush1.bf16.msra.mxu0 0
    %7117 = vmatprep.subr.bf16.mxu0 0
    %7118 = vmatpush1.bf16.msra.mxu0 0
    %7119 = vmatprep.subr.bf16.mxu0 0
    %7120 = vmatpush1.bf16.msra.mxu0 0
    %7121 = vmatprep.subr.bf16.mxu0 0
    %7122 = vmatpush1.bf16.msra.mxu0 0
    %7123 = vmatprep.subr.bf16.mxu0 0
    %7124 = vmatpush1.bf16.msra.mxu0 0
    %7125 = vmatprep.subr.bf16.mxu0 0
    %7126 = vmatpush1.bf16.msra.mxu0 0
    %7127 = vmatprep.subr.bf16.mxu0 0
    %7128 = vmatpush1.bf16.msra.mxu0 0
    %7129 = vmatprep.subr.bf16.mxu0 0
    %7130 = vmatpush1.bf16.msra.mxu0 0
    %7131 = vmatprep.subr.bf16.mxu0 0
    %7132 = vmatpush1.bf16.msra.mxu0 0
    %7133 = vmatprep.subr.bf16.mxu0 0
    %7134 = vmatpush1.bf16.msra.mxu0 0
    %7135 = vmatprep.subr.bf16.mxu0 0
    %7136 = vmatpush1.bf16.msra.mxu0 0
    %7137 = vmatprep.subr.bf16.mxu0 0
    %7138 = vmatpush1.bf16.msra.mxu0 0
    %7139 = vmatprep.subr.bf16.mxu0 0
    %7140 = vmatpush1.bf16.msra.mxu0 0
    %7141 = vmatprep.subr.bf16.mxu0 0
    %7142 = vmatpush1.bf16.msra.mxu0 0
    %7143 = vmatprep.mubr.bf16.mxu0 0
    %7144 = vmatmul.mubr.bf16.gmra.mrb[0].mxu0 %v7109
    %v7145 = vpop.f32.mrb[0].mxu0
    %v7146 = vadd.f32 %v5330, %v7145
    %v7147 = vpop.f32.mrb[0].mxu0
    %v7148 = vpop.f32.mrb[0].mxu0
    %v7149 = vpop.f32.mrb[0].mxu0
    %7150 = vdwg.mxu0
    %7151 = vmatprep.subr.bf16.mxu0 0
    %7152 = vmatpush1.bf16.msra.mxu0 %v5430
    %7153 = vmatprep.subr.bf16.mxu0 0
    %7154 = vmatpush1.bf16.msra.mxu0 %v5431
    %7155 = vmatprep.subr.bf16.mxu0 0
    %7156 = vmatpush1.bf16.msra.mxu0 0
    %7157 = vmatprep.subr.bf16.mxu0 0
    %7158 = vmatpush1.bf16.msra.mxu0 0
    %7159 = vmatprep.subr.bf16.mxu0 0
    %7160 = vmatpush1.bf16.msra.mxu0 0
    %7161 = vmatprep.subr.bf16.mxu0 0
    %7162 = vmatpush1.bf16.msra.mxu0 0
    %7163 = vmatprep.subr.bf16.mxu0 0
    %7164 = vmatpush1.bf16.msra.mxu0 0
    %7165 = vmatprep.subr.bf16.mxu0 0
    %7166 = vmatpush1.bf16.msra.mxu0 0
    %7167 = vmatprep.subr.bf16.mxu0 0
    %7168 = vmatpush1.bf16.msra.mxu0 0
    %7169 = vmatprep.subr.bf16.mxu0 0
    %7170 = vmatpush1.bf16.msra.mxu0 0
    %7171 = vmatprep.subr.bf16.mxu0 0
    %7172 = vmatpush1.bf16.msra.mxu0 0
    %7173 = vmatprep.subr.bf16.mxu0 0
    %7174 = vmatpush1.bf16.msra.mxu0 0
    %7175 = vmatprep.subr.bf16.mxu0 0
    %7176 = vmatpush1.bf16.msra.mxu0 0
    %7177 = vmatprep.subr.bf16.mxu0 0
    %7178 = vmatpush1.bf16.msra.mxu0 0
    %7179 = vmatprep.subr.bf16.mxu0 0
    %7180 = vmatpush1.bf16.msra.mxu0 0
    %7181 = vmatprep.subr.bf16.mxu0 0
    %7182 = vmatpush1.bf16.msra.mxu0 0
    %7183 = vmatprep.mubr.bf16.mxu0 0
    %7184 = vmatmul.mubr.bf16.gmra.mrb[0].mxu0 %v7109
    %v7185 = vpop.f32.mrb[0].mxu0
    %v7186 = vadd.f32 %v5334, %v7185
    %v7187 = vpop.f32.mrb[0].mxu0
    %v7188 = vpop.f32.mrb[0].mxu0
    %v7189 = vpop.f32.mrb[0].mxu0
    %7190 = vdwg.mxu0
    %7191 = vmatprep.subr.bf16.mxu0 0
    %7192 = vmatpush1.bf16.msra.mxu0 %v5482
    %7193 = vmatprep.subr.bf16.mxu0 0
    %7194 = vmatpush1.bf16.msra.mxu0 %v5483
    %7195 = vmatprep.subr.bf16.mxu0 0
    %7196 = vmatpush1.bf16.msra.mxu0 0
    %7197 = vmatprep.subr.bf16.mxu0 0
    %7198 = vmatpush1.bf16.msra.mxu0 0
    %7199 = vmatprep.subr.bf16.mxu0 0
    %7200 = vmatpush1.bf16.msra.mxu0 0
    %7201 = vmatprep.subr.bf16.mxu0 0
    %7202 = vmatpush1.bf16.msra.mxu0 0
    %7203 = vmatprep.subr.bf16.mxu0 0
    %7204 = vmatpush1.bf16.msra.mxu0 0
    %7205 = vmatprep.subr.bf16.mxu0 0
    %7206 = vmatpush1.bf16.msra.mxu0 0
    %7207 = vmatprep.subr.bf16.mxu0 0
    %7208 = vmatpush1.bf16.msra.mxu0 0
    %7209 = vmatprep.subr.bf16.mxu0 0
    %7210 = vmatpush1.bf16.msra.mxu0 0
    %7211 = vmatprep.subr.bf16.mxu0 0
    %7212 = vmatpush1.bf16.msra.mxu0 0
    %7213 = vmatprep.subr.bf16.mxu0 0
    %7214 = vmatpush1.bf16.msra.mxu0 0
    %7215 = vmatprep.subr.bf16.mxu0 0
    %7216 = vmatpush1.bf16.msra.mxu0 0
    %7217 = vmatprep.subr.bf16.mxu0 0
    %7218 = vmatpush1.bf16.msra.mxu0 0
    %7219 = vmatprep.subr.bf16.mxu0 0
    %7220 = vmatpush1.bf16.msra.mxu0 0
    %7221 = vmatprep.subr.bf16.mxu0 0
    %7222 = vmatpush1.bf16.msra.mxu0 0
    %7223 = vmatprep.mubr.bf16.mxu0 0
    %7224 = vmatmul.mubr.bf16.gmra.mrb[0].mxu0 %v7109
    %v7225 = vpop.f32.mrb[0].mxu0
    %v7226 = vadd.f32 %v5338, %v7225
    %v7227 = vpop.f32.mrb[0].mxu0
    %v7228 = vpop.f32.mrb[0].mxu0
    %v7229 = vpop.f32.mrb[0].mxu0
    %7230 = vdwg.mxu0
    %7231 = vmatprep.subr.bf16.mxu0 0
    %7232 = vmatpush1.bf16.msra.mxu0 %v5534
    %7233 = vmatprep.subr.bf16.mxu0 0
    %7234 = vmatpush1.bf16.msra.mxu0 %v5535
    %7235 = vmatprep.subr.bf16.mxu0 0
    %7236 = vmatpush1.bf16.msra.mxu0 0
    %7237 = vmatprep.subr.bf16.mxu0 0
    %7238 = vmatpush1.bf16.msra.mxu0 0
    %7239 = vmatprep.subr.bf16.mxu0 0
    %7240 = vmatpush1.bf16.msra.mxu0 0
    %7241 = vmatprep.subr.bf16.mxu0 0
    %7242 = vmatpush1.bf16.msra.mxu0 0
    %7243 = vmatprep.subr.bf16.mxu0 0
    %7244 = vmatpush1.bf16.msra.mxu0 0
    %7245 = vmatprep.subr.bf16.mxu0 0
    %7246 = vmatpush1.bf16.msra.mxu0 0
    %7247 = vmatprep.subr.bf16.mxu0 0
    %7248 = vmatpush1.bf16.msra.mxu0 0
    %7249 = vmatprep.subr.bf16.mxu0 0
    %7250 = vmatpush1.bf16.msra.mxu0 0
    %7251 = vmatprep.subr.bf16.mxu0 0
    %7252 = vmatpush1.bf16.msra.mxu0 0
    %7253 = vmatprep.subr.bf16.mxu0 0
    %7254 = vmatpush1.bf16.msra.mxu0 0
    %7255 = vmatprep.subr.bf16.mxu0 0
    %7256 = vmatpush1.bf16.msra.mxu0 0
    %7257 = vmatprep.subr.bf16.mxu0 0
    %7258 = vmatpush1.bf16.msra.mxu0 0
    %7259 = vmatprep.subr.bf16.mxu0 0
    %7260 = vmatpush1.bf16.msra.mxu0 0
    %7261 = vmatprep.subr.bf16.mxu0 0
    %7262 = vmatpush1.bf16.msra.mxu0 0
    %7263 = vmatprep.mubr.bf16.mxu0 0
    %7264 = vmatmul.mubr.bf16.gmra.mrb[0].mxu0 %v7109
    %v7265 = vpop.f32.mrb[0].mxu0
    %v7266 = vadd.f32 %v5342, %v7265
    %v7267 = vpop.f32.mrb[0].mxu0
    %v7268 = vpop.f32.mrb[0].mxu0
    %v7269 = vpop.f32.mrb[0].mxu0
    %7270 = vdwg.mxu0
    %7271 = vmatprep.subr.bf16.mxu0 0
    %7272 = vmatpush1.bf16.msra.mxu0 %v5586
    %7273 = vmatprep.subr.bf16.mxu0 0
    %7274 = vmatpush1.bf16.msra.mxu0 %v5587
    %7275 = vmatprep.subr.bf16.mxu0 0
    %7276 = vmatpush1.bf16.msra.mxu0 0
    %7277 = vmatprep.subr.bf16.mxu0 0
    %7278 = vmatpush1.bf16.msra.mxu0 0
    %7279 = vmatprep.subr.bf16.mxu0 0
    %7280 = vmatpush1.bf16.msra.mxu0 0
    %7281 = vmatprep.subr.bf16.mxu0 0
    %7282 = vmatpush1.bf16.msra.mxu0 0
    %7283 = vmatprep.subr.bf16.mxu0 0
    %7284 = vmatpush1.bf16.msra.mxu0 0
    %7285 = vmatprep.subr.bf16.mxu0 0
    %7286 = vmatpush1.bf16.msra.mxu0 0
    %7287 = vmatprep.subr.bf16.mxu0 0
    %7288 = vmatpush1.bf16.msra.mxu0 0
    %7289 = vmatprep.subr.bf16.mxu0 0
    %7290 = vmatpush1.bf16.msra.mxu0 0
    %7291 = vmatprep.subr.bf16.mxu0 0
    %7292 = vmatpush1.bf16.msra.mxu0 0
    %7293 = vmatprep.subr.bf16.mxu0 0
    %7294 = vmatpush1.bf16.msra.mxu0 0
    %7295 = vmatprep.subr.bf16.mxu0 0
    %7296 = vmatpush1.bf16.msra.mxu0 0
    %7297 = vmatprep.subr.bf16.mxu0 0
    %7298 = vmatpush1.bf16.msra.mxu0 0
    %7299 = vmatprep.subr.bf16.mxu0 0
    %7300 = vmatpush1.bf16.msra.mxu0 0
    %7301 = vmatprep.subr.bf16.mxu0 0
    %7302 = vmatpush1.bf16.msra.mxu0 0
    %7303 = vmatprep.mubr.bf16.mxu0 0
    %7304 = vmatmul.mubr.bf16.gmra.mrb[0].mxu0 %v7109
    %v7305 = vpop.f32.mrb[0].mxu0
    %v7306 = vadd.f32 %v5346, %v7305
    %v7307 = vpop.f32.mrb[0].mxu0
    %v7308 = vpop.f32.mrb[0].mxu0
    %v7309 = vpop.f32.mrb[0].mxu0
    %7310 = vdwg.mxu0
    %7311 = vmatprep.subr.bf16.mxu0 0
    %7312 = vmatpush1.bf16.msra.mxu0 %v5638
    %7313 = vmatprep.subr.bf16.mxu0 0
    %7314 = vmatpush1.bf16.msra.mxu0 %v5639
    %7315 = vmatprep.subr.bf16.mxu0 0
    %7316 = vmatpush1.bf16.msra.mxu0 0
    %7317 = vmatprep.subr.bf16.mxu0 0
    %7318 = vmatpush1.bf16.msra.mxu0 0
    %7319 = vmatprep.subr.bf16.mxu0 0
    %7320 = vmatpush1.bf16.msra.mxu0 0
    %7321 = vmatprep.subr.bf16.mxu0 0
    %7322 = vmatpush1.bf16.msra.mxu0 0
    %7323 = vmatprep.subr.bf16.mxu0 0
    %7324 = vmatpush1.bf16.msra.mxu0 0
    %7325 = vmatprep.subr.bf16.mxu0 0
    %7326 = vmatpush1.bf16.msra.mxu0 0
    %7327 = vmatprep.subr.bf16.mxu0 0
    %7328 = vmatpush1.bf16.msra.mxu0 0
    %7329 = vmatprep.subr.bf16.mxu0 0
    %7330 = vmatpush1.bf16.msra.mxu0 0
    %7331 = vmatprep.subr.bf16.mxu0 0
    %7332 = vmatpush1.bf16.msra.mxu0 0
    %7333 = vmatprep.subr.bf16.mxu0 0
    %7334 = vmatpush1.bf16.msra.mxu0 0
    %7335 = vmatprep.subr.bf16.mxu0 0
    %7336 = vmatpush1.bf16.msra.mxu0 0
    %7337 = vmatprep.subr.bf16.mxu0 0
    %7338 = vmatpush1.bf16.msra.mxu0 0
    %7339 = vmatprep.subr.bf16.mxu0 0
    %7340 = vmatpush1.bf16.msra.mxu0 0
    %7341 = vmatprep.subr.bf16.mxu0 0
    %7342 = vmatpush1.bf16.msra.mxu0 0
    %7343 = vmatprep.mubr.bf16.mxu0 0
    %7344 = vmatmul.mubr.bf16.gmra.mrb[0].mxu0 %v7109
    %v7345 = vpop.f32.mrb[0].mxu0
    %v7346 = vadd.f32 %v5350, %v7345
    %v7347 = vpop.f32.mrb[0].mxu0
    %v7348 = vpop.f32.mrb[0].mxu0
    %v7349 = vpop.f32.mrb[0].mxu0
    %7350 = vdwg.mxu0
    %7351 = vmatprep.subr.bf16.mxu0 0
    %7352 = vmatpush1.bf16.msra.mxu0 %v5690
    %7353 = vmatprep.subr.bf16.mxu0 0
    %7354 = vmatpush1.bf16.msra.mxu0 %v5691
    %7355 = vmatprep.subr.bf16.mxu0 0
    %7356 = vmatpush1.bf16.msra.mxu0 0
    %7357 = vmatprep.subr.bf16.mxu0 0
    %7358 = vmatpush1.bf16.msra.mxu0 0
    %7359 = vmatprep.subr.bf16.mxu0 0
    %7360 = vmatpush1.bf16.msra.mxu0 0
    %7361 = vmatprep.subr.bf16.mxu0 0
    %7362 = vmatpush1.bf16.msra.mxu0 0
    %7363 = vmatprep.subr.bf16.mxu0 0
    %7364 = vmatpush1.bf16.msra.mxu0 0
    %7365 = vmatprep.subr.bf16.mxu0 0
    %7366 = vmatpush1.bf16.msra.mxu0 0
    %7367 = vmatprep.subr.bf16.mxu0 0
    %7368 = vmatpush1.bf16.msra.mxu0 0
    %7369 = vmatprep.subr.bf16.mxu0 0
    %7370 = vmatpush1.bf16.msra.mxu0 0
    %7371 = vmatprep.subr.bf16.mxu0 0
    %7372 = vmatpush1.bf16.msra.mxu0 0
    %7373 = vmatprep.subr.bf16.mxu0 0
    %7374 = vmatpush1.bf16.msra.mxu0 0
    %7375 = vmatprep.subr.bf16.mxu0 0
    %7376 = vmatpush1.bf16.msra.mxu0 0
    %7377 = vmatprep.subr.bf16.mxu0 0
    %7378 = vmatpush1.bf16.msra.mxu0 0
    %7379 = vmatprep.subr.bf16.mxu0 0
    %7380 = vmatpush1.bf16.msra.mxu0 0
    %7381 = vmatprep.subr.bf16.mxu0 0
    %7382 = vmatpush1.bf16.msra.mxu0 0
    %7383 = vmatprep.mubr.bf16.mxu0 0
    %7384 = vmatmul.mubr.bf16.gmra.mrb[0].mxu0 %v7109
    %v7385 = vpop.f32.mrb[0].mxu0
    %v7386 = vadd.f32 %v5354, %v7385
    %v7387 = vpop.f32.mrb[0].mxu0
    %v7388 = vpop.f32.mrb[0].mxu0
    %v7389 = vpop.f32.mrb[0].mxu0
    %7390 = vdwg.mxu0
    %7391 = vmatprep.subr.bf16.mxu0 0
    %7392 = vmatpush1.bf16.msra.mxu0 %v5742
    %7393 = vmatprep.subr.bf16.mxu0 0
    %7394 = vmatpush1.bf16.msra.mxu0 %v5743
    %7395 = vmatprep.subr.bf16.mxu0 0
    %7396 = vmatpush1.bf16.msra.mxu0 0
    %7397 = vmatprep.subr.bf16.mxu0 0
    %7398 = vmatpush1.bf16.msra.mxu0 0
    %7399 = vmatprep.subr.bf16.mxu0 0
    %7400 = vmatpush1.bf16.msra.mxu0 0
    %7401 = vmatprep.subr.bf16.mxu0 0
    %7402 = vmatpush1.bf16.msra.mxu0 0
    %7403 = vmatprep.subr.bf16.mxu0 0
    %7404 = vmatpush1.bf16.msra.mxu0 0
    %7405 = vmatprep.subr.bf16.mxu0 0
    %7406 = vmatpush1.bf16.msra.mxu0 0
    %7407 = vmatprep.subr.bf16.mxu0 0
    %7408 = vmatpush1.bf16.msra.mxu0 0
    %7409 = vmatprep.subr.bf16.mxu0 0
    %7410 = vmatpush1.bf16.msra.mxu0 0
    %7411 = vmatprep.subr.bf16.mxu0 0
    %7412 = vmatpush1.bf16.msra.mxu0 0
    %7413 = vmatprep.subr.bf16.mxu0 0
    %7414 = vmatpush1.bf16.msra.mxu0 0
    %7415 = vmatprep.subr.bf16.mxu0 0
    %7416 = vmatpush1.bf16.msra.mxu0 0
    %7417 = vmatprep.subr.bf16.mxu0 0
    %7418 = vmatpush1.bf16.msra.mxu0 0
    %7419 = vmatprep.subr.bf16.mxu0 0
    %7420 = vmatpush1.bf16.msra.mxu0 0
    %7421 = vmatprep.subr.bf16.mxu0 0
    %7422 = vmatpush1.bf16.msra.mxu0 0
    %7423 = vmatprep.mubr.bf16.mxu0 0
    %7424 = vmatmul.mubr.bf16.gmra.mrb[0].mxu0 %v7109
    %v7425 = vpop.f32.mrb[0].mxu0
    %v7426 = vadd.f32 %v5358, %v7425
    %v7427 = vpop.f32.mrb[0].mxu0
    %v7428 = vpop.f32.mrb[0].mxu0
    %v7429 = vpop.f32.mrb[0].mxu0
    %7430 = vdwg.mxu0
    %v7431 = vpack.c.bf16 %v7146, %v7146
    %v7432 = vpack.c.bf16 %v7186, %v7186
    %v7433 = vpack.c.bf16 %v7226, %v7226
    %v7434 = vpack.c.bf16 %v7266, %v7266
    %v7435 = vpack.c.bf16 %v7306, %v7306
    %v7436 = vpack.c.bf16 %v7346, %v7346
    %v7437 = vpack.c.bf16 %v7386, %v7386
    %v7438 = vpack.c.bf16 %v7426, %v7426
    %7440 = vrot.lane.b32.xlu0 %v7431, 124
    %v7441 = vpop.permute.xlu0 %7440
    %v7443 = vsel %vm1476, %v7431, 0
    %v7446 = vsel %vm1476, %v7441, 0
    %7448 = vmatprep.subr.bf16.mxu0 0
    %7449 = vmatpush1.bf16.xpose.msra.mxu0 %v7446
    %7450 = vmatprep.subr.bf16.mxu0 0
    %7451 = vmatpush1.bf16.xpose.msra.mxu0 0
    %7452 = vmatprep.subr.bf16.mxu0 0
    %7453 = vmatpush1.bf16.xpose.msra.mxu0 0
    %7454 = vmatprep.subr.bf16.mxu0 0
    %7455 = vmatpush1.bf16.xpose.msra.mxu0 0
    %7456 = vmatprep.subr.bf16.mxu0 0
    %7457 = vmatpush1.bf16.xpose.msra.mxu0 0
    %7458 = vmatprep.subr.bf16.mxu0 0
    %7459 = vmatpush1.bf16.xpose.msra.mxu0 0
    %7460 = vmatprep.subr.bf16.mxu0 0
    %7461 = vmatpush1.bf16.xpose.msra.mxu0 0
    %7462 = vmatprep.subr.bf16.mxu0 0
    %7463 = vmatpush1.bf16.xpose.msra.mxu0 0
    %7464 = vmatprep.subr.bf16.mxu0 0
    %7465 = vmatpush1.bf16.xpose.msra.mxu0 0
    %7466 = vmatprep.subr.bf16.mxu0 0
    %7467 = vmatpush1.bf16.xpose.msra.mxu0 0
    %7468 = vmatprep.subr.bf16.mxu0 0
    %7469 = vmatpush1.bf16.xpose.msra.mxu0 0
    %7470 = vmatprep.subr.bf16.mxu0 0
    %7471 = vmatpush1.bf16.xpose.msra.mxu0 0
    %7472 = vmatprep.subr.bf16.mxu0 0
    %7473 = vmatpush1.bf16.xpose.msra.mxu0 0
    %7474 = vmatprep.subr.bf16.mxu0 0
    %7475 = vmatpush1.bf16.xpose.msra.mxu0 0
    %7476 = vmatprep.subr.bf16.mxu0 0
    %7477 = vmatpush1.bf16.xpose.msra.mxu0 0
    %7478 = vmatprep.subr.bf16.mxu0 0
    %7479 = vmatpush1.bf16.xpose.msra.mxu0 0
    %7480 = vmatprep.mubr.bf16.mxu0 0
    %7481 = vmatmul.mubr.bf16.gmra.mrb[0].mxu0 %v7443
    %v7482 = vpop.f32.mrb[0].mxu0
    %v7483 = vadd.f32 %v3133, %v7482
    %v7484 = vpop.f32.mrb[0].mxu0
    %v7485 = vpop.f32.mrb[0].mxu0
    %v7486 = vpop.f32.mrb[0].mxu0
    %7487 = vdwg.mxu0
    %7489 = vrot.lane.b32.xlu0 %v7432, 124
    %v7490 = vpop.permute.xlu0 %7489
    %v7492 = vsel %vm1476, %v7432, 0
    %v7495 = vsel %vm1476, %v7490, 0
    %7497 = vmatprep.subr.bf16.mxu0 0
    %7498 = vmatpush1.bf16.xpose.msra.mxu0 %v7495
    %7499 = vmatprep.subr.bf16.mxu0 0
    %7500 = vmatpush1.bf16.xpose.msra.mxu0 0
    %7501 = vmatprep.subr.bf16.mxu0 0
    %7502 = vmatpush1.bf16.xpose.msra.mxu0 0
    %7503 = vmatprep.subr.bf16.mxu0 0
    %7504 = vmatpush1.bf16.xpose.msra.mxu0 0
    %7505 = vmatprep.subr.bf16.mxu0 0
    %7506 = vmatpush1.bf16.xpose.msra.mxu0 0
    %7507 = vmatprep.subr.bf16.mxu0 0
    %7508 = vmatpush1.bf16.xpose.msra.mxu0 0
    %7509 = vmatprep.subr.bf16.mxu0 0
    %7510 = vmatpush1.bf16.xpose.msra.mxu0 0
    %7511 = vmatprep.subr.bf16.mxu0 0
    %7512 = vmatpush1.bf16.xpose.msra.mxu0 0
    %7513 = vmatprep.subr.bf16.mxu0 0
    %7514 = vmatpush1.bf16.xpose.msra.mxu0 0
    %7515 = vmatprep.subr.bf16.mxu0 0
    %7516 = vmatpush1.bf16.xpose.msra.mxu0 0
    %7517 = vmatprep.subr.bf16.mxu0 0
    %7518 = vmatpush1.bf16.xpose.msra.mxu0 0
    %7519 = vmatprep.subr.bf16.mxu0 0
    %7520 = vmatpush1.bf16.xpose.msra.mxu0 0
    %7521 = vmatprep.subr.bf16.mxu0 0
    %7522 = vmatpush1.bf16.xpose.msra.mxu0 0
    %7523 = vmatprep.subr.bf16.mxu0 0
    %7524 = vmatpush1.bf16.xpose.msra.mxu0 0
    %7525 = vmatprep.subr.bf16.mxu0 0
    %7526 = vmatpush1.bf16.xpose.msra.mxu0 0
    %7527 = vmatprep.subr.bf16.mxu0 0
    %7528 = vmatpush1.bf16.xpose.msra.mxu0 0
    %7529 = vmatprep.mubr.bf16.mxu0 0
    %7530 = vmatmul.mubr.bf16.gmra.mrb[0].mxu0 %v7492
    %v7531 = vpop.f32.mrb[0].mxu0
    %v7532 = vadd.f32 %v3133, %v7531
    %v7533 = vpop.f32.mrb[0].mxu0
    %v7534 = vpop.f32.mrb[0].mxu0
    %v7535 = vpop.f32.mrb[0].mxu0
    %7536 = vdwg.mxu0
    %7538 = vrot.lane.b32.xlu0 %v7433, 124
    %v7539 = vpop.permute.xlu0 %7538
    %v7541 = vsel %vm1476, %v7433, 0
    %v7544 = vsel %vm1476, %v7539, 0
    %7546 = vmatprep.subr.bf16.mxu0 0
    %7547 = vmatpush1.bf16.xpose.msra.mxu0 %v7544
    %7548 = vmatprep.subr.bf16.mxu0 0
    %7549 = vmatpush1.bf16.xpose.msra.mxu0 0
    %7550 = vmatprep.subr.bf16.mxu0 0
    %7551 = vmatpush1.bf16.xpose.msra.mxu0 0
    %7552 = vmatprep.subr.bf16.mxu0 0
    %7553 = vmatpush1.bf16.xpose.msra.mxu0 0
    %7554 = vmatprep.subr.bf16.mxu0 0
    %7555 = vmatpush1.bf16.xpose.msra.mxu0 0
    %7556 = vmatprep.subr.bf16.mxu0 0
    %7557 = vmatpush1.bf16.xpose.msra.mxu0 0
    %7558 = vmatprep.subr.bf16.mxu0 0
    %7559 = vmatpush1.bf16.xpose.msra.mxu0 0
    %7560 = vmatprep.subr.bf16.mxu0 0
    %7561 = vmatpush1.bf16.xpose.msra.mxu0 0
    %7562 = vmatprep.subr.bf16.mxu0 0
    %7563 = vmatpush1.bf16.xpose.msra.mxu0 0
    %7564 = vmatprep.subr.bf16.mxu0 0
    %7565 = vmatpush1.bf16.xpose.msra.mxu0 0
    %7566 = vmatprep.subr.bf16.mxu0 0
    %7567 = vmatpush1.bf16.xpose.msra.mxu0 0
    %7568 = vmatprep.subr.bf16.mxu0 0
    %7569 = vmatpush1.bf16.xpose.msra.mxu0 0
    %7570 = vmatprep.subr.bf16.mxu0 0
    %7571 = vmatpush1.bf16.xpose.msra.mxu0 0
    %7572 = vmatprep.subr.bf16.mxu0 0
    %7573 = vmatpush1.bf16.xpose.msra.mxu0 0
    %7574 = vmatprep.subr.bf16.mxu0 0
    %7575 = vmatpush1.bf16.xpose.msra.mxu0 0
    %7576 = vmatprep.subr.bf16.mxu0 0
    %7577 = vmatpush1.bf16.xpose.msra.mxu0 0
    %7578 = vmatprep.mubr.bf16.mxu0 0
    %7579 = vmatmul.mubr.bf16.gmra.mrb[0].mxu0 %v7541
    %v7580 = vpop.f32.mrb[0].mxu0
    %v7581 = vadd.f32 %v3133, %v7580
    %v7582 = vpop.f32.mrb[0].mxu0
    %v7583 = vpop.f32.mrb[0].mxu0
    %v7584 = vpop.f32.mrb[0].mxu0
    %7585 = vdwg.mxu0
    %7587 = vrot.lane.b32.xlu0 %v7434, 124
    %v7588 = vpop.permute.xlu0 %7587
    %v7590 = vsel %vm1476, %v7434, 0
    %v7593 = vsel %vm1476, %v7588, 0
    %7595 = vmatprep.subr.bf16.mxu0 0
    %7596 = vmatpush1.bf16.xpose.msra.mxu0 %v7593
    %7597 = vmatprep.subr.bf16.mxu0 0
    %7598 = vmatpush1.bf16.xpose.msra.mxu0 0
    %7599 = vmatprep.subr.bf16.mxu0 0
    %7600 = vmatpush1.bf16.xpose.msra.mxu0 0
    %7601 = vmatprep.subr.bf16.mxu0 0
    %7602 = vmatpush1.bf16.xpose.msra.mxu0 0
    %7603 = vmatprep.subr.bf16.mxu0 0
    %7604 = vmatpush1.bf16.xpose.msra.mxu0 0
    %7605 = vmatprep.subr.bf16.mxu0 0
    %7606 = vmatpush1.bf16.xpose.msra.mxu0 0
    %7607 = vmatprep.subr.bf16.mxu0 0
    %7608 = vmatpush1.bf16.xpose.msra.mxu0 0
    %7609 = vmatprep.subr.bf16.mxu0 0
    %7610 = vmatpush1.bf16.xpose.msra.mxu0 0
    %7611 = vmatprep.subr.bf16.mxu0 0
    %7612 = vmatpush1.bf16.xpose.msra.mxu0 0
    %7613 = vmatprep.subr.bf16.mxu0 0
    %7614 = vmatpush1.bf16.xpose.msra.mxu0 0
    %7615 = vmatprep.subr.bf16.mxu0 0
    %7616 = vmatpush1.bf16.xpose.msra.mxu0 0
    %7617 = vmatprep.subr.bf16.mxu0 0
    %7618 = vmatpush1.bf16.xpose.msra.mxu0 0
    %7619 = vmatprep.subr.bf16.mxu0 0
    %7620 = vmatpush1.bf16.xpose.msra.mxu0 0
    %7621 = vmatprep.subr.bf16.mxu0 0
    %7622 = vmatpush1.bf16.xpose.msra.mxu0 0
    %7623 = vmatprep.subr.bf16.mxu0 0
    %7624 = vmatpush1.bf16.xpose.msra.mxu0 0
    %7625 = vmatprep.subr.bf16.mxu0 0
    %7626 = vmatpush1.bf16.xpose.msra.mxu0 0
    %7627 = vmatprep.mubr.bf16.mxu0 0
    %7628 = vmatmul.mubr.bf16.gmra.mrb[0].mxu0 %v7590
    %v7629 = vpop.f32.mrb[0].mxu0
    %v7630 = vadd.f32 %v3133, %v7629
    %v7631 = vpop.f32.mrb[0].mxu0
    %v7632 = vpop.f32.mrb[0].mxu0
    %v7633 = vpop.f32.mrb[0].mxu0
    %7634 = vdwg.mxu0
    %7636 = vrot.lane.b32.xlu0 %v7435, 124
    %v7637 = vpop.permute.xlu0 %7636
    %v7639 = vsel %vm1476, %v7435, 0
    %v7642 = vsel %vm1476, %v7637, 0
    %7644 = vmatprep.subr.bf16.mxu0 0
    %7645 = vmatpush1.bf16.xpose.msra.mxu0 %v7642
    %7646 = vmatprep.subr.bf16.mxu0 0
    %7647 = vmatpush1.bf16.xpose.msra.mxu0 0
    %7648 = vmatprep.subr.bf16.mxu0 0
    %7649 = vmatpush1.bf16.xpose.msra.mxu0 0
    %7650 = vmatprep.subr.bf16.mxu0 0
    %7651 = vmatpush1.bf16.xpose.msra.mxu0 0
    %7652 = vmatprep.subr.bf16.mxu0 0
    %7653 = vmatpush1.bf16.xpose.msra.mxu0 0
    %7654 = vmatprep.subr.bf16.mxu0 0
    %7655 = vmatpush1.bf16.xpose.msra.mxu0 0
    %7656 = vmatprep.subr.bf16.mxu0 0
    %7657 = vmatpush1.bf16.xpose.msra.mxu0 0
    %7658 = vmatprep.subr.bf16.mxu0 0
    %7659 = vmatpush1.bf16.xpose.msra.mxu0 0
    %7660 = vmatprep.subr.bf16.mxu0 0
    %7661 = vmatpush1.bf16.xpose.msra.mxu0 0
    %7662 = vmatprep.subr.bf16.mxu0 0
    %7663 = vmatpush1.bf16.xpose.msra.mxu0 0
    %7664 = vmatprep.subr.bf16.mxu0 0
    %7665 = vmatpush1.bf16.xpose.msra.mxu0 0
    %7666 = vmatprep.subr.bf16.mxu0 0
    %7667 = vmatpush1.bf16.xpose.msra.mxu0 0
    %7668 = vmatprep.subr.bf16.mxu0 0
    %7669 = vmatpush1.bf16.xpose.msra.mxu0 0
    %7670 = vmatprep.subr.bf16.mxu0 0
    %7671 = vmatpush1.bf16.xpose.msra.mxu0 0
    %7672 = vmatprep.subr.bf16.mxu0 0
    %7673 = vmatpush1.bf16.xpose.msra.mxu0 0
    %7674 = vmatprep.subr.bf16.mxu0 0
    %7675 = vmatpush1.bf16.xpose.msra.mxu0 0
    %7676 = vmatprep.mubr.bf16.mxu0 0
    %7677 = vmatmul.mubr.bf16.gmra.mrb[0].mxu0 %v7639
    %v7678 = vpop.f32.mrb[0].mxu0
    %v7679 = vadd.f32 %v3133, %v7678
    %v7680 = vpop.f32.mrb[0].mxu0
    %v7681 = vpop.f32.mrb[0].mxu0
    %v7682 = vpop.f32.mrb[0].mxu0
    %7683 = vdwg.mxu0
    %7685 = vrot.lane.b32.xlu0 %v7436, 124
    %v7686 = vpop.permute.xlu0 %7685
    %v7688 = vsel %vm1476, %v7436, 0
    %v7691 = vsel %vm1476, %v7686, 0
    %7693 = vmatprep.subr.bf16.mxu0 0
    %7694 = vmatpush1.bf16.xpose.msra.mxu0 %v7691
    %7695 = vmatprep.subr.bf16.mxu0 0
    %7696 = vmatpush1.bf16.xpose.msra.mxu0 0
    %7697 = vmatprep.subr.bf16.mxu0 0
    %7698 = vmatpush1.bf16.xpose.msra.mxu0 0
    %7699 = vmatprep.subr.bf16.mxu0 0
    %7700 = vmatpush1.bf16.xpose.msra.mxu0 0
    %7701 = vmatprep.subr.bf16.mxu0 0
    %7702 = vmatpush1.bf16.xpose.msra.mxu0 0
    %7703 = vmatprep.subr.bf16.mxu0 0
    %7704 = vmatpush1.bf16.xpose.msra.mxu0 0
    %7705 = vmatprep.subr.bf16.mxu0 0
    %7706 = vmatpush1.bf16.xpose.msra.mxu0 0
    %7707 = vmatprep.subr.bf16.mxu0 0
    %7708 = vmatpush1.bf16.xpose.msra.mxu0 0
    %7709 = vmatprep.subr.bf16.mxu0 0
    %7710 = vmatpush1.bf16.xpose.msra.mxu0 0
    %7711 = vmatprep.subr.bf16.mxu0 0
    %7712 = vmatpush1.bf16.xpose.msra.mxu0 0
    %7713 = vmatprep.subr.bf16.mxu0 0
    %7714 = vmatpush1.bf16.xpose.msra.mxu0 0
    %7715 = vmatprep.subr.bf16.mxu0 0
    %7716 = vmatpush1.bf16.xpose.msra.mxu0 0
    %7717 = vmatprep.subr.bf16.mxu0 0
    %7718 = vmatpush1.bf16.xpose.msra.mxu0 0
    %7719 = vmatprep.subr.bf16.mxu0 0
    %7720 = vmatpush1.bf16.xpose.msra.mxu0 0
    %7721 = vmatprep.subr.bf16.mxu0 0
    %7722 = vmatpush1.bf16.xpose.msra.mxu0 0
    %7723 = vmatprep.subr.bf16.mxu0 0
    %7724 = vmatpush1.bf16.xpose.msra.mxu0 0
    %7725 = vmatprep.mubr.bf16.mxu0 0
    %7726 = vmatmul.mubr.bf16.gmra.mrb[0].mxu0 %v7688
    %v7727 = vpop.f32.mrb[0].mxu0
    %v7728 = vadd.f32 %v3133, %v7727
    %v7729 = vpop.f32.mrb[0].mxu0
    %v7730 = vpop.f32.mrb[0].mxu0
    %v7731 = vpop.f32.mrb[0].mxu0
    %7732 = vdwg.mxu0
    %7734 = vrot.lane.b32.xlu0 %v7437, 124
    %v7735 = vpop.permute.xlu0 %7734
    %v7737 = vsel %vm1476, %v7437, 0
    %v7740 = vsel %vm1476, %v7735, 0
    %7742 = vmatprep.subr.bf16.mxu0 0
    %7743 = vmatpush1.bf16.xpose.msra.mxu0 %v7740
    %7744 = vmatprep.subr.bf16.mxu0 0
    %7745 = vmatpush1.bf16.xpose.msra.mxu0 0
    %7746 = vmatprep.subr.bf16.mxu0 0
    %7747 = vmatpush1.bf16.xpose.msra.mxu0 0
    %7748 = vmatprep.subr.bf16.mxu0 0
    %7749 = vmatpush1.bf16.xpose.msra.mxu0 0
    %7750 = vmatprep.subr.bf16.mxu0 0
    %7751 = vmatpush1.bf16.xpose.msra.mxu0 0
    %7752 = vmatprep.subr.bf16.mxu0 0
    %7753 = vmatpush1.bf16.xpose.msra.mxu0 0
    %7754 = vmatprep.subr.bf16.mxu0 0
    %7755 = vmatpush1.bf16.xpose.msra.mxu0 0
    %7756 = vmatprep.subr.bf16.mxu0 0
    %7757 = vmatpush1.bf16.xpose.msra.mxu0 0
    %7758 = vmatprep.subr.bf16.mxu0 0
    %7759 = vmatpush1.bf16.xpose.msra.mxu0 0
    %7760 = vmatprep.subr.bf16.mxu0 0
    %7761 = vmatpush1.bf16.xpose.msra.mxu0 0
    %7762 = vmatprep.subr.bf16.mxu0 0
    %7763 = vmatpush1.bf16.xpose.msra.mxu0 0
    %7764 = vmatprep.subr.bf16.mxu0 0
    %7765 = vmatpush1.bf16.xpose.msra.mxu0 0
    %7766 = vmatprep.subr.bf16.mxu0 0
    %7767 = vmatpush1.bf16.xpose.msra.mxu0 0
    %7768 = vmatprep.subr.bf16.mxu0 0
    %7769 = vmatpush1.bf16.xpose.msra.mxu0 0
    %7770 = vmatprep.subr.bf16.mxu0 0
    %7771 = vmatpush1.bf16.xpose.msra.mxu0 0
    %7772 = vmatprep.subr.bf16.mxu0 0
    %7773 = vmatpush1.bf16.xpose.msra.mxu0 0
    %7774 = vmatprep.mubr.bf16.mxu0 0
    %7775 = vmatmul.mubr.bf16.gmra.mrb[0].mxu0 %v7737
    %v7776 = vpop.f32.mrb[0].mxu0
    %v7777 = vadd.f32 %v3133, %v7776
    %v7778 = vpop.f32.mrb[0].mxu0
    %v7779 = vpop.f32.mrb[0].mxu0
    %v7780 = vpop.f32.mrb[0].mxu0
    %7781 = vdwg.mxu0
    %7783 = vrot.lane.b32.xlu0 %v7438, 124
    %v7784 = vpop.permute.xlu0 %7783
    %v7786 = vsel %vm1476, %v7438, 0
    %v7789 = vsel %vm1476, %v7784, 0
    %7791 = vmatprep.subr.bf16.mxu0 0
    %7792 = vmatpush1.bf16.xpose.msra.mxu0 %v7789
    %7793 = vmatprep.subr.bf16.mxu0 0
    %7794 = vmatpush1.bf16.xpose.msra.mxu0 0
    %7795 = vmatprep.subr.bf16.mxu0 0
    %7796 = vmatpush1.bf16.xpose.msra.mxu0 0
    %7797 = vmatprep.subr.bf16.mxu0 0
    %7798 = vmatpush1.bf16.xpose.msra.mxu0 0
    %7799 = vmatprep.subr.bf16.mxu0 0
    %7800 = vmatpush1.bf16.xpose.msra.mxu0 0
    %7801 = vmatprep.subr.bf16.mxu0 0
    %7802 = vmatpush1.bf16.xpose.msra.mxu0 0
    %7803 = vmatprep.subr.bf16.mxu0 0
    %7804 = vmatpush1.bf16.xpose.msra.mxu0 0
    %7805 = vmatprep.subr.bf16.mxu0 0
    %7806 = vmatpush1.bf16.xpose.msra.mxu0 0
    %7807 = vmatprep.subr.bf16.mxu0 0
    %7808 = vmatpush1.bf16.xpose.msra.mxu0 0
    %7809 = vmatprep.subr.bf16.mxu0 0
    %7810 = vmatpush1.bf16.xpose.msra.mxu0 0
    %7811 = vmatprep.subr.bf16.mxu0 0
    %7812 = vmatpush1.bf16.xpose.msra.mxu0 0
    %7813 = vmatprep.subr.bf16.mxu0 0
    %7814 = vmatpush1.bf16.xpose.msra.mxu0 0
    %7815 = vmatprep.subr.bf16.mxu0 0
    %7816 = vmatpush1.bf16.xpose.msra.mxu0 0
    %7817 = vmatprep.subr.bf16.mxu0 0
    %7818 = vmatpush1.bf16.xpose.msra.mxu0 0
    %7819 = vmatprep.subr.bf16.mxu0 0
    %7820 = vmatpush1.bf16.xpose.msra.mxu0 0
    %7821 = vmatprep.subr.bf16.mxu0 0
    %7822 = vmatpush1.bf16.xpose.msra.mxu0 0
    %7823 = vmatprep.mubr.bf16.mxu0 0
    %7824 = vmatmul.mubr.bf16.gmra.mrb[0].mxu0 %v7786
    %v7825 = vpop.f32.mrb[0].mxu0
    %v7826 = vadd.f32 %v3133, %v7825
    %v7827 = vpop.f32.mrb[0].mxu0
    %v7828 = vpop.f32.mrb[0].mxu0
    %v7829 = vpop.f32.mrb[0].mxu0
    %7830 = vdwg.mxu0
    %v7831 = vsel %vm1866, %v7483, -inf
    %7832 = vmax.xlane.f32.xlu0 %v7831
    %v7833 = vpop.xlane.xlu0 %7832
    %v7834 = vsel %vm1866, %v7532, -inf
    %7835 = vmax.xlane.f32.xlu0 %v7834
    %v7836 = vpop.xlane.xlu0 %7835
    %v7837 = vsel %vm1866, %v7581, -inf
    %7838 = vmax.xlane.f32.xlu0 %v7837
    %v7839 = vpop.xlane.xlu0 %7838
    %v7840 = vsel %vm1866, %v7630, -inf
    %7841 = vmax.xlane.f32.xlu0 %v7840
    %v7842 = vpop.xlane.xlu0 %7841
    %v7843 = vsel %vm1866, %v7679, -inf
    %7844 = vmax.xlane.f32.xlu0 %v7843
    %v7845 = vpop.xlane.xlu0 %7844
    %v7846 = vsel %vm1866, %v7728, -inf
    %7847 = vmax.xlane.f32.xlu0 %v7846
    %v7848 = vpop.xlane.xlu0 %7847
    %v7849 = vsel %vm1866, %v7777, -inf
    %7850 = vmax.xlane.f32.xlu0 %v7849
    %v7851 = vpop.xlane.xlu0 %7850
    %v7852 = vsel %vm1866, %v7826, -inf
    %7853 = vmax.xlane.f32.xlu0 %v7852
    %v7854 = vpop.xlane.xlu0 %7853
    %v7855 = vsub.f32 %v7483, %v7833
    %v7856 = vsub.f32 %v7532, %v7836
    %v7857 = vsub.f32 %v7581, %v7839
    %v7858 = vsub.f32 %v7630, %v7842
    %v7859 = vsub.f32 %v7679, %v7845
    %v7860 = vsub.f32 %v7728, %v7848
    %v7861 = vsub.f32 %v7777, %v7851
    %v7862 = vsub.f32 %v7826, %v7854
    %v7863 = vmul.f32 %v7855, 1.442695
    %v7864 = vpow.pop %v7863
    %v7865 = vmul.f32 %v7856, 1.442695
    %v7866 = vpow.pop %v7865
    %v7867 = vmul.f32 %v7857, 1.442695
    %v7868 = vpow.pop %v7867
    %v7869 = vmul.f32 %v7858, 1.442695
    %v7870 = vpow.pop %v7869
    %v7871 = vmul.f32 %v7859, 1.442695
    %v7872 = vpow.pop %v7871
    %v7873 = vmul.f32 %v7860, 1.442695
    %v7874 = vpow.pop %v7873
    %v7875 = vmul.f32 %v7861, 1.442695
    %v7876 = vpow.pop %v7875
    %v7877 = vmul.f32 %v7862, 1.442695
    %v7878 = vpow.pop %v7877
    %v7879 = vsel %vm1866, %v7864, 0.0
    %7880 = vadd.xlane.f32.xlu0 %v7879
    %v7881 = vpop.xlane.xlu0 %7880
    %v7882 = vsel %vm1866, %v7866, 0.0
    %7883 = vadd.xlane.f32.xlu0 %v7882
    %v7884 = vpop.xlane.xlu0 %7883
    %v7885 = vsel %vm1866, %v7868, 0.0
    %7886 = vadd.xlane.f32.xlu0 %v7885
    %v7887 = vpop.xlane.xlu0 %7886
    %v7888 = vsel %vm1866, %v7870, 0.0
    %7889 = vadd.xlane.f32.xlu0 %v7888
    %v7890 = vpop.xlane.xlu0 %7889
    %v7891 = vsel %vm1866, %v7872, 0.0
    %7892 = vadd.xlane.f32.xlu0 %v7891
    %v7893 = vpop.xlane.xlu0 %7892
    %v7894 = vsel %vm1866, %v7874, 0.0
    %7895 = vadd.xlane.f32.xlu0 %v7894
    %v7896 = vpop.xlane.xlu0 %7895
    %v7897 = vsel %vm1866, %v7876, 0.0
    %7898 = vadd.xlane.f32.xlu0 %v7897
    %v7899 = vpop.xlane.xlu0 %7898
    %v7900 = vsel %vm1866, %v7878, 0.0
    %7901 = vadd.xlane.f32.xlu0 %v7900
    %v7902 = vpop.xlane.xlu0 %7901
    %v7903 = vrcp.pop %v7881
    %v7904 = vrcp.pop %v7884
    %v7905 = vrcp.pop %v7887
    %v7906 = vrcp.pop %v7890
    %v7907 = vrcp.pop %v7893
    %v7908 = vrcp.pop %v7896
    %v7909 = vrcp.pop %v7899
    %v7910 = vrcp.pop %v7902
    %v7911 = vmul.f32 %v7864, %v7903
    %v7912 = vmul.f32 %v7866, %v7904
    %v7913 = vmul.f32 %v7868, %v7905
    %v7914 = vmul.f32 %v7870, %v7906
    %v7915 = vmul.f32 %v7872, %v7907
    %v7916 = vmul.f32 %v7874, %v7908
    %v7917 = vmul.f32 %v7876, %v7909
    %v7918 = vmul.f32 %v7878, %v7910
    %v7919 = vpack.c.bf16 %v7911, %v7911
    %v7920 = vpack.c.bf16 %v7912, %v7912
    %v7921 = vpack.c.bf16 %v7913, %v7913
    %v7922 = vpack.c.bf16 %v7914, %v7914
    %v7923 = vpack.c.bf16 %v7915, %v7915
    %v7924 = vpack.c.bf16 %v7916, %v7916
    %v7925 = vpack.c.bf16 %v7917, %v7917
    %v7926 = vpack.c.bf16 %v7918, %v7918
    %7927 = vrot.lane.b32.xlu0 %v7431, 120
    %v7928 = vpop.permute.xlu0 %7927
    %v7930 = vsel %vm1965, %v7919, 0
    %v7933 = vsel %vm166, %v7928, 0
    %7935 = vmatprep.subr.bf16.mxu0 0
    %7936 = vmatpush1.bf16.msra.mxu0 %v7933
    %7937 = vmatprep.subr.bf16.mxu0 0
    %7938 = vmatpush1.bf16.msra.mxu0 0
    %7939 = vmatprep.subr.bf16.mxu0 0
    %7940 = vmatpush1.bf16.msra.mxu0 0
    %7941 = vmatprep.subr.bf16.mxu0 0
    %7942 = vmatpush1.bf16.msra.mxu0 0
    %7943 = vmatprep.subr.bf16.mxu0 0
    %7944 = vmatpush1.bf16.msra.mxu0 0
    %7945 = vmatprep.subr.bf16.mxu0 0
    %7946 = vmatpush1.bf16.msra.mxu0 0
    %7947 = vmatprep.subr.bf16.mxu0 0
    %7948 = vmatpush1.bf16.msra.mxu0 0
    %7949 = vmatprep.subr.bf16.mxu0 0
    %7950 = vmatpush1.bf16.msra.mxu0 0
    %7951 = vmatprep.subr.bf16.mxu0 0
    %7952 = vmatpush1.bf16.msra.mxu0 0
    %7953 = vmatprep.subr.bf16.mxu0 0
    %7954 = vmatpush1.bf16.msra.mxu0 0
    %7955 = vmatprep.subr.bf16.mxu0 0
    %7956 = vmatpush1.bf16.msra.mxu0 0
    %7957 = vmatprep.subr.bf16.mxu0 0
    %7958 = vmatpush1.bf16.msra.mxu0 0
    %7959 = vmatprep.subr.bf16.mxu0 0
    %7960 = vmatpush1.bf16.msra.mxu0 0
    %7961 = vmatprep.subr.bf16.mxu0 0
    %7962 = vmatpush1.bf16.msra.mxu0 0
    %7963 = vmatprep.subr.bf16.mxu0 0
    %7964 = vmatpush1.bf16.msra.mxu0 0
    %7965 = vmatprep.subr.bf16.mxu0 0
    %7966 = vmatpush1.bf16.msra.mxu0 0
    %7967 = vmatprep.mubr.bf16.mxu0 0
    %7968 = vmatmul.mubr.bf16.gmra.mrb[0].mxu0 %v7930
    %v7969 = vpop.f32.mrb[0].mxu0
    %v7970 = vadd.f32 0.0, %v7969
    %v7971 = vpop.f32.mrb[0].mxu0
    %v7972 = vpop.f32.mrb[0].mxu0
    %v7973 = vpop.f32.mrb[0].mxu0
    %7974 = vdwg.mxu0
    %7975 = vrot.lane.b32.xlu0 %v7432, 120
    %v7976 = vpop.permute.xlu0 %7975
    %v7978 = vsel %vm1965, %v7920, 0
    %v7981 = vsel %vm166, %v7976, 0
    %7983 = vmatprep.subr.bf16.mxu0 0
    %7984 = vmatpush1.bf16.msra.mxu0 %v7981
    %7985 = vmatprep.subr.bf16.mxu0 0
    %7986 = vmatpush1.bf16.msra.mxu0 0
    %7987 = vmatprep.subr.bf16.mxu0 0
    %7988 = vmatpush1.bf16.msra.mxu0 0
    %7989 = vmatprep.subr.bf16.mxu0 0
    %7990 = vmatpush1.bf16.msra.mxu0 0
    %7991 = vmatprep.subr.bf16.mxu0 0
    %7992 = vmatpush1.bf16.msra.mxu0 0
    %7993 = vmatprep.subr.bf16.mxu0 0
    %7994 = vmatpush1.bf16.msra.mxu0 0
    %7995 = vmatprep.subr.bf16.mxu0 0
    %7996 = vmatpush1.bf16.msra.mxu0 0
    %7997 = vmatprep.subr.bf16.mxu0 0
    %7998 = vmatpush1.bf16.msra.mxu0 0
    %7999 = vmatprep.subr.bf16.mxu0 0
    %8000 = vmatpush1.bf16.msra.mxu0 0
    %8001 = vmatprep.subr.bf16.mxu0 0
    %8002 = vmatpush1.bf16.msra.mxu0 0
    %8003 = vmatprep.subr.bf16.mxu0 0
    %8004 = vmatpush1.bf16.msra.mxu0 0
    %8005 = vmatprep.subr.bf16.mxu0 0
    %8006 = vmatpush1.bf16.msra.mxu0 0
    %8007 = vmatprep.subr.bf16.mxu0 0
    %8008 = vmatpush1.bf16.msra.mxu0 0
    %8009 = vmatprep.subr.bf16.mxu0 0
    %8010 = vmatpush1.bf16.msra.mxu0 0
    %8011 = vmatprep.subr.bf16.mxu0 0
    %8012 = vmatpush1.bf16.msra.mxu0 0
    %8013 = vmatprep.subr.bf16.mxu0 0
    %8014 = vmatpush1.bf16.msra.mxu0 0
    %8015 = vmatprep.mubr.bf16.mxu0 0
    %8016 = vmatmul.mubr.bf16.gmra.mrb[0].mxu0 %v7978
    %v8017 = vpop.f32.mrb[0].mxu0
    %v8018 = vadd.f32 0.0, %v8017
    %v8019 = vpop.f32.mrb[0].mxu0
    %v8020 = vpop.f32.mrb[0].mxu0
    %v8021 = vpop.f32.mrb[0].mxu0
    %8022 = vdwg.mxu0
    %8023 = vrot.lane.b32.xlu0 %v7433, 120
    %v8024 = vpop.permute.xlu0 %8023
    %v8026 = vsel %vm1965, %v7921, 0
    %v8029 = vsel %vm166, %v8024, 0
    %8031 = vmatprep.subr.bf16.mxu0 0
    %8032 = vmatpush1.bf16.msra.mxu0 %v8029
    %8033 = vmatprep.subr.bf16.mxu0 0
    %8034 = vmatpush1.bf16.msra.mxu0 0
    %8035 = vmatprep.subr.bf16.mxu0 0
    %8036 = vmatpush1.bf16.msra.mxu0 0
    %8037 = vmatprep.subr.bf16.mxu0 0
    %8038 = vmatpush1.bf16.msra.mxu0 0
    %8039 = vmatprep.subr.bf16.mxu0 0
    %8040 = vmatpush1.bf16.msra.mxu0 0
    %8041 = vmatprep.subr.bf16.mxu0 0
    %8042 = vmatpush1.bf16.msra.mxu0 0
    %8043 = vmatprep.subr.bf16.mxu0 0
    %8044 = vmatpush1.bf16.msra.mxu0 0
    %8045 = vmatprep.subr.bf16.mxu0 0
    %8046 = vmatpush1.bf16.msra.mxu0 0
    %8047 = vmatprep.subr.bf16.mxu0 0
    %8048 = vmatpush1.bf16.msra.mxu0 0
    %8049 = vmatprep.subr.bf16.mxu0 0
    %8050 = vmatpush1.bf16.msra.mxu0 0
    %8051 = vmatprep.subr.bf16.mxu0 0
    %8052 = vmatpush1.bf16.msra.mxu0 0
    %8053 = vmatprep.subr.bf16.mxu0 0
    %8054 = vmatpush1.bf16.msra.mxu0 0
    %8055 = vmatprep.subr.bf16.mxu0 0
    %8056 = vmatpush1.bf16.msra.mxu0 0
    %8057 = vmatprep.subr.bf16.mxu0 0
    %8058 = vmatpush1.bf16.msra.mxu0 0
    %8059 = vmatprep.subr.bf16.mxu0 0
    %8060 = vmatpush1.bf16.msra.mxu0 0
    %8061 = vmatprep.subr.bf16.mxu0 0
    %8062 = vmatpush1.bf16.msra.mxu0 0
    %8063 = vmatprep.mubr.bf16.mxu0 0
    %8064 = vmatmul.mubr.bf16.gmra.mrb[0].mxu0 %v8026
    %v8065 = vpop.f32.mrb[0].mxu0
    %v8066 = vadd.f32 0.0, %v8065
    %v8067 = vpop.f32.mrb[0].mxu0
    %v8068 = vpop.f32.mrb[0].mxu0
    %v8069 = vpop.f32.mrb[0].mxu0
    %8070 = vdwg.mxu0
    %8071 = vrot.lane.b32.xlu0 %v7434, 120
    %v8072 = vpop.permute.xlu0 %8071
    %v8074 = vsel %vm1965, %v7922, 0
    %v8077 = vsel %vm166, %v8072, 0
    %8079 = vmatprep.subr.bf16.mxu0 0
    %8080 = vmatpush1.bf16.msra.mxu0 %v8077
    %8081 = vmatprep.subr.bf16.mxu0 0
    %8082 = vmatpush1.bf16.msra.mxu0 0
    %8083 = vmatprep.subr.bf16.mxu0 0
    %8084 = vmatpush1.bf16.msra.mxu0 0
    %8085 = vmatprep.subr.bf16.mxu0 0
    %8086 = vmatpush1.bf16.msra.mxu0 0
    %8087 = vmatprep.subr.bf16.mxu0 0
    %8088 = vmatpush1.bf16.msra.mxu0 0
    %8089 = vmatprep.subr.bf16.mxu0 0
    %8090 = vmatpush1.bf16.msra.mxu0 0
    %8091 = vmatprep.subr.bf16.mxu0 0
    %8092 = vmatpush1.bf16.msra.mxu0 0
    %8093 = vmatprep.subr.bf16.mxu0 0
    %8094 = vmatpush1.bf16.msra.mxu0 0
    %8095 = vmatprep.subr.bf16.mxu0 0
    %8096 = vmatpush1.bf16.msra.mxu0 0
    %8097 = vmatprep.subr.bf16.mxu0 0
    %8098 = vmatpush1.bf16.msra.mxu0 0
    %8099 = vmatprep.subr.bf16.mxu0 0
    %8100 = vmatpush1.bf16.msra.mxu0 0
    %8101 = vmatprep.subr.bf16.mxu0 0
    %8102 = vmatpush1.bf16.msra.mxu0 0
    %8103 = vmatprep.subr.bf16.mxu0 0
    %8104 = vmatpush1.bf16.msra.mxu0 0
    %8105 = vmatprep.subr.bf16.mxu0 0
    %8106 = vmatpush1.bf16.msra.mxu0 0
    %8107 = vmatprep.subr.bf16.mxu0 0
    %8108 = vmatpush1.bf16.msra.mxu0 0
    %8109 = vmatprep.subr.bf16.mxu0 0
    %8110 = vmatpush1.bf16.msra.mxu0 0
    %8111 = vmatprep.mubr.bf16.mxu0 0
    %8112 = vmatmul.mubr.bf16.gmra.mrb[0].mxu0 %v8074
    %v8113 = vpop.f32.mrb[0].mxu0
    %v8114 = vadd.f32 0.0, %v8113
    %v8115 = vpop.f32.mrb[0].mxu0
    %v8116 = vpop.f32.mrb[0].mxu0
    %v8117 = vpop.f32.mrb[0].mxu0
    %8118 = vdwg.mxu0
    %8119 = vrot.lane.b32.xlu0 %v7435, 120
    %v8120 = vpop.permute.xlu0 %8119
    %v8122 = vsel %vm1965, %v7923, 0
    %v8125 = vsel %vm166, %v8120, 0
    %8127 = vmatprep.subr.bf16.mxu0 0
    %8128 = vmatpush1.bf16.msra.mxu0 %v8125
    %8129 = vmatprep.subr.bf16.mxu0 0
    %8130 = vmatpush1.bf16.msra.mxu0 0
    %8131 = vmatprep.subr.bf16.mxu0 0
    %8132 = vmatpush1.bf16.msra.mxu0 0
    %8133 = vmatprep.subr.bf16.mxu0 0
    %8134 = vmatpush1.bf16.msra.mxu0 0
    %8135 = vmatprep.subr.bf16.mxu0 0
    %8136 = vmatpush1.bf16.msra.mxu0 0
    %8137 = vmatprep.subr.bf16.mxu0 0
    %8138 = vmatpush1.bf16.msra.mxu0 0
    %8139 = vmatprep.subr.bf16.mxu0 0
    %8140 = vmatpush1.bf16.msra.mxu0 0
    %8141 = vmatprep.subr.bf16.mxu0 0
    %8142 = vmatpush1.bf16.msra.mxu0 0
    %8143 = vmatprep.subr.bf16.mxu0 0
    %8144 = vmatpush1.bf16.msra.mxu0 0
    %8145 = vmatprep.subr.bf16.mxu0 0
    %8146 = vmatpush1.bf16.msra.mxu0 0
    %8147 = vmatprep.subr.bf16.mxu0 0
    %8148 = vmatpush1.bf16.msra.mxu0 0
    %8149 = vmatprep.subr.bf16.mxu0 0
    %8150 = vmatpush1.bf16.msra.mxu0 0
    %8151 = vmatprep.subr.bf16.mxu0 0
    %8152 = vmatpush1.bf16.msra.mxu0 0
    %8153 = vmatprep.subr.bf16.mxu0 0
    %8154 = vmatpush1.bf16.msra.mxu0 0
    %8155 = vmatprep.subr.bf16.mxu0 0
    %8156 = vmatpush1.bf16.msra.mxu0 0
    %8157 = vmatprep.subr.bf16.mxu0 0
    %8158 = vmatpush1.bf16.msra.mxu0 0
    %8159 = vmatprep.mubr.bf16.mxu0 0
    %8160 = vmatmul.mubr.bf16.gmra.mrb[0].mxu0 %v8122
    %v8161 = vpop.f32.mrb[0].mxu0
    %v8162 = vadd.f32 0.0, %v8161
    %v8163 = vpop.f32.mrb[0].mxu0
    %v8164 = vpop.f32.mrb[0].mxu0
    %v8165 = vpop.f32.mrb[0].mxu0
    %8166 = vdwg.mxu0
    %8167 = vrot.lane.b32.xlu0 %v7436, 120
    %v8168 = vpop.permute.xlu0 %8167
    %v8170 = vsel %vm1965, %v7924, 0
    %v8173 = vsel %vm166, %v8168, 0
    %8175 = vmatprep.subr.bf16.mxu0 0
    %8176 = vmatpush1.bf16.msra.mxu0 %v8173
    %8177 = vmatprep.subr.bf16.mxu0 0
    %8178 = vmatpush1.bf16.msra.mxu0 0
    %8179 = vmatprep.subr.bf16.mxu0 0
    %8180 = vmatpush1.bf16.msra.mxu0 0
    %8181 = vmatprep.subr.bf16.mxu0 0
    %8182 = vmatpush1.bf16.msra.mxu0 0
    %8183 = vmatprep.subr.bf16.mxu0 0
    %8184 = vmatpush1.bf16.msra.mxu0 0
    %8185 = vmatprep.subr.bf16.mxu0 0
    %8186 = vmatpush1.bf16.msra.mxu0 0
    %8187 = vmatprep.subr.bf16.mxu0 0
    %8188 = vmatpush1.bf16.msra.mxu0 0
    %8189 = vmatprep.subr.bf16.mxu0 0
    %8190 = vmatpush1.bf16.msra.mxu0 0
    %8191 = vmatprep.subr.bf16.mxu0 0
    %8192 = vmatpush1.bf16.msra.mxu0 0
    %8193 = vmatprep.subr.bf16.mxu0 0
    %8194 = vmatpush1.bf16.msra.mxu0 0
    %8195 = vmatprep.subr.bf16.mxu0 0
    %8196 = vmatpush1.bf16.msra.mxu0 0
    %8197 = vmatprep.subr.bf16.mxu0 0
    %8198 = vmatpush1.bf16.msra.mxu0 0
    %8199 = vmatprep.subr.bf16.mxu0 0
    %8200 = vmatpush1.bf16.msra.mxu0 0
    %8201 = vmatprep.subr.bf16.mxu0 0
    %8202 = vmatpush1.bf16.msra.mxu0 0
    %8203 = vmatprep.subr.bf16.mxu0 0
    %8204 = vmatpush1.bf16.msra.mxu0 0
    %8205 = vmatprep.subr.bf16.mxu0 0
    %8206 = vmatpush1.bf16.msra.mxu0 0
    %8207 = vmatprep.mubr.bf16.mxu0 0
    %8208 = vmatmul.mubr.bf16.gmra.mrb[0].mxu0 %v8170
    %v8209 = vpop.f32.mrb[0].mxu0
    %v8210 = vadd.f32 0.0, %v8209
    %v8211 = vpop.f32.mrb[0].mxu0
    %v8212 = vpop.f32.mrb[0].mxu0
    %v8213 = vpop.f32.mrb[0].mxu0
    %8214 = vdwg.mxu0
    %8215 = vrot.lane.b32.xlu0 %v7437, 120
    %v8216 = vpop.permute.xlu0 %8215
    %v8218 = vsel %vm1965, %v7925, 0
    %v8221 = vsel %vm166, %v8216, 0
    %8223 = vmatprep.subr.bf16.mxu0 0
    %8224 = vmatpush1.bf16.msra.mxu0 %v8221
    %8225 = vmatprep.subr.bf16.mxu0 0
    %8226 = vmatpush1.bf16.msra.mxu0 0
    %8227 = vmatprep.subr.bf16.mxu0 0
    %8228 = vmatpush1.bf16.msra.mxu0 0
    %8229 = vmatprep.subr.bf16.mxu0 0
    %8230 = vmatpush1.bf16.msra.mxu0 0
    %8231 = vmatprep.subr.bf16.mxu0 0
    %8232 = vmatpush1.bf16.msra.mxu0 0
    %8233 = vmatprep.subr.bf16.mxu0 0
    %8234 = vmatpush1.bf16.msra.mxu0 0
    %8235 = vmatprep.subr.bf16.mxu0 0
    %8236 = vmatpush1.bf16.msra.mxu0 0
    %8237 = vmatprep.subr.bf16.mxu0 0
    %8238 = vmatpush1.bf16.msra.mxu0 0
    %8239 = vmatprep.subr.bf16.mxu0 0
    %8240 = vmatpush1.bf16.msra.mxu0 0
    %8241 = vmatprep.subr.bf16.mxu0 0
    %8242 = vmatpush1.bf16.msra.mxu0 0
    %8243 = vmatprep.subr.bf16.mxu0 0
    %8244 = vmatpush1.bf16.msra.mxu0 0
    %8245 = vmatprep.subr.bf16.mxu0 0
    %8246 = vmatpush1.bf16.msra.mxu0 0
    %8247 = vmatprep.subr.bf16.mxu0 0
    %8248 = vmatpush1.bf16.msra.mxu0 0
    %8249 = vmatprep.subr.bf16.mxu0 0
    %8250 = vmatpush1.bf16.msra.mxu0 0
    %8251 = vmatprep.subr.bf16.mxu0 0
    %8252 = vmatpush1.bf16.msra.mxu0 0
    %8253 = vmatprep.subr.bf16.mxu0 0
    %8254 = vmatpush1.bf16.msra.mxu0 0
    %8255 = vmatprep.mubr.bf16.mxu0 0
    %8256 = vmatmul.mubr.bf16.gmra.mrb[0].mxu0 %v8218
    %v8257 = vpop.f32.mrb[0].mxu0
    %v8258 = vadd.f32 0.0, %v8257
    %v8259 = vpop.f32.mrb[0].mxu0
    %v8260 = vpop.f32.mrb[0].mxu0
    %v8261 = vpop.f32.mrb[0].mxu0
    %8262 = vdwg.mxu0
    %8263 = vrot.lane.b32.xlu0 %v7438, 120
    %v8264 = vpop.permute.xlu0 %8263
    %v8266 = vsel %vm1965, %v7926, 0
    %v8269 = vsel %vm166, %v8264, 0
    %8271 = vmatprep.subr.bf16.mxu0 0
    %8272 = vmatpush1.bf16.msra.mxu0 %v8269
    %8273 = vmatprep.subr.bf16.mxu0 0
    %8274 = vmatpush1.bf16.msra.mxu0 0
    %8275 = vmatprep.subr.bf16.mxu0 0
    %8276 = vmatpush1.bf16.msra.mxu0 0
    %8277 = vmatprep.subr.bf16.mxu0 0
    %8278 = vmatpush1.bf16.msra.mxu0 0
    %8279 = vmatprep.subr.bf16.mxu0 0
    %8280 = vmatpush1.bf16.msra.mxu0 0
    %8281 = vmatprep.subr.bf16.mxu0 0
    %8282 = vmatpush1.bf16.msra.mxu0 0
    %8283 = vmatprep.subr.bf16.mxu0 0
    %8284 = vmatpush1.bf16.msra.mxu0 0
    %8285 = vmatprep.subr.bf16.mxu0 0
    %8286 = vmatpush1.bf16.msra.mxu0 0
    %8287 = vmatprep.subr.bf16.mxu0 0
    %8288 = vmatpush1.bf16.msra.mxu0 0
    %8289 = vmatprep.subr.bf16.mxu0 0
    %8290 = vmatpush1.bf16.msra.mxu0 0
    %8291 = vmatprep.subr.bf16.mxu0 0
    %8292 = vmatpush1.bf16.msra.mxu0 0
    %8293 = vmatprep.subr.bf16.mxu0 0
    %8294 = vmatpush1.bf16.msra.mxu0 0
    %8295 = vmatprep.subr.bf16.mxu0 0
    %8296 = vmatpush1.bf16.msra.mxu0 0
    %8297 = vmatprep.subr.bf16.mxu0 0
    %8298 = vmatpush1.bf16.msra.mxu0 0
    %8299 = vmatprep.subr.bf16.mxu0 0
    %8300 = vmatpush1.bf16.msra.mxu0 0
    %8301 = vmatprep.subr.bf16.mxu0 0
    %8302 = vmatpush1.bf16.msra.mxu0 0
    %8303 = vmatprep.mubr.bf16.mxu0 0
    %8304 = vmatmul.mubr.bf16.gmra.mrb[0].mxu0 %v8266
    %v8305 = vpop.f32.mrb[0].mxu0
    %v8306 = vadd.f32 0.0, %v8305
    %v8307 = vpop.f32.mrb[0].mxu0
    %v8308 = vpop.f32.mrb[0].mxu0
    %v8309 = vpop.f32.mrb[0].mxu0
    %8310 = vdwg.mxu0
    %v8311 = vpack.c.bf16 %v7970, %v7970
    %v8312 = vpack.c.bf16 %v8018, %v8018
    %v8313 = vpack.c.bf16 %v8066, %v8066
    %v8314 = vpack.c.bf16 %v8114, %v8114
    %v8315 = vpack.c.bf16 %v8162, %v8162
    %v8316 = vpack.c.bf16 %v8210, %v8210
    %v8317 = vpack.c.bf16 %v8258, %v8258
    %v8318 = vpack.c.bf16 %v8306, %v8306
    %v8320 = vsel %vm1476, %v8311, 0
    %8322 = vmatprep.subr.bf16.mxu0 0
    %8323 = vmatpush1.bf16.msra.mxu0 %v6678
    %8324 = vmatprep.subr.bf16.mxu0 0
    %8325 = vmatpush1.bf16.msra.mxu0 0
    %8326 = vmatprep.subr.bf16.mxu0 0
    %8327 = vmatpush1.bf16.msra.mxu0 0
    %8328 = vmatprep.subr.bf16.mxu0 0
    %8329 = vmatpush1.bf16.msra.mxu0 0
    %8330 = vmatprep.subr.bf16.mxu0 0
    %8331 = vmatpush1.bf16.msra.mxu0 0
    %8332 = vmatprep.subr.bf16.mxu0 0
    %8333 = vmatpush1.bf16.msra.mxu0 0
    %8334 = vmatprep.subr.bf16.mxu0 0
    %8335 = vmatpush1.bf16.msra.mxu0 0
    %8336 = vmatprep.subr.bf16.mxu0 0
    %8337 = vmatpush1.bf16.msra.mxu0 0
    %8338 = vmatprep.subr.bf16.mxu0 0
    %8339 = vmatpush1.bf16.msra.mxu0 0
    %8340 = vmatprep.subr.bf16.mxu0 0
    %8341 = vmatpush1.bf16.msra.mxu0 0
    %8342 = vmatprep.subr.bf16.mxu0 0
    %8343 = vmatpush1.bf16.msra.mxu0 0
    %8344 = vmatprep.subr.bf16.mxu0 0
    %8345 = vmatpush1.bf16.msra.mxu0 0
    %8346 = vmatprep.subr.bf16.mxu0 0
    %8347 = vmatpush1.bf16.msra.mxu0 0
    %8348 = vmatprep.subr.bf16.mxu0 0
    %8349 = vmatpush1.bf16.msra.mxu0 0
    %8350 = vmatprep.subr.bf16.mxu0 0
    %8351 = vmatpush1.bf16.msra.mxu0 0
    %8352 = vmatprep.subr.bf16.mxu0 0
    %8353 = vmatpush1.bf16.msra.mxu0 0
    %8354 = vmatprep.mubr.bf16.mxu0 0
    %8355 = vmatmul.mubr.bf16.gmra.mrb[0].mxu0 %v8320
    %v8356 = vpop.f32.mrb[0].mxu0
    %v8357 = vadd.f32 0.0, %v8356
    %v8358 = vpop.f32.mrb[0].mxu0
    %v8359 = vpop.f32.mrb[0].mxu0
    %v8360 = vpop.f32.mrb[0].mxu0
    %8361 = vdwg.mxu0
    %v8363 = vsel %vm1476, %v8312, 0
    %8365 = vmatprep.subr.bf16.mxu0 0
    %8366 = vmatpush1.bf16.msra.mxu0 %v6724
    %8367 = vmatprep.subr.bf16.mxu0 0
    %8368 = vmatpush1.bf16.msra.mxu0 0
    %8369 = vmatprep.subr.bf16.mxu0 0
    %8370 = vmatpush1.bf16.msra.mxu0 0
    %8371 = vmatprep.subr.bf16.mxu0 0
    %8372 = vmatpush1.bf16.msra.mxu0 0
    %8373 = vmatprep.subr.bf16.mxu0 0
    %8374 = vmatpush1.bf16.msra.mxu0 0
    %8375 = vmatprep.subr.bf16.mxu0 0
    %8376 = vmatpush1.bf16.msra.mxu0 0
    %8377 = vmatprep.subr.bf16.mxu0 0
    %8378 = vmatpush1.bf16.msra.mxu0 0
    %8379 = vmatprep.subr.bf16.mxu0 0
    %8380 = vmatpush1.bf16.msra.mxu0 0
    %8381 = vmatprep.subr.bf16.mxu0 0
    %8382 = vmatpush1.bf16.msra.mxu0 0
    %8383 = vmatprep.subr.bf16.mxu0 0
    %8384 = vmatpush1.bf16.msra.mxu0 0
    %8385 = vmatprep.subr.bf16.mxu0 0
    %8386 = vmatpush1.bf16.msra.mxu0 0
    %8387 = vmatprep.subr.bf16.mxu0 0
    %8388 = vmatpush1.bf16.msra.mxu0 0
    %8389 = vmatprep.subr.bf16.mxu0 0
    %8390 = vmatpush1.bf16.msra.mxu0 0
    %8391 = vmatprep.subr.bf16.mxu0 0
    %8392 = vmatpush1.bf16.msra.mxu0 0
    %8393 = vmatprep.subr.bf16.mxu0 0
    %8394 = vmatpush1.bf16.msra.mxu0 0
    %8395 = vmatprep.subr.bf16.mxu0 0
    %8396 = vmatpush1.bf16.msra.mxu0 0
    %8397 = vmatprep.mubr.bf16.mxu0 0
    %8398 = vmatmul.mubr.bf16.gmra.mrb[0].mxu0 %v8363
    %v8399 = vpop.f32.mrb[0].mxu0
    %v8400 = vadd.f32 0.0, %v8399
    %v8401 = vpop.f32.mrb[0].mxu0
    %v8402 = vpop.f32.mrb[0].mxu0
    %v8403 = vpop.f32.mrb[0].mxu0
    %8404 = vdwg.mxu0
    %v8406 = vsel %vm1476, %v8313, 0
    %8408 = vmatprep.subr.bf16.mxu0 0
    %8409 = vmatpush1.bf16.msra.mxu0 %v6770
    %8410 = vmatprep.subr.bf16.mxu0 0
    %8411 = vmatpush1.bf16.msra.mxu0 0
    %8412 = vmatprep.subr.bf16.mxu0 0
    %8413 = vmatpush1.bf16.msra.mxu0 0
    %8414 = vmatprep.subr.bf16.mxu0 0
    %8415 = vmatpush1.bf16.msra.mxu0 0
    %8416 = vmatprep.subr.bf16.mxu0 0
    %8417 = vmatpush1.bf16.msra.mxu0 0
    %8418 = vmatprep.subr.bf16.mxu0 0
    %8419 = vmatpush1.bf16.msra.mxu0 0
    %8420 = vmatprep.subr.bf16.mxu0 0
    %8421 = vmatpush1.bf16.msra.mxu0 0
    %8422 = vmatprep.subr.bf16.mxu0 0
    %8423 = vmatpush1.bf16.msra.mxu0 0
    %8424 = vmatprep.subr.bf16.mxu0 0
    %8425 = vmatpush1.bf16.msra.mxu0 0
    %8426 = vmatprep.subr.bf16.mxu0 0
    %8427 = vmatpush1.bf16.msra.mxu0 0
    %8428 = vmatprep.subr.bf16.mxu0 0
    %8429 = vmatpush1.bf16.msra.mxu0 0
    %8430 = vmatprep.subr.bf16.mxu0 0
    %8431 = vmatpush1.bf16.msra.mxu0 0
    %8432 = vmatprep.subr.bf16.mxu0 0
    %8433 = vmatpush1.bf16.msra.mxu0 0
    %8434 = vmatprep.subr.bf16.mxu0 0
    %8435 = vmatpush1.bf16.msra.mxu0 0
    %8436 = vmatprep.subr.bf16.mxu0 0
    %8437 = vmatpush1.bf16.msra.mxu0 0
    %8438 = vmatprep.subr.bf16.mxu0 0
    %8439 = vmatpush1.bf16.msra.mxu0 0
    %8440 = vmatprep.mubr.bf16.mxu0 0
    %8441 = vmatmul.mubr.bf16.gmra.mrb[0].mxu0 %v8406
    %v8442 = vpop.f32.mrb[0].mxu0
    %v8443 = vadd.f32 0.0, %v8442
    %v8444 = vpop.f32.mrb[0].mxu0
    %v8445 = vpop.f32.mrb[0].mxu0
    %v8446 = vpop.f32.mrb[0].mxu0
    %8447 = vdwg.mxu0
    %v8449 = vsel %vm1476, %v8314, 0
    %8451 = vmatprep.subr.bf16.mxu0 0
    %8452 = vmatpush1.bf16.msra.mxu0 %v6816
    %8453 = vmatprep.subr.bf16.mxu0 0
    %8454 = vmatpush1.bf16.msra.mxu0 0
    %8455 = vmatprep.subr.bf16.mxu0 0
    %8456 = vmatpush1.bf16.msra.mxu0 0
    %8457 = vmatprep.subr.bf16.mxu0 0
    %8458 = vmatpush1.bf16.msra.mxu0 0
    %8459 = vmatprep.subr.bf16.mxu0 0
    %8460 = vmatpush1.bf16.msra.mxu0 0
    %8461 = vmatprep.subr.bf16.mxu0 0
    %8462 = vmatpush1.bf16.msra.mxu0 0
    %8463 = vmatprep.subr.bf16.mxu0 0
    %8464 = vmatpush1.bf16.msra.mxu0 0
    %8465 = vmatprep.subr.bf16.mxu0 0
    %8466 = vmatpush1.bf16.msra.mxu0 0
    %8467 = vmatprep.subr.bf16.mxu0 0
    %8468 = vmatpush1.bf16.msra.mxu0 0
    %8469 = vmatprep.subr.bf16.mxu0 0
    %8470 = vmatpush1.bf16.msra.mxu0 0
    %8471 = vmatprep.subr.bf16.mxu0 0
    %8472 = vmatpush1.bf16.msra.mxu0 0
    %8473 = vmatprep.subr.bf16.mxu0 0
    %8474 = vmatpush1.bf16.msra.mxu0 0
    %8475 = vmatprep.subr.bf16.mxu0 0
    %8476 = vmatpush1.bf16.msra.mxu0 0
    %8477 = vmatprep.subr.bf16.mxu0 0
    %8478 = vmatpush1.bf16.msra.mxu0 0
    %8479 = vmatprep.subr.bf16.mxu0 0
    %8480 = vmatpush1.bf16.msra.mxu0 0
    %8481 = vmatprep.subr.bf16.mxu0 0
    %8482 = vmatpush1.bf16.msra.mxu0 0
    %8483 = vmatprep.mubr.bf16.mxu0 0
    %8484 = vmatmul.mubr.bf16.gmra.mrb[0].mxu0 %v8449
    %v8485 = vpop.f32.mrb[0].mxu0
    %v8486 = vadd.f32 0.0, %v8485
    %v8487 = vpop.f32.mrb[0].mxu0
    %v8488 = vpop.f32.mrb[0].mxu0
    %v8489 = vpop.f32.mrb[0].mxu0
    %8490 = vdwg.mxu0
    %v8492 = vsel %vm1476, %v8315, 0
    %8494 = vmatprep.subr.bf16.mxu0 0
    %8495 = vmatpush1.bf16.msra.mxu0 %v6862
    %8496 = vmatprep.subr.bf16.mxu0 0
    %8497 = vmatpush1.bf16.msra.mxu0 0
    %8498 = vmatprep.subr.bf16.mxu0 0
    %8499 = vmatpush1.bf16.msra.mxu0 0
    %8500 = vmatprep.subr.bf16.mxu0 0
    %8501 = vmatpush1.bf16.msra.mxu0 0
    %8502 = vmatprep.subr.bf16.mxu0 0
    %8503 = vmatpush1.bf16.msra.mxu0 0
    %8504 = vmatprep.subr.bf16.mxu0 0
    %8505 = vmatpush1.bf16.msra.mxu0 0
    %8506 = vmatprep.subr.bf16.mxu0 0
    %8507 = vmatpush1.bf16.msra.mxu0 0
    %8508 = vmatprep.subr.bf16.mxu0 0
    %8509 = vmatpush1.bf16.msra.mxu0 0
    %8510 = vmatprep.subr.bf16.mxu0 0
    %8511 = vmatpush1.bf16.msra.mxu0 0
    %8512 = vmatprep.subr.bf16.mxu0 0
    %8513 = vmatpush1.bf16.msra.mxu0 0
    %8514 = vmatprep.subr.bf16.mxu0 0
    %8515 = vmatpush1.bf16.msra.mxu0 0
    %8516 = vmatprep.subr.bf16.mxu0 0
    %8517 = vmatpush1.bf16.msra.mxu0 0
    %8518 = vmatprep.subr.bf16.mxu0 0
    %8519 = vmatpush1.bf16.msra.mxu0 0
    %8520 = vmatprep.subr.bf16.mxu0 0
    %8521 = vmatpush1.bf16.msra.mxu0 0
    %8522 = vmatprep.subr.bf16.mxu0 0
    %8523 = vmatpush1.bf16.msra.mxu0 0
    %8524 = vmatprep.subr.bf16.mxu0 0
    %8525 = vmatpush1.bf16.msra.mxu0 0
    %8526 = vmatprep.mubr.bf16.mxu0 0
    %8527 = vmatmul.mubr.bf16.gmra.mrb[0].mxu0 %v8492
    %v8528 = vpop.f32.mrb[0].mxu0
    %v8529 = vadd.f32 0.0, %v8528
    %v8530 = vpop.f32.mrb[0].mxu0
    %v8531 = vpop.f32.mrb[0].mxu0
    %v8532 = vpop.f32.mrb[0].mxu0
    %8533 = vdwg.mxu0
    %v8535 = vsel %vm1476, %v8316, 0
    %8537 = vmatprep.subr.bf16.mxu0 0
    %8538 = vmatpush1.bf16.msra.mxu0 %v6908
    %8539 = vmatprep.subr.bf16.mxu0 0
    %8540 = vmatpush1.bf16.msra.mxu0 0
    %8541 = vmatprep.subr.bf16.mxu0 0
    %8542 = vmatpush1.bf16.msra.mxu0 0
    %8543 = vmatprep.subr.bf16.mxu0 0
    %8544 = vmatpush1.bf16.msra.mxu0 0
    %8545 = vmatprep.subr.bf16.mxu0 0
    %8546 = vmatpush1.bf16.msra.mxu0 0
    %8547 = vmatprep.subr.bf16.mxu0 0
    %8548 = vmatpush1.bf16.msra.mxu0 0
    %8549 = vmatprep.subr.bf16.mxu0 0
    %8550 = vmatpush1.bf16.msra.mxu0 0
    %8551 = vmatprep.subr.bf16.mxu0 0
    %8552 = vmatpush1.bf16.msra.mxu0 0
    %8553 = vmatprep.subr.bf16.mxu0 0
    %8554 = vmatpush1.bf16.msra.mxu0 0
    %8555 = vmatprep.subr.bf16.mxu0 0
    %8556 = vmatpush1.bf16.msra.mxu0 0
    %8557 = vmatprep.subr.bf16.mxu0 0
    %8558 = vmatpush1.bf16.msra.mxu0 0
    %8559 = vmatprep.subr.bf16.mxu0 0
    %8560 = vmatpush1.bf16.msra.mxu0 0
    %8561 = vmatprep.subr.bf16.mxu0 0
    %8562 = vmatpush1.bf16.msra.mxu0 0
    %8563 = vmatprep.subr.bf16.mxu0 0
    %8564 = vmatpush1.bf16.msra.mxu0 0
    %8565 = vmatprep.subr.bf16.mxu0 0
    %8566 = vmatpush1.bf16.msra.mxu0 0
    %8567 = vmatprep.subr.bf16.mxu0 0
    %8568 = vmatpush1.bf16.msra.mxu0 0
    %8569 = vmatprep.mubr.bf16.mxu0 0
    %8570 = vmatmul.mubr.bf16.gmra.mrb[0].mxu0 %v8535
    %v8571 = vpop.f32.mrb[0].mxu0
    %v8572 = vadd.f32 0.0, %v8571
    %v8573 = vpop.f32.mrb[0].mxu0
    %v8574 = vpop.f32.mrb[0].mxu0
    %v8575 = vpop.f32.mrb[0].mxu0
    %8576 = vdwg.mxu0
    %v8578 = vsel %vm1476, %v8317, 0
    %8580 = vmatprep.subr.bf16.mxu0 0
    %8581 = vmatpush1.bf16.msra.mxu0 %v6954
    %8582 = vmatprep.subr.bf16.mxu0 0
    %8583 = vmatpush1.bf16.msra.mxu0 0
    %8584 = vmatprep.subr.bf16.mxu0 0
    %8585 = vmatpush1.bf16.msra.mxu0 0
    %8586 = vmatprep.subr.bf16.mxu0 0
    %8587 = vmatpush1.bf16.msra.mxu0 0
    %8588 = vmatprep.subr.bf16.mxu0 0
    %8589 = vmatpush1.bf16.msra.mxu0 0
    %8590 = vmatprep.subr.bf16.mxu0 0
    %8591 = vmatpush1.bf16.msra.mxu0 0
    %8592 = vmatprep.subr.bf16.mxu0 0
    %8593 = vmatpush1.bf16.msra.mxu0 0
    %8594 = vmatprep.subr.bf16.mxu0 0
    %8595 = vmatpush1.bf16.msra.mxu0 0
    %8596 = vmatprep.subr.bf16.mxu0 0
    %8597 = vmatpush1.bf16.msra.mxu0 0
    %8598 = vmatprep.subr.bf16.mxu0 0
    %8599 = vmatpush1.bf16.msra.mxu0 0
    %8600 = vmatprep.subr.bf16.mxu0 0
    %8601 = vmatpush1.bf16.msra.mxu0 0
    %8602 = vmatprep.subr.bf16.mxu0 0
    %8603 = vmatpush1.bf16.msra.mxu0 0
    %8604 = vmatprep.subr.bf16.mxu0 0
    %8605 = vmatpush1.bf16.msra.mxu0 0
    %8606 = vmatprep.subr.bf16.mxu0 0
    %8607 = vmatpush1.bf16.msra.mxu0 0
    %8608 = vmatprep.subr.bf16.mxu0 0
    %8609 = vmatpush1.bf16.msra.mxu0 0
    %8610 = vmatprep.subr.bf16.mxu0 0
    %8611 = vmatpush1.bf16.msra.mxu0 0
    %8612 = vmatprep.mubr.bf16.mxu0 0
    %8613 = vmatmul.mubr.bf16.gmra.mrb[0].mxu0 %v8578
    %v8614 = vpop.f32.mrb[0].mxu0
    %v8615 = vadd.f32 0.0, %v8614
    %v8616 = vpop.f32.mrb[0].mxu0
    %v8617 = vpop.f32.mrb[0].mxu0
    %v8618 = vpop.f32.mrb[0].mxu0
    %8619 = vdwg.mxu0
    %v8621 = vsel %vm1476, %v8318, 0
    %8623 = vmatprep.subr.bf16.mxu0 0
    %8624 = vmatpush1.bf16.msra.mxu0 %v7000
    %8625 = vmatprep.subr.bf16.mxu0 0
    %8626 = vmatpush1.bf16.msra.mxu0 0
    %8627 = vmatprep.subr.bf16.mxu0 0
    %8628 = vmatpush1.bf16.msra.mxu0 0
    %8629 = vmatprep.subr.bf16.mxu0 0
    %8630 = vmatpush1.bf16.msra.mxu0 0
    %8631 = vmatprep.subr.bf16.mxu0 0
    %8632 = vmatpush1.bf16.msra.mxu0 0
    %8633 = vmatprep.subr.bf16.mxu0 0
    %8634 = vmatpush1.bf16.msra.mxu0 0
    %8635 = vmatprep.subr.bf16.mxu0 0
    %8636 = vmatpush1.bf16.msra.mxu0 0
    %8637 = vmatprep.subr.bf16.mxu0 0
    %8638 = vmatpush1.bf16.msra.mxu0 0
    %8639 = vmatprep.subr.bf16.mxu0 0
    %8640 = vmatpush1.bf16.msra.mxu0 0
    %8641 = vmatprep.subr.bf16.mxu0 0
    %8642 = vmatpush1.bf16.msra.mxu0 0
    %8643 = vmatprep.subr.bf16.mxu0 0
    %8644 = vmatpush1.bf16.msra.mxu0 0
    %8645 = vmatprep.subr.bf16.mxu0 0
    %8646 = vmatpush1.bf16.msra.mxu0 0
    %8647 = vmatprep.subr.bf16.mxu0 0
    %8648 = vmatpush1.bf16.msra.mxu0 0
    %8649 = vmatprep.subr.bf16.mxu0 0
    %8650 = vmatpush1.bf16.msra.mxu0 0
    %8651 = vmatprep.subr.bf16.mxu0 0
    %8652 = vmatpush1.bf16.msra.mxu0 0
    %8653 = vmatprep.subr.bf16.mxu0 0
    %8654 = vmatpush1.bf16.msra.mxu0 0
    %8655 = vmatprep.mubr.bf16.mxu0 0
    %8656 = vmatmul.mubr.bf16.gmra.mrb[0].mxu0 %v8621
    %v8657 = vpop.f32.mrb[0].mxu0
    %v8658 = vadd.f32 0.0, %v8657
    %v8659 = vpop.f32.mrb[0].mxu0
    %v8660 = vpop.f32.mrb[0].mxu0
    %v8661 = vpop.f32.mrb[0].mxu0
    %8662 = vdwg.mxu0
    %v8663 = vsel %vm2725, %v8357, 0.0
    %v8664 = vsel %vm2725, %v8400, 0.0
    %v8665 = vadd.f32 %v8663, %v8664
    %v8666 = vsel %vm2725, %v8443, 0.0
    %v8667 = vadd.f32 %v8665, %v8666
    %v8668 = vsel %vm2725, %v8486, 0.0
    %v8669 = vadd.f32 %v8667, %v8668
    %v8670 = vsel %vm2725, %v8529, 0.0
    %v8671 = vadd.f32 %v8669, %v8670
    %v8672 = vsel %vm2725, %v8572, 0.0
    %v8673 = vadd.f32 %v8671, %v8672
    %v8674 = vsel %vm2725, %v8615, 0.0
    %v8675 = vadd.f32 %v8673, %v8674
    %v8676 = vsel %vm2725, %v8658, 0.0
    %v8677 = vadd.f32 %v8675, %v8676
    %v8678 = vadd.f32 %v8677, %v7063
    %v8679 = vpack.c.bf16 %v8678, %v8678
    %v8681 = vsel %vm166, %v8679, 0
    %8683 = vmatprep.subr.bf16.mxu0 0
    %8684 = vmatpush1.bf16.msra.mxu0 %v8681
    %8685 = vmatprep.subr.bf16.mxu0 0
    %8686 = vmatpush1.bf16.msra.mxu0 0
    %8687 = vmatprep.subr.bf16.mxu0 0
    %8688 = vmatpush1.bf16.msra.mxu0 0
    %8689 = vmatprep.subr.bf16.mxu0 0
    %8690 = vmatpush1.bf16.msra.mxu0 0
    %8691 = vmatprep.subr.bf16.mxu0 0
    %8692 = vmatpush1.bf16.msra.mxu0 0
    %8693 = vmatprep.subr.bf16.mxu0 0
    %8694 = vmatpush1.bf16.msra.mxu0 0
    %8695 = vmatprep.subr.bf16.mxu0 0
    %8696 = vmatpush1.bf16.msra.mxu0 0
    %8697 = vmatprep.subr.bf16.mxu0 0
    %8698 = vmatpush1.bf16.msra.mxu0 0
    %8699 = vmatprep.subr.bf16.mxu0 0
    %8700 = vmatpush1.bf16.msra.mxu0 0
    %8701 = vmatprep.subr.bf16.mxu0 0
    %8702 = vmatpush1.bf16.msra.mxu0 0
    %8703 = vmatprep.subr.bf16.mxu0 0
    %8704 = vmatpush1.bf16.msra.mxu0 0
    %8705 = vmatprep.subr.bf16.mxu0 0
    %8706 = vmatpush1.bf16.msra.mxu0 0
    %8707 = vmatprep.subr.bf16.mxu0 0
    %8708 = vmatpush1.bf16.msra.mxu0 0
    %8709 = vmatprep.subr.bf16.mxu0 0
    %8710 = vmatpush1.bf16.msra.mxu0 0
    %8711 = vmatprep.subr.bf16.mxu0 0
    %8712 = vmatpush1.bf16.msra.mxu0 0
    %8713 = vmatprep.subr.bf16.mxu0 0
    %8714 = vmatpush1.bf16.msra.mxu0 0
    %8715 = vmatprep.mubr.bf16.mxu0 0
    %8716 = vmatmul.mubr.bf16.gmra.mrb[0].mxu0 %v4393
    %v8717 = vpop.f32.mrb[0].mxu0
    %v8718 = vadd.f32 0.0, %v8717
    %v8719 = vpop.f32.mrb[0].mxu0
    %v8720 = vpop.f32.mrb[0].mxu0
    %v8721 = vadd.f32 0.0, %v8720
    %v8722 = vpop.f32.mrb[0].mxu0
    %8723 = vdwg.mxu0
    %v8725 = vsel %vm166, %v7066, 0
    %8727 = vmatprep.subr.bf16.mxu0 0
    %8728 = vmatpush1.bf16.msra.mxu0 %v8725
    %8729 = vmatprep.subr.bf16.mxu0 0
    %8730 = vmatpush1.bf16.msra.mxu0 0
    %8731 = vmatprep.subr.bf16.mxu0 0
    %8732 = vmatpush1.bf16.msra.mxu0 0
    %8733 = vmatprep.subr.bf16.mxu0 0
    %8734 = vmatpush1.bf16.msra.mxu0 0
    %8735 = vmatprep.subr.bf16.mxu0 0
    %8736 = vmatpush1.bf16.msra.mxu0 0
    %8737 = vmatprep.subr.bf16.mxu0 0
    %8738 = vmatpush1.bf16.msra.mxu0 0
    %8739 = vmatprep.subr.bf16.mxu0 0
    %8740 = vmatpush1.bf16.msra.mxu0 0
    %8741 = vmatprep.subr.bf16.mxu0 0
    %8742 = vmatpush1.bf16.msra.mxu0 0
    %8743 = vmatprep.subr.bf16.mxu0 0
    %8744 = vmatpush1.bf16.msra.mxu0 0
    %8745 = vmatprep.subr.bf16.mxu0 0
    %8746 = vmatpush1.bf16.msra.mxu0 0
    %8747 = vmatprep.subr.bf16.mxu0 0
    %8748 = vmatpush1.bf16.msra.mxu0 0
    %8749 = vmatprep.subr.bf16.mxu0 0
    %8750 = vmatpush1.bf16.msra.mxu0 0
    %8751 = vmatprep.subr.bf16.mxu0 0
    %8752 = vmatpush1.bf16.msra.mxu0 0
    %8753 = vmatprep.subr.bf16.mxu0 0
    %8754 = vmatpush1.bf16.msra.mxu0 0
    %8755 = vmatprep.subr.bf16.mxu0 0
    %8756 = vmatpush1.bf16.msra.mxu0 0
    %8757 = vmatprep.subr.bf16.mxu0 0
    %8758 = vmatpush1.bf16.msra.mxu0 0
    %8759 = vmatprep.mubr.bf16.mxu0 0
    %8760 = vmatmul.mubr.bf16.gmra.mrb[0].mxu0 %v4456
    %v8761 = vpop.f32.mrb[0].mxu0
    %v8762 = vadd.f32 %v8718, %v8761
    %v8763 = vpop.f32.mrb[0].mxu0
    %v8764 = vpop.f32.mrb[0].mxu0
    %v8765 = vadd.f32 %v8721, %v8764
    %v8766 = vpop.f32.mrb[0].mxu0
    %8767 = vdwg.mxu0
    %v8768 = vadd.f32 %v8762, %v4696
    %v8769 = vadd.f32 %v8765, %v4697
    %s8770 = scalar_lea.vmem %s51, 1
    %v8771 = vld [vmem:[%s8770] sm:$0x1]
    %v8773 = vlaneseq
    %v8774 = vshrl.u32 %v8773, 7
    %v8775 = vsub.s32 0, %v8774
    %v8776 = vrot.slane %v8771, %v8775
    %v8778 = vmul.f32 %v8768, %v8776
    %v8779 = vmul.f32 %v8769, %v8776
    %s8780 = scalar_lea.vmem %s53, 1
    %v8781 = vld [vmem:[%s8780] sm:$0x1]
    %v8783 = vlaneseq
    %v8784 = vshrl.u32 %v8783, 7
    %v8785 = vsub.s32 0, %v8784
    %v8786 = vrot.slane %v8781, %v8785
    %v8788 = vadd.f32 %v8778, %v8786
    %v8789 = vadd.f32 %v8779, %v8786
    %v8790 = vadd.f32 %v5223, %v8788
    %v8791 = vadd.f32 %v5224, %v8789
    %v8792 = vpack.c.bf16 %v8791, %v8790
    %s8793 = scalar_lea.vmem %s55, 16
    %v8794 = vld [vmem:[%s8793] sm:$0xf]
    %v8795 = vld [vmem:[%s8793 + $0x4] sm:$0xf]
    %v8796 = vld [vmem:[%s8793 + $0x8] sm:$0xf]
    %v8797 = vld [vmem:[%s8793 + $0xc] sm:$0xf]
    %s8798 = scalar_lea.vmem %s57, 1
    %v8799 = vld [vmem:[%s8798] sm:$0x1]
    %v8801 = vlaneseq
    %v8802 = vshrl.u32 %v8801, 7
    %v8803 = vsub.s32 0, %v8802
    %v8804 = vrot.slane %v8799, %v8803
    %v8810 = vunpack.c.l.b16 %v8794
    %v8811 = vunpack.c.l.b16 %v8795
    %v8812 = vunpack.c.l.b16 %v8796
    %v8813 = vunpack.c.l.b16 %v8797
    %v8814 = vpack.c.b16 %v8811, %v8810
    %v8815 = vpack.c.b16 %v8813, %v8812
    %v8819 = vsel %vm331, %v8792, 0
    %8821 = vmatprep.subr.bf16.mxu0 0
    %8822 = vmatpush1.bf16.msra.mxu0 %v8814
    %8823 = vmatprep.subr.bf16.mxu0 0
    %8824 = vmatpush1.bf16.msra.mxu0 %v8815
    %8825 = vmatprep.subr.bf16.mxu0 0
    %8826 = vmatpush1.bf16.msra.mxu0 0
    %8827 = vmatprep.subr.bf16.mxu0 0
    %8828 = vmatpush1.bf16.msra.mxu0 0
    %8829 = vmatprep.subr.bf16.mxu0 0
    %8830 = vmatpush1.bf16.msra.mxu0 0
    %8831 = vmatprep.subr.bf16.mxu0 0
    %8832 = vmatpush1.bf16.msra.mxu0 0
    %8833 = vmatprep.subr.bf16.mxu0 0
    %8834 = vmatpush1.bf16.msra.mxu0 0
    %8835 = vmatprep.subr.bf16.mxu0 0
    %8836 = vmatpush1.bf16.msra.mxu0 0
    %8837 = vmatprep.subr.bf16.mxu0 0
    %8838 = vmatpush1.bf16.msra.mxu0 0
    %8839 = vmatprep.subr.bf16.mxu0 0
    %8840 = vmatpush1.bf16.msra.mxu0 0
    %8841 = vmatprep.subr.bf16.mxu0 0
    %8842 = vmatpush1.bf16.msra.mxu0 0
    %8843 = vmatprep.subr.bf16.mxu0 0
    %8844 = vmatpush1.bf16.msra.mxu0 0
    %8845 = vmatprep.subr.bf16.mxu0 0
    %8846 = vmatpush1.bf16.msra.mxu0 0
    %8847 = vmatprep.subr.bf16.mxu0 0
    %8848 = vmatpush1.bf16.msra.mxu0 0
    %8849 = vmatprep.subr.bf16.mxu0 0
    %8850 = vmatpush1.bf16.msra.mxu0 0
    %8851 = vmatprep.subr.bf16.mxu0 0
    %8852 = vmatpush1.bf16.msra.mxu0 0
    %8853 = vmatprep.mubr.bf16.mxu0 0
    %8854 = vmatmul.mubr.bf16.gmra.mrb[0].mxu0 %v8819
    %v8855 = vpop.f32.mrb[0].mxu0
    %v8856 = vadd.f32 %v8804, %v8855
    %v8857 = vpop.f32.mrb[0].mxu0
    %v8858 = vpop.f32.mrb[0].mxu0
    %v8859 = vadd.f32 %v8804, %v8858
    %v8860 = vpop.f32.mrb[0].mxu0
    %8861 = vdwg.mxu0
    %v8862 = vmax.f32 %v8856, 0.0
    %v8863 = vmax.f32 %v8859, 0.0
    %v8864 = vpack.c.bf16 %v8863, %v8862
    %s8865 = scalar_lea.vmem %s59, 32
    %v8866 = vld [vmem:[%s8865] sm:$0xf]
    %v8867 = vld [vmem:[%s8865 + $0x4] sm:$0xf]
    %v8868 = vld [vmem:[%s8865 + $0x8] sm:$0xf]
    %v8869 = vld [vmem:[%s8865 + $0xc] sm:$0xf]
    %v8870 = vld [vmem:[%s8865 + $0x10] sm:$0xf]
    %v8871 = vld [vmem:[%s8865 + $0x14] sm:$0xf]
    %v8872 = vld [vmem:[%s8865 + $0x18] sm:$0xf]
    %v8873 = vld [vmem:[%s8865 + $0x1c] sm:$0xf]
    %s8874 = scalar_lea.vmem %s61, 1
    %v8875 = vld [vmem:[%s8874] sm:$0x1]
    %v8877 = vlaneseq
    %v8878 = vshrl.u32 %v8877, 7
    %v8879 = vsub.s32 0, %v8878
    %v8880 = vrot.slane %v8875, %v8879
    %v8890 = vunpack.c.l.b16 %v8866
    %v8891 = vunpack.c.l.b16 %v8867
    %v8892 = vunpack.c.l.b16 %v8868
    %v8893 = vunpack.c.l.b16 %v8869
    %v8894 = vunpack.c.l.b16 %v8870
    %v8895 = vunpack.c.l.b16 %v8871
    %v8896 = vunpack.c.l.b16 %v8872
    %v8897 = vunpack.c.l.b16 %v8873
    %v8898 = vpack.c.b16 %v8891, %v8890
    %v8899 = vpack.c.b16 %v8893, %v8892
    %v8900 = vpack.c.b16 %v8895, %v8894
    %v8901 = vpack.c.b16 %v8897, %v8896
    %v8907 = vsel %vm257, %v8864, 0
    %8909 = vmatprep.subr.bf16.mxu0 0
    %8910 = vmatpush1.bf16.msra.mxu0 %v8898
    %8911 = vmatprep.subr.bf16.mxu0 0
    %8912 = vmatpush1.bf16.msra.mxu0 %v8899
    %8913 = vmatprep.subr.bf16.mxu0 0
    %8914 = vmatpush1.bf16.msra.mxu0 %v8900
    %8915 = vmatprep.subr.bf16.mxu0 0
    %8916 = vmatpush1.bf16.msra.mxu0 %v8901
    %8917 = vmatprep.subr.bf16.mxu0 0
    %8918 = vmatpush1.bf16.msra.mxu0 0
    %8919 = vmatprep.subr.bf16.mxu0 0
    %8920 = vmatpush1.bf16.msra.mxu0 0
    %8921 = vmatprep.subr.bf16.mxu0 0
    %8922 = vmatpush1.bf16.msra.mxu0 0
    %8923 = vmatprep.subr.bf16.mxu0 0
    %8924 = vmatpush1.bf16.msra.mxu0 0
    %8925 = vmatprep.subr.bf16.mxu0 0
    %8926 = vmatpush1.bf16.msra.mxu0 0
    %8927 = vmatprep.subr.bf16.mxu0 0
    %8928 = vmatpush1.bf16.msra.mxu0 0
    %8929 = vmatprep.subr.bf16.mxu0 0
    %8930 = vmatpush1.bf16.msra.mxu0 0
    %8931 = vmatprep.subr.bf16.mxu0 0
    %8932 = vmatpush1.bf16.msra.mxu0 0
    %8933 = vmatprep.subr.bf16.mxu0 0
    %8934 = vmatpush1.bf16.msra.mxu0 0
    %8935 = vmatprep.subr.bf16.mxu0 0
    %8936 = vmatpush1.bf16.msra.mxu0 0
    %8937 = vmatprep.subr.bf16.mxu0 0
    %8938 = vmatpush1.bf16.msra.mxu0 0
    %8939 = vmatprep.subr.bf16.mxu0 0
    %8940 = vmatpush1.bf16.msra.mxu0 0
    %8941 = vmatprep.mubr.bf16.mxu0 0
    %8942 = vmatmul.mubr.bf16.gmra.mrb[0].mxu0 %v8907
    %v8943 = vpop.f32.mrb[0].mxu0
    %v8944 = vadd.f32 %v8880, %v8943
    %v8945 = vpop.f32.mrb[0].mxu0
    %v8946 = vpop.f32.mrb[0].mxu0
    %v8947 = vadd.f32 %v8880, %v8946
    %v8948 = vpop.f32.mrb[0].mxu0
    %8949 = vdwg.mxu0
    %v8950 = vadd.f32 %v8790, %v8944
    %v8951 = vadd.f32 %v8791, %v8947
    %s8952 = scalar_lea.vmem %s63, 1
    %v8953 = vld [vmem:[%s8952] sm:$0x1]
    %v8955 = vlaneseq
    %v8956 = vshrl.u32 %v8955, 7
    %v8957 = vsub.s32 0, %v8956
    %v8958 = vrot.slane %v8953, %v8957
    %v8960 = vmul.f32 %v8950, %v8958
    %v8961 = vmul.f32 %v8951, %v8958
    %s8962 = scalar_lea.vmem %s65, 1
    %v8963 = vld [vmem:[%s8962] sm:$0x1]
    %v8965 = vlaneseq
    %v8966 = vshrl.u32 %v8965, 7
    %v8967 = vsub.s32 0, %v8966
    %v8968 = vrot.slane %v8963, %v8967
    %v8970 = vadd.f32 %v8960, %v8968
    %v8971 = vadd.f32 %v8961, %v8968
    %v8972 = vld [vmem:[%s13] sm:$0x1]
    %v8973 = vpack.c.bf16 %v8971, %v8970
    %v8975 = vsel %vm654, %v8972, 0
    %v8978 = vsel %vm661, %v8973, 0
    %8980 = vmatprep.subr.bf16.mxu0 0
    %8981 = vmatpush1.bf16.msra.mxu0 %v8978
    %8982 = vmatprep.subr.bf16.mxu0 0
    %8983 = vmatpush1.bf16.msra.mxu0 0
    %8984 = vmatprep.subr.bf16.mxu0 0
    %8985 = vmatpush1.bf16.msra.mxu0 0
    %8986 = vmatprep.subr.bf16.mxu0 0
    %8987 = vmatpush1.bf16.msra.mxu0 0
    %8988 = vmatprep.subr.bf16.mxu0 0
    %8989 = vmatpush1.bf16.msra.mxu0 0
    %8990 = vmatprep.subr.bf16.mxu0 0
    %8991 = vmatpush1.bf16.msra.mxu0 0
    %8992 = vmatprep.subr.bf16.mxu0 0
    %8993 = vmatpush1.bf16.msra.mxu0 0
    %8994 = vmatprep.subr.bf16.mxu0 0
    %8995 = vmatpush1.bf16.msra.mxu0 0
    %8996 = vmatprep.subr.bf16.mxu0 0
    %8997 = vmatpush1.bf16.msra.mxu0 0
    %8998 = vmatprep.subr.bf16.mxu0 0
    %8999 = vmatpush1.bf16.msra.mxu0 0
    %9000 = vmatprep.subr.bf16.mxu0 0
    %9001 = vmatpush1.bf16.msra.mxu0 0
    %9002 = vmatprep.subr.bf16.mxu0 0
    %9003 = vmatpush1.bf16.msra.mxu0 0
    %9004 = vmatprep.subr.bf16.mxu0 0
    %9005 = vmatpush1.bf16.msra.mxu0 0
    %9006 = vmatprep.subr.bf16.mxu0 0
    %9007 = vmatpush1.bf16.msra.mxu0 0
    %9008 = vmatprep.subr.bf16.mxu0 0
    %9009 = vmatpush1.bf16.msra.mxu0 0
    %9010 = vmatprep.subr.bf16.mxu0 0
    %9011 = vmatpush1.bf16.msra.mxu0 0
    %9012 = vmatprep.mubr.bf16.mxu0 0
    %9013 = vmatmul.mubr.bf16.gmra.mrb[0].mxu0 %v8975
    %v9014 = vpop.f32.mrb[0].mxu0
    %v9015 = vadd.f32 0.0, %v9014
    %v9016 = vpop.f32.mrb[0].mxu0
    %v9017 = vpop.f32.mrb[0].mxu0
    %v9018 = vpop.f32.mrb[0].mxu0
    %9019 = vdwg.mxu0
    %v9020 = vld [vmem:[%s15] sm:$0x3]
    %9022 = vset.pattern.permute.xlu0 0
    %9023 = vperm.xlu0 %9022, %v9020
    %v9024 = vpop.permute.xlu0 %9023
    %v9026 = vmul.f32 %v9015, %v9024
    %vm9027 = vcmask 254976
    %9028 = vst.msk [vmem:[#allocation2] sm:$0x3] %vm9027, %v9026
    // Predicated region
    $region134: #{tpu_custom_call.1} parent=1 // pred_check
      _
    $region135: #{tpu_custom_call.1} parent=1 // pred_check_branch
      %9030 = sbr.rel (0) target = $region137
    $region136: #{tpu_custom_call.1} parent=1 // pred_region
      %s9032 = ssub.s32 32, 32
      %9033 = vsyncadd [#allocation3], %s9032
      %s9035 = sshll.u32 [#allocation2], 4
      %s9036 = int_to_ptr.vmem [resolvable:$true] %s9035
      %9038 = dma.vmem_to_hbm [thread:$0]  %s9036, 32, %s67, [#allocation3]
    $region137: #{tpu_custom_call.1} parent=1 // pred_fallthru
      _
    // Predicated region
    $region138: #{tpu_custom_call.1} parent=1 // pred_check
      _
    $region139: #{tpu_custom_call.1} parent=1 // pred_check_branch
      %9040 = sbr.rel (0) target = $region141
    $region140: #{tpu_custom_call.1} parent=1 // pred_region
      %9041 = dma.done [#allocation3], 32
    $region141: #{tpu_custom_call.1} parent=1 // pred_fallthru
      _
    %9042 = vsyncpa [#allocation3], 1

</llo_original>
